<compile_context>
chip_gen: v6e
topology: v6e:2x2x1
jax: 0.10.0
libtpu: 0.0.40
codegen_flags: <defaults>
</compile_context>

<pallas_src>
import jax
import jax.numpy as jnp
from jax.experimental import pallas as pl
from jax.experimental.pallas import tpu as pltpu

# ----------------------- model hyperparameters (small) ----------------------
B = 2             # batch
S = 8             # max_len (stand-in for 150)
VOCAB = 64
H = 128           # hidden size (stand-in for 768; multiple of 128 -> lane-dense)
NUM_HEADS = 2
DH = H // NUM_HEADS
FFN = 256         # stand-in for 3072
NUM_LAYERS = 2
NUM_LABELS = 2    # XLNetForSequenceClassification default num_labels
VEC_W = max(3 * H, FFN)   # width of the packed per-layer small-vector tensor


# ------------------------------ in-kernel helpers -----------------------------
def _layernorm(x, gamma, beta, eps=1e-12):
    """f32 layernorm over the last (feature) axis."""
    mean = jnp.mean(x, axis=-1, keepdims=True)
    var = jnp.mean((x - mean) ** 2, axis=-1, keepdims=True)
    return (x - mean) * jax.lax.rsqrt(var + eps) * gamma + beta


def _dot_bf16(a_f32, w_bf16):
    """bf16 MXU matmul (weights already stored bf16) with f32 accumulation."""
    return jnp.dot(a_f32.astype(jnp.bfloat16), w_bf16,
                   preferred_element_type=jnp.float32)


# ----------------- fused encoder + head kernel (one grid step = one layer) ----
def _encoder_kernel(x_in_ref, bias_ref, onehot_ref,
                    wqkv_ref, wo_ref, w1_ref, w2_ref, vec_ref,
                    summ_w_ref, summ_b_ref, cls_w_ref, cls_b_ref,
                    logits_ref, nll_ref,
                    x_scr):
    layer = pl.program_id(1)

    @pl.when(layer == 0)
    def _():
        x_scr[...] = x_in_ref[...]            # load embeddings for this batch elem

    x = x_scr[...]                            # (S, H) f32, VMEM-resident carry

    # Packed per-layer small vectors (ONE DMA per layer instead of eight).
    # rows: 0=bqkv 1=bo 2=b1 3=b2 4=ln1_g 5=ln1_b 6=ln2_g 7=ln2_b
    bqkv = vec_ref[0:1, 0:3 * H]
    bo = vec_ref[1:2, 0:H]
    b1 = vec_ref[2:3, 0:FFN]
    b2 = vec_ref[3:4, 0:H]
    ln1g = vec_ref[4:5, 0:H]
    ln1b = vec_ref[5:6, 0:H]
    ln2g = vec_ref[6:7, 0:H]
    ln2b = vec_ref[7:8, 0:H]

    # ---- packed QKV projection (1/sqrt(dh) folded into Wq at init) ----
    qkv = _dot_bf16(x, wqkv_ref[...]) + bqkv                      # (S, 3H) f32

    # ---- multi-head self-attention via einsum over a head axis ----
    # Lane-aligned slices (offsets 0, H, 2H are multiples of 128); no concatenates.
    q = qkv[:, 0:H].reshape(S, NUM_HEADS, DH).astype(jnp.bfloat16)
    k = qkv[:, H:2 * H].reshape(S, NUM_HEADS, DH).astype(jnp.bfloat16)
    v = qkv[:, 2 * H:3 * H].reshape(S, NUM_HEADS, DH).astype(jnp.bfloat16)

    s = jnp.einsum('qhd,khd->hqk', q, k,
                   preferred_element_type=jnp.float32)            # (NH, S, S)
    s = s + bias_ref[...]                    # (1,S) key-mask bias, broadcast once
    m = jnp.max(s, axis=-1, keepdims=True)
    p = jnp.exp(s - m)
    p = p * pl.reciprocal(jnp.sum(p, axis=-1, keepdims=True), approx=True)
    ctx = jnp.einsum('hqk,khd->qhd', p.astype(jnp.bfloat16), v,
                     preferred_element_type=jnp.float32)          # (S, NH, DH)
    ctx = ctx.reshape(S, H)

    # ---- output projection + residual + LN ----
    ctx = _dot_bf16(ctx, wo_ref[...]) + bo
    x = _layernorm(x + ctx, ln1g, ln1b)

    # ---- feed-forward (gelu) + residual + LN ----
    ff = _dot_bf16(x, w1_ref[...]) + b1
    ff = jax.nn.gelu(ff)          # TODO(synk): tanh-approx gelu (HF XLNet uses erf)
    ff = _dot_bf16(ff, w2_ref[...]) + b2
    x = _layernorm(x + ff, ln2g, ln2b)

    x_scr[...] = x

    # ---- fused head on the final layer: summary + classifier + cross-entropy ----
    @pl.when(layer == NUM_LAYERS - 1)
    def _():
        # XLNet sequence summary 'last': left padding guarantees the last
        # position is a real token -> static last-row slice, no gather needed.
        h_last = x[S - 1:S, :]                                      # (1, H)
        summ = jnp.tanh(_dot_bf16(h_last, summ_w_ref[...]) + summ_b_ref[...])
        logits = _dot_bf16(summ, cls_w_ref[...]) + cls_b_ref[...]   # (1, C)
        logits_ref[...] = logits

        # per-example negative log-likelihood (exact division; tiny)
        mm = jnp.max(logits, axis=-1, keepdims=True)
        lse = jnp.log(jnp.sum(jnp.exp(logits - mm), axis=-1, keepdims=True)) + mm
        nll_ref[...] = -jnp.sum((logits - lse) * onehot_ref[...],
                                axis=-1, keepdims=True)


# --------------------------------- parameters --------------------------------
def init_params(key):
    def nrm(k, shape, scale=0.02):
        return scale * jax.random.normal(k, shape, dtype=jnp.float32)

    keys = iter(jax.random.split(key, 4 + 6 * NUM_LAYERS))
    params = {
        "word_emb": nrm(next(keys), (VOCAB, H)),
        "pos_emb": nrm(next(keys), (S, H)),
        # large weights stored in bf16 (halves HBM->VMEM DMA bytes + VMEM footprint)
        "summ_w": nrm(next(keys), (H, H)).astype(jnp.bfloat16),
        "summ_b": jnp.zeros((1, H), jnp.float32),
        "cls_w": nrm(next(keys), (H, NUM_LABELS)).astype(jnp.bfloat16),
        "cls_b": jnp.zeros((1, NUM_LABELS), jnp.float32),
    }

    inv_sqrt_dh = 1.0 / (DH ** 0.5)
    wqkv, wo, w1, w2 = [], [], [], []
    for _ in range(NUM_LAYERS):
        wq = nrm(next(keys), (H, H)) * inv_sqrt_dh   # fold 1/sqrt(dh) into Wq
        wk = nrm(next(keys), (H, H))
        wv = nrm(next(keys), (H, H))
        wqkv.append(jnp.concatenate([wq, wk, wv], axis=1))   # (H, 3H)
        wo.append(nrm(next(keys), (H, H)))
        w1.append(nrm(next(keys), (H, FFN)))
        w2.append(nrm(next(keys), (FFN, H)))

    L = NUM_LAYERS
    # Pack the 8 small per-layer vectors into one (L, 8, VEC_W) tensor.
    # rows: 0=bqkv 1=bo 2=b1 3=b2 4=ln1_g 5=ln1_b 6=ln2_g 7=ln2_b   (biases = 0)
    vec = jnp.zeros((L, 8, VEC_W), jnp.float32)
    vec = vec.at[:, 4, 0:H].set(1.0)   # ln1 gamma
    vec = vec.at[:, 6, 0:H].set(1.0)   # ln2 gamma

    params.update({
        "wqkv": jnp.stack(wqkv).astype(jnp.bfloat16),   # (L, H, 3H) bf16
        "wo": jnp.stack(wo).astype(jnp.bfloat16),       # (L, H, H)  bf16
        "w1": jnp.stack(w1).astype(jnp.bfloat16),       # (L, H, FFN) bf16
        "w2": jnp.stack(w2).astype(jnp.bfloat16),       # (L, FFN, H) bf16
        "vec": vec,                                     # (L, 8, VEC_W) f32
    })
    return params


# --------------------------------- forward -----------------------------------
def corona_classifier_forward(params, input_ids, attention_mask, labels):
    """Returns (loss, logits) — mirrors CoronaClassifier.forward."""
    bsz, seq = input_ids.shape

    # Embedding gather + absolute position embedding (glue in plain JAX).
    # TODO(synk): data-dependent embedding row gather stays in the JAX wrapper.
    x_in = (params["word_emb"][input_ids]
            + params["pos_emb"][None, :seq, :]).astype(jnp.float32)   # (B, S, H)

    # Additive key-mask bias: 0 for real tokens, -1e9 for pads.  (B, 1, S)
    mask_bias = ((1.0 - attention_mask.astype(jnp.float32)) * -1e9)[:, None, :]
    onehot = jax.nn.one_hot(labels, NUM_LABELS, dtype=jnp.float32)[:, None, :]

    per_layer = lambda shape: pl.BlockSpec((None,) + shape, lambda b, l: (l, 0, 0))
    per_batch = lambda shape: pl.BlockSpec((None,) + shape, lambda b, l: (b, 0, 0))
    const = lambda shape: pl.BlockSpec(shape, lambda b, l: (0, 0))

    logits, nll = pl.pallas_call(
        _encoder_kernel,
        out_shape=(jax.ShapeDtypeStruct((bsz, 1, NUM_LABELS), jnp.float32),
                   jax.ShapeDtypeStruct((bsz, 1, 1), jnp.float32)),
        grid=(bsz, NUM_LAYERS),
        in_specs=[
            per_batch((S, H)),              # embeddings (read only at layer 0)
            per_batch((1, S)),              # additive key-mask bias
            per_batch((1, NUM_LABELS)),     # one-hot labels
            per_layer((H, 3 * H)),          # packed Wqkv (bf16)
            per_layer((H, H)),              # Wo (bf16)
            per_layer((H, FFN)),            # W1 (bf16)
            per_layer((FFN, H)),            # W2 (bf16)
            per_layer((8, VEC_W)),          # packed biases + LN params
            const((H, H)),                  # summary proj W (bf16)
            const((1, H)),                  # summary proj b
            const((H, NUM_LABELS)),         # classifier W (bf16)
            const((1, NUM_LABELS)),         # classifier b
        ],
        out_specs=(per_batch((1, NUM_LABELS)),   # logits (written at last layer)
                   per_batch((1, 1))),           # per-example NLL
        scratch_shapes=[pltpu.VMEM((S, H), jnp.float32)],   # activation carry
        compiler_params=pltpu.CompilerParams(
            dimension_semantics=("parallel", "arbitrary"),   # batch || , layers seq
            # Explicit VMEM budget; safe on v7x (64 MiB) and v5e/v6e.  Re-derive
            # at real XLNet dims (bf16 weights ~14 MB/layer double-buffered).
            vmem_limit_bytes=48 * 1024 * 1024),
    )(x_in, mask_bias, onehot,
      params["wqkv"], params["wo"], params["w1"], params["w2"], params["vec"],
      params["summ_w"], params["summ_b"], params["cls_w"], params["cls_b"])

    loss = jnp.mean(nll)                       # mean cross-entropy over batch
    return loss, logits.reshape(bsz, NUM_LABELS)


# ----------------------------------- main -------------------------------------
if __name__ == "__main__":
    key = jax.random.PRNGKey(0)
    k_ids, k_lbl, k_par = jax.random.split(key, 3)

    # Synthetic output of tokenizer.encode_batch(batch).  XLNet's tokenizer
    # LEFT-pads, so the last position (used by the 'last' sequence summary)
    # is always a real token: pad the *front* of batch element 1.
    input_ids = jax.random.randint(k_ids, (B, S), 0, VOCAB, dtype=jnp.int32)
    attention_mask = jnp.ones((B, S), dtype=jnp.int32).at[1, :2].set(0)
    labels = jax.random.randint(k_lbl, (B,), 0, NUM_LABELS, dtype=jnp.int32)

    params = init_params(k_par)

    fwd = jax.jit(corona_classifier_forward)
    loss, logits = fwd(params, input_ids, attention_mask, labels)
    jax.block_until_ready((loss, logits))

    assert logits.shape == (B, NUM_LABELS)
    assert loss.shape == ()
    assert bool(jnp.isfinite(loss))
    print("KERNEL_OK")
</pallas_src>

<mosaic_0001>
module attributes {stable_mosaic.version = 11 : i64} {
  func.func @_encoder_kernel(%arg0: i32, %arg1: i32, %arg2: memref<1x8x128xf32, #tpu.memory_space<vmem>>, %arg3: memref<1x1x8xf32, #tpu.memory_space<vmem>>, %arg4: memref<1x1x2xf32, #tpu.memory_space<vmem>>, %arg5: memref<1x128x384xbf16, #tpu.memory_space<vmem>>, %arg6: memref<1x128x128xbf16, #tpu.memory_space<vmem>>, %arg7: memref<1x128x256xbf16, #tpu.memory_space<vmem>>, %arg8: memref<1x256x128xbf16, #tpu.memory_space<vmem>>, %arg9: memref<1x8x384xf32, #tpu.memory_space<vmem>>, %arg10: memref<128x128xbf16, #tpu.memory_space<vmem>>, %arg11: memref<1x128xf32, #tpu.memory_space<vmem>>, %arg12: memref<128x2xbf16, #tpu.memory_space<vmem>>, %arg13: memref<1x2xf32, #tpu.memory_space<vmem>>, %arg14: memref<1x1x2xf32, #tpu.memory_space<vmem>>, %arg15: memref<1x1x1xf32, #tpu.memory_space<vmem>>, %arg16: memref<8x128xf32, #tpu.memory_space<vmem>>) attributes {dimension_semantics = [#tpu.dimension_semantics<parallel>, #tpu.dimension_semantics<arbitrary>], iteration_bounds = array<i64: 2, 2>, scalar_prefetch = 0 : i64, scratch_operands = 1 : i64, tpu.core_type = #tpu.core_type<tc>, window_params = [{transform_indices = @transform_0, window_bounds = array<i64: 1, 8, 128>}, {transform_indices = @transform_1, window_bounds = array<i64: 1, 1, 8>}, {transform_indices = @transform_2, window_bounds = array<i64: 1, 1, 2>}, {transform_indices = @transform_3, window_bounds = array<i64: 1, 128, 384>}, {transform_indices = @transform_4, window_bounds = array<i64: 1, 128, 128>}, {transform_indices = @transform_5, window_bounds = array<i64: 1, 128, 256>}, {transform_indices = @transform_6, window_bounds = array<i64: 1, 256, 128>}, {transform_indices = @transform_7, window_bounds = array<i64: 1, 8, 384>}, {pipeline_mode = #tpu.pipeline_mode<synchronous>, transform_indices = @transform_8, window_bounds = array<i64: 128, 128>}, {pipeline_mode = #tpu.pipeline_mode<synchronous>, transform_indices = @transform_9, window_bounds = array<i64: 1, 128>}, {pipeline_mode = #tpu.pipeline_mode<synchronous>, transform_indices = @transform_10, window_bounds = array<i64: 128, 2>}, {pipeline_mode = #tpu.pipeline_mode<synchronous>, transform_indices = @transform_11, window_bounds = array<i64: 1, 2>}, {transform_indices = @transform_12, window_bounds = array<i64: 1, 1, 2>}, {transform_indices = @transform_13, window_bounds = array<i64: 1, 1, 1>}]} {
    %c0_i32 = arith.constant 0 : i32
    %0 = arith.cmpi eq, %arg1, %c0_i32 : i32
    %1 = arith.extui %0 : i1 to i32
    %c0_i32_0 = arith.constant 0 : i32
    %2 = arith.cmpi ne, %1, %c0_i32_0 : i32
    scf.if %2 {
      %c0_58 = arith.constant 0 : index
      %c0_59 = arith.constant 0 : index
      %c0_60 = arith.constant 0 : index
      %136 = vector.load %arg2[%c0_58, %c0_59, %c0_60] : memref<1x8x128xf32, #tpu.memory_space<vmem>>, vector<1x8x128xf32>
      %137 = vector.shape_cast %136 : vector<1x8x128xf32> to vector<8x128xf32>
      %c0_61 = arith.constant 0 : index
      %c0_62 = arith.constant 0 : index
      %138 = vector.load %arg16[%c0_61, %c0_62] : memref<8x128xf32, #tpu.memory_space<vmem>>, vector<8x128xf32>
      tpu.vector_store %arg16[%c0_61, %c0_62], %137 {strides = array<i32>} : memref<8x128xf32, #tpu.memory_space<vmem>>, vector<8x128xf32>,
    } else {
    }
    %c0 = arith.constant 0 : index
    %c0_1 = arith.constant 0 : index
    %3 = vector.load %arg16[%c0, %c0_1] : memref<8x128xf32, #tpu.memory_space<vmem>>, vector<8x128xf32>
    %c0_2 = arith.constant 0 : index
    %c0_3 = arith.constant 0 : index
    %c0_4 = arith.constant 0 : index
    %4 = vector.load %arg9[%c0_2, %c0_3, %c0_4] : memref<1x8x384xf32, #tpu.memory_space<vmem>>, vector<1x1x384xf32>
    %5 = vector.shape_cast %4 : vector<1x1x384xf32> to vector<1x384xf32>
    %c0_5 = arith.constant 0 : index
    %c1 = arith.constant 1 : index
    %c0_6 = arith.constant 0 : index
    %6 = vector.load %arg9[%c0_5, %c1, %c0_6] : memref<1x8x384xf32, #tpu.memory_space<vmem>>, vector<1x1x128xf32>
    %7 = vector.shape_cast %6 : vector<1x1x128xf32> to vector<1x128xf32>
    %c0_7 = arith.constant 0 : index
    %c2 = arith.constant 2 : index
    %c0_8 = arith.constant 0 : index
    %8 = vector.load %arg9[%c0_7, %c2, %c0_8] : memref<1x8x384xf32, #tpu.memory_space<vmem>>, vector<1x1x256xf32>
    %9 = vector.shape_cast %8 : vector<1x1x256xf32> to vector<1x256xf32>
    %c0_9 = arith.constant 0 : index
    %c3 = arith.constant 3 : index
    %c0_10 = arith.constant 0 : index
    %10 = vector.load %arg9[%c0_9, %c3, %c0_10] : memref<1x8x384xf32, #tpu.memory_space<vmem>>, vector<1x1x128xf32>
    %11 = vector.shape_cast %10 : vector<1x1x128xf32> to vector<1x128xf32>
    %c0_11 = arith.constant 0 : index
    %c4 = arith.constant 4 : index
    %c0_12 = arith.constant 0 : index
    %12 = vector.load %arg9[%c0_11, %c4, %c0_12] : memref<1x8x384xf32, #tpu.memory_space<vmem>>, vector<1x1x128xf32>
    %13 = vector.shape_cast %12 : vector<1x1x128xf32> to vector<1x128xf32>
    %c0_13 = arith.constant 0 : index
    %c5 = arith.constant 5 : index
    %c0_14 = arith.constant 0 : index
    %14 = vector.load %arg9[%c0_13, %c5, %c0_14] : memref<1x8x384xf32, #tpu.memory_space<vmem>>, vector<1x1x128xf32>
    %15 = vector.shape_cast %14 : vector<1x1x128xf32> to vector<1x128xf32>
    %c0_15 = arith.constant 0 : index
    %c6 = arith.constant 6 : index
    %c0_16 = arith.constant 0 : index
    %16 = vector.load %arg9[%c0_15, %c6, %c0_16] : memref<1x8x384xf32, #tpu.memory_space<vmem>>, vector<1x1x128xf32>
    %17 = vector.shape_cast %16 : vector<1x1x128xf32> to vector<1x128xf32>
    %c0_17 = arith.constant 0 : index
    %c7 = arith.constant 7 : index
    %c0_18 = arith.constant 0 : index
    %18 = vector.load %arg9[%c0_17, %c7, %c0_18] : memref<1x8x384xf32, #tpu.memory_space<vmem>>, vector<1x1x128xf32>
    %19 = vector.shape_cast %18 : vector<1x1x128xf32> to vector<1x128xf32>
    %c0_19 = arith.constant 0 : index
    %c0_20 = arith.constant 0 : index
    %c0_21 = arith.constant 0 : index
    %20 = vector.load %arg5[%c0_19, %c0_20, %c0_21] : memref<1x128x384xbf16, #tpu.memory_space<vmem>>, vector<1x128x384xbf16>
    %21 = vector.shape_cast %20 : vector<1x128x384xbf16> to vector<128x384xbf16>
    %22 = arith.truncf %3 : vector<8x128xf32> to vector<8x128xbf16>
    %cst = arith.constant dense<0.000000e+00> : vector<8x384xf32>
    %23 = tpu.matmul %22, %21, %cst {dimension_numbers = #tpu.dot_dimension_numbers<[1], [0], [0], [1], [0, 0, 1, 1], [], []>} : vector<8x128xbf16>, vector<128x384xbf16>, vector<8x384xf32> -> vector<8x384xf32>
    %24 = vector.broadcast %5 : vector<1x384xf32> to vector<8x384xf32>
    %25 = arith.addf %23, %24 : vector<8x384xf32>
    %26 = vector.extract_strided_slice %25 {offsets = [0, 0], sizes = [8, 128], strides = [1, 1]} : vector<8x384xf32> to vector<8x128xf32>
    %27 = vector.shape_cast %26 : vector<8x128xf32> to vector<8x2x64xf32>
    %28 = arith.truncf %27 : vector<8x2x64xf32> to vector<8x2x64xbf16>
    %29 = vector.extract_strided_slice %25 {offsets = [0, 128], sizes = [8, 128], strides = [1, 1]} : vector<8x384xf32> to vector<8x128xf32>
    %30 = vector.shape_cast %29 : vector<8x128xf32> to vector<8x2x64xf32>
    %31 = arith.truncf %30 : vector<8x2x64xf32> to vector<8x2x64xbf16>
    %32 = vector.extract_strided_slice %25 {offsets = [0, 256], sizes = [8, 128], strides = [1, 1]} : vector<8x384xf32> to vector<8x128xf32>
    %33 = vector.shape_cast %32 : vector<8x128xf32> to vector<8x2x64xf32>
    %34 = arith.truncf %33 : vector<8x2x64xf32> to vector<8x2x64xbf16>
    "tpu.trace_start"() <{level = 10 : i32, message = "qhd,khd->hqk"}> : () -> ()
    %cst_22 = arith.constant dense<0.000000e+00> : vector<2x8x8xf32>
    %35 = tpu.matmul %28, %31, %cst_22 {dimension_numbers = #tpu.dot_dimension_numbers<[2], [2], [0], [0], [0, 1, 0, 0, 1, 0], [1], [1]>} : vector<8x2x64xbf16>, vector<8x2x64xbf16>, vector<2x8x8xf32> -> vector<2x8x8xf32>
    "tpu.trace_stop"() : () -> ()
    %c0_23 = arith.constant 0 : index
    %c0_24 = arith.constant 0 : index
    %c0_25 = arith.constant 0 : index
    %36 = vector.load %arg3[%c0_23, %c0_24, %c0_25] : memref<1x1x8xf32, #tpu.memory_space<vmem>>, vector<1x1x8xf32>
    %37 = vector.shape_cast %36 : vector<1x1x8xf32> to vector<1x8xf32>
    %38 = vector.shape_cast %37 : vector<1x8xf32> to vector<1x1x8xf32>
    %39 = vector.broadcast %38 : vector<1x1x8xf32> to vector<2x8x8xf32>
    %40 = arith.addf %35, %39 : vector<2x8x8xf32>
    %cst_26 = arith.constant dense<0xFF800000> : vector<2x8xf32>
    %41 = vector.multi_reduction <maximumf>, %40, %cst_26 [2] : vector<2x8x8xf32> to vector<2x8xf32>
    %42 = vector.shape_cast %41 : vector<2x8xf32> to vector<2x8x1xf32>
    %43 = vector.broadcast %42 : vector<2x8x1xf32> to vector<2x8x8xf32>
    %44 = arith.subf %40, %43 : vector<2x8x8xf32>
    %45 = math.exp %44 : vector<2x8x8xf32>
    %cst_27 = arith.constant dense<0.000000e+00> : vector<2x8xf32>
    %46 = vector.multi_reduction <add>, %45, %cst_27 [2] : vector<2x8x8xf32> to vector<2x8xf32>
    %47 = vector.shape_cast %46 : vector<2x8xf32> to vector<2x8x1xf32>
    %48 = tpu.reciprocal %47 {approx = true} : vector<2x8x1xf32> -> vector<2x8x1xf32>
    %49 = vector.broadcast %48 : vector<2x8x1xf32> to vector<2x8x8xf32>
    %50 = arith.mulf %45, %49 : vector<2x8x8xf32>
    %51 = arith.truncf %50 : vector<2x8x8xf32> to vector<2x8x8xbf16>
    "tpu.trace_start"() <{level = 10 : i32, message = "hqk,khd->qhd"}> : () -> ()
    %cst_28 = arith.constant dense<0.000000e+00> : vector<2x64x8xf32>
    %52 = tpu.matmul %34, %51, %cst_28 {dimension_numbers = #tpu.dot_dimension_numbers<[0], [2], [2], [1], [0, 1, 0, 2, 1, 1], [1], [0]>} : vector<8x2x64xbf16>, vector<2x8x8xbf16>, vector<2x64x8xf32> -> vector<2x64x8xf32>
    %53 = tpu.transpose %52, [2, 0, 1] : vector<2x64x8xf32> -> vector<8x2x64xf32>
    "tpu.trace_stop"() : () -> ()
    %54 = vector.shape_cast %53 : vector<8x2x64xf32> to vector<8x128xf32>
    %c0_29 = arith.constant 0 : index
    %c0_30 = arith.constant 0 : index
    %c0_31 = arith.constant 0 : index
    %55 = vector.load %arg6[%c0_29, %c0_30, %c0_31] : memref<1x128x128xbf16, #tpu.memory_space<vmem>>, vector<1x128x128xbf16>
    %56 = vector.shape_cast %55 : vector<1x128x128xbf16> to vector<128x128xbf16>
    %57 = arith.truncf %54 : vector<8x128xf32> to vector<8x128xbf16>
    %cst_32 = arith.constant dense<0.000000e+00> : vector<8x128xf32>
    %58 = tpu.matmul %57, %56, %cst_32 {dimension_numbers = #tpu.dot_dimension_numbers<[1], [0], [0], [1], [0, 0, 1, 1], [], []>} : vector<8x128xbf16>, vector<128x128xbf16>, vector<8x128xf32> -> vector<8x128xf32>
    %59 = vector.broadcast %7 : vector<1x128xf32> to vector<8x128xf32>
    %60 = arith.addf %58, %59 : vector<8x128xf32>
    %61 = arith.addf %3, %60 : vector<8x128xf32>
    %cst_33 = arith.constant dense<0.000000e+00> : vector<8xf32>
    %62 = vector.multi_reduction <add>, %61, %cst_33 [1] : vector<8x128xf32> to vector<8xf32>
    %63 = vector.shape_cast %62 : vector<8xf32> to vector<8x1xf32>
    %cst_34 = arith.constant 1.280000e+02 : f32
    %64 = vector.broadcast %cst_34 : f32 to vector<8x1xf32>
    %65 = arith.divf %63, %64 : vector<8x1xf32>
    %66 = vector.broadcast %65 : vector<8x1xf32> to vector<8x128xf32>
    %67 = arith.subf %61, %66 : vector<8x128xf32>
    %68 = arith.mulf %67, %67 : vector<8x128xf32>
    %cst_35 = arith.constant dense<0.000000e+00> : vector<8xf32>
    %69 = vector.multi_reduction <add>, %68, %cst_35 [1] : vector<8x128xf32> to vector<8xf32>
    %70 = vector.shape_cast %69 : vector<8xf32> to vector<8x1xf32>
    %cst_36 = arith.constant 1.280000e+02 : f32
    %71 = vector.broadcast %cst_36 : f32 to vector<8x1xf32>
    %72 = arith.divf %70, %71 : vector<8x1xf32>
    %73 = vector.broadcast %65 : vector<8x1xf32> to vector<8x128xf32>
    %74 = arith.subf %61, %73 : vector<8x128xf32>
    %cst_37 = arith.constant 9.99999996E-13 : f32
    %75 = vector.broadcast %cst_37 : f32 to vector<8x1xf32>
    %76 = arith.addf %72, %75 : vector<8x1xf32>
    %77 = math.rsqrt %76 : vector<8x1xf32>
    %78 = vector.broadcast %77 : vector<8x1xf32> to vector<8x128xf32>
    %79 = arith.mulf %74, %78 : vector<8x128xf32>
    %80 = vector.broadcast %13 : vector<1x128xf32> to vector<8x128xf32>
    %81 = arith.mulf %79, %80 : vector<8x128xf32>
    %82 = vector.broadcast %15 : vector<1x128xf32> to vector<8x128xf32>
    %83 = arith.addf %81, %82 : vector<8x128xf32>
    %c0_38 = arith.constant 0 : index
    %c0_39 = arith.constant 0 : index
    %c0_40 = arith.constant 0 : index
    %84 = vector.load %arg7[%c0_38, %c0_39, %c0_40] : memref<1x128x256xbf16, #tpu.memory_space<vmem>>, vector<1x128x256xbf16>
    %85 = vector.shape_cast %84 : vector<1x128x256xbf16> to vector<128x256xbf16>
    %86 = arith.truncf %83 : vector<8x128xf32> to vector<8x128xbf16>
    %cst_41 = arith.constant dense<0.000000e+00> : vector<8x256xf32>
    %87 = tpu.matmul %86, %85, %cst_41 {dimension_numbers = #tpu.dot_dimension_numbers<[1], [0], [0], [1], [0, 0, 1, 1], [], []>} : vector<8x128xbf16>, vector<128x256xbf16>, vector<8x256xf32> -> vector<8x256xf32>
    %88 = vector.broadcast %9 : vector<1x256xf32> to vector<8x256xf32>
    %89 = arith.addf %87, %88 : vector<8x256xf32>
    %90 = arith.mulf %89, %89 : vector<8x256xf32>
    %91 = arith.mulf %89, %90 : vector<8x256xf32>
    %cst_42 = arith.constant 4.471500e-02 : f32
    %92 = vector.broadcast %cst_42 : f32 to vector<8x256xf32>
    %93 = arith.mulf %92, %91 : vector<8x256xf32>
    %94 = arith.addf %89, %93 : vector<8x256xf32>
    %cst_43 = arith.constant 0.797884583 : f32
    %95 = vector.broadcast %cst_43 : f32 to vector<8x256xf32>
    %96 = arith.mulf %95, %94 : vector<8x256xf32>
    %97 = math.tanh %96 : vector<8x256xf32>
    %cst_44 = arith.constant 1.000000e+00 : f32
    %98 = vector.broadcast %cst_44 : f32 to vector<8x256xf32>
    %99 = arith.addf %98, %97 : vector<8x256xf32>
    %cst_45 = arith.constant 5.000000e-01 : f32
    %100 = vector.broadcast %cst_45 : f32 to vector<8x256xf32>
    %101 = arith.mulf %100, %99 : vector<8x256xf32>
    %102 = arith.mulf %89, %101 : vector<8x256xf32>
    %c0_46 = arith.constant 0 : index
    %c0_47 = arith.constant 0 : index
    %c0_48 = arith.constant 0 : index
    %103 = vector.load %arg8[%c0_46, %c0_47, %c0_48] : memref<1x256x128xbf16, #tpu.memory_space<vmem>>, vector<1x256x128xbf16>
    %104 = vector.shape_cast %103 : vector<1x256x128xbf16> to vector<256x128xbf16>
    %105 = arith.truncf %102 : vector<8x256xf32> to vector<8x256xbf16>
    %cst_49 = arith.constant dense<0.000000e+00> : vector<8x128xf32>
    %106 = tpu.matmul %105, %104, %cst_49 {dimension_numbers = #tpu.dot_dimension_numbers<[1], [0], [0], [1], [0, 0, 1, 1], [], []>} : vector<8x256xbf16>, vector<256x128xbf16>, vector<8x128xf32> -> vector<8x128xf32>
    %107 = vector.broadcast %11 : vector<1x128xf32> to vector<8x128xf32>
    %108 = arith.addf %106, %107 : vector<8x128xf32>
    %109 = arith.addf %83, %108 : vector<8x128xf32>
    %cst_50 = arith.constant dense<0.000000e+00> : vector<8xf32>
    %110 = vector.multi_reduction <add>, %109, %cst_50 [1] : vector<8x128xf32> to vector<8xf32>
    %111 = vector.shape_cast %110 : vector<8xf32> to vector<8x1xf32>
    %cst_51 = arith.constant 1.280000e+02 : f32
    %112 = vector.broadcast %cst_51 : f32 to vector<8x1xf32>
    %113 = arith.divf %111, %112 : vector<8x1xf32>
    %114 = vector.broadcast %113 : vector<8x1xf32> to vector<8x128xf32>
    %115 = arith.subf %109, %114 : vector<8x128xf32>
    %116 = arith.mulf %115, %115 : vector<8x128xf32>
    %cst_52 = arith.constant dense<0.000000e+00> : vector<8xf32>
    %117 = vector.multi_reduction <add>, %116, %cst_52 [1] : vector<8x128xf32> to vector<8xf32>
    %118 = vector.shape_cast %117 : vector<8xf32> to vector<8x1xf32>
    %cst_53 = arith.constant 1.280000e+02 : f32
    %119 = vector.broadcast %cst_53 : f32 to vector<8x1xf32>
    %120 = arith.divf %118, %119 : vector<8x1xf32>
    %121 = vector.broadcast %113 : vector<8x1xf32> to vector<8x128xf32>
    %122 = arith.subf %109, %121 : vector<8x128xf32>
    %cst_54 = arith.constant 9.99999996E-13 : f32
    %123 = vector.broadcast %cst_54 : f32 to vector<8x1xf32>
    %124 = arith.addf %120, %123 : vector<8x1xf32>
    %125 = math.rsqrt %124 : vector<8x1xf32>
    %126 = vector.broadcast %125 : vector<8x1xf32> to vector<8x128xf32>
    %127 = arith.mulf %122, %126 : vector<8x128xf32>
    %128 = vector.broadcast %17 : vector<1x128xf32> to vector<8x128xf32>
    %129 = arith.mulf %127, %128 : vector<8x128xf32>
    %130 = vector.broadcast %19 : vector<1x128xf32> to vector<8x128xf32>
    %131 = arith.addf %129, %130 : vector<8x128xf32>
    %c0_55 = arith.constant 0 : index
    %c0_56 = arith.constant 0 : index
    %132 = vector.load %arg16[%c0_55, %c0_56] : memref<8x128xf32, #tpu.memory_space<vmem>>, vector<8x128xf32>
    tpu.vector_store %arg16[%c0_55, %c0_56], %131 {strides = array<i32>} : memref<8x128xf32, #tpu.memory_space<vmem>>, vector<8x128xf32>,
    %c1_i32 = arith.constant 1 : i32
    %133 = arith.cmpi eq, %arg1, %c1_i32 : i32
    %134 = arith.extui %133 : i1 to i32
    %c0_i32_57 = arith.constant 0 : i32
    %135 = arith.cmpi ne, %134, %c0_i32_57 : i32
    scf.if %135 {
      %136 = vector.extract_strided_slice %131 {offsets = [7, 0], sizes = [1, 128], strides = [1, 1]} : vector<8x128xf32> to vector<1x128xf32>
      %c0_58 = arith.constant 0 : index
      %c0_59 = arith.constant 0 : index
      %137 = vector.load %arg10[%c0_58, %c0_59] : memref<128x128xbf16, #tpu.memory_space<vmem>>, vector<128x128xbf16>
      %138 = arith.truncf %136 : vector<1x128xf32> to vector<1x128xbf16>
      %cst_60 = arith.constant dense<0.000000e+00> : vector<1x128xf32>
      %139 = tpu.matmul %138, %137, %cst_60 {dimension_numbers = #tpu.dot_dimension_numbers<[1], [0], [0], [1], [0, 0, 1, 1], [], []>} : vector<1x128xbf16>, vector<128x128xbf16>, vector<1x128xf32> -> vector<1x128xf32>
      %c0_61 = arith.constant 0 : index
      %c0_62 = arith.constant 0 : index
      %140 = vector.load %arg11[%c0_61, %c0_62] : memref<1x128xf32, #tpu.memory_space<vmem>>, vector<1x128xf32>
      %141 = arith.addf %139, %140 : vector<1x128xf32>
      %142 = math.tanh %141 : vector<1x128xf32>
      %c0_63 = arith.constant 0 : index
      %c0_64 = arith.constant 0 : index
      %143 = vector.load %arg12[%c0_63, %c0_64] : memref<128x2xbf16, #tpu.memory_space<vmem>>, vector<128x2xbf16>
      %144 = arith.truncf %142 : vector<1x128xf32> to vector<1x128xbf16>
      %cst_65 = arith.constant dense<0.000000e+00> : vector<1x2xf32>
      %145 = tpu.matmul %144, %143, %cst_65 {dimension_numbers = #tpu.dot_dimension_numbers<[1], [0], [0], [1], [0, 0, 1, 1], [], []>} : vector<1x128xbf16>, vector<128x2xbf16>, vector<1x2xf32> -> vector<1x2xf32>
      %c0_66 = arith.constant 0 : index
      %c0_67 = arith.constant 0 : index
      %146 = vector.load %arg13[%c0_66, %c0_67] : memref<1x2xf32, #tpu.memory_space<vmem>>, vector<1x2xf32>
      %147 = arith.addf %145, %146 : vector<1x2xf32>
      %c0_68 = arith.constant 0 : index
      %c0_69 = arith.constant 0 : index
      %c0_70 = arith.constant 0 : index
      %148 = vector.load %arg14[%c0_68, %c0_69, %c0_70] : memref<1x1x2xf32, #tpu.memory_space<vmem>>, vector<1x1x2xf32>
      %149 = vector.shape_cast %148 : vector<1x1x2xf32> to vector<1x2xf32>
      %150 = vector.shape_cast %147 : vector<1x2xf32> to vector<1x1x2xf32>
      tpu.vector_store %arg14[%c0_68, %c0_69, %c0_70], %150 {strides = array<i32>} : memref<1x1x2xf32, #tpu.memory_space<vmem>>, vector<1x1x2xf32>,
      %cst_71 = arith.constant dense<0xFF800000> : vector<1xf32>
      %151 = vector.multi_reduction <maximumf>, %147, %cst_71 [1] : vector<1x2xf32> to vector<1xf32>
      %152 = vector.shape_cast %151 : vector<1xf32> to vector<1x1xf32>
      %153 = vector.broadcast %152 : vector<1x1xf32> to vector<1x2xf32>
      %154 = arith.subf %147, %153 : vector<1x2xf32>
      %155 = math.exp %154 : vector<1x2xf32>
      %cst_72 = arith.constant dense<0.000000e+00> : vector<1xf32>
      %156 = vector.multi_reduction <add>, %155, %cst_72 [1] : vector<1x2xf32> to vector<1xf32>
      %157 = vector.shape_cast %156 : vector<1xf32> to vector<1x1xf32>
      %158 = math.log %157 : vector<1x1xf32>
      %159 = arith.addf %158, %152 : vector<1x1xf32>
      %160 = vector.broadcast %159 : vector<1x1xf32> to vector<1x2xf32>
      %161 = arith.subf %147, %160 : vector<1x2xf32>
      %c0_73 = arith.constant 0 : index
      %c0_74 = arith.constant 0 : index
      %c0_75 = arith.constant 0 : index
      %162 = vector.load %arg4[%c0_73, %c0_74, %c0_75] : memref<1x1x2xf32, #tpu.memory_space<vmem>>, vector<1x1x2xf32>
      %163 = vector.shape_cast %162 : vector<1x1x2xf32> to vector<1x2xf32>
      %164 = arith.mulf %161, %163 : vector<1x2xf32>
      %cst_76 = arith.constant dense<0.000000e+00> : vector<1xf32>
      %165 = vector.multi_reduction <add>, %164, %cst_76 [1] : vector<1x2xf32> to vector<1xf32>
      %166 = vector.shape_cast %165 : vector<1xf32> to vector<1x1xf32>
      %cst_77 = arith.constant 0.000000e+00 : f32
      %167 = vector.broadcast %cst_77 : f32 to vector<1x1xf32>
      %168 = arith.subf %167, %166 : vector<1x1xf32>
      %c0_78 = arith.constant 0 : index
      %c0_79 = arith.constant 0 : index
      %c0_80 = arith.constant 0 : index
      %169 = vector.load %arg15[%c0_78, %c0_79, %c0_80] : memref<1x1x1xf32, #tpu.memory_space<vmem>>, vector<1x1x1xf32>
      %170 = vector.shape_cast %169 : vector<1x1x1xf32> to vector<1x1xf32>
      %171 = vector.shape_cast %168 : vector<1x1xf32> to vector<1x1x1xf32>
      tpu.vector_store %arg15[%c0_78, %c0_79, %c0_80], %171 {strides = array<i32>} : memref<1x1x1xf32, #tpu.memory_space<vmem>>, vector<1x1x1xf32>,
    } else {
    }
    return
  }
  func.func @transform_0(%arg0: i32, %arg1: i32) -> (i32, i32, i32) {
    %c0_i32 = arith.constant 0 : i32
    %c0_i32_0 = arith.constant 0 : i32
    %c0_i32_1 = arith.constant 0 : i32
    return %arg0, %c0_i32, %c0_i32_0 : i32, i32, i32
  }
  func.func @transform_1(%arg0: i32, %arg1: i32) -> (i32, i32, i32) {
    %c0_i32 = arith.constant 0 : i32
    %c0_i32_0 = arith.constant 0 : i32
    %c0_i32_1 = arith.constant 0 : i32
    return %arg0, %c0_i32, %c0_i32_0 : i32, i32, i32
  }
  func.func @transform_2(%arg0: i32, %arg1: i32) -> (i32, i32, i32) {
    %c0_i32 = arith.constant 0 : i32
    %c0_i32_0 = arith.constant 0 : i32
    %c0_i32_1 = arith.constant 0 : i32
    return %arg0, %c0_i32, %c0_i32_0 : i32, i32, i32
  }
  func.func @transform_3(%arg0: i32, %arg1: i32) -> (i32, i32, i32) {
    %c0_i32 = arith.constant 0 : i32
    %c0_i32_0 = arith.constant 0 : i32
    %c0_i32_1 = arith.constant 0 : i32
    return %arg1, %c0_i32, %c0_i32_0 : i32, i32, i32
  }
  func.func @transform_4(%arg0: i32, %arg1: i32) -> (i32, i32, i32) {
    %c0_i32 = arith.constant 0 : i32
    %c0_i32_0 = arith.constant 0 : i32
    %c0_i32_1 = arith.constant 0 : i32
    return %arg1, %c0_i32, %c0_i32_0 : i32, i32, i32
  }
  func.func @transform_5(%arg0: i32, %arg1: i32) -> (i32, i32, i32) {
    %c0_i32 = arith.constant 0 : i32
    %c0_i32_0 = arith.constant 0 : i32
    %c0_i32_1 = arith.constant 0 : i32
    return %arg1, %c0_i32, %c0_i32_0 : i32, i32, i32
  }
  func.func @transform_6(%arg0: i32, %arg1: i32) -> (i32, i32, i32) {
    %c0_i32 = arith.constant 0 : i32
    %c0_i32_0 = arith.constant 0 : i32
    %c0_i32_1 = arith.constant 0 : i32
    return %arg1, %c0_i32, %c0_i32_0 : i32, i32, i32
  }
  func.func @transform_7(%arg0: i32, %arg1: i32) -> (i32, i32, i32) {
    %c0_i32 = arith.constant 0 : i32
    %c0_i32_0 = arith.constant 0 : i32
    %c0_i32_1 = arith.constant 0 : i32
    return %arg1, %c0_i32, %c0_i32_0 : i32, i32, i32
  }
  func.func @transform_8(%arg0: i32, %arg1: i32) -> (i32, i32) {
    %c0_i32 = arith.constant 0 : i32
    %c0_i32_0 = arith.constant 0 : i32
    %c0_i32_1 = arith.constant 0 : i32
    return %c0_i32, %c0_i32_0 : i32, i32
  }
  func.func @transform_9(%arg0: i32, %arg1: i32) -> (i32, i32) {
    %c0_i32 = arith.constant 0 : i32
    %c0_i32_0 = arith.constant 0 : i32
    %c0_i32_1 = arith.constant 0 : i32
    return %c0_i32, %c0_i32_0 : i32, i32
  }
  func.func @transform_10(%arg0: i32, %arg1: i32) -> (i32, i32) {
    %c0_i32 = arith.constant 0 : i32
    %c0_i32_0 = arith.constant 0 : i32
    %c0_i32_1 = arith.constant 0 : i32
    return %c0_i32, %c0_i32_0 : i32, i32
  }
  func.func @transform_11(%arg0: i32, %arg1: i32) -> (i32, i32) {
    %c0_i32 = arith.constant 0 : i32
    %c0_i32_0 = arith.constant 0 : i32
    %c0_i32_1 = arith.constant 0 : i32
    return %c0_i32, %c0_i32_0 : i32, i32
  }
  func.func @transform_12(%arg0: i32, %arg1: i32) -> (i32, i32, i32) {
    %c0_i32 = arith.constant 0 : i32
    %c0_i32_0 = arith.constant 0 : i32
    %c0_i32_1 = arith.constant 0 : i32
    return %arg0, %c0_i32, %c0_i32_0 : i32, i32, i32
  }
  func.func @transform_13(%arg0: i32, %arg1: i32) -> (i32, i32, i32) {
    %c0_i32 = arith.constant 0 : i32
    %c0_i32_0 = arith.constant 0 : i32
    %c0_i32_1 = arith.constant 0 : i32
    return %arg0, %c0_i32, %c0_i32_0 : i32, i32, i32
  }
}

</mosaic_0001>

<llo_original>
// kernel: corona_classifier_forward.1
$region0: #{corona_classifier_forward.1}
  #allocation0 [shape = 'u32[]', space=smem, size = 0x4, offset = 0x4, fixed_abs, tag = 'smem constant byte address 0x4 - core index']
  #allocation1 [shape = 'u32[144,128]{1,0:T(1,128)}', space=vmem, size = 0x12000, scoped, tag = 'internal scratch']
  #allocation2 [shape = 'f32[8,128]{1,0:T(8,128)}', space=vmem, size = 0x1000, scoped, tag = 'scratch operand']
  %s0 = inlined_call_operand.vmem [shape: f32[2,8,128], index: 0, kind: input, shape index: {}]
  %s1 = inlined_call_operand.vmem [shape: f32[2,1,8], index: 1, kind: input, shape index: {}]
  %s2 = inlined_call_operand.vmem [shape: f32[2,1,2], index: 2, kind: input, shape index: {}]
  %s3 = inlined_call_operand.hbm [shape: bf16[2,128,384], index: 3, kind: input, shape index: {}]
  %s4 = inlined_call_operand.hbm [shape: bf16[2,128,128], index: 4, kind: input, shape index: {}]
  %s5 = inlined_call_operand.vmem [shape: bf16[2,128,256], index: 5, kind: input, shape index: {}]
  %s6 = inlined_call_operand.hbm [shape: bf16[2,256,128], index: 6, kind: input, shape index: {}]
  %s7 = inlined_call_operand.hbm [shape: f32[2,8,384], index: 7, kind: input, shape index: {}]
  %s8 = inlined_call_operand.hbm [shape: bf16[128,128], index: 8, kind: input, shape index: {}]
  %s9 = inlined_call_operand.vmem [shape: f32[1,128], index: 9, kind: input, shape index: {}]
  %s10 = inlined_call_operand.vmem [shape: bf16[128,2], index: 10, kind: input, shape index: {}]
  %s11 = inlined_call_operand.vmem [shape: f32[1,2], index: 11, kind: input, shape index: {}]
  %s12 = inlined_call_operand.hbm [shape: f32[2,1,2], index: 12, kind: output, shape index: {0}]
  %s13 = inlined_call_operand.vmem [shape: f32[2,1,1], index: 13, kind: output, shape index: {1}]
  %14 = xla_tuple %s12, %s13
  %s15 = sld [smem:[#allocation0]]
  $region117: #{corona_classifier_forward.1} parent=0
    _
  %s17 = ssub.s32 1, %s15
  %s18 = scalar_select 0, %s17, %s15
  $region1: #{corona_classifier_forward.1} parent=0
    #allocation3 [shape = 'u8[196608]{0}', space=vmem, size = 0x30000, scoped, tag = 'input window, operand 3']
    #allocation4 [shape = 's32[2]{0}', space=sflag, size = 0x8, scoped, tag = 'scoped memory for corona_classifier_forward.1']
    #allocation5 [shape = 's32[2]{0}', space=sflag, size = 0x8, scoped, tag = 'scoped memory for corona_classifier_forward.1']
    #allocation6 [shape = 'u8[65536]{0}', space=vmem, size = 0x10000, scoped, tag = 'input window, operand 4']
    #allocation7 [shape = 's32[2]{0}', space=sflag, size = 0x8, scoped, tag = 'scoped memory for corona_classifier_forward.1']
    #allocation8 [shape = 'u8[131072]{0}', space=vmem, size = 0x20000, scoped, tag = 'input window, operand 6']
    #allocation9 [shape = 'u8[24576]{0}', space=vmem, size = 0x6000, scoped, tag = 'input window, operand 7']
    #allocation10 [shape = 's32[2]{0}', space=sflag, size = 0x8, scoped, tag = 'scoped memory for corona_classifier_forward.1']
    #allocation11 [shape = 'u8[32768]{0}', space=vmem, size = 0x8000, scoped, tag = 'input window, operand 8, single buffered']
    #allocation12 [shape = 'u8[1024]{0}', space=vmem, size = 0x400, scoped, tag = 'output window, operand 0']
    %19 = vsyncpa [#allocation4], 0
    %s20 = scalar_lea.sflag [#allocation4], 1
    %21 = vsyncpa %s20, 0
    %22 = vsyncpa [#allocation7], 0
    %s23 = scalar_lea.sflag [#allocation7], 1
    %24 = vsyncpa %s23, 0
    %25 = vsyncpa [#allocation10], 0
    %s26 = scalar_lea.sflag [#allocation10], 1
    %27 = vsyncpa %s26, 0
    %28 = vsyncpa [#allocation5], 0
    %s29 = scalar_lea.sflag [#allocation5], 1
    %30 = vsyncpa %s29, 0
    loop: start=0, step=1, limit=6
    $region2: #{corona_classifier_forward.1} parent=1 // loop_pre_header
      _
    $region3: #{corona_classifier_forward.1} parent=1 // loop_header
      %s32 = sphi 0, %s36
      %p33 = scmp.ge.s32.totalorder %s32, 6
      %s39 = sphi 0, %s51
      %s40 = sphi 0, %s47
      %s41 = sphi 0, %s39
      %s42 = sphi 0, %s40
      %s43 = sphi 0, %s41
      %s44 = sphi 0, %s42
      %s54 = sphi 0, %s56
      %s57 = sphi 0, %s54
      %s58 = sphi 0, %s57
      %s74 = sphi 0, %s58
      %s80 = sphi 0, %s82
      %s83 = sphi 0, %s80
      %s84 = sphi 0, %s83
      %s100 = sphi 0, %s84
      %s106 = sphi 0, %s108
      %s109 = sphi 0, %s106
      %s110 = sphi 0, %s109
      %s126 = sphi 0, %s110
      %s132 = sphi 0, %s134
      %s135 = sphi 0, %s132
      %s136 = sphi 0, %s135
      %s152 = sphi 0, %s136
      %s158 = sphi 0, %s160
      %s161 = sphi 0, %s158
      %s162 = sphi 0, %s161
      %s178 = sphi 0, %s162
      %s184 = sphi 0, %s186
      %s187 = sphi 0, %s184
      %s188 = sphi 0, %s187
      %s204 = sphi 0, %s188
      %s210 = sphi 0, %s212
      %s213 = sphi 0, %s210
      %s214 = sphi 0, %s213
      %s230 = sphi 0, %s214
      %s236 = sphi 0, %s238
      %s239 = sphi 0, %s236
      %s240 = sphi 0, %s239
      %s256 = sphi 0, %s240
      %s260 = sphi 0, %s260
      %s262 = sphi 0, %s260
      %s263 = sphi 0, %s262
      %s277 = sphi 0, %s263
      %s281 = sphi 0, %s281
      %s283 = sphi 0, %s281
      %s284 = sphi 0, %s283
      %s298 = sphi 0, %s284
      %s302 = sphi 0, %s302
      %s304 = sphi 0, %s302
      %s305 = sphi 0, %s304
      %s319 = sphi 0, %s305
      %s323 = sphi 0, %s323
      %s325 = sphi 0, %s323
      %s326 = sphi 0, %s325
      %s340 = sphi 0, %s326
      %s346 = sphi 0, %s348
      %s349 = sphi 0, %s346
      %s350 = sphi 0, %s349
      %s366 = sphi 0, %s350
      %s372 = sphi 0, %s374
      %s375 = sphi 0, %s372
      %s376 = sphi 0, %s375
      %s392 = sphi 0, %s376
    $region4: #{corona_classifier_forward.1} parent=1 // loop_header_branch
      %35 = sbr.rel (%p33) target = $region8
    $region5: #{corona_classifier_forward.1} parent=1 // loop_body
      %s37 = ssub.s32 %s32, 1
      %s38 = ssub.s32 %s32, 2
      %s45 = sadd.s32 1, %s40
      %p46 = scmp.ge.s32.totalorder %s45, 2
      %s47 = scalar_select %p46, 0, %s45
      %s48 = sadd.s32 1, %s39
      %s49 = scalar_select %p46, %s48, %s39
      %p50 = scmp.ge.s32.totalorder %s49, 2
      %s51 = scalar_select %p50, 0, %s49
      %s52 = ssub.s32 %s39, %s51
      %p53 = scmp.eq.s32.totalorder %s52, 0
      %s55 = sadd.s32 %s54, 1
      %s56 = scalar_select %p53, %s54, %s55
      %p59 = pneg %p53
      %p60 = scmp.eq.s32.totalorder %s32, 3
      %p61 = por %p59, %p60
      %p62 = scmp.ne.s32.totalorder %s54, %s57
      %p63 = scmp.eq.s32.totalorder %s32, 0
      %p64 = por %p62, %p63
      %p65 = scmp.ne.s32.totalorder %s54, %s57
      %p66 = scmp.eq.s32.totalorder %s37, 3
      %p67 = por %p65, %p66
      %p68 = scmp.ne.s32.totalorder %s57, %s58
      %p69 = scmp.eq.s32.totalorder %s37, 0
      %p70 = por %p68, %p69
      %p71 = scmp.ne.s32.totalorder %s57, %s58
      %p72 = scmp.eq.s32.totalorder %s38, 3
      %p73 = por %p71, %p72
      %p75 = scmp.ne.s32.totalorder %s58, %s74
      %p76 = scmp.eq.s32.totalorder %s38, 0
      %p77 = por %p75, %p76
      %s78 = ssub.s32 %s39, %s51
      %p79 = scmp.eq.s32.totalorder %s78, 0
      %s81 = sadd.s32 %s80, 1
      %s82 = scalar_select %p79, %s80, %s81
      %p85 = pneg %p79
      %p86 = scmp.eq.s32.totalorder %s32, 3
      %p87 = por %p85, %p86
      %p88 = scmp.ne.s32.totalorder %s80, %s83
      %p89 = scmp.eq.s32.totalorder %s32, 0
      %p90 = por %p88, %p89
      %p91 = scmp.ne.s32.totalorder %s80, %s83
      %p92 = scmp.eq.s32.totalorder %s37, 3
      %p93 = por %p91, %p92
      %p94 = scmp.ne.s32.totalorder %s83, %s84
      %p95 = scmp.eq.s32.totalorder %s37, 0
      %p96 = por %p94, %p95
      %p97 = scmp.ne.s32.totalorder %s83, %s84
      %p98 = scmp.eq.s32.totalorder %s38, 3
      %p99 = por %p97, %p98
      %p101 = scmp.ne.s32.totalorder %s84, %s100
      %p102 = scmp.eq.s32.totalorder %s38, 0
      %p103 = por %p101, %p102
      %s104 = ssub.s32 %s39, %s51
      %p105 = scmp.eq.s32.totalorder %s104, 0
      %s107 = sadd.s32 %s106, 1
      %s108 = scalar_select %p105, %s106, %s107
      %p111 = pneg %p105
      %p112 = scmp.eq.s32.totalorder %s32, 3
      %p113 = por %p111, %p112
      %p114 = scmp.ne.s32.totalorder %s106, %s109
      %p115 = scmp.eq.s32.totalorder %s32, 0
      %p116 = por %p114, %p115
      %p117 = scmp.ne.s32.totalorder %s106, %s109
      %p118 = scmp.eq.s32.totalorder %s37, 3
      %p119 = por %p117, %p118
      %p120 = scmp.ne.s32.totalorder %s109, %s110
      %p121 = scmp.eq.s32.totalorder %s37, 0
      %p122 = por %p120, %p121
      %p123 = scmp.ne.s32.totalorder %s109, %s110
      %p124 = scmp.eq.s32.totalorder %s38, 3
      %p125 = por %p123, %p124
      %p127 = scmp.ne.s32.totalorder %s110, %s126
      %p128 = scmp.eq.s32.totalorder %s38, 0
      %p129 = por %p127, %p128
      %s130 = ssub.s32 %s40, %s47
      %p131 = scmp.eq.s32.totalorder %s130, 0
      %s133 = sadd.s32 %s132, 1
      %s134 = scalar_select %p131, %s132, %s133
      %p137 = pneg %p131
      %p138 = scmp.eq.s32.totalorder %s32, 3
      %p139 = por %p137, %p138
      %p140 = scmp.ne.s32.totalorder %s132, %s135
      %p141 = scmp.eq.s32.totalorder %s32, 0
      %p142 = por %p140, %p141
      %p143 = scmp.ne.s32.totalorder %s132, %s135
      %p144 = scmp.eq.s32.totalorder %s37, 3
      %p145 = por %p143, %p144
      %p146 = scmp.ne.s32.totalorder %s135, %s136
      %p147 = scmp.eq.s32.totalorder %s37, 0
      %p148 = por %p146, %p147
      %p149 = scmp.ne.s32.totalorder %s135, %s136
      %p150 = scmp.eq.s32.totalorder %s38, 3
      %p151 = por %p149, %p150
      %p153 = scmp.ne.s32.totalorder %s136, %s152
      %p154 = scmp.eq.s32.totalorder %s38, 0
      %p155 = por %p153, %p154
      %s156 = ssub.s32 %s40, %s47
      %p157 = scmp.eq.s32.totalorder %s156, 0
      %s159 = sadd.s32 %s158, 1
      %s160 = scalar_select %p157, %s158, %s159
      %p163 = pneg %p157
      %p164 = scmp.eq.s32.totalorder %s32, 3
      %p165 = por %p163, %p164
      %p166 = scmp.ne.s32.totalorder %s158, %s161
      %p167 = scmp.eq.s32.totalorder %s32, 0
      %p168 = por %p166, %p167
      %p169 = scmp.ne.s32.totalorder %s158, %s161
      %p170 = scmp.eq.s32.totalorder %s37, 3
      %p171 = por %p169, %p170
      %p172 = scmp.ne.s32.totalorder %s161, %s162
      %p173 = scmp.eq.s32.totalorder %s37, 0
      %p174 = por %p172, %p173
      %p175 = scmp.ne.s32.totalorder %s161, %s162
      %p176 = scmp.eq.s32.totalorder %s38, 3
      %p177 = por %p175, %p176
      %p179 = scmp.ne.s32.totalorder %s162, %s178
      %p180 = scmp.eq.s32.totalorder %s38, 0
      %p181 = por %p179, %p180
      %s182 = ssub.s32 %s40, %s47
      %p183 = scmp.eq.s32.totalorder %s182, 0
      %s185 = sadd.s32 %s184, 1
      %s186 = scalar_select %p183, %s184, %s185
      %p189 = pneg %p183
      %p190 = scmp.eq.s32.totalorder %s32, 3
      %p191 = por %p189, %p190
      %p192 = scmp.ne.s32.totalorder %s184, %s187
      %p193 = scmp.eq.s32.totalorder %s32, 0
      %p194 = por %p192, %p193
      %p195 = scmp.ne.s32.totalorder %s184, %s187
      %p196 = scmp.eq.s32.totalorder %s37, 3
      %p197 = por %p195, %p196
      %p198 = scmp.ne.s32.totalorder %s187, %s188
      %p199 = scmp.eq.s32.totalorder %s37, 0
      %p200 = por %p198, %p199
      %p201 = scmp.ne.s32.totalorder %s187, %s188
      %p202 = scmp.eq.s32.totalorder %s38, 3
      %p203 = por %p201, %p202
      %p205 = scmp.ne.s32.totalorder %s188, %s204
      %p206 = scmp.eq.s32.totalorder %s38, 0
      %p207 = por %p205, %p206
      %s208 = ssub.s32 %s40, %s47
      %p209 = scmp.eq.s32.totalorder %s208, 0
      %s211 = sadd.s32 %s210, 1
      %s212 = scalar_select %p209, %s210, %s211
      %p215 = pneg %p209
      %p216 = scmp.eq.s32.totalorder %s32, 3
      %p217 = por %p215, %p216
      %p218 = scmp.ne.s32.totalorder %s210, %s213
      %p219 = scmp.eq.s32.totalorder %s32, 0
      %p220 = por %p218, %p219
      %p221 = scmp.ne.s32.totalorder %s210, %s213
      %p222 = scmp.eq.s32.totalorder %s37, 3
      %p223 = por %p221, %p222
      %p224 = scmp.ne.s32.totalorder %s213, %s214
      %p225 = scmp.eq.s32.totalorder %s37, 0
      %p226 = por %p224, %p225
      %p227 = scmp.ne.s32.totalorder %s213, %s214
      %p228 = scmp.eq.s32.totalorder %s38, 3
      %p229 = por %p227, %p228
      %p231 = scmp.ne.s32.totalorder %s214, %s230
      %p232 = scmp.eq.s32.totalorder %s38, 0
      %p233 = por %p231, %p232
      %s234 = ssub.s32 %s40, %s47
      %p235 = scmp.eq.s32.totalorder %s234, 0
      %s237 = sadd.s32 %s236, 1
      %s238 = scalar_select %p235, %s236, %s237
      %p241 = pneg %p235
      %p242 = scmp.eq.s32.totalorder %s32, 3
      %p243 = por %p241, %p242
      %p244 = scmp.ne.s32.totalorder %s236, %s239
      %p245 = scmp.eq.s32.totalorder %s32, 0
      %p246 = por %p244, %p245
      %p247 = scmp.ne.s32.totalorder %s236, %s239
      %p248 = scmp.eq.s32.totalorder %s37, 3
      %p249 = por %p247, %p248
      %p250 = scmp.ne.s32.totalorder %s239, %s240
      %p251 = scmp.eq.s32.totalorder %s37, 0
      %p252 = por %p250, %p251
      %p253 = scmp.ne.s32.totalorder %s239, %s240
      %p254 = scmp.eq.s32.totalorder %s38, 3
      %p255 = por %p253, %p254
      %p257 = scmp.ne.s32.totalorder %s240, %s256
      %p258 = scmp.eq.s32.totalorder %s38, 0
      %p259 = por %p257, %p258
      %s261 = sadd.s32 %s260, 1
      %p264 = scmp.eq.s32.totalorder %s32, 3
      %p265 = scmp.ne.s32.totalorder %s260, %s262
      %p266 = scmp.eq.s32.totalorder %s32, 0
      %p267 = por %p265, %p266
      %p268 = scmp.ne.s32.totalorder %s260, %s262
      %p269 = scmp.eq.s32.totalorder %s37, 3
      %p270 = por %p268, %p269
      %p271 = scmp.ne.s32.totalorder %s262, %s263
      %p272 = scmp.eq.s32.totalorder %s37, 0
      %p273 = por %p271, %p272
      %p274 = scmp.ne.s32.totalorder %s262, %s263
      %p275 = scmp.eq.s32.totalorder %s38, 3
      %p276 = por %p274, %p275
      %p278 = scmp.ne.s32.totalorder %s263, %s277
      %p279 = scmp.eq.s32.totalorder %s38, 0
      %p280 = por %p278, %p279
      %s282 = sadd.s32 %s281, 1
      %p285 = scmp.eq.s32.totalorder %s32, 3
      %p286 = scmp.ne.s32.totalorder %s281, %s283
      %p287 = scmp.eq.s32.totalorder %s32, 0
      %p288 = por %p286, %p287
      %p289 = scmp.ne.s32.totalorder %s281, %s283
      %p290 = scmp.eq.s32.totalorder %s37, 3
      %p291 = por %p289, %p290
      %p292 = scmp.ne.s32.totalorder %s283, %s284
      %p293 = scmp.eq.s32.totalorder %s37, 0
      %p294 = por %p292, %p293
      %p295 = scmp.ne.s32.totalorder %s283, %s284
      %p296 = scmp.eq.s32.totalorder %s38, 3
      %p297 = por %p295, %p296
      %p299 = scmp.ne.s32.totalorder %s284, %s298
      %p300 = scmp.eq.s32.totalorder %s38, 0
      %p301 = por %p299, %p300
      %s303 = sadd.s32 %s302, 1
      %p306 = scmp.eq.s32.totalorder %s32, 3
      %p307 = scmp.ne.s32.totalorder %s302, %s304
      %p308 = scmp.eq.s32.totalorder %s32, 0
      %p309 = por %p307, %p308
      %p310 = scmp.ne.s32.totalorder %s302, %s304
      %p311 = scmp.eq.s32.totalorder %s37, 3
      %p312 = por %p310, %p311
      %p313 = scmp.ne.s32.totalorder %s304, %s305
      %p314 = scmp.eq.s32.totalorder %s37, 0
      %p315 = por %p313, %p314
      %p316 = scmp.ne.s32.totalorder %s304, %s305
      %p317 = scmp.eq.s32.totalorder %s38, 3
      %p318 = por %p316, %p317
      %p320 = scmp.ne.s32.totalorder %s305, %s319
      %p321 = scmp.eq.s32.totalorder %s38, 0
      %p322 = por %p320, %p321
      %s324 = sadd.s32 %s323, 1
      %p327 = scmp.eq.s32.totalorder %s32, 3
      %p328 = scmp.ne.s32.totalorder %s323, %s325
      %p329 = scmp.eq.s32.totalorder %s32, 0
      %p330 = por %p328, %p329
      %p331 = scmp.ne.s32.totalorder %s323, %s325
      %p332 = scmp.eq.s32.totalorder %s37, 3
      %p333 = por %p331, %p332
      %p334 = scmp.ne.s32.totalorder %s325, %s326
      %p335 = scmp.eq.s32.totalorder %s37, 0
      %p336 = por %p334, %p335
      %p337 = scmp.ne.s32.totalorder %s325, %s326
      %p338 = scmp.eq.s32.totalorder %s38, 3
      %p339 = por %p337, %p338
      %p341 = scmp.ne.s32.totalorder %s326, %s340
      %p342 = scmp.eq.s32.totalorder %s38, 0
      %p343 = por %p341, %p342
      %s344 = ssub.s32 %s39, %s51
      %p345 = scmp.eq.s32.totalorder %s344, 0
      %s347 = sadd.s32 %s346, 1
      %s348 = scalar_select %p345, %s346, %s347
      %p351 = pneg %p345
      %p352 = scmp.eq.s32.totalorder %s32, 3
      %p353 = por %p351, %p352
      %p354 = scmp.ne.s32.totalorder %s346, %s349
      %p355 = scmp.eq.s32.totalorder %s32, 0
      %p356 = por %p354, %p355
      %p357 = scmp.ne.s32.totalorder %s346, %s349
      %p358 = scmp.eq.s32.totalorder %s37, 3
      %p359 = por %p357, %p358
      %p360 = scmp.ne.s32.totalorder %s349, %s350
      %p361 = scmp.eq.s32.totalorder %s37, 0
      %p362 = por %p360, %p361
      %p363 = scmp.ne.s32.totalorder %s349, %s350
      %p364 = scmp.eq.s32.totalorder %s38, 3
      %p365 = por %p363, %p364
      %p367 = scmp.ne.s32.totalorder %s350, %s366
      %p368 = scmp.eq.s32.totalorder %s38, 0
      %p369 = por %p367, %p368
      %s370 = ssub.s32 %s39, %s51
      %p371 = scmp.eq.s32.totalorder %s370, 0
      %s373 = sadd.s32 %s372, 1
      %s374 = scalar_select %p371, %s372, %s373
      %p377 = pneg %p371
      %p378 = scmp.eq.s32.totalorder %s32, 3
      %p379 = por %p377, %p378
      %p380 = scmp.ne.s32.totalorder %s372, %s375
      %p381 = scmp.eq.s32.totalorder %s32, 0
      %p382 = por %p380, %p381
      %p383 = scmp.ne.s32.totalorder %s372, %s375
      %p384 = scmp.eq.s32.totalorder %s37, 3
      %p385 = por %p383, %p384
      %p386 = scmp.ne.s32.totalorder %s375, %s376
      %p387 = scmp.eq.s32.totalorder %s37, 0
      %p388 = por %p386, %p387
      %p389 = scmp.ne.s32.totalorder %s375, %s376
      %p390 = scmp.eq.s32.totalorder %s38, 3
      %p391 = por %p389, %p390
      %p393 = scmp.ne.s32.totalorder %s376, %s392
      %p394 = scmp.eq.s32.totalorder %s38, 0
      %p395 = por %p393, %p394
      %p396 = scmp.le.s32.totalorder 1, %s32
      %p397 = scmp.lt.s32.totalorder %s32, 5
      %p398 = pnand %p396, %p397
      %p399 = pneg %p398
      // Predicated region
      $region9: #{corona_classifier_forward.1} parent=5 // pred_check
        _
      $region10: #{corona_classifier_forward.1} parent=5 // pred_check_branch
        %401 = sbr.rel (%p398) target = $region12
      $region11: #{corona_classifier_forward.1} parent=5 // pred_region
        %s402 = ssub.s32 %s32, 1
        // Predicated region
        $region13: #{corona_classifier_forward.1} parent=11 // pred_check
          %p403 = pneg %p273
        $region14: #{corona_classifier_forward.1} parent=11 // pred_check_branch
          %405 = sbr.rel (%p403) target = $region16
        $region15: #{corona_classifier_forward.1} parent=11 // pred_region
          %s407 = ssub.s32 1024, 1024
          %408 = vsyncadd [#allocation10], %s407
          %s409 = sshll.u32 [#allocation11], 4
          %s410 = int_to_ptr.vmem [resolvable:$true] %s409
          %415 = dma.hbm_to_vmem [thread:$0]  %s8, 1024, %s410, [#allocation10], 64, 64, 4
        $region16: #{corona_classifier_forward.1} parent=11 // pred_fallthru
          _
        // Predicated region
        $region17: #{corona_classifier_forward.1} parent=11 // pred_check
          %p416 = pneg %p294
        $region18: #{corona_classifier_forward.1} parent=11 // pred_check_branch
          %418 = sbr.rel (%p416) target = $region20
        $region19: #{corona_classifier_forward.1} parent=11 // pred_region
          _
        $region20: #{corona_classifier_forward.1} parent=11 // pred_fallthru
          _
        // Predicated region
        $region21: #{corona_classifier_forward.1} parent=11 // pred_check
          %p419 = pneg %p315
        $region22: #{corona_classifier_forward.1} parent=11 // pred_check_branch
          %421 = sbr.rel (%p419) target = $region24
        $region23: #{corona_classifier_forward.1} parent=11 // pred_region
          _
        $region24: #{corona_classifier_forward.1} parent=11 // pred_fallthru
          _
        // Predicated region
        $region25: #{corona_classifier_forward.1} parent=11 // pred_check
          %p422 = pneg %p336
        $region26: #{corona_classifier_forward.1} parent=11 // pred_check_branch
          %424 = sbr.rel (%p422) target = $region28
        $region27: #{corona_classifier_forward.1} parent=11 // pred_region
          _
        $region28: #{corona_classifier_forward.1} parent=11 // pred_fallthru
          _
      $region12: #{corona_classifier_forward.1} parent=5 // pred_fallthru
        _
      %p425 = scmp.lt.s32.totalorder %s32, 4
      // Predicated region
      $region29: #{corona_classifier_forward.1} parent=5 // pred_check
        %p426 = pneg %p425
      $region30: #{corona_classifier_forward.1} parent=5 // pred_check_branch
        %428 = sbr.rel (%p426) target = $region32
      $region31: #{corona_classifier_forward.1} parent=5 // pred_region
        // Predicated region
        $region33: #{corona_classifier_forward.1} parent=31 // pred_check
          %p429 = pneg %p64
        $region34: #{corona_classifier_forward.1} parent=31 // pred_check_branch
          %431 = sbr.rel (%p429) target = $region36
        $region35: #{corona_classifier_forward.1} parent=31 // pred_region
          %p432 = scmp.lt.s32.totalorder %s39, 1
          %s433 = scalar_select %p432, %s39, 1
          %s434 = smul.addr %s433, 8
          %s435 = scalar_lea.vmem %s0, %s434
        $region36: #{corona_classifier_forward.1} parent=31 // pred_fallthru
          _
        // Predicated region
        $region37: #{corona_classifier_forward.1} parent=31 // pred_check
          %p436 = pneg %p90
        $region38: #{corona_classifier_forward.1} parent=31 // pred_check_branch
          %438 = sbr.rel (%p436) target = $region40
        $region39: #{corona_classifier_forward.1} parent=31 // pred_region
          %p439 = scmp.lt.s32.totalorder %s39, 1
          %s440 = scalar_select %p439, %s39, 1
          %s441 = scalar_lea.vmem %s1, %s440
        $region40: #{corona_classifier_forward.1} parent=31 // pred_fallthru
          _
        // Predicated region
        $region41: #{corona_classifier_forward.1} parent=31 // pred_check
          %p442 = pneg %p116
        $region42: #{corona_classifier_forward.1} parent=31 // pred_check_branch
          %444 = sbr.rel (%p442) target = $region44
        $region43: #{corona_classifier_forward.1} parent=31 // pred_region
          %p445 = scmp.lt.s32.totalorder %s39, 1
          %s446 = scalar_select %p445, %s39, 1
          %s447 = scalar_lea.vmem %s2, %s446
        $region44: #{corona_classifier_forward.1} parent=31 // pred_fallthru
          _
        // Predicated region
        $region45: #{corona_classifier_forward.1} parent=31 // pred_check
          %p448 = pneg %p142
        $region46: #{corona_classifier_forward.1} parent=31 // pred_check_branch
          %450 = sbr.rel (%p448) target = $region48
        $region47: #{corona_classifier_forward.1} parent=31 // pred_region
          %s451 = sand.u32 %s132, 1
          %s452 = scalar_lea.sflag [#allocation4], %s451
          %s453 = sand.u32 %s132, 1
          %s454 = smul.addr %s453, 192
          %s455 = scalar_lea.vmem [#allocation3], %s454
          %s457 = ssub.s32 3072, 3072
          %458 = vsyncadd %s452, %s457
          %s459 = smul.addr %s40, 48
          %s460 = smul.addr %s459, 64
          %s461 = scalar_lea.hbm %s3, %s460
          %s462 = sshll.u32 %s455, 4
          %s463 = int_to_ptr.vmem [resolvable:$true] %s462
          %468 = dma.hbm_to_vmem [thread:$0]  %s461, 3072, %s463, %s452, 192, 192, 12
        $region48: #{corona_classifier_forward.1} parent=31 // pred_fallthru
          _
        // Predicated region
        $region49: #{corona_classifier_forward.1} parent=31 // pred_check
          %p469 = pneg %p168
        $region50: #{corona_classifier_forward.1} parent=31 // pred_check_branch
          %471 = sbr.rel (%p469) target = $region52
        $region51: #{corona_classifier_forward.1} parent=31 // pred_region
          %s472 = sand.u32 %s32, 1
          %s473 = scalar_lea.sflag [#allocation7], %s472
          %s474 = sand.u32 %s158, 1
          %s475 = smul.addr %s474, 64
          %s476 = scalar_lea.vmem [#allocation6], %s475
          %s478 = ssub.s32 1024, 1024
          %479 = vsyncadd %s473, %s478
          %s480 = smul.addr %s40, 16
          %s481 = smul.addr %s480, 64
          %s482 = scalar_lea.hbm %s4, %s481
          %s483 = sshll.u32 %s476, 4
          %s484 = int_to_ptr.vmem [resolvable:$true] %s483
          %489 = dma.hbm_to_vmem [thread:$0]  %s482, 1024, %s484, %s473, 64, 64, 4
        $region52: #{corona_classifier_forward.1} parent=31 // pred_fallthru
          _
        // Predicated region
        $region53: #{corona_classifier_forward.1} parent=31 // pred_check
          %p490 = pneg %p194
        $region54: #{corona_classifier_forward.1} parent=31 // pred_check_branch
          %492 = sbr.rel (%p490) target = $region56
        $region55: #{corona_classifier_forward.1} parent=31 // pred_region
          %p493 = scmp.lt.s32.totalorder %s40, 1
          %s494 = scalar_select %p493, %s40, 1
          %s495 = smul.addr %s494, 32
          %s496 = smul.addr %s495, 4
          %s497 = scalar_lea.vmem %s5, %s496
        $region56: #{corona_classifier_forward.1} parent=31 // pred_fallthru
          _
        // Predicated region
        $region57: #{corona_classifier_forward.1} parent=31 // pred_check
          %p498 = pneg %p220
        $region58: #{corona_classifier_forward.1} parent=31 // pred_check_branch
          %500 = sbr.rel (%p498) target = $region60
        $region59: #{corona_classifier_forward.1} parent=31 // pred_region
          %s501 = sand.u32 %s32, 1
          %s502 = scalar_lea.sflag [#allocation7], %s501
          %s503 = sand.u32 %s210, 1
          %s504 = smul.addr %s503, 128
          %s505 = scalar_lea.vmem [#allocation8], %s504
          %s507 = ssub.s32 2048, 2048
          %508 = vsyncadd %s502, %s507
          %s509 = smul.addr %s40, 32
          %s510 = smul.addr %s509, 64
          %s511 = scalar_lea.hbm %s6, %s510
          %s512 = sshll.u32 %s505, 4
          %s513 = int_to_ptr.vmem [resolvable:$true] %s512
          %518 = dma.hbm_to_vmem [thread:$0]  %s511, 2048, %s513, %s502, 64, 64, 4
        $region60: #{corona_classifier_forward.1} parent=31 // pred_fallthru
          _
        // Predicated region
        $region61: #{corona_classifier_forward.1} parent=31 // pred_check
          %p519 = pneg %p246
        $region62: #{corona_classifier_forward.1} parent=31 // pred_check_branch
          %521 = sbr.rel (%p519) target = $region64
        $region63: #{corona_classifier_forward.1} parent=31 // pred_region
          %s522 = sand.u32 %s32, 1
          %s523 = scalar_lea.sflag [#allocation10], %s522
          %s524 = sand.u32 %s236, 1
          %s525 = smul.addr %s524, 24
          %s526 = scalar_lea.vmem [#allocation9], %s525
          %s528 = ssub.s32 384, 384
          %529 = vsyncadd %s523, %s528
          %s530 = smul.addr %s40, 3
          %s531 = smul.addr %s530, 128
          %s532 = scalar_lea.hbm %s7, %s531
          %s534 = sshll.u32 %s526, 4
          %s535 = int_to_ptr.vmem [resolvable:$true] %s534
          %537 = dma.hbm_to_vmem [thread:$0]  %s532, 384, %s535, %s523
        $region64: #{corona_classifier_forward.1} parent=31 // pred_fallthru
          _
      $region32: #{corona_classifier_forward.1} parent=5 // pred_fallthru
        _
      %p538 = scmp.le.s32.totalorder 1, %s32
      %p539 = scmp.lt.s32.totalorder %s32, 5
      %p540 = pnand %p538, %p539
      %p541 = pneg %p540
      // Predicated region
      $region65: #{corona_classifier_forward.1} parent=5 // pred_check
        _
      $region66: #{corona_classifier_forward.1} parent=5 // pred_check_branch
        %543 = sbr.rel (%p540) target = $region68
      $region67: #{corona_classifier_forward.1} parent=5 // pred_region
        %s544 = ssub.s32 %s32, 1
        %s545 = sand.u32 %s135, 1
        %s546 = scalar_lea.sflag [#allocation4], %s545
        %s547 = sand.u32 %s135, 1
        %s548 = smul.addr %s547, 192
        %s549 = scalar_lea.vmem [#allocation3], %s548
        // Predicated region
        $region69: #{corona_classifier_forward.1} parent=67 // pred_check
          %p550 = pneg %p148
        $region70: #{corona_classifier_forward.1} parent=67 // pred_check_branch
          %552 = sbr.rel (%p550) target = $region72
        $region71: #{corona_classifier_forward.1} parent=67 // pred_region
          %553 = dma.done %s546, 3072
        $region72: #{corona_classifier_forward.1} parent=67 // pred_fallthru
          _
        %s554 = sand.u32 %s37, 1
        %s555 = scalar_lea.sflag [#allocation7], %s554
        %s556 = sand.u32 %s161, 1
        %s557 = smul.addr %s556, 64
        %s558 = scalar_lea.vmem [#allocation6], %s557
        // Predicated region
        $region73: #{corona_classifier_forward.1} parent=67 // pred_check
          %p559 = pneg %p174
        $region74: #{corona_classifier_forward.1} parent=67 // pred_check_branch
          %561 = sbr.rel (%p559) target = $region76
        $region75: #{corona_classifier_forward.1} parent=67 // pred_region
          %562 = dma.done %s555, 1024
        $region76: #{corona_classifier_forward.1} parent=67 // pred_fallthru
          _
        %s563 = sand.u32 %s37, 1
        %s564 = scalar_lea.sflag [#allocation7], %s563
        %s565 = sand.u32 %s213, 1
        %s566 = smul.addr %s565, 128
        %s567 = scalar_lea.vmem [#allocation8], %s566
        // Predicated region
        $region77: #{corona_classifier_forward.1} parent=67 // pred_check
          %p568 = pneg %p226
        $region78: #{corona_classifier_forward.1} parent=67 // pred_check_branch
          %570 = sbr.rel (%p568) target = $region80
        $region79: #{corona_classifier_forward.1} parent=67 // pred_region
          %571 = dma.done %s564, 2048
        $region80: #{corona_classifier_forward.1} parent=67 // pred_fallthru
          _
        %s572 = sand.u32 %s37, 1
        %s573 = scalar_lea.sflag [#allocation10], %s572
        %s574 = sand.u32 %s239, 1
        %s575 = smul.addr %s574, 24
        %s576 = scalar_lea.vmem [#allocation9], %s575
        // Predicated region
        $region81: #{corona_classifier_forward.1} parent=67 // pred_check
          %p577 = pneg %p252
        $region82: #{corona_classifier_forward.1} parent=67 // pred_check_branch
          %579 = sbr.rel (%p577) target = $region84
        $region83: #{corona_classifier_forward.1} parent=67 // pred_region
          %580 = dma.done %s573, 384
        $region84: #{corona_classifier_forward.1} parent=67 // pred_fallthru
          _
        // Predicated region
        $region85: #{corona_classifier_forward.1} parent=67 // pred_check
          %p581 = pneg %p273
        $region86: #{corona_classifier_forward.1} parent=67 // pred_check_branch
          %583 = sbr.rel (%p581) target = $region88
        $region87: #{corona_classifier_forward.1} parent=67 // pred_region
          %584 = dma.done [#allocation10], 1024
        $region88: #{corona_classifier_forward.1} parent=67 // pred_fallthru
          _
        %p585 = scmp.lt.s32.totalorder %s41, 1
        %s586 = scalar_select %p585, %s41, 1
        %s587 = smul.addr %s586, 8
        %s588 = scalar_lea.vmem %s0, %s587
        %p589 = pneg %p70
        %p590 = pneg %p67
        %p591 = scmp.lt.s32.totalorder %s41, 1
        %s592 = scalar_select %p591, %s41, 1
        %s593 = scalar_lea.vmem %s1, %s592
        %p594 = pneg %p96
        %p595 = pneg %p93
        %p596 = scmp.lt.s32.totalorder %s41, 1
        %s597 = scalar_select %p596, %s41, 1
        %s598 = scalar_lea.vmem %s2, %s597
        %p599 = pneg %p122
        %p600 = pneg %p119
        %s601 = sand.u32 %s135, 1
        %s602 = scalar_lea.sflag [#allocation4], %s601
        %s603 = sand.u32 %s135, 1
        %s604 = smul.addr %s603, 192
        %s605 = scalar_lea.vmem [#allocation3], %s604
        %p606 = pneg %p148
        %p607 = pneg %p145
        %s608 = sand.u32 %s37, 1
        %s609 = scalar_lea.sflag [#allocation7], %s608
        %s610 = sand.u32 %s161, 1
        %s611 = smul.addr %s610, 64
        %s612 = scalar_lea.vmem [#allocation6], %s611
        %p613 = pneg %p174
        %p614 = pneg %p171
        %p615 = scmp.lt.s32.totalorder %s42, 1
        %s616 = scalar_select %p615, %s42, 1
        %s617 = smul.addr %s616, 32
        %s618 = smul.addr %s617, 4
        %s619 = scalar_lea.vmem %s5, %s618
        %p620 = pneg %p200
        %p621 = pneg %p197
        %s622 = sand.u32 %s37, 1
        %s623 = scalar_lea.sflag [#allocation7], %s622
        %s624 = sand.u32 %s213, 1
        %s625 = smul.addr %s624, 128
        %s626 = scalar_lea.vmem [#allocation8], %s625
        %p627 = pneg %p226
        %p628 = pneg %p223
        %s629 = sand.u32 %s37, 1
        %s630 = scalar_lea.sflag [#allocation10], %s629
        %s631 = sand.u32 %s239, 1
        %s632 = smul.addr %s631, 24
        %s633 = scalar_lea.vmem [#allocation9], %s632
        %p634 = pneg %p252
        %p635 = pneg %p249
        %p636 = pneg %p273
        %p637 = pneg %p270
        %p638 = pneg %p294
        %p639 = pneg %p291
        %p640 = pneg %p315
        %p641 = pneg %p312
        %p642 = pneg %p336
        %p643 = pneg %p333
        %p644 = pneg %p362
        %p645 = pneg %p359
        %s646 = sand.u32 %s349, 1
        %s647 = scalar_lea.sflag [#allocation5], %s646
        %s648 = sand.u32 %s349, 1
        %s649 = scalar_lea.vmem [#allocation12], %s648
        %p650 = pneg %p388
        %p651 = pneg %p385
        %p652 = scmp.lt.s32.totalorder %s41, 1
        %s653 = scalar_select %p652, %s41, 1
        %s654 = scalar_lea.vmem %s13, %s653
        %p655 = scmp.lt.s32.totalorder %s41, 1
        %s656 = scalar_select %p655, %s41, 1
        %s657 = smul.addr %s656, 8
        %s658 = scalar_lea.vmem %s0, %s657
        %p659 = scmp.lt.s32.totalorder %s41, 1
        %s660 = scalar_select %p659, %s41, 1
        %s661 = scalar_lea.vmem %s1, %s660
        %p662 = scmp.lt.s32.totalorder %s41, 1
        %s663 = scalar_select %p662, %s41, 1
        %s664 = scalar_lea.vmem %s2, %s663
        %p665 = scmp.lt.s32.totalorder %s42, 1
        %s666 = scalar_select %p665, %s42, 1
        %s667 = smul.addr %s666, 32
        %s668 = smul.addr %s667, 4
        %s669 = scalar_lea.vmem %s5, %s668
        %p670 = scmp.lt.s32.totalorder %s41, 1
        %s671 = scalar_select %p670, %s41, 1
        %s672 = scalar_lea.vmem %s13, %s671
        %p674 = scmp.eq.s32.totalorder %s42, 0
        // Predicated region
        $region89: #{corona_classifier_forward.1} parent=67 // pred_check
          %p675 = pneg %p674
        $region90: #{corona_classifier_forward.1} parent=67 // pred_check_branch
          %677 = sbr.rel (%p675) target = $region92
        $region91: #{corona_classifier_forward.1} parent=67 // pred_region
          %v678 = vld [vmem:[%s658] sm:$0xff]
          %679 = vst [vmem:[#allocation2] sm:$0xff] %v678
        $region92: #{corona_classifier_forward.1} parent=67 // pred_fallthru
          _
        %v680 = vld [vmem:[#allocation2] sm:$0xff]
        %v681 = vld [vmem:[%s576] ss:$8 sm:$0x7]
        %v682 = vld [vmem:[%s576 + $0x1] ss:$0 sm:$0xff]
        %s683 = scalar_lea.vmem %s576, 2 [#allocation9]
        %v684 = vld [vmem:[%s683] ss:$8 sm:$0x3]
        %v685 = vld [vmem:[%s576 + $0x3] ss:$0 sm:$0xff]
        %v686 = vld [vmem:[%s576 + $0x4] ss:$0 sm:$0xff]
        %v687 = vld [vmem:[%s576 + $0x5] ss:$0 sm:$0xff]
        %v688 = vld [vmem:[%s576 + $0x6] ss:$0 sm:$0xff]
        %v689 = vld [vmem:[%s576 + $0x7] ss:$0 sm:$0xff]
        %v690 = vld [vmem:[%s549] sm:$0xff]
        %v691 = vld [vmem:[%s549 + $0x8] sm:$0xf]
        %v692 = vld [vmem:[%s549 + $0xc] sm:$0xff]
        %v693 = vld [vmem:[%s549 + $0x14] sm:$0xf]
        %v694 = vld [vmem:[%s549 + $0x18] sm:$0xff]
        %v695 = vld [vmem:[%s549 + $0x20] sm:$0xf]
        %v696 = vld [vmem:[%s549 + $0x24] sm:$0xff]
        %v697 = vld [vmem:[%s549 + $0x2c] sm:$0xf]
        %v698 = vld [vmem:[%s549 + $0x30] sm:$0xff]
        %v699 = vld [vmem:[%s549 + $0x38] sm:$0xf]
        %v700 = vld [vmem:[%s549 + $0x3c] sm:$0xff]
        %v701 = vld [vmem:[%s549 + $0x44] sm:$0xf]
        %v702 = vld [vmem:[%s549 + $0x48] sm:$0xff]
        %v703 = vld [vmem:[%s549 + $0x50] sm:$0xf]
        %v704 = vld [vmem:[%s549 + $0x54] sm:$0xff]
        %v705 = vld [vmem:[%s549 + $0x5c] sm:$0xf]
        %v706 = vld [vmem:[%s549 + $0x60] sm:$0xff]
        %v707 = vld [vmem:[%s549 + $0x68] sm:$0xf]
        %v708 = vld [vmem:[%s549 + $0x6c] sm:$0xff]
        %v709 = vld [vmem:[%s549 + $0x74] sm:$0xf]
        %v710 = vld [vmem:[%s549 + $0x78] sm:$0xff]
        %v711 = vld [vmem:[%s549 + $0x80] sm:$0xf]
        %v712 = vld [vmem:[%s549 + $0x84] sm:$0xff]
        %v713 = vld [vmem:[%s549 + $0x8c] sm:$0xf]
        %v714 = vld [vmem:[%s549 + $0x90] sm:$0xff]
        %v715 = vld [vmem:[%s549 + $0x98] sm:$0xf]
        %v716 = vld [vmem:[%s549 + $0x9c] sm:$0xff]
        %v717 = vld [vmem:[%s549 + $0xa4] sm:$0xf]
        %v718 = vld [vmem:[%s549 + $0xa8] sm:$0xff]
        %v719 = vld [vmem:[%s549 + $0xb0] sm:$0xf]
        %v720 = vld [vmem:[%s549 + $0xb4] sm:$0xff]
        %v721 = vld [vmem:[%s549 + $0xbc] sm:$0xf]
        %v722 = vpack.c.bf16 %v680, %v680
        %v724 = vlaneseq
        %v725 = vshrl.u32 %v724, 7
        %v726 = vsub.s32 0, %v725
        %v727 = vrot.slane %v681, %v726
        %v728 = vlaneseq
        %v729 = vshrl.u32 %v728, 7
        %v730 = vsub.s32 1, %v729
        %v731 = vrot.slane %v681, %v730
        %v732 = vlaneseq
        %v733 = vshrl.u32 %v732, 7
        %v734 = vsub.s32 2, %v733
        %v735 = vrot.slane %v681, %v734
        %v771 = vunpack.c.l.b16 %v690
        %v772 = vunpack.c.h.b16 %v690
        %v773 = vunpack.c.l.b16 %v691
        %v774 = vunpack.c.l.b16 %v692
        %v775 = vunpack.c.h.b16 %v692
        %v776 = vunpack.c.l.b16 %v693
        %v777 = vunpack.c.l.b16 %v694
        %v778 = vunpack.c.h.b16 %v694
        %v779 = vunpack.c.l.b16 %v695
        %v780 = vunpack.c.l.b16 %v696
        %v781 = vunpack.c.h.b16 %v696
        %v782 = vunpack.c.l.b16 %v697
        %v783 = vunpack.c.l.b16 %v698
        %v784 = vunpack.c.h.b16 %v698
        %v785 = vunpack.c.l.b16 %v699
        %v786 = vunpack.c.l.b16 %v700
        %v787 = vunpack.c.h.b16 %v700
        %v788 = vunpack.c.l.b16 %v701
        %v789 = vunpack.c.l.b16 %v702
        %v790 = vunpack.c.h.b16 %v702
        %v791 = vunpack.c.l.b16 %v703
        %v792 = vunpack.c.l.b16 %v704
        %v793 = vunpack.c.h.b16 %v704
        %v794 = vunpack.c.l.b16 %v705
        %v795 = vunpack.c.l.b16 %v706
        %v796 = vunpack.c.h.b16 %v706
        %v797 = vunpack.c.l.b16 %v707
        %v798 = vunpack.c.l.b16 %v708
        %v799 = vunpack.c.h.b16 %v708
        %v800 = vunpack.c.l.b16 %v709
        %v801 = vunpack.c.l.b16 %v710
        %v802 = vunpack.c.h.b16 %v710
        %v803 = vunpack.c.l.b16 %v711
        %v804 = vunpack.c.l.b16 %v712
        %v805 = vunpack.c.h.b16 %v712
        %v806 = vunpack.c.l.b16 %v713
        %v807 = vunpack.c.l.b16 %v714
        %v808 = vunpack.c.h.b16 %v714
        %v809 = vunpack.c.l.b16 %v715
        %v810 = vunpack.c.l.b16 %v716
        %v811 = vunpack.c.h.b16 %v716
        %v812 = vunpack.c.l.b16 %v717
        %v813 = vunpack.c.l.b16 %v718
        %v814 = vunpack.c.h.b16 %v718
        %v815 = vunpack.c.l.b16 %v719
        %v816 = vunpack.c.l.b16 %v720
        %v817 = vunpack.c.h.b16 %v720
        %v818 = vunpack.c.l.b16 %v721
        %v819 = vpack.c.b16 %v774, %v771
        %v820 = vpack.c.b16 %v775, %v772
        %v821 = vpack.c.b16 %v776, %v773
        %v822 = vpack.c.b16 %v780, %v777
        %v823 = vpack.c.b16 %v781, %v778
        %v824 = vpack.c.b16 %v782, %v779
        %v825 = vpack.c.b16 %v786, %v783
        %v826 = vpack.c.b16 %v787, %v784
        %v827 = vpack.c.b16 %v788, %v785
        %v828 = vpack.c.b16 %v792, %v789
        %v829 = vpack.c.b16 %v793, %v790
        %v830 = vpack.c.b16 %v794, %v791
        %v831 = vpack.c.b16 %v798, %v795
        %v832 = vpack.c.b16 %v799, %v796
        %v833 = vpack.c.b16 %v800, %v797
        %v834 = vpack.c.b16 %v804, %v801
        %v835 = vpack.c.b16 %v805, %v802
        %v836 = vpack.c.b16 %v806, %v803
        %v837 = vpack.c.b16 %v810, %v807
        %v838 = vpack.c.b16 %v811, %v808
        %v839 = vpack.c.b16 %v812, %v809
        %v840 = vpack.c.b16 %v816, %v813
        %v841 = vpack.c.b16 %v817, %v814
        %v842 = vpack.c.b16 %v818, %v815
        %867 = vmatprep.subr.bf16.mxu0 %v841
        %868 = vmatpush1.bf16.msra.mxu0 %v840
        %869 = vmatprep.subr.bf16.mxu0 %v838
        %870 = vmatpush1.bf16.msra.mxu0 %v837
        %871 = vmatprep.subr.bf16.mxu0 %v835
        %872 = vmatpush1.bf16.msra.mxu0 %v834
        %873 = vmatprep.subr.bf16.mxu0 %v832
        %874 = vmatpush1.bf16.msra.mxu0 %v831
        %875 = vmatprep.subr.bf16.mxu0 %v829
        %876 = vmatpush1.bf16.msra.mxu0 %v828
        %877 = vmatprep.subr.bf16.mxu0 %v826
        %878 = vmatpush1.bf16.msra.mxu0 %v825
        %879 = vmatprep.subr.bf16.mxu0 %v823
        %880 = vmatpush1.bf16.msra.mxu0 %v822
        %881 = vmatprep.subr.bf16.mxu0 %v820
        %882 = vmatpush1.bf16.msra.mxu0 %v819
        %883 = vmatprep.subr.bf16.mxu0 0
        %884 = vmatpush2.bf16.msra.mxu0 0
        %885 = vmatprep.subr.bf16.mxu0 0
        %886 = vmatpush2.bf16.msra.mxu0 0
        %887 = vmatprep.subr.bf16.mxu0 0
        %888 = vmatpush2.bf16.msra.mxu0 0
        %889 = vmatprep.subr.bf16.mxu0 0
        %890 = vmatpush2.bf16.msra.mxu0 0
        %891 = vmatprep.subr.bf16.mxu0 0
        %892 = vmatpush2.bf16.msra.mxu0 0
        %893 = vmatprep.subr.bf16.mxu0 0
        %894 = vmatpush2.bf16.msra.mxu0 0
        %895 = vmatprep.subr.bf16.mxu0 0
        %896 = vmatpush2.bf16.msra.mxu0 0
        %897 = vmatprep.subr.bf16.mxu0 0
        %898 = vmatpush2.bf16.msra.mxu0 0
        %899 = vmatprep.mubr.bf16.mxu0 0
        %900 = vmatmul.mubr.bf16.gmra.mxu0 %v722
        %v901 = vpop.f32.mrf.mxu0
        %v902 = vadd.f32 %v727, %v901
        %v903 = vpop.f32.mrf.mxu0
        %v904 = vadd.f32 %v731, %v903
        %v905 = vpop.f32.mrf.mxu0
        %v906 = vpop.f32.mrf.mxu0
        %907 = vdwg.mxu0
        %908 = vmatprep.subr.bf16.mxu0 0
        %909 = vmatpush1.bf16.msra.mxu0 %v842
        %910 = vmatprep.subr.bf16.mxu0 0
        %911 = vmatpush1.bf16.msra.mxu0 %v839
        %912 = vmatprep.subr.bf16.mxu0 0
        %913 = vmatpush1.bf16.msra.mxu0 %v836
        %914 = vmatprep.subr.bf16.mxu0 0
        %915 = vmatpush1.bf16.msra.mxu0 %v833
        %916 = vmatprep.subr.bf16.mxu0 0
        %917 = vmatpush1.bf16.msra.mxu0 %v830
        %918 = vmatprep.subr.bf16.mxu0 0
        %919 = vmatpush1.bf16.msra.mxu0 %v827
        %920 = vmatprep.subr.bf16.mxu0 0
        %921 = vmatpush1.bf16.msra.mxu0 %v824
        %922 = vmatprep.subr.bf16.mxu0 0
        %923 = vmatpush1.bf16.msra.mxu0 %v821
        %924 = vmatprep.subr.bf16.mxu0 0
        %925 = vmatpush2.bf16.msra.mxu0 0
        %926 = vmatprep.subr.bf16.mxu0 0
        %927 = vmatpush2.bf16.msra.mxu0 0
        %928 = vmatprep.subr.bf16.mxu0 0
        %929 = vmatpush2.bf16.msra.mxu0 0
        %930 = vmatprep.subr.bf16.mxu0 0
        %931 = vmatpush2.bf16.msra.mxu0 0
        %932 = vmatprep.subr.bf16.mxu0 0
        %933 = vmatpush2.bf16.msra.mxu0 0
        %934 = vmatprep.subr.bf16.mxu0 0
        %935 = vmatpush2.bf16.msra.mxu0 0
        %936 = vmatprep.subr.bf16.mxu0 0
        %937 = vmatpush2.bf16.msra.mxu0 0
        %938 = vmatprep.subr.bf16.mxu0 0
        %939 = vmatpush2.bf16.msra.mxu0 0
        %940 = vmatprep.mubr.bf16.mxu0 0
        %941 = vmatmul.mubr.bf16.gmra.mxu0 %v722
        %v942 = vpop.f32.mrf.mxu0
        %v943 = vadd.f32 %v735, %v942
        %v944 = vpop.f32.mrf.mxu0
        %v945 = vpop.f32.mrf.mxu0
        %v946 = vpop.f32.mrf.mxu0
        %947 = vdwg.mxu0
        %949 = vrot.lane.b32.xlu0 %v902, 64
        %v950 = vpop.permute.xlu0 %949
        %v952 = vcombine.high %v902, 0.0
        %v954 = vunpack.c.l.s4 1983009808
        %v955 = vunpack.c.0.s8 %v954
        %v956 = vlaneseq
        %v957 = vshrl.u32 %v956, 7
        %v958 = vsub.s32 %v955, %v957
        %v959 = vrot.slane %v902, %v958
        %v961 = vunpack.c.l.s4 1983009808
        %v962 = vunpack.c.0.s8 %v961
        %v963 = vlaneseq
        %v964 = vshrl.u32 %v963, 7
        %v965 = vsub.s32 %v962, %v964
        %v966 = vrot.slane %v952, %v965
        %v967 = vcombine.high %v950, 0.0
        %v969 = vunpack.c.l.s4 1983009808
        %v970 = vunpack.c.0.s8 %v969
        %v971 = vlaneseq
        %v972 = vshrl.u32 %v971, 7
        %v973 = vsub.s32 %v970, %v972
        %v974 = vrot.slane %v950, %v973
        %v976 = vunpack.c.l.s4 1983009808
        %v977 = vunpack.c.0.s8 %v976
        %v978 = vlaneseq
        %v979 = vshrl.u32 %v978, 7
        %v980 = vsub.s32 %v977, %v979
        %v981 = vrot.slane %v967, %v980
        %v982 = vcombine.low %v959, %v974
        %v983 = vcombine.high %v959, %v974
        %v985 = vunpack.c.l.s4 1934713408
        %v986 = vunpack.c.0.s8 %v985
        %v987 = vlaneseq
        %v988 = vshrl.u32 %v987, 7
        %v989 = vsub.s32 %v986, %v988
        %v990 = vrot.slane %v982, %v989
        %v992 = vunpack.c.l.s4 1934713408
        %v993 = vunpack.c.0.s8 %v992
        %v994 = vlaneseq
        %v995 = vshrl.u32 %v994, 7
        %v996 = vsub.s32 %v993, %v995
        %v997 = vrot.slane %v983, %v996
        %v998 = vcombine.low %v966, %v981
        %v999 = vcombine.high %v966, %v981
        %v1001 = vunpack.c.l.s4 1934713408
        %v1002 = vunpack.c.0.s8 %v1001
        %v1003 = vlaneseq
        %v1004 = vshrl.u32 %v1003, 7
        %v1005 = vsub.s32 %v1002, %v1004
        %v1006 = vrot.slane %v998, %v1005
        %v1008 = vunpack.c.l.s4 1934713408
        %v1009 = vunpack.c.0.s8 %v1008
        %v1010 = vlaneseq
        %v1011 = vshrl.u32 %v1010, 7
        %v1012 = vsub.s32 %v1009, %v1011
        %v1013 = vrot.slane %v999, %v1012
        %v1014 = vcombine.high %v990, 0.0
        %v1015 = vcombine.high %v997, 0.0
        %v1016 = vcombine.high %v1006, 0.0
        %v1017 = vcombine.high %v1013, 0.0
        %v1018 = vpack.c.bf16 %v990, %v990
        %v1019 = vpack.c.bf16 %v1014, %v1014
        %v1020 = vpack.c.bf16 %v997, %v997
        %v1021 = vpack.c.bf16 %v1015, %v1015
        %v1022 = vpack.c.bf16 %v1006, %v1006
        %v1023 = vpack.c.bf16 %v1016, %v1016
        %v1024 = vpack.c.bf16 %v1013, %v1013
        %v1025 = vpack.c.bf16 %v1017, %v1017
        %1027 = vrot.lane.b32.xlu0 %v904, 64
        %v1028 = vpop.permute.xlu0 %1027
        %v1030 = vcombine.high %v904, 0.0
        %v1032 = vunpack.c.l.s4 1983009808
        %v1033 = vunpack.c.0.s8 %v1032
        %v1034 = vlaneseq
        %v1035 = vshrl.u32 %v1034, 7
        %v1036 = vsub.s32 %v1033, %v1035
        %v1037 = vrot.slane %v904, %v1036
        %v1039 = vunpack.c.l.s4 1983009808
        %v1040 = vunpack.c.0.s8 %v1039
        %v1041 = vlaneseq
        %v1042 = vshrl.u32 %v1041, 7
        %v1043 = vsub.s32 %v1040, %v1042
        %v1044 = vrot.slane %v1030, %v1043
        %v1045 = vcombine.high %v1028, 0.0
        %v1047 = vunpack.c.l.s4 1983009808
        %v1048 = vunpack.c.0.s8 %v1047
        %v1049 = vlaneseq
        %v1050 = vshrl.u32 %v1049, 7
        %v1051 = vsub.s32 %v1048, %v1050
        %v1052 = vrot.slane %v1028, %v1051
        %v1054 = vunpack.c.l.s4 1983009808
        %v1055 = vunpack.c.0.s8 %v1054
        %v1056 = vlaneseq
        %v1057 = vshrl.u32 %v1056, 7
        %v1058 = vsub.s32 %v1055, %v1057
        %v1059 = vrot.slane %v1045, %v1058
        %v1060 = vcombine.low %v1037, %v1052
        %v1061 = vcombine.high %v1037, %v1052
        %v1063 = vunpack.c.l.s4 1934713408
        %v1064 = vunpack.c.0.s8 %v1063
        %v1065 = vlaneseq
        %v1066 = vshrl.u32 %v1065, 7
        %v1067 = vsub.s32 %v1064, %v1066
        %v1068 = vrot.slane %v1060, %v1067
        %v1070 = vunpack.c.l.s4 1934713408
        %v1071 = vunpack.c.0.s8 %v1070
        %v1072 = vlaneseq
        %v1073 = vshrl.u32 %v1072, 7
        %v1074 = vsub.s32 %v1071, %v1073
        %v1075 = vrot.slane %v1061, %v1074
        %v1076 = vcombine.low %v1044, %v1059
        %v1077 = vcombine.high %v1044, %v1059
        %v1079 = vunpack.c.l.s4 1934713408
        %v1080 = vunpack.c.0.s8 %v1079
        %v1081 = vlaneseq
        %v1082 = vshrl.u32 %v1081, 7
        %v1083 = vsub.s32 %v1080, %v1082
        %v1084 = vrot.slane %v1076, %v1083
        %v1086 = vunpack.c.l.s4 1934713408
        %v1087 = vunpack.c.0.s8 %v1086
        %v1088 = vlaneseq
        %v1089 = vshrl.u32 %v1088, 7
        %v1090 = vsub.s32 %v1087, %v1089
        %v1091 = vrot.slane %v1077, %v1090
        %v1092 = vcombine.high %v1068, 0.0
        %v1093 = vcombine.high %v1075, 0.0
        %v1094 = vcombine.high %v1084, 0.0
        %v1095 = vcombine.high %v1091, 0.0
        %v1096 = vpack.c.bf16 %v1068, %v1068
        %v1097 = vpack.c.bf16 %v1092, %v1092
        %v1098 = vpack.c.bf16 %v1075, %v1075
        %v1099 = vpack.c.bf16 %v1093, %v1093
        %v1100 = vpack.c.bf16 %v1084, %v1084
        %v1101 = vpack.c.bf16 %v1094, %v1094
        %v1102 = vpack.c.bf16 %v1091, %v1091
        %v1103 = vpack.c.bf16 %v1095, %v1095
        %1105 = vrot.lane.b32.xlu0 %v943, 64
        %v1106 = vpop.permute.xlu0 %1105
        %v1108 = vcombine.high %v943, 0.0
        %v1110 = vunpack.c.l.s4 1983009808
        %v1111 = vunpack.c.0.s8 %v1110
        %v1112 = vlaneseq
        %v1113 = vshrl.u32 %v1112, 7
        %v1114 = vsub.s32 %v1111, %v1113
        %v1115 = vrot.slane %v943, %v1114
        %v1117 = vunpack.c.l.s4 1983009808
        %v1118 = vunpack.c.0.s8 %v1117
        %v1119 = vlaneseq
        %v1120 = vshrl.u32 %v1119, 7
        %v1121 = vsub.s32 %v1118, %v1120
        %v1122 = vrot.slane %v1108, %v1121
        %v1123 = vcombine.high %v1106, 0.0
        %v1125 = vunpack.c.l.s4 1983009808
        %v1126 = vunpack.c.0.s8 %v1125
        %v1127 = vlaneseq
        %v1128 = vshrl.u32 %v1127, 7
        %v1129 = vsub.s32 %v1126, %v1128
        %v1130 = vrot.slane %v1106, %v1129
        %v1132 = vunpack.c.l.s4 1983009808
        %v1133 = vunpack.c.0.s8 %v1132
        %v1134 = vlaneseq
        %v1135 = vshrl.u32 %v1134, 7
        %v1136 = vsub.s32 %v1133, %v1135
        %v1137 = vrot.slane %v1123, %v1136
        %v1138 = vcombine.low %v1115, %v1130
        %v1139 = vcombine.high %v1115, %v1130
        %v1141 = vunpack.c.l.s4 1934713408
        %v1142 = vunpack.c.0.s8 %v1141
        %v1143 = vlaneseq
        %v1144 = vshrl.u32 %v1143, 7
        %v1145 = vsub.s32 %v1142, %v1144
        %v1146 = vrot.slane %v1138, %v1145
        %v1148 = vunpack.c.l.s4 1934713408
        %v1149 = vunpack.c.0.s8 %v1148
        %v1150 = vlaneseq
        %v1151 = vshrl.u32 %v1150, 7
        %v1152 = vsub.s32 %v1149, %v1151
        %v1153 = vrot.slane %v1139, %v1152
        %v1154 = vcombine.low %v1122, %v1137
        %v1155 = vcombine.high %v1122, %v1137
        %v1157 = vunpack.c.l.s4 1934713408
        %v1158 = vunpack.c.0.s8 %v1157
        %v1159 = vlaneseq
        %v1160 = vshrl.u32 %v1159, 7
        %v1161 = vsub.s32 %v1158, %v1160
        %v1162 = vrot.slane %v1154, %v1161
        %v1164 = vunpack.c.l.s4 1934713408
        %v1165 = vunpack.c.0.s8 %v1164
        %v1166 = vlaneseq
        %v1167 = vshrl.u32 %v1166, 7
        %v1168 = vsub.s32 %v1165, %v1167
        %v1169 = vrot.slane %v1155, %v1168
        %v1170 = vcombine.high %v1146, 0.0
        %v1171 = vcombine.high %v1153, 0.0
        %v1172 = vcombine.high %v1162, 0.0
        %v1173 = vcombine.high %v1169, 0.0
        %v1174 = vpack.c.bf16 %v1146, %v1146
        %v1175 = vpack.c.bf16 %v1170, %v1170
        %v1176 = vpack.c.bf16 %v1153, %v1153
        %v1177 = vpack.c.bf16 %v1171, %v1171
        %v1178 = vpack.c.bf16 %v1162, %v1162
        %v1179 = vpack.c.bf16 %v1172, %v1172
        %v1180 = vpack.c.bf16 %v1169, %v1169
        %v1181 = vpack.c.bf16 %v1173, %v1173
        %v1182 = vld [vmem:[%s661] sm:$0x1]
        %v1184 = vlaneseq
        %v1185 = vshrl.u32 %v1184, 7
        %v1186 = vsub.s32 0, %v1185
        %v1187 = vrot.slane %v1182, %v1186
        %v1189 = vcombine.low %v1018, %v1022
        %v1191 = vunpack.c.l.s4 1983009808
        %v1192 = vunpack.c.0.s8 %v1191
        %v1193 = vlaneseq
        %v1194 = vshrl.u32 %v1193, 7
        %v1195 = vsub.s32 %v1192, %v1194
        %v1196 = vrot.slane %v1189, %v1195
        %v1197 = vcombine.low %v1020, %v1024
        %v1199 = vunpack.c.l.s4 1983009808
        %v1200 = vunpack.c.0.s8 %v1199
        %v1201 = vlaneseq
        %v1202 = vshrl.u32 %v1201, 7
        %v1203 = vsub.s32 %v1200, %v1202
        %v1204 = vrot.slane %v1197, %v1203
        %v1205 = vcombine.low %v1196, %v1204
        %v1207 = vunpack.c.l.s4 1934713408
        %v1208 = vunpack.c.0.s8 %v1207
        %v1209 = vlaneseq
        %v1210 = vshrl.u32 %v1209, 7
        %v1211 = vsub.s32 %v1208, %v1210
        %v1212 = vrot.slane %v1205, %v1211
        %v1213 = vcombine.low %v1019, %v1023
        %v1215 = vunpack.c.l.s4 1983009808
        %v1216 = vunpack.c.0.s8 %v1215
        %v1217 = vlaneseq
        %v1218 = vshrl.u32 %v1217, 7
        %v1219 = vsub.s32 %v1216, %v1218
        %v1220 = vrot.slane %v1213, %v1219
        %v1221 = vcombine.low %v1021, %v1025
        %v1223 = vunpack.c.l.s4 1983009808
        %v1224 = vunpack.c.0.s8 %v1223
        %v1225 = vlaneseq
        %v1226 = vshrl.u32 %v1225, 7
        %v1227 = vsub.s32 %v1224, %v1226
        %v1228 = vrot.slane %v1221, %v1227
        %v1229 = vcombine.low %v1220, %v1228
        %v1231 = vunpack.c.l.s4 1934713408
        %v1232 = vunpack.c.0.s8 %v1231
        %v1233 = vlaneseq
        %v1234 = vshrl.u32 %v1233, 7
        %v1235 = vsub.s32 %v1232, %v1234
        %v1236 = vrot.slane %v1229, %v1235
        %v1239 = vpack.i.b16 %v1236, %v1212
        %v1240 = vshrl.u32 %v1212, 16
        %v1241 = vshrl.u32 %v1236, 16
        %v1242 = vpack.i.b16 %v1241, %v1240
        %1243 = vxpose.xlu0.c.b16.start [1/8] %v1096, 128
        %1244 = vxpose.xlu0.c.b16.cont [2/8] 0, 128
        %1245 = vxpose.xlu0.c.b16.cont [3/8] 0, 128
        %1246 = vxpose.xlu0.c.b16.cont [4/8] 0, 128
        %1247 = vxpose.xlu0.c.b16.cont [5/8] 0, 128
        %1248 = vxpose.xlu0.c.b16.cont [6/8] 0, 128
        %1249 = vxpose.xlu0.c.b16.cont [7/8] 0, 128
        %1250 = vxpose.xlu0.c.b16.end [8/8] 0, 128
        %v1251 = vpop.trf.xlu0
        %v1252 = vpop.trf.xlu0
        %v1253 = vpop.trf.xlu0
        %v1254 = vpop.trf.xlu0
        %v1255 = vpop.trf.xlu0
        %v1256 = vpop.trf.xlu0
        %v1257 = vpop.trf.xlu0
        %v1258 = vpop.trf.xlu0
        %1259 = vxpose.xlu0.c.b16.start [1/8] %v1097, 128
        %1260 = vxpose.xlu0.c.b16.cont [2/8] 0, 128
        %1261 = vxpose.xlu0.c.b16.cont [3/8] 0, 128
        %1262 = vxpose.xlu0.c.b16.cont [4/8] 0, 128
        %1263 = vxpose.xlu0.c.b16.cont [5/8] 0, 128
        %1264 = vxpose.xlu0.c.b16.cont [6/8] 0, 128
        %1265 = vxpose.xlu0.c.b16.cont [7/8] 0, 128
        %1266 = vxpose.xlu0.c.b16.end [8/8] 0, 128
        %v1267 = vpop.trf.xlu0
        %v1268 = vpop.trf.xlu0
        %v1269 = vpop.trf.xlu0
        %v1270 = vpop.trf.xlu0
        %v1271 = vpop.trf.xlu0
        %v1272 = vpop.trf.xlu0
        %v1273 = vpop.trf.xlu0
        %v1274 = vpop.trf.xlu0
        %1275 = vxpose.xlu0.c.b16.start [1/8] %v1098, 128
        %1276 = vxpose.xlu0.c.b16.cont [2/8] 0, 128
        %1277 = vxpose.xlu0.c.b16.cont [3/8] 0, 128
        %1278 = vxpose.xlu0.c.b16.cont [4/8] 0, 128
        %1279 = vxpose.xlu0.c.b16.cont [5/8] 0, 128
        %1280 = vxpose.xlu0.c.b16.cont [6/8] 0, 128
        %1281 = vxpose.xlu0.c.b16.cont [7/8] 0, 128
        %1282 = vxpose.xlu0.c.b16.end [8/8] 0, 128
        %v1283 = vpop.trf.xlu0
        %v1284 = vpop.trf.xlu0
        %v1285 = vpop.trf.xlu0
        %v1286 = vpop.trf.xlu0
        %v1287 = vpop.trf.xlu0
        %v1288 = vpop.trf.xlu0
        %v1289 = vpop.trf.xlu0
        %v1290 = vpop.trf.xlu0
        %1291 = vxpose.xlu0.c.b16.start [1/8] %v1099, 128
        %1292 = vxpose.xlu0.c.b16.cont [2/8] 0, 128
        %1293 = vxpose.xlu0.c.b16.cont [3/8] 0, 128
        %1294 = vxpose.xlu0.c.b16.cont [4/8] 0, 128
        %1295 = vxpose.xlu0.c.b16.cont [5/8] 0, 128
        %1296 = vxpose.xlu0.c.b16.cont [6/8] 0, 128
        %1297 = vxpose.xlu0.c.b16.cont [7/8] 0, 128
        %1298 = vxpose.xlu0.c.b16.end [8/8] 0, 128
        %v1299 = vpop.trf.xlu0
        %v1300 = vpop.trf.xlu0
        %v1301 = vpop.trf.xlu0
        %v1302 = vpop.trf.xlu0
        %v1303 = vpop.trf.xlu0
        %v1304 = vpop.trf.xlu0
        %v1305 = vpop.trf.xlu0
        %v1306 = vpop.trf.xlu0
        %1307 = vxpose.xlu0.c.b16.start [1/8] %v1100, 128
        %1308 = vxpose.xlu0.c.b16.cont [2/8] 0, 128
        %1309 = vxpose.xlu0.c.b16.cont [3/8] 0, 128
        %1310 = vxpose.xlu0.c.b16.cont [4/8] 0, 128
        %1311 = vxpose.xlu0.c.b16.cont [5/8] 0, 128
        %1312 = vxpose.xlu0.c.b16.cont [6/8] 0, 128
        %1313 = vxpose.xlu0.c.b16.cont [7/8] 0, 128
        %1314 = vxpose.xlu0.c.b16.end [8/8] 0, 128
        %v1315 = vpop.trf.xlu0
        %v1316 = vpop.trf.xlu0
        %v1317 = vpop.trf.xlu0
        %v1318 = vpop.trf.xlu0
        %v1319 = vpop.trf.xlu0
        %v1320 = vpop.trf.xlu0
        %v1321 = vpop.trf.xlu0
        %v1322 = vpop.trf.xlu0
        %1323 = vxpose.xlu0.c.b16.start [1/8] %v1101, 128
        %1324 = vxpose.xlu0.c.b16.cont [2/8] 0, 128
        %1325 = vxpose.xlu0.c.b16.cont [3/8] 0, 128
        %1326 = vxpose.xlu0.c.b16.cont [4/8] 0, 128
        %1327 = vxpose.xlu0.c.b16.cont [5/8] 0, 128
        %1328 = vxpose.xlu0.c.b16.cont [6/8] 0, 128
        %1329 = vxpose.xlu0.c.b16.cont [7/8] 0, 128
        %1330 = vxpose.xlu0.c.b16.end [8/8] 0, 128
        %v1331 = vpop.trf.xlu0
        %v1332 = vpop.trf.xlu0
        %v1333 = vpop.trf.xlu0
        %v1334 = vpop.trf.xlu0
        %v1335 = vpop.trf.xlu0
        %v1336 = vpop.trf.xlu0
        %v1337 = vpop.trf.xlu0
        %v1338 = vpop.trf.xlu0
        %1339 = vxpose.xlu0.c.b16.start [1/8] %v1102, 128
        %1340 = vxpose.xlu0.c.b16.cont [2/8] 0, 128
        %1341 = vxpose.xlu0.c.b16.cont [3/8] 0, 128
        %1342 = vxpose.xlu0.c.b16.cont [4/8] 0, 128
        %1343 = vxpose.xlu0.c.b16.cont [5/8] 0, 128
        %1344 = vxpose.xlu0.c.b16.cont [6/8] 0, 128
        %1345 = vxpose.xlu0.c.b16.cont [7/8] 0, 128
        %1346 = vxpose.xlu0.c.b16.end [8/8] 0, 128
        %v1347 = vpop.trf.xlu0
        %v1348 = vpop.trf.xlu0
        %v1349 = vpop.trf.xlu0
        %v1350 = vpop.trf.xlu0
        %v1351 = vpop.trf.xlu0
        %v1352 = vpop.trf.xlu0
        %v1353 = vpop.trf.xlu0
        %v1354 = vpop.trf.xlu0
        %1355 = vxpose.xlu0.c.b16.start [1/8] %v1103, 128
        %1356 = vxpose.xlu0.c.b16.cont [2/8] 0, 128
        %1357 = vxpose.xlu0.c.b16.cont [3/8] 0, 128
        %1358 = vxpose.xlu0.c.b16.cont [4/8] 0, 128
        %1359 = vxpose.xlu0.c.b16.cont [5/8] 0, 128
        %1360 = vxpose.xlu0.c.b16.cont [6/8] 0, 128
        %1361 = vxpose.xlu0.c.b16.cont [7/8] 0, 128
        %1362 = vxpose.xlu0.c.b16.end [8/8] 0, 128
        %v1363 = vpop.trf.xlu0
        %v1364 = vpop.trf.xlu0
        %v1365 = vpop.trf.xlu0
        %v1366 = vpop.trf.xlu0
        %v1367 = vpop.trf.xlu0
        %v1368 = vpop.trf.xlu0
        %v1369 = vpop.trf.xlu0
        %v1370 = vpop.trf.xlu0
        %v1373 = vpack.i.b16 %v1267, %v1251
        %v1375 = vshrl.u32 %v1251, 16
        %v1376 = vshrl.u32 %v1267, 16
        %v1377 = vpack.i.b16 %v1376, %v1375
        %v1381 = vpack.i.b16 %v1299, %v1283
        %v1383 = vshrl.u32 %v1283, 16
        %v1384 = vshrl.u32 %v1299, 16
        %v1385 = vpack.i.b16 %v1384, %v1383
        %v1389 = vpack.i.b16 %v1331, %v1315
        %v1391 = vshrl.u32 %v1315, 16
        %v1392 = vshrl.u32 %v1331, 16
        %v1393 = vpack.i.b16 %v1392, %v1391
        %v1397 = vpack.i.b16 %v1363, %v1347
        %v1399 = vshrl.u32 %v1347, 16
        %v1400 = vshrl.u32 %v1363, 16
        %v1401 = vpack.i.b16 %v1400, %v1399
        %v1405 = vpack.i.b16 %v1268, %v1252
        %v1407 = vshrl.u32 %v1252, 16
        %v1408 = vshrl.u32 %v1268, 16
        %v1409 = vpack.i.b16 %v1408, %v1407
        %v1413 = vpack.i.b16 %v1300, %v1284
        %v1415 = vshrl.u32 %v1284, 16
        %v1416 = vshrl.u32 %v1300, 16
        %v1417 = vpack.i.b16 %v1416, %v1415
        %v1421 = vpack.i.b16 %v1332, %v1316
        %v1423 = vshrl.u32 %v1316, 16
        %v1424 = vshrl.u32 %v1332, 16
        %v1425 = vpack.i.b16 %v1424, %v1423
        %v1429 = vpack.i.b16 %v1364, %v1348
        %v1431 = vshrl.u32 %v1348, 16
        %v1432 = vshrl.u32 %v1364, 16
        %v1433 = vpack.i.b16 %v1432, %v1431
        %v1437 = vpack.i.b16 %v1269, %v1253
        %v1439 = vshrl.u32 %v1253, 16
        %v1440 = vshrl.u32 %v1269, 16
        %v1441 = vpack.i.b16 %v1440, %v1439
        %v1445 = vpack.i.b16 %v1301, %v1285
        %v1447 = vshrl.u32 %v1285, 16
        %v1448 = vshrl.u32 %v1301, 16
        %v1449 = vpack.i.b16 %v1448, %v1447
        %v1453 = vpack.i.b16 %v1333, %v1317
        %v1455 = vshrl.u32 %v1317, 16
        %v1456 = vshrl.u32 %v1333, 16
        %v1457 = vpack.i.b16 %v1456, %v1455
        %v1461 = vpack.i.b16 %v1365, %v1349
        %v1463 = vshrl.u32 %v1349, 16
        %v1464 = vshrl.u32 %v1365, 16
        %v1465 = vpack.i.b16 %v1464, %v1463
        %v1469 = vpack.i.b16 %v1270, %v1254
        %v1471 = vshrl.u32 %v1254, 16
        %v1472 = vshrl.u32 %v1270, 16
        %v1473 = vpack.i.b16 %v1472, %v1471
        %v1477 = vpack.i.b16 %v1302, %v1286
        %v1479 = vshrl.u32 %v1286, 16
        %v1480 = vshrl.u32 %v1302, 16
        %v1481 = vpack.i.b16 %v1480, %v1479
        %v1485 = vpack.i.b16 %v1334, %v1318
        %v1487 = vshrl.u32 %v1318, 16
        %v1488 = vshrl.u32 %v1334, 16
        %v1489 = vpack.i.b16 %v1488, %v1487
        %v1493 = vpack.i.b16 %v1366, %v1350
        %v1495 = vshrl.u32 %v1350, 16
        %v1496 = vshrl.u32 %v1366, 16
        %v1497 = vpack.i.b16 %v1496, %v1495
        %v1499 = vcombine.low %v1373, %v1389
        %v1500 = vcombine.high %v1373, %v1389
        %v1502 = vunpack.c.l.s4 1983009808
        %v1503 = vunpack.c.0.s8 %v1502
        %v1504 = vlaneseq
        %v1505 = vshrl.u32 %v1504, 7
        %v1506 = vsub.s32 %v1503, %v1505
        %v1507 = vrot.slane %v1499, %v1506
        %v1509 = vunpack.c.l.s4 1983009808
        %v1510 = vunpack.c.0.s8 %v1509
        %v1511 = vlaneseq
        %v1512 = vshrl.u32 %v1511, 7
        %v1513 = vsub.s32 %v1510, %v1512
        %v1514 = vrot.slane %v1500, %v1513
        %v1515 = vcombine.low %v1381, %v1397
        %v1516 = vcombine.high %v1381, %v1397
        %v1518 = vunpack.c.l.s4 1983009808
        %v1519 = vunpack.c.0.s8 %v1518
        %v1520 = vlaneseq
        %v1521 = vshrl.u32 %v1520, 7
        %v1522 = vsub.s32 %v1519, %v1521
        %v1523 = vrot.slane %v1515, %v1522
        %v1525 = vunpack.c.l.s4 1983009808
        %v1526 = vunpack.c.0.s8 %v1525
        %v1527 = vlaneseq
        %v1528 = vshrl.u32 %v1527, 7
        %v1529 = vsub.s32 %v1526, %v1528
        %v1530 = vrot.slane %v1516, %v1529
        %v1531 = vcombine.low %v1507, %v1523
        %v1532 = vcombine.high %v1507, %v1523
        %v1534 = vunpack.c.l.s4 1934713408
        %v1535 = vunpack.c.0.s8 %v1534
        %v1536 = vlaneseq
        %v1537 = vshrl.u32 %v1536, 7
        %v1538 = vsub.s32 %v1535, %v1537
        %v1539 = vrot.slane %v1531, %v1538
        %v1541 = vunpack.c.l.s4 1934713408
        %v1542 = vunpack.c.0.s8 %v1541
        %v1543 = vlaneseq
        %v1544 = vshrl.u32 %v1543, 7
        %v1545 = vsub.s32 %v1542, %v1544
        %v1546 = vrot.slane %v1532, %v1545
        %v1547 = vcombine.low %v1514, %v1530
        %v1548 = vcombine.high %v1514, %v1530
        %v1550 = vunpack.c.l.s4 1934713408
        %v1551 = vunpack.c.0.s8 %v1550
        %v1552 = vlaneseq
        %v1553 = vshrl.u32 %v1552, 7
        %v1554 = vsub.s32 %v1551, %v1553
        %v1555 = vrot.slane %v1547, %v1554
        %v1557 = vunpack.c.l.s4 1934713408
        %v1558 = vunpack.c.0.s8 %v1557
        %v1559 = vlaneseq
        %v1560 = vshrl.u32 %v1559, 7
        %v1561 = vsub.s32 %v1558, %v1560
        %v1562 = vrot.slane %v1548, %v1561
        %v1563 = vcombine.high %v1539, 0
        %v1564 = vcombine.high %v1546, 0
        %v1565 = vcombine.high %v1555, 0
        %v1566 = vcombine.high %v1562, 0
        %v1567 = vcombine.low %v1377, %v1393
        %v1568 = vcombine.high %v1377, %v1393
        %v1570 = vunpack.c.l.s4 1983009808
        %v1571 = vunpack.c.0.s8 %v1570
        %v1572 = vlaneseq
        %v1573 = vshrl.u32 %v1572, 7
        %v1574 = vsub.s32 %v1571, %v1573
        %v1575 = vrot.slane %v1567, %v1574
        %v1577 = vunpack.c.l.s4 1983009808
        %v1578 = vunpack.c.0.s8 %v1577
        %v1579 = vlaneseq
        %v1580 = vshrl.u32 %v1579, 7
        %v1581 = vsub.s32 %v1578, %v1580
        %v1582 = vrot.slane %v1568, %v1581
        %v1583 = vcombine.low %v1385, %v1401
        %v1584 = vcombine.high %v1385, %v1401
        %v1586 = vunpack.c.l.s4 1983009808
        %v1587 = vunpack.c.0.s8 %v1586
        %v1588 = vlaneseq
        %v1589 = vshrl.u32 %v1588, 7
        %v1590 = vsub.s32 %v1587, %v1589
        %v1591 = vrot.slane %v1583, %v1590
        %v1593 = vunpack.c.l.s4 1983009808
        %v1594 = vunpack.c.0.s8 %v1593
        %v1595 = vlaneseq
        %v1596 = vshrl.u32 %v1595, 7
        %v1597 = vsub.s32 %v1594, %v1596
        %v1598 = vrot.slane %v1584, %v1597
        %v1599 = vcombine.low %v1575, %v1591
        %v1600 = vcombine.high %v1575, %v1591
        %v1602 = vunpack.c.l.s4 1934713408
        %v1603 = vunpack.c.0.s8 %v1602
        %v1604 = vlaneseq
        %v1605 = vshrl.u32 %v1604, 7
        %v1606 = vsub.s32 %v1603, %v1605
        %v1607 = vrot.slane %v1599, %v1606
        %v1609 = vunpack.c.l.s4 1934713408
        %v1610 = vunpack.c.0.s8 %v1609
        %v1611 = vlaneseq
        %v1612 = vshrl.u32 %v1611, 7
        %v1613 = vsub.s32 %v1610, %v1612
        %v1614 = vrot.slane %v1600, %v1613
        %v1615 = vcombine.low %v1582, %v1598
        %v1616 = vcombine.high %v1582, %v1598
        %v1618 = vunpack.c.l.s4 1934713408
        %v1619 = vunpack.c.0.s8 %v1618
        %v1620 = vlaneseq
        %v1621 = vshrl.u32 %v1620, 7
        %v1622 = vsub.s32 %v1619, %v1621
        %v1623 = vrot.slane %v1615, %v1622
        %v1625 = vunpack.c.l.s4 1934713408
        %v1626 = vunpack.c.0.s8 %v1625
        %v1627 = vlaneseq
        %v1628 = vshrl.u32 %v1627, 7
        %v1629 = vsub.s32 %v1626, %v1628
        %v1630 = vrot.slane %v1616, %v1629
        %v1631 = vcombine.high %v1607, 0
        %v1632 = vcombine.high %v1614, 0
        %v1633 = vcombine.high %v1623, 0
        %v1634 = vcombine.high %v1630, 0
        %v1635 = vcombine.low %v1405, %v1421
        %v1636 = vcombine.high %v1405, %v1421
        %v1638 = vunpack.c.l.s4 1983009808
        %v1639 = vunpack.c.0.s8 %v1638
        %v1640 = vlaneseq
        %v1641 = vshrl.u32 %v1640, 7
        %v1642 = vsub.s32 %v1639, %v1641
        %v1643 = vrot.slane %v1635, %v1642
        %v1645 = vunpack.c.l.s4 1983009808
        %v1646 = vunpack.c.0.s8 %v1645
        %v1647 = vlaneseq
        %v1648 = vshrl.u32 %v1647, 7
        %v1649 = vsub.s32 %v1646, %v1648
        %v1650 = vrot.slane %v1636, %v1649
        %v1651 = vcombine.low %v1413, %v1429
        %v1652 = vcombine.high %v1413, %v1429
        %v1654 = vunpack.c.l.s4 1983009808
        %v1655 = vunpack.c.0.s8 %v1654
        %v1656 = vlaneseq
        %v1657 = vshrl.u32 %v1656, 7
        %v1658 = vsub.s32 %v1655, %v1657
        %v1659 = vrot.slane %v1651, %v1658
        %v1661 = vunpack.c.l.s4 1983009808
        %v1662 = vunpack.c.0.s8 %v1661
        %v1663 = vlaneseq
        %v1664 = vshrl.u32 %v1663, 7
        %v1665 = vsub.s32 %v1662, %v1664
        %v1666 = vrot.slane %v1652, %v1665
        %v1667 = vcombine.low %v1643, %v1659
        %v1668 = vcombine.high %v1643, %v1659
        %v1670 = vunpack.c.l.s4 1934713408
        %v1671 = vunpack.c.0.s8 %v1670
        %v1672 = vlaneseq
        %v1673 = vshrl.u32 %v1672, 7
        %v1674 = vsub.s32 %v1671, %v1673
        %v1675 = vrot.slane %v1667, %v1674
        %v1677 = vunpack.c.l.s4 1934713408
        %v1678 = vunpack.c.0.s8 %v1677
        %v1679 = vlaneseq
        %v1680 = vshrl.u32 %v1679, 7
        %v1681 = vsub.s32 %v1678, %v1680
        %v1682 = vrot.slane %v1668, %v1681
        %v1683 = vcombine.low %v1650, %v1666
        %v1684 = vcombine.high %v1650, %v1666
        %v1686 = vunpack.c.l.s4 1934713408
        %v1687 = vunpack.c.0.s8 %v1686
        %v1688 = vlaneseq
        %v1689 = vshrl.u32 %v1688, 7
        %v1690 = vsub.s32 %v1687, %v1689
        %v1691 = vrot.slane %v1683, %v1690
        %v1693 = vunpack.c.l.s4 1934713408
        %v1694 = vunpack.c.0.s8 %v1693
        %v1695 = vlaneseq
        %v1696 = vshrl.u32 %v1695, 7
        %v1697 = vsub.s32 %v1694, %v1696
        %v1698 = vrot.slane %v1684, %v1697
        %v1699 = vcombine.high %v1675, 0
        %v1700 = vcombine.high %v1682, 0
        %v1701 = vcombine.high %v1691, 0
        %v1702 = vcombine.high %v1698, 0
        %v1703 = vcombine.low %v1409, %v1425
        %v1704 = vcombine.high %v1409, %v1425
        %v1706 = vunpack.c.l.s4 1983009808
        %v1707 = vunpack.c.0.s8 %v1706
        %v1708 = vlaneseq
        %v1709 = vshrl.u32 %v1708, 7
        %v1710 = vsub.s32 %v1707, %v1709
        %v1711 = vrot.slane %v1703, %v1710
        %v1713 = vunpack.c.l.s4 1983009808
        %v1714 = vunpack.c.0.s8 %v1713
        %v1715 = vlaneseq
        %v1716 = vshrl.u32 %v1715, 7
        %v1717 = vsub.s32 %v1714, %v1716
        %v1718 = vrot.slane %v1704, %v1717
        %v1719 = vcombine.low %v1417, %v1433
        %v1720 = vcombine.high %v1417, %v1433
        %v1722 = vunpack.c.l.s4 1983009808
        %v1723 = vunpack.c.0.s8 %v1722
        %v1724 = vlaneseq
        %v1725 = vshrl.u32 %v1724, 7
        %v1726 = vsub.s32 %v1723, %v1725
        %v1727 = vrot.slane %v1719, %v1726
        %v1729 = vunpack.c.l.s4 1983009808
        %v1730 = vunpack.c.0.s8 %v1729
        %v1731 = vlaneseq
        %v1732 = vshrl.u32 %v1731, 7
        %v1733 = vsub.s32 %v1730, %v1732
        %v1734 = vrot.slane %v1720, %v1733
        %v1735 = vcombine.low %v1711, %v1727
        %v1736 = vcombine.high %v1711, %v1727
        %v1738 = vunpack.c.l.s4 1934713408
        %v1739 = vunpack.c.0.s8 %v1738
        %v1740 = vlaneseq
        %v1741 = vshrl.u32 %v1740, 7
        %v1742 = vsub.s32 %v1739, %v1741
        %v1743 = vrot.slane %v1735, %v1742
        %v1745 = vunpack.c.l.s4 1934713408
        %v1746 = vunpack.c.0.s8 %v1745
        %v1747 = vlaneseq
        %v1748 = vshrl.u32 %v1747, 7
        %v1749 = vsub.s32 %v1746, %v1748
        %v1750 = vrot.slane %v1736, %v1749
        %v1751 = vcombine.low %v1718, %v1734
        %v1752 = vcombine.high %v1718, %v1734
        %v1754 = vunpack.c.l.s4 1934713408
        %v1755 = vunpack.c.0.s8 %v1754
        %v1756 = vlaneseq
        %v1757 = vshrl.u32 %v1756, 7
        %v1758 = vsub.s32 %v1755, %v1757
        %v1759 = vrot.slane %v1751, %v1758
        %v1761 = vunpack.c.l.s4 1934713408
        %v1762 = vunpack.c.0.s8 %v1761
        %v1763 = vlaneseq
        %v1764 = vshrl.u32 %v1763, 7
        %v1765 = vsub.s32 %v1762, %v1764
        %v1766 = vrot.slane %v1752, %v1765
        %v1767 = vcombine.high %v1743, 0
        %v1768 = vcombine.high %v1750, 0
        %v1769 = vcombine.high %v1759, 0
        %v1770 = vcombine.high %v1766, 0
        %v1771 = vcombine.low %v1437, %v1453
        %v1772 = vcombine.high %v1437, %v1453
        %v1774 = vunpack.c.l.s4 1983009808
        %v1775 = vunpack.c.0.s8 %v1774
        %v1776 = vlaneseq
        %v1777 = vshrl.u32 %v1776, 7
        %v1778 = vsub.s32 %v1775, %v1777
        %v1779 = vrot.slane %v1771, %v1778
        %v1781 = vunpack.c.l.s4 1983009808
        %v1782 = vunpack.c.0.s8 %v1781
        %v1783 = vlaneseq
        %v1784 = vshrl.u32 %v1783, 7
        %v1785 = vsub.s32 %v1782, %v1784
        %v1786 = vrot.slane %v1772, %v1785
        %v1787 = vcombine.low %v1445, %v1461
        %v1788 = vcombine.high %v1445, %v1461
        %v1790 = vunpack.c.l.s4 1983009808
        %v1791 = vunpack.c.0.s8 %v1790
        %v1792 = vlaneseq
        %v1793 = vshrl.u32 %v1792, 7
        %v1794 = vsub.s32 %v1791, %v1793
        %v1795 = vrot.slane %v1787, %v1794
        %v1797 = vunpack.c.l.s4 1983009808
        %v1798 = vunpack.c.0.s8 %v1797
        %v1799 = vlaneseq
        %v1800 = vshrl.u32 %v1799, 7
        %v1801 = vsub.s32 %v1798, %v1800
        %v1802 = vrot.slane %v1788, %v1801
        %v1803 = vcombine.low %v1779, %v1795
        %v1804 = vcombine.high %v1779, %v1795
        %v1806 = vunpack.c.l.s4 1934713408
        %v1807 = vunpack.c.0.s8 %v1806
        %v1808 = vlaneseq
        %v1809 = vshrl.u32 %v1808, 7
        %v1810 = vsub.s32 %v1807, %v1809
        %v1811 = vrot.slane %v1803, %v1810
        %v1813 = vunpack.c.l.s4 1934713408
        %v1814 = vunpack.c.0.s8 %v1813
        %v1815 = vlaneseq
        %v1816 = vshrl.u32 %v1815, 7
        %v1817 = vsub.s32 %v1814, %v1816
        %v1818 = vrot.slane %v1804, %v1817
        %v1819 = vcombine.low %v1786, %v1802
        %v1820 = vcombine.high %v1786, %v1802
        %v1822 = vunpack.c.l.s4 1934713408
        %v1823 = vunpack.c.0.s8 %v1822
        %v1824 = vlaneseq
        %v1825 = vshrl.u32 %v1824, 7
        %v1826 = vsub.s32 %v1823, %v1825
        %v1827 = vrot.slane %v1819, %v1826
        %v1829 = vunpack.c.l.s4 1934713408
        %v1830 = vunpack.c.0.s8 %v1829
        %v1831 = vlaneseq
        %v1832 = vshrl.u32 %v1831, 7
        %v1833 = vsub.s32 %v1830, %v1832
        %v1834 = vrot.slane %v1820, %v1833
        %v1835 = vcombine.high %v1811, 0
        %v1836 = vcombine.high %v1818, 0
        %v1837 = vcombine.high %v1827, 0
        %v1838 = vcombine.high %v1834, 0
        %v1839 = vcombine.low %v1441, %v1457
        %v1840 = vcombine.high %v1441, %v1457
        %v1842 = vunpack.c.l.s4 1983009808
        %v1843 = vunpack.c.0.s8 %v1842
        %v1844 = vlaneseq
        %v1845 = vshrl.u32 %v1844, 7
        %v1846 = vsub.s32 %v1843, %v1845
        %v1847 = vrot.slane %v1839, %v1846
        %v1849 = vunpack.c.l.s4 1983009808
        %v1850 = vunpack.c.0.s8 %v1849
        %v1851 = vlaneseq
        %v1852 = vshrl.u32 %v1851, 7
        %v1853 = vsub.s32 %v1850, %v1852
        %v1854 = vrot.slane %v1840, %v1853
        %v1855 = vcombine.low %v1449, %v1465
        %v1856 = vcombine.high %v1449, %v1465
        %v1858 = vunpack.c.l.s4 1983009808
        %v1859 = vunpack.c.0.s8 %v1858
        %v1860 = vlaneseq
        %v1861 = vshrl.u32 %v1860, 7
        %v1862 = vsub.s32 %v1859, %v1861
        %v1863 = vrot.slane %v1855, %v1862
        %v1865 = vunpack.c.l.s4 1983009808
        %v1866 = vunpack.c.0.s8 %v1865
        %v1867 = vlaneseq
        %v1868 = vshrl.u32 %v1867, 7
        %v1869 = vsub.s32 %v1866, %v1868
        %v1870 = vrot.slane %v1856, %v1869
        %v1871 = vcombine.low %v1847, %v1863
        %v1872 = vcombine.high %v1847, %v1863
        %v1874 = vunpack.c.l.s4 1934713408
        %v1875 = vunpack.c.0.s8 %v1874
        %v1876 = vlaneseq
        %v1877 = vshrl.u32 %v1876, 7
        %v1878 = vsub.s32 %v1875, %v1877
        %v1879 = vrot.slane %v1871, %v1878
        %v1881 = vunpack.c.l.s4 1934713408
        %v1882 = vunpack.c.0.s8 %v1881
        %v1883 = vlaneseq
        %v1884 = vshrl.u32 %v1883, 7
        %v1885 = vsub.s32 %v1882, %v1884
        %v1886 = vrot.slane %v1872, %v1885
        %v1887 = vcombine.low %v1854, %v1870
        %v1888 = vcombine.high %v1854, %v1870
        %v1890 = vunpack.c.l.s4 1934713408
        %v1891 = vunpack.c.0.s8 %v1890
        %v1892 = vlaneseq
        %v1893 = vshrl.u32 %v1892, 7
        %v1894 = vsub.s32 %v1891, %v1893
        %v1895 = vrot.slane %v1887, %v1894
        %v1897 = vunpack.c.l.s4 1934713408
        %v1898 = vunpack.c.0.s8 %v1897
        %v1899 = vlaneseq
        %v1900 = vshrl.u32 %v1899, 7
        %v1901 = vsub.s32 %v1898, %v1900
        %v1902 = vrot.slane %v1888, %v1901
        %v1903 = vcombine.high %v1879, 0
        %v1904 = vcombine.high %v1886, 0
        %v1905 = vcombine.high %v1895, 0
        %v1906 = vcombine.high %v1902, 0
        %v1907 = vcombine.low %v1469, %v1485
        %v1908 = vcombine.high %v1469, %v1485
        %v1910 = vunpack.c.l.s4 1983009808
        %v1911 = vunpack.c.0.s8 %v1910
        %v1912 = vlaneseq
        %v1913 = vshrl.u32 %v1912, 7
        %v1914 = vsub.s32 %v1911, %v1913
        %v1915 = vrot.slane %v1907, %v1914
        %v1917 = vunpack.c.l.s4 1983009808
        %v1918 = vunpack.c.0.s8 %v1917
        %v1919 = vlaneseq
        %v1920 = vshrl.u32 %v1919, 7
        %v1921 = vsub.s32 %v1918, %v1920
        %v1922 = vrot.slane %v1908, %v1921
        %v1923 = vcombine.low %v1477, %v1493
        %v1924 = vcombine.high %v1477, %v1493
        %v1926 = vunpack.c.l.s4 1983009808
        %v1927 = vunpack.c.0.s8 %v1926
        %v1928 = vlaneseq
        %v1929 = vshrl.u32 %v1928, 7
        %v1930 = vsub.s32 %v1927, %v1929
        %v1931 = vrot.slane %v1923, %v1930
        %v1933 = vunpack.c.l.s4 1983009808
        %v1934 = vunpack.c.0.s8 %v1933
        %v1935 = vlaneseq
        %v1936 = vshrl.u32 %v1935, 7
        %v1937 = vsub.s32 %v1934, %v1936
        %v1938 = vrot.slane %v1924, %v1937
        %v1939 = vcombine.low %v1915, %v1931
        %v1940 = vcombine.high %v1915, %v1931
        %v1942 = vunpack.c.l.s4 1934713408
        %v1943 = vunpack.c.0.s8 %v1942
        %v1944 = vlaneseq
        %v1945 = vshrl.u32 %v1944, 7
        %v1946 = vsub.s32 %v1943, %v1945
        %v1947 = vrot.slane %v1939, %v1946
        %v1949 = vunpack.c.l.s4 1934713408
        %v1950 = vunpack.c.0.s8 %v1949
        %v1951 = vlaneseq
        %v1952 = vshrl.u32 %v1951, 7
        %v1953 = vsub.s32 %v1950, %v1952
        %v1954 = vrot.slane %v1940, %v1953
        %v1955 = vcombine.low %v1922, %v1938
        %v1956 = vcombine.high %v1922, %v1938
        %v1958 = vunpack.c.l.s4 1934713408
        %v1959 = vunpack.c.0.s8 %v1958
        %v1960 = vlaneseq
        %v1961 = vshrl.u32 %v1960, 7
        %v1962 = vsub.s32 %v1959, %v1961
        %v1963 = vrot.slane %v1955, %v1962
        %v1965 = vunpack.c.l.s4 1934713408
        %v1966 = vunpack.c.0.s8 %v1965
        %v1967 = vlaneseq
        %v1968 = vshrl.u32 %v1967, 7
        %v1969 = vsub.s32 %v1966, %v1968
        %v1970 = vrot.slane %v1956, %v1969
        %v1971 = vcombine.high %v1947, 0
        %v1972 = vcombine.high %v1954, 0
        %v1973 = vcombine.high %v1963, 0
        %v1974 = vcombine.high %v1970, 0
        %v1975 = vcombine.low %v1473, %v1489
        %v1976 = vcombine.high %v1473, %v1489
        %v1978 = vunpack.c.l.s4 1983009808
        %v1979 = vunpack.c.0.s8 %v1978
        %v1980 = vlaneseq
        %v1981 = vshrl.u32 %v1980, 7
        %v1982 = vsub.s32 %v1979, %v1981
        %v1983 = vrot.slane %v1975, %v1982
        %v1985 = vunpack.c.l.s4 1983009808
        %v1986 = vunpack.c.0.s8 %v1985
        %v1987 = vlaneseq
        %v1988 = vshrl.u32 %v1987, 7
        %v1989 = vsub.s32 %v1986, %v1988
        %v1990 = vrot.slane %v1976, %v1989
        %v1991 = vcombine.low %v1481, %v1497
        %v1992 = vcombine.high %v1481, %v1497
        %v1994 = vunpack.c.l.s4 1983009808
        %v1995 = vunpack.c.0.s8 %v1994
        %v1996 = vlaneseq
        %v1997 = vshrl.u32 %v1996, 7
        %v1998 = vsub.s32 %v1995, %v1997
        %v1999 = vrot.slane %v1991, %v1998
        %v2001 = vunpack.c.l.s4 1983009808
        %v2002 = vunpack.c.0.s8 %v2001
        %v2003 = vlaneseq
        %v2004 = vshrl.u32 %v2003, 7
        %v2005 = vsub.s32 %v2002, %v2004
        %v2006 = vrot.slane %v1992, %v2005
        %v2007 = vcombine.low %v1983, %v1999
        %v2008 = vcombine.high %v1983, %v1999
        %v2010 = vunpack.c.l.s4 1934713408
        %v2011 = vunpack.c.0.s8 %v2010
        %v2012 = vlaneseq
        %v2013 = vshrl.u32 %v2012, 7
        %v2014 = vsub.s32 %v2011, %v2013
        %v2015 = vrot.slane %v2007, %v2014
        %v2017 = vunpack.c.l.s4 1934713408
        %v2018 = vunpack.c.0.s8 %v2017
        %v2019 = vlaneseq
        %v2020 = vshrl.u32 %v2019, 7
        %v2021 = vsub.s32 %v2018, %v2020
        %v2022 = vrot.slane %v2008, %v2021
        %v2023 = vcombine.low %v1990, %v2006
        %v2024 = vcombine.high %v1990, %v2006
        %v2026 = vunpack.c.l.s4 1934713408
        %v2027 = vunpack.c.0.s8 %v2026
        %v2028 = vlaneseq
        %v2029 = vshrl.u32 %v2028, 7
        %v2030 = vsub.s32 %v2027, %v2029
        %v2031 = vrot.slane %v2023, %v2030
        %v2033 = vunpack.c.l.s4 1934713408
        %v2034 = vunpack.c.0.s8 %v2033
        %v2035 = vlaneseq
        %v2036 = vshrl.u32 %v2035, 7
        %v2037 = vsub.s32 %v2034, %v2036
        %v2038 = vrot.slane %v2024, %v2037
        %v2039 = vcombine.high %v2015, 0
        %v2040 = vcombine.high %v2022, 0
        %v2041 = vcombine.high %v2031, 0
        %v2042 = vcombine.high %v2038, 0
        %2043 = vxpose.xlu0.c.b16.start [1/8] %v1539, 128
        %2044 = vxpose.xlu0.c.b16.cont [2/8] 0, 128
        %2045 = vxpose.xlu0.c.b16.cont [3/8] 0, 128
        %2046 = vxpose.xlu0.c.b16.cont [4/8] 0, 128
        %2047 = vxpose.xlu0.c.b16.cont [5/8] 0, 128
        %2048 = vxpose.xlu0.c.b16.cont [6/8] 0, 128
        %2049 = vxpose.xlu0.c.b16.cont [7/8] 0, 128
        %2050 = vxpose.xlu0.c.b16.end [8/8] 0, 128
        %v2051 = vpop.trf.xlu0
        %v2052 = vpop.trf.xlu0
        %v2053 = vpop.trf.xlu0
        %v2054 = vpop.trf.xlu0
        %v2055 = vpop.trf.xlu0
        %v2056 = vpop.trf.xlu0
        %v2057 = vpop.trf.xlu0
        %v2058 = vpop.trf.xlu0
        %2059 = vxpose.xlu0.c.b16.start [1/8] %v1607, 128
        %2060 = vxpose.xlu0.c.b16.cont [2/8] 0, 128
        %2061 = vxpose.xlu0.c.b16.cont [3/8] 0, 128
        %2062 = vxpose.xlu0.c.b16.cont [4/8] 0, 128
        %2063 = vxpose.xlu0.c.b16.cont [5/8] 0, 128
        %2064 = vxpose.xlu0.c.b16.cont [6/8] 0, 128
        %2065 = vxpose.xlu0.c.b16.cont [7/8] 0, 128
        %2066 = vxpose.xlu0.c.b16.end [8/8] 0, 128
        %v2067 = vpop.trf.xlu0
        %v2068 = vpop.trf.xlu0
        %v2069 = vpop.trf.xlu0
        %v2070 = vpop.trf.xlu0
        %v2071 = vpop.trf.xlu0
        %v2072 = vpop.trf.xlu0
        %v2073 = vpop.trf.xlu0
        %v2074 = vpop.trf.xlu0
        %2075 = vxpose.xlu0.c.b16.start [1/8] %v1563, 128
        %2076 = vxpose.xlu0.c.b16.cont [2/8] 0, 128
        %2077 = vxpose.xlu0.c.b16.cont [3/8] 0, 128
        %2078 = vxpose.xlu0.c.b16.cont [4/8] 0, 128
        %2079 = vxpose.xlu0.c.b16.cont [5/8] 0, 128
        %2080 = vxpose.xlu0.c.b16.cont [6/8] 0, 128
        %2081 = vxpose.xlu0.c.b16.cont [7/8] 0, 128
        %2082 = vxpose.xlu0.c.b16.end [8/8] 0, 128
        %v2083 = vpop.trf.xlu0
        %v2084 = vpop.trf.xlu0
        %v2085 = vpop.trf.xlu0
        %v2086 = vpop.trf.xlu0
        %v2087 = vpop.trf.xlu0
        %v2088 = vpop.trf.xlu0
        %v2089 = vpop.trf.xlu0
        %v2090 = vpop.trf.xlu0
        %2091 = vxpose.xlu0.c.b16.start [1/8] %v1631, 128
        %2092 = vxpose.xlu0.c.b16.cont [2/8] 0, 128
        %2093 = vxpose.xlu0.c.b16.cont [3/8] 0, 128
        %2094 = vxpose.xlu0.c.b16.cont [4/8] 0, 128
        %2095 = vxpose.xlu0.c.b16.cont [5/8] 0, 128
        %2096 = vxpose.xlu0.c.b16.cont [6/8] 0, 128
        %2097 = vxpose.xlu0.c.b16.cont [7/8] 0, 128
        %2098 = vxpose.xlu0.c.b16.end [8/8] 0, 128
        %v2099 = vpop.trf.xlu0
        %v2100 = vpop.trf.xlu0
        %v2101 = vpop.trf.xlu0
        %v2102 = vpop.trf.xlu0
        %v2103 = vpop.trf.xlu0
        %v2104 = vpop.trf.xlu0
        %v2105 = vpop.trf.xlu0
        %v2106 = vpop.trf.xlu0
        %2107 = vxpose.xlu0.c.b16.start [1/8] %v1546, 128
        %2108 = vxpose.xlu0.c.b16.cont [2/8] 0, 128
        %2109 = vxpose.xlu0.c.b16.cont [3/8] 0, 128
        %2110 = vxpose.xlu0.c.b16.cont [4/8] 0, 128
        %2111 = vxpose.xlu0.c.b16.cont [5/8] 0, 128
        %2112 = vxpose.xlu0.c.b16.cont [6/8] 0, 128
        %2113 = vxpose.xlu0.c.b16.cont [7/8] 0, 128
        %2114 = vxpose.xlu0.c.b16.end [8/8] 0, 128
        %v2115 = vpop.trf.xlu0
        %v2116 = vpop.trf.xlu0
        %v2117 = vpop.trf.xlu0
        %v2118 = vpop.trf.xlu0
        %v2119 = vpop.trf.xlu0
        %v2120 = vpop.trf.xlu0
        %v2121 = vpop.trf.xlu0
        %v2122 = vpop.trf.xlu0
        %2123 = vxpose.xlu0.c.b16.start [1/8] %v1614, 128
        %2124 = vxpose.xlu0.c.b16.cont [2/8] 0, 128
        %2125 = vxpose.xlu0.c.b16.cont [3/8] 0, 128
        %2126 = vxpose.xlu0.c.b16.cont [4/8] 0, 128
        %2127 = vxpose.xlu0.c.b16.cont [5/8] 0, 128
        %2128 = vxpose.xlu0.c.b16.cont [6/8] 0, 128
        %2129 = vxpose.xlu0.c.b16.cont [7/8] 0, 128
        %2130 = vxpose.xlu0.c.b16.end [8/8] 0, 128
        %v2131 = vpop.trf.xlu0
        %v2132 = vpop.trf.xlu0
        %v2133 = vpop.trf.xlu0
        %v2134 = vpop.trf.xlu0
        %v2135 = vpop.trf.xlu0
        %v2136 = vpop.trf.xlu0
        %v2137 = vpop.trf.xlu0
        %v2138 = vpop.trf.xlu0
        %2139 = vxpose.xlu0.c.b16.start [1/8] %v1564, 128
        %2140 = vxpose.xlu0.c.b16.cont [2/8] 0, 128
        %2141 = vxpose.xlu0.c.b16.cont [3/8] 0, 128
        %2142 = vxpose.xlu0.c.b16.cont [4/8] 0, 128
        %2143 = vxpose.xlu0.c.b16.cont [5/8] 0, 128
        %2144 = vxpose.xlu0.c.b16.cont [6/8] 0, 128
        %2145 = vxpose.xlu0.c.b16.cont [7/8] 0, 128
        %2146 = vxpose.xlu0.c.b16.end [8/8] 0, 128
        %v2147 = vpop.trf.xlu0
        %v2148 = vpop.trf.xlu0
        %v2149 = vpop.trf.xlu0
        %v2150 = vpop.trf.xlu0
        %v2151 = vpop.trf.xlu0
        %v2152 = vpop.trf.xlu0
        %v2153 = vpop.trf.xlu0
        %v2154 = vpop.trf.xlu0
        %2155 = vxpose.xlu0.c.b16.start [1/8] %v1632, 128
        %2156 = vxpose.xlu0.c.b16.cont [2/8] 0, 128
        %2157 = vxpose.xlu0.c.b16.cont [3/8] 0, 128
        %2158 = vxpose.xlu0.c.b16.cont [4/8] 0, 128
        %2159 = vxpose.xlu0.c.b16.cont [5/8] 0, 128
        %2160 = vxpose.xlu0.c.b16.cont [6/8] 0, 128
        %2161 = vxpose.xlu0.c.b16.cont [7/8] 0, 128
        %2162 = vxpose.xlu0.c.b16.end [8/8] 0, 128
        %v2163 = vpop.trf.xlu0
        %v2164 = vpop.trf.xlu0
        %v2165 = vpop.trf.xlu0
        %v2166 = vpop.trf.xlu0
        %v2167 = vpop.trf.xlu0
        %v2168 = vpop.trf.xlu0
        %v2169 = vpop.trf.xlu0
        %v2170 = vpop.trf.xlu0
        %2171 = vxpose.xlu0.c.b16.start [1/8] %v1555, 128
        %2172 = vxpose.xlu0.c.b16.cont [2/8] 0, 128
        %2173 = vxpose.xlu0.c.b16.cont [3/8] 0, 128
        %2174 = vxpose.xlu0.c.b16.cont [4/8] 0, 128
        %2175 = vxpose.xlu0.c.b16.cont [5/8] 0, 128
        %2176 = vxpose.xlu0.c.b16.cont [6/8] 0, 128
        %2177 = vxpose.xlu0.c.b16.cont [7/8] 0, 128
        %2178 = vxpose.xlu0.c.b16.end [8/8] 0, 128
        %v2179 = vpop.trf.xlu0
        %v2180 = vpop.trf.xlu0
        %v2181 = vpop.trf.xlu0
        %v2182 = vpop.trf.xlu0
        %v2183 = vpop.trf.xlu0
        %v2184 = vpop.trf.xlu0
        %v2185 = vpop.trf.xlu0
        %v2186 = vpop.trf.xlu0
        %2187 = vxpose.xlu0.c.b16.start [1/8] %v1623, 128
        %2188 = vxpose.xlu0.c.b16.cont [2/8] 0, 128
        %2189 = vxpose.xlu0.c.b16.cont [3/8] 0, 128
        %2190 = vxpose.xlu0.c.b16.cont [4/8] 0, 128
        %2191 = vxpose.xlu0.c.b16.cont [5/8] 0, 128
        %2192 = vxpose.xlu0.c.b16.cont [6/8] 0, 128
        %2193 = vxpose.xlu0.c.b16.cont [7/8] 0, 128
        %2194 = vxpose.xlu0.c.b16.end [8/8] 0, 128
        %v2195 = vpop.trf.xlu0
        %v2196 = vpop.trf.xlu0
        %v2197 = vpop.trf.xlu0
        %v2198 = vpop.trf.xlu0
        %v2199 = vpop.trf.xlu0
        %v2200 = vpop.trf.xlu0
        %v2201 = vpop.trf.xlu0
        %v2202 = vpop.trf.xlu0
        %2203 = vxpose.xlu0.c.b16.start [1/8] %v1565, 128
        %2204 = vxpose.xlu0.c.b16.cont [2/8] 0, 128
        %2205 = vxpose.xlu0.c.b16.cont [3/8] 0, 128
        %2206 = vxpose.xlu0.c.b16.cont [4/8] 0, 128
        %2207 = vxpose.xlu0.c.b16.cont [5/8] 0, 128
        %2208 = vxpose.xlu0.c.b16.cont [6/8] 0, 128
        %2209 = vxpose.xlu0.c.b16.cont [7/8] 0, 128
        %2210 = vxpose.xlu0.c.b16.end [8/8] 0, 128
        %v2211 = vpop.trf.xlu0
        %v2212 = vpop.trf.xlu0
        %v2213 = vpop.trf.xlu0
        %v2214 = vpop.trf.xlu0
        %v2215 = vpop.trf.xlu0
        %v2216 = vpop.trf.xlu0
        %v2217 = vpop.trf.xlu0
        %v2218 = vpop.trf.xlu0
        %2219 = vxpose.xlu0.c.b16.start [1/8] %v1633, 128
        %2220 = vxpose.xlu0.c.b16.cont [2/8] 0, 128
        %2221 = vxpose.xlu0.c.b16.cont [3/8] 0, 128
        %2222 = vxpose.xlu0.c.b16.cont [4/8] 0, 128
        %2223 = vxpose.xlu0.c.b16.cont [5/8] 0, 128
        %2224 = vxpose.xlu0.c.b16.cont [6/8] 0, 128
        %2225 = vxpose.xlu0.c.b16.cont [7/8] 0, 128
        %2226 = vxpose.xlu0.c.b16.end [8/8] 0, 128
        %v2227 = vpop.trf.xlu0
        %v2228 = vpop.trf.xlu0
        %v2229 = vpop.trf.xlu0
        %v2230 = vpop.trf.xlu0
        %v2231 = vpop.trf.xlu0
        %v2232 = vpop.trf.xlu0
        %v2233 = vpop.trf.xlu0
        %v2234 = vpop.trf.xlu0
        %2235 = vxpose.xlu0.c.b16.start [1/8] %v1562, 128
        %2236 = vxpose.xlu0.c.b16.cont [2/8] 0, 128
        %2237 = vxpose.xlu0.c.b16.cont [3/8] 0, 128
        %2238 = vxpose.xlu0.c.b16.cont [4/8] 0, 128
        %2239 = vxpose.xlu0.c.b16.cont [5/8] 0, 128
        %2240 = vxpose.xlu0.c.b16.cont [6/8] 0, 128
        %2241 = vxpose.xlu0.c.b16.cont [7/8] 0, 128
        %2242 = vxpose.xlu0.c.b16.end [8/8] 0, 128
        %v2243 = vpop.trf.xlu0
        %v2244 = vpop.trf.xlu0
        %v2245 = vpop.trf.xlu0
        %v2246 = vpop.trf.xlu0
        %v2247 = vpop.trf.xlu0
        %v2248 = vpop.trf.xlu0
        %v2249 = vpop.trf.xlu0
        %v2250 = vpop.trf.xlu0
        %2251 = vxpose.xlu0.c.b16.start [1/8] %v1630, 128
        %2252 = vxpose.xlu0.c.b16.cont [2/8] 0, 128
        %2253 = vxpose.xlu0.c.b16.cont [3/8] 0, 128
        %2254 = vxpose.xlu0.c.b16.cont [4/8] 0, 128
        %2255 = vxpose.xlu0.c.b16.cont [5/8] 0, 128
        %2256 = vxpose.xlu0.c.b16.cont [6/8] 0, 128
        %2257 = vxpose.xlu0.c.b16.cont [7/8] 0, 128
        %2258 = vxpose.xlu0.c.b16.end [8/8] 0, 128
        %v2259 = vpop.trf.xlu0
        %v2260 = vpop.trf.xlu0
        %v2261 = vpop.trf.xlu0
        %v2262 = vpop.trf.xlu0
        %v2263 = vpop.trf.xlu0
        %v2264 = vpop.trf.xlu0
        %v2265 = vpop.trf.xlu0
        %v2266 = vpop.trf.xlu0
        %2267 = vxpose.xlu0.c.b16.start [1/8] %v1566, 128
        %2268 = vxpose.xlu0.c.b16.cont [2/8] 0, 128
        %2269 = vxpose.xlu0.c.b16.cont [3/8] 0, 128
        %2270 = vxpose.xlu0.c.b16.cont [4/8] 0, 128
        %2271 = vxpose.xlu0.c.b16.cont [5/8] 0, 128
        %2272 = vxpose.xlu0.c.b16.cont [6/8] 0, 128
        %2273 = vxpose.xlu0.c.b16.cont [7/8] 0, 128
        %2274 = vxpose.xlu0.c.b16.end [8/8] 0, 128
        %v2275 = vpop.trf.xlu0
        %v2276 = vpop.trf.xlu0
        %v2277 = vpop.trf.xlu0
        %v2278 = vpop.trf.xlu0
        %v2279 = vpop.trf.xlu0
        %v2280 = vpop.trf.xlu0
        %v2281 = vpop.trf.xlu0
        %v2282 = vpop.trf.xlu0
        %2283 = vxpose.xlu0.c.b16.start [1/8] %v1634, 128
        %2284 = vxpose.xlu0.c.b16.cont [2/8] 0, 128
        %2285 = vxpose.xlu0.c.b16.cont [3/8] 0, 128
        %2286 = vxpose.xlu0.c.b16.cont [4/8] 0, 128
        %2287 = vxpose.xlu0.c.b16.cont [5/8] 0, 128
        %2288 = vxpose.xlu0.c.b16.cont [6/8] 0, 128
        %2289 = vxpose.xlu0.c.b16.cont [7/8] 0, 128
        %2290 = vxpose.xlu0.c.b16.end [8/8] 0, 128
        %v2291 = vpop.trf.xlu0
        %v2292 = vpop.trf.xlu0
        %v2293 = vpop.trf.xlu0
        %v2294 = vpop.trf.xlu0
        %v2295 = vpop.trf.xlu0
        %v2296 = vpop.trf.xlu0
        %v2297 = vpop.trf.xlu0
        %v2298 = vpop.trf.xlu0
        %2299 = vxpose.xlu0.c.b16.start [1/8] %v1675, 128
        %2300 = vxpose.xlu0.c.b16.cont [2/8] 0, 128
        %2301 = vxpose.xlu0.c.b16.cont [3/8] 0, 128
        %2302 = vxpose.xlu0.c.b16.cont [4/8] 0, 128
        %2303 = vxpose.xlu0.c.b16.cont [5/8] 0, 128
        %2304 = vxpose.xlu0.c.b16.cont [6/8] 0, 128
        %2305 = vxpose.xlu0.c.b16.cont [7/8] 0, 128
        %2306 = vxpose.xlu0.c.b16.end [8/8] 0, 128
        %v2307 = vpop.trf.xlu0
        %v2308 = vpop.trf.xlu0
        %v2309 = vpop.trf.xlu0
        %v2310 = vpop.trf.xlu0
        %v2311 = vpop.trf.xlu0
        %v2312 = vpop.trf.xlu0
        %v2313 = vpop.trf.xlu0
        %v2314 = vpop.trf.xlu0
        %2315 = vxpose.xlu0.c.b16.start [1/8] %v1743, 128
        %2316 = vxpose.xlu0.c.b16.cont [2/8] 0, 128
        %2317 = vxpose.xlu0.c.b16.cont [3/8] 0, 128
        %2318 = vxpose.xlu0.c.b16.cont [4/8] 0, 128
        %2319 = vxpose.xlu0.c.b16.cont [5/8] 0, 128
        %2320 = vxpose.xlu0.c.b16.cont [6/8] 0, 128
        %2321 = vxpose.xlu0.c.b16.cont [7/8] 0, 128
        %2322 = vxpose.xlu0.c.b16.end [8/8] 0, 128
        %v2323 = vpop.trf.xlu0
        %v2324 = vpop.trf.xlu0
        %v2325 = vpop.trf.xlu0
        %v2326 = vpop.trf.xlu0
        %v2327 = vpop.trf.xlu0
        %v2328 = vpop.trf.xlu0
        %v2329 = vpop.trf.xlu0
        %v2330 = vpop.trf.xlu0
        %2331 = vxpose.xlu0.c.b16.start [1/8] %v1699, 128
        %2332 = vxpose.xlu0.c.b16.cont [2/8] 0, 128
        %2333 = vxpose.xlu0.c.b16.cont [3/8] 0, 128
        %2334 = vxpose.xlu0.c.b16.cont [4/8] 0, 128
        %2335 = vxpose.xlu0.c.b16.cont [5/8] 0, 128
        %2336 = vxpose.xlu0.c.b16.cont [6/8] 0, 128
        %2337 = vxpose.xlu0.c.b16.cont [7/8] 0, 128
        %2338 = vxpose.xlu0.c.b16.end [8/8] 0, 128
        %v2339 = vpop.trf.xlu0
        %v2340 = vpop.trf.xlu0
        %v2341 = vpop.trf.xlu0
        %v2342 = vpop.trf.xlu0
        %v2343 = vpop.trf.xlu0
        %v2344 = vpop.trf.xlu0
        %v2345 = vpop.trf.xlu0
        %v2346 = vpop.trf.xlu0
        %2347 = vxpose.xlu0.c.b16.start [1/8] %v1767, 128
        %2348 = vxpose.xlu0.c.b16.cont [2/8] 0, 128
        %2349 = vxpose.xlu0.c.b16.cont [3/8] 0, 128
        %2350 = vxpose.xlu0.c.b16.cont [4/8] 0, 128
        %2351 = vxpose.xlu0.c.b16.cont [5/8] 0, 128
        %2352 = vxpose.xlu0.c.b16.cont [6/8] 0, 128
        %2353 = vxpose.xlu0.c.b16.cont [7/8] 0, 128
        %2354 = vxpose.xlu0.c.b16.end [8/8] 0, 128
        %v2355 = vpop.trf.xlu0
        %v2356 = vpop.trf.xlu0
        %v2357 = vpop.trf.xlu0
        %v2358 = vpop.trf.xlu0
        %v2359 = vpop.trf.xlu0
        %v2360 = vpop.trf.xlu0
        %v2361 = vpop.trf.xlu0
        %v2362 = vpop.trf.xlu0
        %2363 = vxpose.xlu0.c.b16.start [1/8] %v1682, 128
        %2364 = vxpose.xlu0.c.b16.cont [2/8] 0, 128
        %2365 = vxpose.xlu0.c.b16.cont [3/8] 0, 128
        %2366 = vxpose.xlu0.c.b16.cont [4/8] 0, 128
        %2367 = vxpose.xlu0.c.b16.cont [5/8] 0, 128
        %2368 = vxpose.xlu0.c.b16.cont [6/8] 0, 128
        %2369 = vxpose.xlu0.c.b16.cont [7/8] 0, 128
        %2370 = vxpose.xlu0.c.b16.end [8/8] 0, 128
        %v2371 = vpop.trf.xlu0
        %v2372 = vpop.trf.xlu0
        %v2373 = vpop.trf.xlu0
        %v2374 = vpop.trf.xlu0
        %v2375 = vpop.trf.xlu0
        %v2376 = vpop.trf.xlu0
        %v2377 = vpop.trf.xlu0
        %v2378 = vpop.trf.xlu0
        %2379 = vxpose.xlu0.c.b16.start [1/8] %v1750, 128
        %2380 = vxpose.xlu0.c.b16.cont [2/8] 0, 128
        %2381 = vxpose.xlu0.c.b16.cont [3/8] 0, 128
        %2382 = vxpose.xlu0.c.b16.cont [4/8] 0, 128
        %2383 = vxpose.xlu0.c.b16.cont [5/8] 0, 128
        %2384 = vxpose.xlu0.c.b16.cont [6/8] 0, 128
        %2385 = vxpose.xlu0.c.b16.cont [7/8] 0, 128
        %2386 = vxpose.xlu0.c.b16.end [8/8] 0, 128
        %v2387 = vpop.trf.xlu0
        %v2388 = vpop.trf.xlu0
        %v2389 = vpop.trf.xlu0
        %v2390 = vpop.trf.xlu0
        %v2391 = vpop.trf.xlu0
        %v2392 = vpop.trf.xlu0
        %v2393 = vpop.trf.xlu0
        %v2394 = vpop.trf.xlu0
        %2395 = vxpose.xlu0.c.b16.start [1/8] %v1700, 128
        %2396 = vxpose.xlu0.c.b16.cont [2/8] 0, 128
        %2397 = vxpose.xlu0.c.b16.cont [3/8] 0, 128
        %2398 = vxpose.xlu0.c.b16.cont [4/8] 0, 128
        %2399 = vxpose.xlu0.c.b16.cont [5/8] 0, 128
        %2400 = vxpose.xlu0.c.b16.cont [6/8] 0, 128
        %2401 = vxpose.xlu0.c.b16.cont [7/8] 0, 128
        %2402 = vxpose.xlu0.c.b16.end [8/8] 0, 128
        %v2403 = vpop.trf.xlu0
        %v2404 = vpop.trf.xlu0
        %v2405 = vpop.trf.xlu0
        %v2406 = vpop.trf.xlu0
        %v2407 = vpop.trf.xlu0
        %v2408 = vpop.trf.xlu0
        %v2409 = vpop.trf.xlu0
        %v2410 = vpop.trf.xlu0
        %2411 = vxpose.xlu0.c.b16.start [1/8] %v1768, 128
        %2412 = vxpose.xlu0.c.b16.cont [2/8] 0, 128
        %2413 = vxpose.xlu0.c.b16.cont [3/8] 0, 128
        %2414 = vxpose.xlu0.c.b16.cont [4/8] 0, 128
        %2415 = vxpose.xlu0.c.b16.cont [5/8] 0, 128
        %2416 = vxpose.xlu0.c.b16.cont [6/8] 0, 128
        %2417 = vxpose.xlu0.c.b16.cont [7/8] 0, 128
        %2418 = vxpose.xlu0.c.b16.end [8/8] 0, 128
        %v2419 = vpop.trf.xlu0
        %v2420 = vpop.trf.xlu0
        %v2421 = vpop.trf.xlu0
        %v2422 = vpop.trf.xlu0
        %v2423 = vpop.trf.xlu0
        %v2424 = vpop.trf.xlu0
        %v2425 = vpop.trf.xlu0
        %v2426 = vpop.trf.xlu0
        %2427 = vxpose.xlu0.c.b16.start [1/8] %v1691, 128
        %2428 = vxpose.xlu0.c.b16.cont [2/8] 0, 128
        %2429 = vxpose.xlu0.c.b16.cont [3/8] 0, 128
        %2430 = vxpose.xlu0.c.b16.cont [4/8] 0, 128
        %2431 = vxpose.xlu0.c.b16.cont [5/8] 0, 128
        %2432 = vxpose.xlu0.c.b16.cont [6/8] 0, 128
        %2433 = vxpose.xlu0.c.b16.cont [7/8] 0, 128
        %2434 = vxpose.xlu0.c.b16.end [8/8] 0, 128
        %v2435 = vpop.trf.xlu0
        %v2436 = vpop.trf.xlu0
        %v2437 = vpop.trf.xlu0
        %v2438 = vpop.trf.xlu0
        %v2439 = vpop.trf.xlu0
        %v2440 = vpop.trf.xlu0
        %v2441 = vpop.trf.xlu0
        %v2442 = vpop.trf.xlu0
        %2443 = vxpose.xlu0.c.b16.start [1/8] %v1759, 128
        %2444 = vxpose.xlu0.c.b16.cont [2/8] 0, 128
        %2445 = vxpose.xlu0.c.b16.cont [3/8] 0, 128
        %2446 = vxpose.xlu0.c.b16.cont [4/8] 0, 128
        %2447 = vxpose.xlu0.c.b16.cont [5/8] 0, 128
        %2448 = vxpose.xlu0.c.b16.cont [6/8] 0, 128
        %2449 = vxpose.xlu0.c.b16.cont [7/8] 0, 128
        %2450 = vxpose.xlu0.c.b16.end [8/8] 0, 128
        %v2451 = vpop.trf.xlu0
        %v2452 = vpop.trf.xlu0
        %v2453 = vpop.trf.xlu0
        %v2454 = vpop.trf.xlu0
        %v2455 = vpop.trf.xlu0
        %v2456 = vpop.trf.xlu0
        %v2457 = vpop.trf.xlu0
        %v2458 = vpop.trf.xlu0
        %2459 = vxpose.xlu0.c.b16.start [1/8] %v1701, 128
        %2460 = vxpose.xlu0.c.b16.cont [2/8] 0, 128
        %2461 = vxpose.xlu0.c.b16.cont [3/8] 0, 128
        %2462 = vxpose.xlu0.c.b16.cont [4/8] 0, 128
        %2463 = vxpose.xlu0.c.b16.cont [5/8] 0, 128
        %2464 = vxpose.xlu0.c.b16.cont [6/8] 0, 128
        %2465 = vxpose.xlu0.c.b16.cont [7/8] 0, 128
        %2466 = vxpose.xlu0.c.b16.end [8/8] 0, 128
        %v2467 = vpop.trf.xlu0
        %v2468 = vpop.trf.xlu0
        %v2469 = vpop.trf.xlu0
        %v2470 = vpop.trf.xlu0
        %v2471 = vpop.trf.xlu0
        %v2472 = vpop.trf.xlu0
        %v2473 = vpop.trf.xlu0
        %v2474 = vpop.trf.xlu0
        %2475 = vxpose.xlu0.c.b16.start [1/8] %v1769, 128
        %2476 = vxpose.xlu0.c.b16.cont [2/8] 0, 128
        %2477 = vxpose.xlu0.c.b16.cont [3/8] 0, 128
        %2478 = vxpose.xlu0.c.b16.cont [4/8] 0, 128
        %2479 = vxpose.xlu0.c.b16.cont [5/8] 0, 128
        %2480 = vxpose.xlu0.c.b16.cont [6/8] 0, 128
        %2481 = vxpose.xlu0.c.b16.cont [7/8] 0, 128
        %2482 = vxpose.xlu0.c.b16.end [8/8] 0, 128
        %v2483 = vpop.trf.xlu0
        %v2484 = vpop.trf.xlu0
        %v2485 = vpop.trf.xlu0
        %v2486 = vpop.trf.xlu0
        %v2487 = vpop.trf.xlu0
        %v2488 = vpop.trf.xlu0
        %v2489 = vpop.trf.xlu0
        %v2490 = vpop.trf.xlu0
        %2491 = vxpose.xlu0.c.b16.start [1/8] %v1698, 128
        %2492 = vxpose.xlu0.c.b16.cont [2/8] 0, 128
        %2493 = vxpose.xlu0.c.b16.cont [3/8] 0, 128
        %2494 = vxpose.xlu0.c.b16.cont [4/8] 0, 128
        %2495 = vxpose.xlu0.c.b16.cont [5/8] 0, 128
        %2496 = vxpose.xlu0.c.b16.cont [6/8] 0, 128
        %2497 = vxpose.xlu0.c.b16.cont [7/8] 0, 128
        %2498 = vxpose.xlu0.c.b16.end [8/8] 0, 128
        %v2499 = vpop.trf.xlu0
        %v2500 = vpop.trf.xlu0
        %v2501 = vpop.trf.xlu0
        %v2502 = vpop.trf.xlu0
        %v2503 = vpop.trf.xlu0
        %v2504 = vpop.trf.xlu0
        %v2505 = vpop.trf.xlu0
        %v2506 = vpop.trf.xlu0
        %2507 = vxpose.xlu0.c.b16.start [1/8] %v1766, 128
        %2508 = vxpose.xlu0.c.b16.cont [2/8] 0, 128
        %2509 = vxpose.xlu0.c.b16.cont [3/8] 0, 128
        %2510 = vxpose.xlu0.c.b16.cont [4/8] 0, 128
        %2511 = vxpose.xlu0.c.b16.cont [5/8] 0, 128
        %2512 = vxpose.xlu0.c.b16.cont [6/8] 0, 128
        %2513 = vxpose.xlu0.c.b16.cont [7/8] 0, 128
        %2514 = vxpose.xlu0.c.b16.end [8/8] 0, 128
        %v2515 = vpop.trf.xlu0
        %v2516 = vpop.trf.xlu0
        %v2517 = vpop.trf.xlu0
        %v2518 = vpop.trf.xlu0
        %v2519 = vpop.trf.xlu0
        %v2520 = vpop.trf.xlu0
        %v2521 = vpop.trf.xlu0
        %v2522 = vpop.trf.xlu0
        %2523 = vxpose.xlu0.c.b16.start [1/8] %v1702, 128
        %2524 = vxpose.xlu0.c.b16.cont [2/8] 0, 128
        %2525 = vxpose.xlu0.c.b16.cont [3/8] 0, 128
        %2526 = vxpose.xlu0.c.b16.cont [4/8] 0, 128
        %2527 = vxpose.xlu0.c.b16.cont [5/8] 0, 128
        %2528 = vxpose.xlu0.c.b16.cont [6/8] 0, 128
        %2529 = vxpose.xlu0.c.b16.cont [7/8] 0, 128
        %2530 = vxpose.xlu0.c.b16.end [8/8] 0, 128
        %v2531 = vpop.trf.xlu0
        %v2532 = vpop.trf.xlu0
        %v2533 = vpop.trf.xlu0
        %v2534 = vpop.trf.xlu0
        %v2535 = vpop.trf.xlu0
        %v2536 = vpop.trf.xlu0
        %v2537 = vpop.trf.xlu0
        %v2538 = vpop.trf.xlu0
        %2539 = vxpose.xlu0.c.b16.start [1/8] %v1770, 128
        %2540 = vxpose.xlu0.c.b16.cont [2/8] 0, 128
        %2541 = vxpose.xlu0.c.b16.cont [3/8] 0, 128
        %2542 = vxpose.xlu0.c.b16.cont [4/8] 0, 128
        %2543 = vxpose.xlu0.c.b16.cont [5/8] 0, 128
        %2544 = vxpose.xlu0.c.b16.cont [6/8] 0, 128
        %2545 = vxpose.xlu0.c.b16.cont [7/8] 0, 128
        %2546 = vxpose.xlu0.c.b16.end [8/8] 0, 128
        %v2547 = vpop.trf.xlu0
        %v2548 = vpop.trf.xlu0
        %v2549 = vpop.trf.xlu0
        %v2550 = vpop.trf.xlu0
        %v2551 = vpop.trf.xlu0
        %v2552 = vpop.trf.xlu0
        %v2553 = vpop.trf.xlu0
        %v2554 = vpop.trf.xlu0
        %2555 = vxpose.xlu0.c.b16.start [1/8] %v1811, 128
        %2556 = vxpose.xlu0.c.b16.cont [2/8] 0, 128
        %2557 = vxpose.xlu0.c.b16.cont [3/8] 0, 128
        %2558 = vxpose.xlu0.c.b16.cont [4/8] 0, 128
        %2559 = vxpose.xlu0.c.b16.cont [5/8] 0, 128
        %2560 = vxpose.xlu0.c.b16.cont [6/8] 0, 128
        %2561 = vxpose.xlu0.c.b16.cont [7/8] 0, 128
        %2562 = vxpose.xlu0.c.b16.end [8/8] 0, 128
        %v2563 = vpop.trf.xlu0
        %v2564 = vpop.trf.xlu0
        %v2565 = vpop.trf.xlu0
        %v2566 = vpop.trf.xlu0
        %v2567 = vpop.trf.xlu0
        %v2568 = vpop.trf.xlu0
        %v2569 = vpop.trf.xlu0
        %v2570 = vpop.trf.xlu0
        %2571 = vxpose.xlu0.c.b16.start [1/8] %v1879, 128
        %2572 = vxpose.xlu0.c.b16.cont [2/8] 0, 128
        %2573 = vxpose.xlu0.c.b16.cont [3/8] 0, 128
        %2574 = vxpose.xlu0.c.b16.cont [4/8] 0, 128
        %2575 = vxpose.xlu0.c.b16.cont [5/8] 0, 128
        %2576 = vxpose.xlu0.c.b16.cont [6/8] 0, 128
        %2577 = vxpose.xlu0.c.b16.cont [7/8] 0, 128
        %2578 = vxpose.xlu0.c.b16.end [8/8] 0, 128
        %v2579 = vpop.trf.xlu0
        %v2580 = vpop.trf.xlu0
        %v2581 = vpop.trf.xlu0
        %v2582 = vpop.trf.xlu0
        %v2583 = vpop.trf.xlu0
        %v2584 = vpop.trf.xlu0
        %v2585 = vpop.trf.xlu0
        %v2586 = vpop.trf.xlu0
        %2587 = vxpose.xlu0.c.b16.start [1/8] %v1835, 128
        %2588 = vxpose.xlu0.c.b16.cont [2/8] 0, 128
        %2589 = vxpose.xlu0.c.b16.cont [3/8] 0, 128
        %2590 = vxpose.xlu0.c.b16.cont [4/8] 0, 128
        %2591 = vxpose.xlu0.c.b16.cont [5/8] 0, 128
        %2592 = vxpose.xlu0.c.b16.cont [6/8] 0, 128
        %2593 = vxpose.xlu0.c.b16.cont [7/8] 0, 128
        %2594 = vxpose.xlu0.c.b16.end [8/8] 0, 128
        %v2595 = vpop.trf.xlu0
        %v2596 = vpop.trf.xlu0
        %v2597 = vpop.trf.xlu0
        %v2598 = vpop.trf.xlu0
        %v2599 = vpop.trf.xlu0
        %v2600 = vpop.trf.xlu0
        %v2601 = vpop.trf.xlu0
        %v2602 = vpop.trf.xlu0
        %2603 = vxpose.xlu0.c.b16.start [1/8] %v1903, 128
        %2604 = vxpose.xlu0.c.b16.cont [2/8] 0, 128
        %2605 = vxpose.xlu0.c.b16.cont [3/8] 0, 128
        %2606 = vxpose.xlu0.c.b16.cont [4/8] 0, 128
        %2607 = vxpose.xlu0.c.b16.cont [5/8] 0, 128
        %2608 = vxpose.xlu0.c.b16.cont [6/8] 0, 128
        %2609 = vxpose.xlu0.c.b16.cont [7/8] 0, 128
        %2610 = vxpose.xlu0.c.b16.end [8/8] 0, 128
        %v2611 = vpop.trf.xlu0
        %v2612 = vpop.trf.xlu0
        %v2613 = vpop.trf.xlu0
        %v2614 = vpop.trf.xlu0
        %v2615 = vpop.trf.xlu0
        %v2616 = vpop.trf.xlu0
        %v2617 = vpop.trf.xlu0
        %v2618 = vpop.trf.xlu0
        %2619 = vxpose.xlu0.c.b16.start [1/8] %v1818, 128
        %2620 = vxpose.xlu0.c.b16.cont [2/8] 0, 128
        %2621 = vxpose.xlu0.c.b16.cont [3/8] 0, 128
        %2622 = vxpose.xlu0.c.b16.cont [4/8] 0, 128
        %2623 = vxpose.xlu0.c.b16.cont [5/8] 0, 128
        %2624 = vxpose.xlu0.c.b16.cont [6/8] 0, 128
        %2625 = vxpose.xlu0.c.b16.cont [7/8] 0, 128
        %2626 = vxpose.xlu0.c.b16.end [8/8] 0, 128
        %v2627 = vpop.trf.xlu0
        %v2628 = vpop.trf.xlu0
        %v2629 = vpop.trf.xlu0
        %v2630 = vpop.trf.xlu0
        %v2631 = vpop.trf.xlu0
        %v2632 = vpop.trf.xlu0
        %v2633 = vpop.trf.xlu0
        %v2634 = vpop.trf.xlu0
        %2635 = vxpose.xlu0.c.b16.start [1/8] %v1886, 128
        %2636 = vxpose.xlu0.c.b16.cont [2/8] 0, 128
        %2637 = vxpose.xlu0.c.b16.cont [3/8] 0, 128
        %2638 = vxpose.xlu0.c.b16.cont [4/8] 0, 128
        %2639 = vxpose.xlu0.c.b16.cont [5/8] 0, 128
        %2640 = vxpose.xlu0.c.b16.cont [6/8] 0, 128
        %2641 = vxpose.xlu0.c.b16.cont [7/8] 0, 128
        %2642 = vxpose.xlu0.c.b16.end [8/8] 0, 128
        %v2643 = vpop.trf.xlu0
        %v2644 = vpop.trf.xlu0
        %v2645 = vpop.trf.xlu0
        %v2646 = vpop.trf.xlu0
        %v2647 = vpop.trf.xlu0
        %v2648 = vpop.trf.xlu0
        %v2649 = vpop.trf.xlu0
        %v2650 = vpop.trf.xlu0
        %2651 = vxpose.xlu0.c.b16.start [1/8] %v1836, 128
        %2652 = vxpose.xlu0.c.b16.cont [2/8] 0, 128
        %2653 = vxpose.xlu0.c.b16.cont [3/8] 0, 128
        %2654 = vxpose.xlu0.c.b16.cont [4/8] 0, 128
        %2655 = vxpose.xlu0.c.b16.cont [5/8] 0, 128
        %2656 = vxpose.xlu0.c.b16.cont [6/8] 0, 128
        %2657 = vxpose.xlu0.c.b16.cont [7/8] 0, 128
        %2658 = vxpose.xlu0.c.b16.end [8/8] 0, 128
        %v2659 = vpop.trf.xlu0
        %v2660 = vpop.trf.xlu0
        %v2661 = vpop.trf.xlu0
        %v2662 = vpop.trf.xlu0
        %v2663 = vpop.trf.xlu0
        %v2664 = vpop.trf.xlu0
        %v2665 = vpop.trf.xlu0
        %v2666 = vpop.trf.xlu0
        %2667 = vxpose.xlu0.c.b16.start [1/8] %v1904, 128
        %2668 = vxpose.xlu0.c.b16.cont [2/8] 0, 128
        %2669 = vxpose.xlu0.c.b16.cont [3/8] 0, 128
        %2670 = vxpose.xlu0.c.b16.cont [4/8] 0, 128
        %2671 = vxpose.xlu0.c.b16.cont [5/8] 0, 128
        %2672 = vxpose.xlu0.c.b16.cont [6/8] 0, 128
        %2673 = vxpose.xlu0.c.b16.cont [7/8] 0, 128
        %2674 = vxpose.xlu0.c.b16.end [8/8] 0, 128
        %v2675 = vpop.trf.xlu0
        %v2676 = vpop.trf.xlu0
        %v2677 = vpop.trf.xlu0
        %v2678 = vpop.trf.xlu0
        %v2679 = vpop.trf.xlu0
        %v2680 = vpop.trf.xlu0
        %v2681 = vpop.trf.xlu0
        %v2682 = vpop.trf.xlu0
        %2683 = vxpose.xlu0.c.b16.start [1/8] %v1827, 128
        %2684 = vxpose.xlu0.c.b16.cont [2/8] 0, 128
        %2685 = vxpose.xlu0.c.b16.cont [3/8] 0, 128
        %2686 = vxpose.xlu0.c.b16.cont [4/8] 0, 128
        %2687 = vxpose.xlu0.c.b16.cont [5/8] 0, 128
        %2688 = vxpose.xlu0.c.b16.cont [6/8] 0, 128
        %2689 = vxpose.xlu0.c.b16.cont [7/8] 0, 128
        %2690 = vxpose.xlu0.c.b16.end [8/8] 0, 128
        %v2691 = vpop.trf.xlu0
        %v2692 = vpop.trf.xlu0
        %v2693 = vpop.trf.xlu0
        %v2694 = vpop.trf.xlu0
        %v2695 = vpop.trf.xlu0
        %v2696 = vpop.trf.xlu0
        %v2697 = vpop.trf.xlu0
        %v2698 = vpop.trf.xlu0
        %2699 = vxpose.xlu0.c.b16.start [1/8] %v1895, 128
        %2700 = vxpose.xlu0.c.b16.cont [2/8] 0, 128
        %2701 = vxpose.xlu0.c.b16.cont [3/8] 0, 128
        %2702 = vxpose.xlu0.c.b16.cont [4/8] 0, 128
        %2703 = vxpose.xlu0.c.b16.cont [5/8] 0, 128
        %2704 = vxpose.xlu0.c.b16.cont [6/8] 0, 128
        %2705 = vxpose.xlu0.c.b16.cont [7/8] 0, 128
        %2706 = vxpose.xlu0.c.b16.end [8/8] 0, 128
        %v2707 = vpop.trf.xlu0
        %v2708 = vpop.trf.xlu0
        %v2709 = vpop.trf.xlu0
        %v2710 = vpop.trf.xlu0
        %v2711 = vpop.trf.xlu0
        %v2712 = vpop.trf.xlu0
        %v2713 = vpop.trf.xlu0
        %v2714 = vpop.trf.xlu0
        %2715 = vxpose.xlu0.c.b16.start [1/8] %v1837, 128
        %2716 = vxpose.xlu0.c.b16.cont [2/8] 0, 128
        %2717 = vxpose.xlu0.c.b16.cont [3/8] 0, 128
        %2718 = vxpose.xlu0.c.b16.cont [4/8] 0, 128
        %2719 = vxpose.xlu0.c.b16.cont [5/8] 0, 128
        %2720 = vxpose.xlu0.c.b16.cont [6/8] 0, 128
        %2721 = vxpose.xlu0.c.b16.cont [7/8] 0, 128
        %2722 = vxpose.xlu0.c.b16.end [8/8] 0, 128
        %v2723 = vpop.trf.xlu0
        %v2724 = vpop.trf.xlu0
        %v2725 = vpop.trf.xlu0
        %v2726 = vpop.trf.xlu0
        %v2727 = vpop.trf.xlu0
        %v2728 = vpop.trf.xlu0
        %v2729 = vpop.trf.xlu0
        %v2730 = vpop.trf.xlu0
        %2731 = vxpose.xlu0.c.b16.start [1/8] %v1905, 128
        %2732 = vxpose.xlu0.c.b16.cont [2/8] 0, 128
        %2733 = vxpose.xlu0.c.b16.cont [3/8] 0, 128
        %2734 = vxpose.xlu0.c.b16.cont [4/8] 0, 128
        %2735 = vxpose.xlu0.c.b16.cont [5/8] 0, 128
        %2736 = vxpose.xlu0.c.b16.cont [6/8] 0, 128
        %2737 = vxpose.xlu0.c.b16.cont [7/8] 0, 128
        %2738 = vxpose.xlu0.c.b16.end [8/8] 0, 128
        %v2739 = vpop.trf.xlu0
        %v2740 = vpop.trf.xlu0
        %v2741 = vpop.trf.xlu0
        %v2742 = vpop.trf.xlu0
        %v2743 = vpop.trf.xlu0
        %v2744 = vpop.trf.xlu0
        %v2745 = vpop.trf.xlu0
        %v2746 = vpop.trf.xlu0
        %2747 = vxpose.xlu0.c.b16.start [1/8] %v1834, 128
        %2748 = vxpose.xlu0.c.b16.cont [2/8] 0, 128
        %2749 = vxpose.xlu0.c.b16.cont [3/8] 0, 128
        %2750 = vxpose.xlu0.c.b16.cont [4/8] 0, 128
        %2751 = vxpose.xlu0.c.b16.cont [5/8] 0, 128
        %2752 = vxpose.xlu0.c.b16.cont [6/8] 0, 128
        %2753 = vxpose.xlu0.c.b16.cont [7/8] 0, 128
        %2754 = vxpose.xlu0.c.b16.end [8/8] 0, 128
        %v2755 = vpop.trf.xlu0
        %v2756 = vpop.trf.xlu0
        %v2757 = vpop.trf.xlu0
        %v2758 = vpop.trf.xlu0
        %v2759 = vpop.trf.xlu0
        %v2760 = vpop.trf.xlu0
        %v2761 = vpop.trf.xlu0
        %v2762 = vpop.trf.xlu0
        %2763 = vxpose.xlu0.c.b16.start [1/8] %v1902, 128
        %2764 = vxpose.xlu0.c.b16.cont [2/8] 0, 128
        %2765 = vxpose.xlu0.c.b16.cont [3/8] 0, 128
        %2766 = vxpose.xlu0.c.b16.cont [4/8] 0, 128
        %2767 = vxpose.xlu0.c.b16.cont [5/8] 0, 128
        %2768 = vxpose.xlu0.c.b16.cont [6/8] 0, 128
        %2769 = vxpose.xlu0.c.b16.cont [7/8] 0, 128
        %2770 = vxpose.xlu0.c.b16.end [8/8] 0, 128
        %v2771 = vpop.trf.xlu0
        %v2772 = vpop.trf.xlu0
        %v2773 = vpop.trf.xlu0
        %v2774 = vpop.trf.xlu0
        %v2775 = vpop.trf.xlu0
        %v2776 = vpop.trf.xlu0
        %v2777 = vpop.trf.xlu0
        %v2778 = vpop.trf.xlu0
        %2779 = vxpose.xlu0.c.b16.start [1/8] %v1838, 128
        %2780 = vxpose.xlu0.c.b16.cont [2/8] 0, 128
        %2781 = vxpose.xlu0.c.b16.cont [3/8] 0, 128
        %2782 = vxpose.xlu0.c.b16.cont [4/8] 0, 128
        %2783 = vxpose.xlu0.c.b16.cont [5/8] 0, 128
        %2784 = vxpose.xlu0.c.b16.cont [6/8] 0, 128
        %2785 = vxpose.xlu0.c.b16.cont [7/8] 0, 128
        %2786 = vxpose.xlu0.c.b16.end [8/8] 0, 128
        %v2787 = vpop.trf.xlu0
        %v2788 = vpop.trf.xlu0
        %v2789 = vpop.trf.xlu0
        %v2790 = vpop.trf.xlu0
        %v2791 = vpop.trf.xlu0
        %v2792 = vpop.trf.xlu0
        %v2793 = vpop.trf.xlu0
        %v2794 = vpop.trf.xlu0
        %2795 = vxpose.xlu0.c.b16.start [1/8] %v1906, 128
        %2796 = vxpose.xlu0.c.b16.cont [2/8] 0, 128
        %2797 = vxpose.xlu0.c.b16.cont [3/8] 0, 128
        %2798 = vxpose.xlu0.c.b16.cont [4/8] 0, 128
        %2799 = vxpose.xlu0.c.b16.cont [5/8] 0, 128
        %2800 = vxpose.xlu0.c.b16.cont [6/8] 0, 128
        %2801 = vxpose.xlu0.c.b16.cont [7/8] 0, 128
        %2802 = vxpose.xlu0.c.b16.end [8/8] 0, 128
        %v2803 = vpop.trf.xlu0
        %v2804 = vpop.trf.xlu0
        %v2805 = vpop.trf.xlu0
        %v2806 = vpop.trf.xlu0
        %v2807 = vpop.trf.xlu0
        %v2808 = vpop.trf.xlu0
        %v2809 = vpop.trf.xlu0
        %v2810 = vpop.trf.xlu0
        %2811 = vxpose.xlu0.c.b16.start [1/8] %v1947, 128
        %2812 = vxpose.xlu0.c.b16.cont [2/8] 0, 128
        %2813 = vxpose.xlu0.c.b16.cont [3/8] 0, 128
        %2814 = vxpose.xlu0.c.b16.cont [4/8] 0, 128
        %2815 = vxpose.xlu0.c.b16.cont [5/8] 0, 128
        %2816 = vxpose.xlu0.c.b16.cont [6/8] 0, 128
        %2817 = vxpose.xlu0.c.b16.cont [7/8] 0, 128
        %2818 = vxpose.xlu0.c.b16.end [8/8] 0, 128
        %v2819 = vpop.trf.xlu0
        %v2820 = vpop.trf.xlu0
        %v2821 = vpop.trf.xlu0
        %v2822 = vpop.trf.xlu0
        %v2823 = vpop.trf.xlu0
        %v2824 = vpop.trf.xlu0
        %v2825 = vpop.trf.xlu0
        %v2826 = vpop.trf.xlu0
        %2827 = vxpose.xlu0.c.b16.start [1/8] %v2015, 128
        %2828 = vxpose.xlu0.c.b16.cont [2/8] 0, 128
        %2829 = vxpose.xlu0.c.b16.cont [3/8] 0, 128
        %2830 = vxpose.xlu0.c.b16.cont [4/8] 0, 128
        %2831 = vxpose.xlu0.c.b16.cont [5/8] 0, 128
        %2832 = vxpose.xlu0.c.b16.cont [6/8] 0, 128
        %2833 = vxpose.xlu0.c.b16.cont [7/8] 0, 128
        %2834 = vxpose.xlu0.c.b16.end [8/8] 0, 128
        %v2835 = vpop.trf.xlu0
        %v2836 = vpop.trf.xlu0
        %v2837 = vpop.trf.xlu0
        %v2838 = vpop.trf.xlu0
        %v2839 = vpop.trf.xlu0
        %v2840 = vpop.trf.xlu0
        %v2841 = vpop.trf.xlu0
        %v2842 = vpop.trf.xlu0
        %2843 = vxpose.xlu0.c.b16.start [1/8] %v1971, 128
        %2844 = vxpose.xlu0.c.b16.cont [2/8] 0, 128
        %2845 = vxpose.xlu0.c.b16.cont [3/8] 0, 128
        %2846 = vxpose.xlu0.c.b16.cont [4/8] 0, 128
        %2847 = vxpose.xlu0.c.b16.cont [5/8] 0, 128
        %2848 = vxpose.xlu0.c.b16.cont [6/8] 0, 128
        %2849 = vxpose.xlu0.c.b16.cont [7/8] 0, 128
        %2850 = vxpose.xlu0.c.b16.end [8/8] 0, 128
        %v2851 = vpop.trf.xlu0
        %v2852 = vpop.trf.xlu0
        %v2853 = vpop.trf.xlu0
        %v2854 = vpop.trf.xlu0
        %v2855 = vpop.trf.xlu0
        %v2856 = vpop.trf.xlu0
        %v2857 = vpop.trf.xlu0
        %v2858 = vpop.trf.xlu0
        %2859 = vxpose.xlu0.c.b16.start [1/8] %v2039, 128
        %2860 = vxpose.xlu0.c.b16.cont [2/8] 0, 128
        %2861 = vxpose.xlu0.c.b16.cont [3/8] 0, 128
        %2862 = vxpose.xlu0.c.b16.cont [4/8] 0, 128
        %2863 = vxpose.xlu0.c.b16.cont [5/8] 0, 128
        %2864 = vxpose.xlu0.c.b16.cont [6/8] 0, 128
        %2865 = vxpose.xlu0.c.b16.cont [7/8] 0, 128
        %2866 = vxpose.xlu0.c.b16.end [8/8] 0, 128
        %v2867 = vpop.trf.xlu0
        %v2868 = vpop.trf.xlu0
        %v2869 = vpop.trf.xlu0
        %v2870 = vpop.trf.xlu0
        %v2871 = vpop.trf.xlu0
        %v2872 = vpop.trf.xlu0
        %v2873 = vpop.trf.xlu0
        %v2874 = vpop.trf.xlu0
        %2875 = vxpose.xlu0.c.b16.start [1/8] %v1954, 128
        %2876 = vxpose.xlu0.c.b16.cont [2/8] 0, 128
        %2877 = vxpose.xlu0.c.b16.cont [3/8] 0, 128
        %2878 = vxpose.xlu0.c.b16.cont [4/8] 0, 128
        %2879 = vxpose.xlu0.c.b16.cont [5/8] 0, 128
        %2880 = vxpose.xlu0.c.b16.cont [6/8] 0, 128
        %2881 = vxpose.xlu0.c.b16.cont [7/8] 0, 128
        %2882 = vxpose.xlu0.c.b16.end [8/8] 0, 128
        %v2883 = vpop.trf.xlu0
        %v2884 = vpop.trf.xlu0
        %v2885 = vpop.trf.xlu0
        %v2886 = vpop.trf.xlu0
        %v2887 = vpop.trf.xlu0
        %v2888 = vpop.trf.xlu0
        %v2889 = vpop.trf.xlu0
        %v2890 = vpop.trf.xlu0
        %2891 = vxpose.xlu0.c.b16.start [1/8] %v2022, 128
        %2892 = vxpose.xlu0.c.b16.cont [2/8] 0, 128
        %2893 = vxpose.xlu0.c.b16.cont [3/8] 0, 128
        %2894 = vxpose.xlu0.c.b16.cont [4/8] 0, 128
        %2895 = vxpose.xlu0.c.b16.cont [5/8] 0, 128
        %2896 = vxpose.xlu0.c.b16.cont [6/8] 0, 128
        %2897 = vxpose.xlu0.c.b16.cont [7/8] 0, 128
        %2898 = vxpose.xlu0.c.b16.end [8/8] 0, 128
        %v2899 = vpop.trf.xlu0
        %v2900 = vpop.trf.xlu0
        %v2901 = vpop.trf.xlu0
        %v2902 = vpop.trf.xlu0
        %v2903 = vpop.trf.xlu0
        %v2904 = vpop.trf.xlu0
        %v2905 = vpop.trf.xlu0
        %v2906 = vpop.trf.xlu0
        %2907 = vxpose.xlu0.c.b16.start [1/8] %v1972, 128
        %2908 = vxpose.xlu0.c.b16.cont [2/8] 0, 128
        %2909 = vxpose.xlu0.c.b16.cont [3/8] 0, 128
        %2910 = vxpose.xlu0.c.b16.cont [4/8] 0, 128
        %2911 = vxpose.xlu0.c.b16.cont [5/8] 0, 128
        %2912 = vxpose.xlu0.c.b16.cont [6/8] 0, 128
        %2913 = vxpose.xlu0.c.b16.cont [7/8] 0, 128
        %2914 = vxpose.xlu0.c.b16.end [8/8] 0, 128
        %v2915 = vpop.trf.xlu0
        %v2916 = vpop.trf.xlu0
        %v2917 = vpop.trf.xlu0
        %v2918 = vpop.trf.xlu0
        %v2919 = vpop.trf.xlu0
        %v2920 = vpop.trf.xlu0
        %v2921 = vpop.trf.xlu0
        %v2922 = vpop.trf.xlu0
        %2923 = vxpose.xlu0.c.b16.start [1/8] %v2040, 128
        %2924 = vxpose.xlu0.c.b16.cont [2/8] 0, 128
        %2925 = vxpose.xlu0.c.b16.cont [3/8] 0, 128
        %2926 = vxpose.xlu0.c.b16.cont [4/8] 0, 128
        %2927 = vxpose.xlu0.c.b16.cont [5/8] 0, 128
        %2928 = vxpose.xlu0.c.b16.cont [6/8] 0, 128
        %2929 = vxpose.xlu0.c.b16.cont [7/8] 0, 128
        %2930 = vxpose.xlu0.c.b16.end [8/8] 0, 128
        %v2931 = vpop.trf.xlu0
        %v2932 = vpop.trf.xlu0
        %v2933 = vpop.trf.xlu0
        %v2934 = vpop.trf.xlu0
        %v2935 = vpop.trf.xlu0
        %v2936 = vpop.trf.xlu0
        %v2937 = vpop.trf.xlu0
        %v2938 = vpop.trf.xlu0
        %2939 = vxpose.xlu0.c.b16.start [1/8] %v1963, 128
        %2940 = vxpose.xlu0.c.b16.cont [2/8] 0, 128
        %2941 = vxpose.xlu0.c.b16.cont [3/8] 0, 128
        %2942 = vxpose.xlu0.c.b16.cont [4/8] 0, 128
        %2943 = vxpose.xlu0.c.b16.cont [5/8] 0, 128
        %2944 = vxpose.xlu0.c.b16.cont [6/8] 0, 128
        %2945 = vxpose.xlu0.c.b16.cont [7/8] 0, 128
        %2946 = vxpose.xlu0.c.b16.end [8/8] 0, 128
        %v2947 = vpop.trf.xlu0
        %v2948 = vpop.trf.xlu0
        %v2949 = vpop.trf.xlu0
        %v2950 = vpop.trf.xlu0
        %v2951 = vpop.trf.xlu0
        %v2952 = vpop.trf.xlu0
        %v2953 = vpop.trf.xlu0
        %v2954 = vpop.trf.xlu0
        %2955 = vxpose.xlu0.c.b16.start [1/8] %v2031, 128
        %2956 = vxpose.xlu0.c.b16.cont [2/8] 0, 128
        %2957 = vxpose.xlu0.c.b16.cont [3/8] 0, 128
        %2958 = vxpose.xlu0.c.b16.cont [4/8] 0, 128
        %2959 = vxpose.xlu0.c.b16.cont [5/8] 0, 128
        %2960 = vxpose.xlu0.c.b16.cont [6/8] 0, 128
        %2961 = vxpose.xlu0.c.b16.cont [7/8] 0, 128
        %2962 = vxpose.xlu0.c.b16.end [8/8] 0, 128
        %v2963 = vpop.trf.xlu0
        %v2964 = vpop.trf.xlu0
        %v2965 = vpop.trf.xlu0
        %v2966 = vpop.trf.xlu0
        %v2967 = vpop.trf.xlu0
        %v2968 = vpop.trf.xlu0
        %v2969 = vpop.trf.xlu0
        %v2970 = vpop.trf.xlu0
        %2971 = vxpose.xlu0.c.b16.start [1/8] %v1973, 128
        %2972 = vxpose.xlu0.c.b16.cont [2/8] 0, 128
        %2973 = vxpose.xlu0.c.b16.cont [3/8] 0, 128
        %2974 = vxpose.xlu0.c.b16.cont [4/8] 0, 128
        %2975 = vxpose.xlu0.c.b16.cont [5/8] 0, 128
        %2976 = vxpose.xlu0.c.b16.cont [6/8] 0, 128
        %2977 = vxpose.xlu0.c.b16.cont [7/8] 0, 128
        %2978 = vxpose.xlu0.c.b16.end [8/8] 0, 128
        %v2979 = vpop.trf.xlu0
        %v2980 = vpop.trf.xlu0
        %v2981 = vpop.trf.xlu0
        %v2982 = vpop.trf.xlu0
        %v2983 = vpop.trf.xlu0
        %v2984 = vpop.trf.xlu0
        %v2985 = vpop.trf.xlu0
        %v2986 = vpop.trf.xlu0
        %2987 = vxpose.xlu0.c.b16.start [1/8] %v2041, 128
        %2988 = vxpose.xlu0.c.b16.cont [2/8] 0, 128
        %2989 = vxpose.xlu0.c.b16.cont [3/8] 0, 128
        %2990 = vxpose.xlu0.c.b16.cont [4/8] 0, 128
        %2991 = vxpose.xlu0.c.b16.cont [5/8] 0, 128
        %2992 = vxpose.xlu0.c.b16.cont [6/8] 0, 128
        %2993 = vxpose.xlu0.c.b16.cont [7/8] 0, 128
        %2994 = vxpose.xlu0.c.b16.end [8/8] 0, 128
        %v2995 = vpop.trf.xlu0
        %v2996 = vpop.trf.xlu0
        %v2997 = vpop.trf.xlu0
        %v2998 = vpop.trf.xlu0
        %v2999 = vpop.trf.xlu0
        %v3000 = vpop.trf.xlu0
        %v3001 = vpop.trf.xlu0
        %v3002 = vpop.trf.xlu0
        %3003 = vxpose.xlu0.c.b16.start [1/8] %v1970, 128
        %3004 = vxpose.xlu0.c.b16.cont [2/8] 0, 128
        %3005 = vxpose.xlu0.c.b16.cont [3/8] 0, 128
        %3006 = vxpose.xlu0.c.b16.cont [4/8] 0, 128
        %3007 = vxpose.xlu0.c.b16.cont [5/8] 0, 128
        %3008 = vxpose.xlu0.c.b16.cont [6/8] 0, 128
        %3009 = vxpose.xlu0.c.b16.cont [7/8] 0, 128
        %3010 = vxpose.xlu0.c.b16.end [8/8] 0, 128
        %v3011 = vpop.trf.xlu0
        %v3012 = vpop.trf.xlu0
        %v3013 = vpop.trf.xlu0
        %v3014 = vpop.trf.xlu0
        %v3015 = vpop.trf.xlu0
        %v3016 = vpop.trf.xlu0
        %v3017 = vpop.trf.xlu0
        %v3018 = vpop.trf.xlu0
        %3019 = vxpose.xlu0.c.b16.start [1/8] %v2038, 128
        %3020 = vxpose.xlu0.c.b16.cont [2/8] 0, 128
        %3021 = vxpose.xlu0.c.b16.cont [3/8] 0, 128
        %3022 = vxpose.xlu0.c.b16.cont [4/8] 0, 128
        %3023 = vxpose.xlu0.c.b16.cont [5/8] 0, 128
        %3024 = vxpose.xlu0.c.b16.cont [6/8] 0, 128
        %3025 = vxpose.xlu0.c.b16.cont [7/8] 0, 128
        %3026 = vxpose.xlu0.c.b16.end [8/8] 0, 128
        %v3027 = vpop.trf.xlu0
        %v3028 = vpop.trf.xlu0
        %v3029 = vpop.trf.xlu0
        %v3030 = vpop.trf.xlu0
        %v3031 = vpop.trf.xlu0
        %v3032 = vpop.trf.xlu0
        %v3033 = vpop.trf.xlu0
        %v3034 = vpop.trf.xlu0
        %3035 = vxpose.xlu0.c.b16.start [1/8] %v1974, 128
        %3036 = vxpose.xlu0.c.b16.cont [2/8] 0, 128
        %3037 = vxpose.xlu0.c.b16.cont [3/8] 0, 128
        %3038 = vxpose.xlu0.c.b16.cont [4/8] 0, 128
        %3039 = vxpose.xlu0.c.b16.cont [5/8] 0, 128
        %3040 = vxpose.xlu0.c.b16.cont [6/8] 0, 128
        %3041 = vxpose.xlu0.c.b16.cont [7/8] 0, 128
        %3042 = vxpose.xlu0.c.b16.end [8/8] 0, 128
        %v3043 = vpop.trf.xlu0
        %v3044 = vpop.trf.xlu0
        %v3045 = vpop.trf.xlu0
        %v3046 = vpop.trf.xlu0
        %v3047 = vpop.trf.xlu0
        %v3048 = vpop.trf.xlu0
        %v3049 = vpop.trf.xlu0
        %v3050 = vpop.trf.xlu0
        %3051 = vxpose.xlu0.c.b16.start [1/8] %v2042, 128
        %3052 = vxpose.xlu0.c.b16.cont [2/8] 0, 128
        %3053 = vxpose.xlu0.c.b16.cont [3/8] 0, 128
        %3054 = vxpose.xlu0.c.b16.cont [4/8] 0, 128
        %3055 = vxpose.xlu0.c.b16.cont [5/8] 0, 128
        %3056 = vxpose.xlu0.c.b16.cont [6/8] 0, 128
        %3057 = vxpose.xlu0.c.b16.cont [7/8] 0, 128
        %3058 = vxpose.xlu0.c.b16.end [8/8] 0, 128
        %v3059 = vpop.trf.xlu0
        %v3060 = vpop.trf.xlu0
        %v3061 = vpop.trf.xlu0
        %v3062 = vpop.trf.xlu0
        %v3063 = vpop.trf.xlu0
        %v3064 = vpop.trf.xlu0
        %v3065 = vpop.trf.xlu0
        %v3066 = vpop.trf.xlu0
        %v3067 = vcombine.low %v2051, %v2115
        %v3069 = vunpack.c.l.s4 1983009808
        %v3070 = vunpack.c.0.s8 %v3069
        %v3071 = vlaneseq
        %v3072 = vshrl.u32 %v3071, 7
        %v3073 = vsub.s32 %v3070, %v3072
        %v3074 = vrot.slane %v3067, %v3073
        %v3075 = vcombine.low %v2083, %v2147
        %v3077 = vunpack.c.l.s4 1983009808
        %v3078 = vunpack.c.0.s8 %v3077
        %v3079 = vlaneseq
        %v3080 = vshrl.u32 %v3079, 7
        %v3081 = vsub.s32 %v3078, %v3080
        %v3082 = vrot.slane %v3075, %v3081
        %v3083 = vcombine.low %v2179, %v2243
        %v3085 = vunpack.c.l.s4 1983009808
        %v3086 = vunpack.c.0.s8 %v3085
        %v3087 = vlaneseq
        %v3088 = vshrl.u32 %v3087, 7
        %v3089 = vsub.s32 %v3086, %v3088
        %v3090 = vrot.slane %v3083, %v3089
        %v3091 = vcombine.low %v2211, %v2275
        %v3093 = vunpack.c.l.s4 1983009808
        %v3094 = vunpack.c.0.s8 %v3093
        %v3095 = vlaneseq
        %v3096 = vshrl.u32 %v3095, 7
        %v3097 = vsub.s32 %v3094, %v3096
        %v3098 = vrot.slane %v3091, %v3097
        %v3099 = vcombine.low %v3074, %v3082
        %v3101 = vunpack.c.l.s4 1934713408
        %v3102 = vunpack.c.0.s8 %v3101
        %v3103 = vlaneseq
        %v3104 = vshrl.u32 %v3103, 7
        %v3105 = vsub.s32 %v3102, %v3104
        %v3106 = vrot.slane %v3099, %v3105
        %v3107 = vcombine.low %v3090, %v3098
        %v3109 = vunpack.c.l.s4 1934713408
        %v3110 = vunpack.c.0.s8 %v3109
        %v3111 = vlaneseq
        %v3112 = vshrl.u32 %v3111, 7
        %v3113 = vsub.s32 %v3110, %v3112
        %v3114 = vrot.slane %v3107, %v3113
        %v3115 = vcombine.low %v3106, %v3114
        %v3116 = vcombine.low %v2067, %v2131
        %v3118 = vunpack.c.l.s4 1983009808
        %v3119 = vunpack.c.0.s8 %v3118
        %v3120 = vlaneseq
        %v3121 = vshrl.u32 %v3120, 7
        %v3122 = vsub.s32 %v3119, %v3121
        %v3123 = vrot.slane %v3116, %v3122
        %v3124 = vcombine.low %v2099, %v2163
        %v3126 = vunpack.c.l.s4 1983009808
        %v3127 = vunpack.c.0.s8 %v3126
        %v3128 = vlaneseq
        %v3129 = vshrl.u32 %v3128, 7
        %v3130 = vsub.s32 %v3127, %v3129
        %v3131 = vrot.slane %v3124, %v3130
        %v3132 = vcombine.low %v2195, %v2259
        %v3134 = vunpack.c.l.s4 1983009808
        %v3135 = vunpack.c.0.s8 %v3134
        %v3136 = vlaneseq
        %v3137 = vshrl.u32 %v3136, 7
        %v3138 = vsub.s32 %v3135, %v3137
        %v3139 = vrot.slane %v3132, %v3138
        %v3140 = vcombine.low %v2227, %v2291
        %v3142 = vunpack.c.l.s4 1983009808
        %v3143 = vunpack.c.0.s8 %v3142
        %v3144 = vlaneseq
        %v3145 = vshrl.u32 %v3144, 7
        %v3146 = vsub.s32 %v3143, %v3145
        %v3147 = vrot.slane %v3140, %v3146
        %v3148 = vcombine.low %v3123, %v3131
        %v3150 = vunpack.c.l.s4 1934713408
        %v3151 = vunpack.c.0.s8 %v3150
        %v3152 = vlaneseq
        %v3153 = vshrl.u32 %v3152, 7
        %v3154 = vsub.s32 %v3151, %v3153
        %v3155 = vrot.slane %v3148, %v3154
        %v3156 = vcombine.low %v3139, %v3147
        %v3158 = vunpack.c.l.s4 1934713408
        %v3159 = vunpack.c.0.s8 %v3158
        %v3160 = vlaneseq
        %v3161 = vshrl.u32 %v3160, 7
        %v3162 = vsub.s32 %v3159, %v3161
        %v3163 = vrot.slane %v3156, %v3162
        %v3164 = vcombine.low %v3155, %v3163
        %v3165 = vcombine.low %v2307, %v2371
        %v3167 = vunpack.c.l.s4 1983009808
        %v3168 = vunpack.c.0.s8 %v3167
        %v3169 = vlaneseq
        %v3170 = vshrl.u32 %v3169, 7
        %v3171 = vsub.s32 %v3168, %v3170
        %v3172 = vrot.slane %v3165, %v3171
        %v3173 = vcombine.low %v2339, %v2403
        %v3175 = vunpack.c.l.s4 1983009808
        %v3176 = vunpack.c.0.s8 %v3175
        %v3177 = vlaneseq
        %v3178 = vshrl.u32 %v3177, 7
        %v3179 = vsub.s32 %v3176, %v3178
        %v3180 = vrot.slane %v3173, %v3179
        %v3181 = vcombine.low %v2435, %v2499
        %v3183 = vunpack.c.l.s4 1983009808
        %v3184 = vunpack.c.0.s8 %v3183
        %v3185 = vlaneseq
        %v3186 = vshrl.u32 %v3185, 7
        %v3187 = vsub.s32 %v3184, %v3186
        %v3188 = vrot.slane %v3181, %v3187
        %v3189 = vcombine.low %v2467, %v2531
        %v3191 = vunpack.c.l.s4 1983009808
        %v3192 = vunpack.c.0.s8 %v3191
        %v3193 = vlaneseq
        %v3194 = vshrl.u32 %v3193, 7
        %v3195 = vsub.s32 %v3192, %v3194
        %v3196 = vrot.slane %v3189, %v3195
        %v3197 = vcombine.low %v3172, %v3180
        %v3199 = vunpack.c.l.s4 1934713408
        %v3200 = vunpack.c.0.s8 %v3199
        %v3201 = vlaneseq
        %v3202 = vshrl.u32 %v3201, 7
        %v3203 = vsub.s32 %v3200, %v3202
        %v3204 = vrot.slane %v3197, %v3203
        %v3205 = vcombine.low %v3188, %v3196
        %v3207 = vunpack.c.l.s4 1934713408
        %v3208 = vunpack.c.0.s8 %v3207
        %v3209 = vlaneseq
        %v3210 = vshrl.u32 %v3209, 7
        %v3211 = vsub.s32 %v3208, %v3210
        %v3212 = vrot.slane %v3205, %v3211
        %v3213 = vcombine.low %v3204, %v3212
        %v3214 = vcombine.low %v2323, %v2387
        %v3216 = vunpack.c.l.s4 1983009808
        %v3217 = vunpack.c.0.s8 %v3216
        %v3218 = vlaneseq
        %v3219 = vshrl.u32 %v3218, 7
        %v3220 = vsub.s32 %v3217, %v3219
        %v3221 = vrot.slane %v3214, %v3220
        %v3222 = vcombine.low %v2355, %v2419
        %v3224 = vunpack.c.l.s4 1983009808
        %v3225 = vunpack.c.0.s8 %v3224
        %v3226 = vlaneseq
        %v3227 = vshrl.u32 %v3226, 7
        %v3228 = vsub.s32 %v3225, %v3227
        %v3229 = vrot.slane %v3222, %v3228
        %v3230 = vcombine.low %v2451, %v2515
        %v3232 = vunpack.c.l.s4 1983009808
        %v3233 = vunpack.c.0.s8 %v3232
        %v3234 = vlaneseq
        %v3235 = vshrl.u32 %v3234, 7
        %v3236 = vsub.s32 %v3233, %v3235
        %v3237 = vrot.slane %v3230, %v3236
        %v3238 = vcombine.low %v2483, %v2547
        %v3240 = vunpack.c.l.s4 1983009808
        %v3241 = vunpack.c.0.s8 %v3240
        %v3242 = vlaneseq
        %v3243 = vshrl.u32 %v3242, 7
        %v3244 = vsub.s32 %v3241, %v3243
        %v3245 = vrot.slane %v3238, %v3244
        %v3246 = vcombine.low %v3221, %v3229
        %v3248 = vunpack.c.l.s4 1934713408
        %v3249 = vunpack.c.0.s8 %v3248
        %v3250 = vlaneseq
        %v3251 = vshrl.u32 %v3250, 7
        %v3252 = vsub.s32 %v3249, %v3251
        %v3253 = vrot.slane %v3246, %v3252
        %v3254 = vcombine.low %v3237, %v3245
        %v3256 = vunpack.c.l.s4 1934713408
        %v3257 = vunpack.c.0.s8 %v3256
        %v3258 = vlaneseq
        %v3259 = vshrl.u32 %v3258, 7
        %v3260 = vsub.s32 %v3257, %v3259
        %v3261 = vrot.slane %v3254, %v3260
        %v3262 = vcombine.low %v3253, %v3261
        %v3263 = vcombine.low %v2563, %v2627
        %v3265 = vunpack.c.l.s4 1983009808
        %v3266 = vunpack.c.0.s8 %v3265
        %v3267 = vlaneseq
        %v3268 = vshrl.u32 %v3267, 7
        %v3269 = vsub.s32 %v3266, %v3268
        %v3270 = vrot.slane %v3263, %v3269
        %v3271 = vcombine.low %v2595, %v2659
        %v3273 = vunpack.c.l.s4 1983009808
        %v3274 = vunpack.c.0.s8 %v3273
        %v3275 = vlaneseq
        %v3276 = vshrl.u32 %v3275, 7
        %v3277 = vsub.s32 %v3274, %v3276
        %v3278 = vrot.slane %v3271, %v3277
        %v3279 = vcombine.low %v2691, %v2755
        %v3281 = vunpack.c.l.s4 1983009808
        %v3282 = vunpack.c.0.s8 %v3281
        %v3283 = vlaneseq
        %v3284 = vshrl.u32 %v3283, 7
        %v3285 = vsub.s32 %v3282, %v3284
        %v3286 = vrot.slane %v3279, %v3285
        %v3287 = vcombine.low %v2723, %v2787
        %v3289 = vunpack.c.l.s4 1983009808
        %v3290 = vunpack.c.0.s8 %v3289
        %v3291 = vlaneseq
        %v3292 = vshrl.u32 %v3291, 7
        %v3293 = vsub.s32 %v3290, %v3292
        %v3294 = vrot.slane %v3287, %v3293
        %v3295 = vcombine.low %v3270, %v3278
        %v3297 = vunpack.c.l.s4 1934713408
        %v3298 = vunpack.c.0.s8 %v3297
        %v3299 = vlaneseq
        %v3300 = vshrl.u32 %v3299, 7
        %v3301 = vsub.s32 %v3298, %v3300
        %v3302 = vrot.slane %v3295, %v3301
        %v3303 = vcombine.low %v3286, %v3294
        %v3305 = vunpack.c.l.s4 1934713408
        %v3306 = vunpack.c.0.s8 %v3305
        %v3307 = vlaneseq
        %v3308 = vshrl.u32 %v3307, 7
        %v3309 = vsub.s32 %v3306, %v3308
        %v3310 = vrot.slane %v3303, %v3309
        %v3311 = vcombine.low %v3302, %v3310
        %v3312 = vcombine.low %v2579, %v2643
        %v3314 = vunpack.c.l.s4 1983009808
        %v3315 = vunpack.c.0.s8 %v3314
        %v3316 = vlaneseq
        %v3317 = vshrl.u32 %v3316, 7
        %v3318 = vsub.s32 %v3315, %v3317
        %v3319 = vrot.slane %v3312, %v3318
        %v3320 = vcombine.low %v2611, %v2675
        %v3322 = vunpack.c.l.s4 1983009808
        %v3323 = vunpack.c.0.s8 %v3322
        %v3324 = vlaneseq
        %v3325 = vshrl.u32 %v3324, 7
        %v3326 = vsub.s32 %v3323, %v3325
        %v3327 = vrot.slane %v3320, %v3326
        %v3328 = vcombine.low %v2707, %v2771
        %v3330 = vunpack.c.l.s4 1983009808
        %v3331 = vunpack.c.0.s8 %v3330
        %v3332 = vlaneseq
        %v3333 = vshrl.u32 %v3332, 7
        %v3334 = vsub.s32 %v3331, %v3333
        %v3335 = vrot.slane %v3328, %v3334
        %v3336 = vcombine.low %v2739, %v2803
        %v3338 = vunpack.c.l.s4 1983009808
        %v3339 = vunpack.c.0.s8 %v3338
        %v3340 = vlaneseq
        %v3341 = vshrl.u32 %v3340, 7
        %v3342 = vsub.s32 %v3339, %v3341
        %v3343 = vrot.slane %v3336, %v3342
        %v3344 = vcombine.low %v3319, %v3327
        %v3346 = vunpack.c.l.s4 1934713408
        %v3347 = vunpack.c.0.s8 %v3346
        %v3348 = vlaneseq
        %v3349 = vshrl.u32 %v3348, 7
        %v3350 = vsub.s32 %v3347, %v3349
        %v3351 = vrot.slane %v3344, %v3350
        %v3352 = vcombine.low %v3335, %v3343
        %v3354 = vunpack.c.l.s4 1934713408
        %v3355 = vunpack.c.0.s8 %v3354
        %v3356 = vlaneseq
        %v3357 = vshrl.u32 %v3356, 7
        %v3358 = vsub.s32 %v3355, %v3357
        %v3359 = vrot.slane %v3352, %v3358
        %v3360 = vcombine.low %v3351, %v3359
        %v3361 = vcombine.low %v2819, %v2883
        %v3363 = vunpack.c.l.s4 1983009808
        %v3364 = vunpack.c.0.s8 %v3363
        %v3365 = vlaneseq
        %v3366 = vshrl.u32 %v3365, 7
        %v3367 = vsub.s32 %v3364, %v3366
        %v3368 = vrot.slane %v3361, %v3367
        %v3369 = vcombine.low %v2851, %v2915
        %v3371 = vunpack.c.l.s4 1983009808
        %v3372 = vunpack.c.0.s8 %v3371
        %v3373 = vlaneseq
        %v3374 = vshrl.u32 %v3373, 7
        %v3375 = vsub.s32 %v3372, %v3374
        %v3376 = vrot.slane %v3369, %v3375
        %v3377 = vcombine.low %v2947, %v3011
        %v3379 = vunpack.c.l.s4 1983009808
        %v3380 = vunpack.c.0.s8 %v3379
        %v3381 = vlaneseq
        %v3382 = vshrl.u32 %v3381, 7
        %v3383 = vsub.s32 %v3380, %v3382
        %v3384 = vrot.slane %v3377, %v3383
        %v3385 = vcombine.low %v2979, %v3043
        %v3387 = vunpack.c.l.s4 1983009808
        %v3388 = vunpack.c.0.s8 %v3387
        %v3389 = vlaneseq
        %v3390 = vshrl.u32 %v3389, 7
        %v3391 = vsub.s32 %v3388, %v3390
        %v3392 = vrot.slane %v3385, %v3391
        %v3393 = vcombine.low %v3368, %v3376
        %v3395 = vunpack.c.l.s4 1934713408
        %v3396 = vunpack.c.0.s8 %v3395
        %v3397 = vlaneseq
        %v3398 = vshrl.u32 %v3397, 7
        %v3399 = vsub.s32 %v3396, %v3398
        %v3400 = vrot.slane %v3393, %v3399
        %v3401 = vcombine.low %v3384, %v3392
        %v3403 = vunpack.c.l.s4 1934713408
        %v3404 = vunpack.c.0.s8 %v3403
        %v3405 = vlaneseq
        %v3406 = vshrl.u32 %v3405, 7
        %v3407 = vsub.s32 %v3404, %v3406
        %v3408 = vrot.slane %v3401, %v3407
        %v3409 = vcombine.low %v3400, %v3408
        %v3410 = vcombine.low %v2835, %v2899
        %v3412 = vunpack.c.l.s4 1983009808
        %v3413 = vunpack.c.0.s8 %v3412
        %v3414 = vlaneseq
        %v3415 = vshrl.u32 %v3414, 7
        %v3416 = vsub.s32 %v3413, %v3415
        %v3417 = vrot.slane %v3410, %v3416
        %v3418 = vcombine.low %v2867, %v2931
        %v3420 = vunpack.c.l.s4 1983009808
        %v3421 = vunpack.c.0.s8 %v3420
        %v3422 = vlaneseq
        %v3423 = vshrl.u32 %v3422, 7
        %v3424 = vsub.s32 %v3421, %v3423
        %v3425 = vrot.slane %v3418, %v3424
        %v3426 = vcombine.low %v2963, %v3027
        %v3428 = vunpack.c.l.s4 1983009808
        %v3429 = vunpack.c.0.s8 %v3428
        %v3430 = vlaneseq
        %v3431 = vshrl.u32 %v3430, 7
        %v3432 = vsub.s32 %v3429, %v3431
        %v3433 = vrot.slane %v3426, %v3432
        %v3434 = vcombine.low %v2995, %v3059
        %v3436 = vunpack.c.l.s4 1983009808
        %v3437 = vunpack.c.0.s8 %v3436
        %v3438 = vlaneseq
        %v3439 = vshrl.u32 %v3438, 7
        %v3440 = vsub.s32 %v3437, %v3439
        %v3441 = vrot.slane %v3434, %v3440
        %v3442 = vcombine.low %v3417, %v3425
        %v3444 = vunpack.c.l.s4 1934713408
        %v3445 = vunpack.c.0.s8 %v3444
        %v3446 = vlaneseq
        %v3447 = vshrl.u32 %v3446, 7
        %v3448 = vsub.s32 %v3445, %v3447
        %v3449 = vrot.slane %v3442, %v3448
        %v3450 = vcombine.low %v3433, %v3441
        %v3452 = vunpack.c.l.s4 1934713408
        %v3453 = vunpack.c.0.s8 %v3452
        %v3454 = vlaneseq
        %v3455 = vshrl.u32 %v3454, 7
        %v3456 = vsub.s32 %v3453, %v3455
        %v3457 = vrot.slane %v3450, %v3456
        %v3458 = vcombine.low %v3449, %v3457
        %v3461 = vpack.i.b16 %v3164, %v3115
        %v3463 = vshrl.u32 %v3115, 16
        %v3464 = vshrl.u32 %v3164, 16
        %v3465 = vpack.i.b16 %v3464, %v3463
        %v3469 = vpack.i.b16 %v3262, %v3213
        %v3471 = vshrl.u32 %v3213, 16
        %v3472 = vshrl.u32 %v3262, 16
        %v3473 = vpack.i.b16 %v3472, %v3471
        %v3477 = vpack.i.b16 %v3360, %v3311
        %v3479 = vshrl.u32 %v3311, 16
        %v3480 = vshrl.u32 %v3360, 16
        %v3481 = vpack.i.b16 %v3480, %v3479
        %v3485 = vpack.i.b16 %v3458, %v3409
        %v3487 = vshrl.u32 %v3409, 16
        %v3488 = vshrl.u32 %v3458, 16
        %v3489 = vpack.i.b16 %v3488, %v3487
        %vm3491 = vcmask 523264
        %v3493 = vsel %vm3491, %v1239, 0
        %3495 = vmatprep.subr.bf16.mxu0 0
        %3496 = vmatpush1.bf16.msra.mxu0 0
        %3497 = vmatprep.subr.bf16.mxu0 0
        %3498 = vmatpush1.bf16.msra.mxu0 0
        %3499 = vmatprep.subr.bf16.mxu0 0
        %3500 = vmatpush1.bf16.msra.mxu0 0
        %3501 = vmatprep.subr.bf16.mxu0 0
        %3502 = vmatpush1.bf16.msra.mxu0 0
        %3503 = vmatprep.subr.bf16.mxu0 0
        %3504 = vmatpush1.bf16.msra.mxu0 %v3485
        %3505 = vmatprep.subr.bf16.mxu0 0
        %3506 = vmatpush1.bf16.msra.mxu0 %v3477
        %3507 = vmatprep.subr.bf16.mxu0 0
        %3508 = vmatpush1.bf16.msra.mxu0 %v3469
        %3509 = vmatprep.subr.bf16.mxu0 0
        %3510 = vmatpush1.bf16.msra.mxu0 %v3461
        %3511 = vmatprep.subr.bf16.mxu0 0
        %3512 = vmatpush2.bf16.msra.mxu0 0
        %3513 = vmatprep.subr.bf16.mxu0 0
        %3514 = vmatpush2.bf16.msra.mxu0 0
        %3515 = vmatprep.subr.bf16.mxu0 0
        %3516 = vmatpush2.bf16.msra.mxu0 0
        %3517 = vmatprep.subr.bf16.mxu0 0
        %3518 = vmatpush2.bf16.msra.mxu0 0
        %3519 = vmatprep.subr.bf16.mxu0 0
        %3520 = vmatpush2.bf16.msra.mxu0 0
        %3521 = vmatprep.subr.bf16.mxu0 0
        %3522 = vmatpush2.bf16.msra.mxu0 0
        %3523 = vmatprep.subr.bf16.mxu0 0
        %3524 = vmatpush2.bf16.msra.mxu0 0
        %3525 = vmatprep.subr.bf16.mxu0 0
        %3526 = vmatpush2.bf16.msra.mxu0 0
        %3527 = vmatprep.mubr.bf16.mxu0 0
        %3528 = vmatmul.mubr.bf16.gmra.mxu0 %v3493
        %v3529 = vpop.f32.mrf.mxu0
        %v3530 = vadd.f32 %v1187, %v3529
        %v3531 = vpop.f32.mrf.mxu0
        %v3532 = vpop.f32.mrf.mxu0
        %v3533 = vpop.f32.mrf.mxu0
        %3534 = vdwg.mxu0
        %v3536 = vsel %vm3491, %v1242, 0
        %3538 = vmatprep.subr.bf16.mxu0 0
        %3539 = vmatpush1.bf16.msra.mxu0 0
        %3540 = vmatprep.subr.bf16.mxu0 0
        %3541 = vmatpush1.bf16.msra.mxu0 0
        %3542 = vmatprep.subr.bf16.mxu0 0
        %3543 = vmatpush1.bf16.msra.mxu0 0
        %3544 = vmatprep.subr.bf16.mxu0 0
        %3545 = vmatpush1.bf16.msra.mxu0 0
        %3546 = vmatprep.subr.bf16.mxu0 0
        %3547 = vmatpush1.bf16.msra.mxu0 %v3489
        %3548 = vmatprep.subr.bf16.mxu0 0
        %3549 = vmatpush1.bf16.msra.mxu0 %v3481
        %3550 = vmatprep.subr.bf16.mxu0 0
        %3551 = vmatpush1.bf16.msra.mxu0 %v3473
        %3552 = vmatprep.subr.bf16.mxu0 0
        %3553 = vmatpush1.bf16.msra.mxu0 %v3465
        %3554 = vmatprep.subr.bf16.mxu0 0
        %3555 = vmatpush2.bf16.msra.mxu0 0
        %3556 = vmatprep.subr.bf16.mxu0 0
        %3557 = vmatpush2.bf16.msra.mxu0 0
        %3558 = vmatprep.subr.bf16.mxu0 0
        %3559 = vmatpush2.bf16.msra.mxu0 0
        %3560 = vmatprep.subr.bf16.mxu0 0
        %3561 = vmatpush2.bf16.msra.mxu0 0
        %3562 = vmatprep.subr.bf16.mxu0 0
        %3563 = vmatpush2.bf16.msra.mxu0 0
        %3564 = vmatprep.subr.bf16.mxu0 0
        %3565 = vmatpush2.bf16.msra.mxu0 0
        %3566 = vmatprep.subr.bf16.mxu0 0
        %3567 = vmatpush2.bf16.msra.mxu0 0
        %3568 = vmatprep.subr.bf16.mxu0 0
        %3569 = vmatpush2.bf16.msra.mxu0 0
        %3570 = vmatprep.mubr.bf16.mxu0 0
        %3571 = vmatmul.mubr.bf16.gmra.mxu0 %v3536
        %v3572 = vpop.f32.mrf.mxu0
        %v3573 = vadd.f32 %v1187, %v3572
        %v3574 = vpop.f32.mrf.mxu0
        %v3575 = vpop.f32.mrf.mxu0
        %v3576 = vpop.f32.mrf.mxu0
        %3577 = vdwg.mxu0
        %vm3578 = vcmask 64512
        %v3579 = vsel %vm3578, %v3530, -inf
        %3580 = vmax.xlane.f32.xlu0 %v3579
        %v3581 = vpop.xlane.xlu0 %3580
        %v3582 = vsel %vm3578, %v3573, -inf
        %3583 = vmax.xlane.f32.xlu0 %v3582
        %v3584 = vpop.xlane.xlu0 %3583
        %v3585 = vsub.f32 %v3530, %v3581
        %v3586 = vsub.f32 %v3573, %v3584
        %v3587 = vmul.f32 %v3585, 1.442695
        %v3588 = vpow.pop %v3587
        %v3589 = vmul.f32 %v3586, 1.442695
        %v3590 = vpow.pop %v3589
        %v3591 = vsel %vm3578, %v3588, 0.0
        %3592 = vadd.xlane.f32.xlu0 %v3591
        %v3593 = vpop.xlane.xlu0 %3592
        %v3594 = vsel %vm3578, %v3590, 0.0
        %3595 = vadd.xlane.f32.xlu0 %v3594
        %v3596 = vpop.xlane.xlu0 %3595
        %v3597 = vrcp.pop %v3593
        %v3598 = vrcp.pop %v3596
        %v3599 = vmul.f32 %v3588, %v3597
        %v3600 = vmul.f32 %v3590, %v3598
        %v3601 = vpack.c.bf16 %v3599, %v3599
        %v3602 = vpack.c.bf16 %v3600, %v3600
        %3603 = vxpose.xlu0.c.b16.start [1/8] %v1174, 128
        %3604 = vxpose.xlu0.c.b16.cont [2/8] 0, 128
        %3605 = vxpose.xlu0.c.b16.cont [3/8] 0, 128
        %3606 = vxpose.xlu0.c.b16.cont [4/8] 0, 128
        %3607 = vxpose.xlu0.c.b16.cont [5/8] 0, 128
        %3608 = vxpose.xlu0.c.b16.cont [6/8] 0, 128
        %3609 = vxpose.xlu0.c.b16.cont [7/8] 0, 128
        %3610 = vxpose.xlu0.c.b16.end [8/8] 0, 128
        %v3611 = vpop.trf.xlu0
        %v3612 = vpop.trf.xlu0
        %v3613 = vpop.trf.xlu0
        %v3614 = vpop.trf.xlu0
        %v3615 = vpop.trf.xlu0
        %v3616 = vpop.trf.xlu0
        %v3617 = vpop.trf.xlu0
        %v3618 = vpop.trf.xlu0
        %3619 = vxpose.xlu0.c.b16.start [1/8] %v1175, 128
        %3620 = vxpose.xlu0.c.b16.cont [2/8] 0, 128
        %3621 = vxpose.xlu0.c.b16.cont [3/8] 0, 128
        %3622 = vxpose.xlu0.c.b16.cont [4/8] 0, 128
        %3623 = vxpose.xlu0.c.b16.cont [5/8] 0, 128
        %3624 = vxpose.xlu0.c.b16.cont [6/8] 0, 128
        %3625 = vxpose.xlu0.c.b16.cont [7/8] 0, 128
        %3626 = vxpose.xlu0.c.b16.end [8/8] 0, 128
        %v3627 = vpop.trf.xlu0
        %v3628 = vpop.trf.xlu0
        %v3629 = vpop.trf.xlu0
        %v3630 = vpop.trf.xlu0
        %v3631 = vpop.trf.xlu0
        %v3632 = vpop.trf.xlu0
        %v3633 = vpop.trf.xlu0
        %v3634 = vpop.trf.xlu0
        %3635 = vxpose.xlu0.c.b16.start [1/8] %v1176, 128
        %3636 = vxpose.xlu0.c.b16.cont [2/8] 0, 128
        %3637 = vxpose.xlu0.c.b16.cont [3/8] 0, 128
        %3638 = vxpose.xlu0.c.b16.cont [4/8] 0, 128
        %3639 = vxpose.xlu0.c.b16.cont [5/8] 0, 128
        %3640 = vxpose.xlu0.c.b16.cont [6/8] 0, 128
        %3641 = vxpose.xlu0.c.b16.cont [7/8] 0, 128
        %3642 = vxpose.xlu0.c.b16.end [8/8] 0, 128
        %v3643 = vpop.trf.xlu0
        %v3644 = vpop.trf.xlu0
        %v3645 = vpop.trf.xlu0
        %v3646 = vpop.trf.xlu0
        %v3647 = vpop.trf.xlu0
        %v3648 = vpop.trf.xlu0
        %v3649 = vpop.trf.xlu0
        %v3650 = vpop.trf.xlu0
        %3651 = vxpose.xlu0.c.b16.start [1/8] %v1177, 128
        %3652 = vxpose.xlu0.c.b16.cont [2/8] 0, 128
        %3653 = vxpose.xlu0.c.b16.cont [3/8] 0, 128
        %3654 = vxpose.xlu0.c.b16.cont [4/8] 0, 128
        %3655 = vxpose.xlu0.c.b16.cont [5/8] 0, 128
        %3656 = vxpose.xlu0.c.b16.cont [6/8] 0, 128
        %3657 = vxpose.xlu0.c.b16.cont [7/8] 0, 128
        %3658 = vxpose.xlu0.c.b16.end [8/8] 0, 128
        %v3659 = vpop.trf.xlu0
        %v3660 = vpop.trf.xlu0
        %v3661 = vpop.trf.xlu0
        %v3662 = vpop.trf.xlu0
        %v3663 = vpop.trf.xlu0
        %v3664 = vpop.trf.xlu0
        %v3665 = vpop.trf.xlu0
        %v3666 = vpop.trf.xlu0
        %3667 = vxpose.xlu0.c.b16.start [1/8] %v1178, 128
        %3668 = vxpose.xlu0.c.b16.cont [2/8] 0, 128
        %3669 = vxpose.xlu0.c.b16.cont [3/8] 0, 128
        %3670 = vxpose.xlu0.c.b16.cont [4/8] 0, 128
        %3671 = vxpose.xlu0.c.b16.cont [5/8] 0, 128
        %3672 = vxpose.xlu0.c.b16.cont [6/8] 0, 128
        %3673 = vxpose.xlu0.c.b16.cont [7/8] 0, 128
        %3674 = vxpose.xlu0.c.b16.end [8/8] 0, 128
        %v3675 = vpop.trf.xlu0
        %v3676 = vpop.trf.xlu0
        %v3677 = vpop.trf.xlu0
        %v3678 = vpop.trf.xlu0
        %v3679 = vpop.trf.xlu0
        %v3680 = vpop.trf.xlu0
        %v3681 = vpop.trf.xlu0
        %v3682 = vpop.trf.xlu0
        %3683 = vxpose.xlu0.c.b16.start [1/8] %v1179, 128
        %3684 = vxpose.xlu0.c.b16.cont [2/8] 0, 128
        %3685 = vxpose.xlu0.c.b16.cont [3/8] 0, 128
        %3686 = vxpose.xlu0.c.b16.cont [4/8] 0, 128
        %3687 = vxpose.xlu0.c.b16.cont [5/8] 0, 128
        %3688 = vxpose.xlu0.c.b16.cont [6/8] 0, 128
        %3689 = vxpose.xlu0.c.b16.cont [7/8] 0, 128
        %3690 = vxpose.xlu0.c.b16.end [8/8] 0, 128
        %v3691 = vpop.trf.xlu0
        %v3692 = vpop.trf.xlu0
        %v3693 = vpop.trf.xlu0
        %v3694 = vpop.trf.xlu0
        %v3695 = vpop.trf.xlu0
        %v3696 = vpop.trf.xlu0
        %v3697 = vpop.trf.xlu0
        %v3698 = vpop.trf.xlu0
        %3699 = vxpose.xlu0.c.b16.start [1/8] %v1180, 128
        %3700 = vxpose.xlu0.c.b16.cont [2/8] 0, 128
        %3701 = vxpose.xlu0.c.b16.cont [3/8] 0, 128
        %3702 = vxpose.xlu0.c.b16.cont [4/8] 0, 128
        %3703 = vxpose.xlu0.c.b16.cont [5/8] 0, 128
        %3704 = vxpose.xlu0.c.b16.cont [6/8] 0, 128
        %3705 = vxpose.xlu0.c.b16.cont [7/8] 0, 128
        %3706 = vxpose.xlu0.c.b16.end [8/8] 0, 128
        %v3707 = vpop.trf.xlu0
        %v3708 = vpop.trf.xlu0
        %v3709 = vpop.trf.xlu0
        %v3710 = vpop.trf.xlu0
        %v3711 = vpop.trf.xlu0
        %v3712 = vpop.trf.xlu0
        %v3713 = vpop.trf.xlu0
        %v3714 = vpop.trf.xlu0
        %3715 = vxpose.xlu0.c.b16.start [1/8] %v1181, 128
        %3716 = vxpose.xlu0.c.b16.cont [2/8] 0, 128
        %3717 = vxpose.xlu0.c.b16.cont [3/8] 0, 128
        %3718 = vxpose.xlu0.c.b16.cont [4/8] 0, 128
        %3719 = vxpose.xlu0.c.b16.cont [5/8] 0, 128
        %3720 = vxpose.xlu0.c.b16.cont [6/8] 0, 128
        %3721 = vxpose.xlu0.c.b16.cont [7/8] 0, 128
        %3722 = vxpose.xlu0.c.b16.end [8/8] 0, 128
        %v3723 = vpop.trf.xlu0
        %v3724 = vpop.trf.xlu0
        %v3725 = vpop.trf.xlu0
        %v3726 = vpop.trf.xlu0
        %v3727 = vpop.trf.xlu0
        %v3728 = vpop.trf.xlu0
        %v3729 = vpop.trf.xlu0
        %v3730 = vpop.trf.xlu0
        %v3733 = vpack.i.b16 %v3627, %v3611
        %v3735 = vshrl.u32 %v3611, 16
        %v3736 = vshrl.u32 %v3627, 16
        %v3737 = vpack.i.b16 %v3736, %v3735
        %v3741 = vpack.i.b16 %v3659, %v3643
        %v3743 = vshrl.u32 %v3643, 16
        %v3744 = vshrl.u32 %v3659, 16
        %v3745 = vpack.i.b16 %v3744, %v3743
        %v3749 = vpack.i.b16 %v3691, %v3675
        %v3751 = vshrl.u32 %v3675, 16
        %v3752 = vshrl.u32 %v3691, 16
        %v3753 = vpack.i.b16 %v3752, %v3751
        %v3757 = vpack.i.b16 %v3723, %v3707
        %v3759 = vshrl.u32 %v3707, 16
        %v3760 = vshrl.u32 %v3723, 16
        %v3761 = vpack.i.b16 %v3760, %v3759
        %v3765 = vpack.i.b16 %v3628, %v3612
        %v3767 = vshrl.u32 %v3612, 16
        %v3768 = vshrl.u32 %v3628, 16
        %v3769 = vpack.i.b16 %v3768, %v3767
        %v3773 = vpack.i.b16 %v3660, %v3644
        %v3775 = vshrl.u32 %v3644, 16
        %v3776 = vshrl.u32 %v3660, 16
        %v3777 = vpack.i.b16 %v3776, %v3775
        %v3781 = vpack.i.b16 %v3692, %v3676
        %v3783 = vshrl.u32 %v3676, 16
        %v3784 = vshrl.u32 %v3692, 16
        %v3785 = vpack.i.b16 %v3784, %v3783
        %v3789 = vpack.i.b16 %v3724, %v3708
        %v3791 = vshrl.u32 %v3708, 16
        %v3792 = vshrl.u32 %v3724, 16
        %v3793 = vpack.i.b16 %v3792, %v3791
        %v3797 = vpack.i.b16 %v3629, %v3613
        %v3799 = vshrl.u32 %v3613, 16
        %v3800 = vshrl.u32 %v3629, 16
        %v3801 = vpack.i.b16 %v3800, %v3799
        %v3805 = vpack.i.b16 %v3661, %v3645
        %v3807 = vshrl.u32 %v3645, 16
        %v3808 = vshrl.u32 %v3661, 16
        %v3809 = vpack.i.b16 %v3808, %v3807
        %v3813 = vpack.i.b16 %v3693, %v3677
        %v3815 = vshrl.u32 %v3677, 16
        %v3816 = vshrl.u32 %v3693, 16
        %v3817 = vpack.i.b16 %v3816, %v3815
        %v3821 = vpack.i.b16 %v3725, %v3709
        %v3823 = vshrl.u32 %v3709, 16
        %v3824 = vshrl.u32 %v3725, 16
        %v3825 = vpack.i.b16 %v3824, %v3823
        %v3829 = vpack.i.b16 %v3630, %v3614
        %v3831 = vshrl.u32 %v3614, 16
        %v3832 = vshrl.u32 %v3630, 16
        %v3833 = vpack.i.b16 %v3832, %v3831
        %v3837 = vpack.i.b16 %v3662, %v3646
        %v3839 = vshrl.u32 %v3646, 16
        %v3840 = vshrl.u32 %v3662, 16
        %v3841 = vpack.i.b16 %v3840, %v3839
        %v3845 = vpack.i.b16 %v3694, %v3678
        %v3847 = vshrl.u32 %v3678, 16
        %v3848 = vshrl.u32 %v3694, 16
        %v3849 = vpack.i.b16 %v3848, %v3847
        %v3853 = vpack.i.b16 %v3726, %v3710
        %v3855 = vshrl.u32 %v3710, 16
        %v3856 = vshrl.u32 %v3726, 16
        %v3857 = vpack.i.b16 %v3856, %v3855
        %v3859 = vcombine.low %v3733, %v3749
        %v3860 = vcombine.high %v3733, %v3749
        %v3862 = vunpack.c.l.s4 1983009808
        %v3863 = vunpack.c.0.s8 %v3862
        %v3864 = vlaneseq
        %v3865 = vshrl.u32 %v3864, 7
        %v3866 = vsub.s32 %v3863, %v3865
        %v3867 = vrot.slane %v3859, %v3866
        %v3869 = vunpack.c.l.s4 1983009808
        %v3870 = vunpack.c.0.s8 %v3869
        %v3871 = vlaneseq
        %v3872 = vshrl.u32 %v3871, 7
        %v3873 = vsub.s32 %v3870, %v3872
        %v3874 = vrot.slane %v3860, %v3873
        %v3875 = vcombine.low %v3741, %v3757
        %v3876 = vcombine.high %v3741, %v3757
        %v3878 = vunpack.c.l.s4 1983009808
        %v3879 = vunpack.c.0.s8 %v3878
        %v3880 = vlaneseq
        %v3881 = vshrl.u32 %v3880, 7
        %v3882 = vsub.s32 %v3879, %v3881
        %v3883 = vrot.slane %v3875, %v3882
        %v3885 = vunpack.c.l.s4 1983009808
        %v3886 = vunpack.c.0.s8 %v3885
        %v3887 = vlaneseq
        %v3888 = vshrl.u32 %v3887, 7
        %v3889 = vsub.s32 %v3886, %v3888
        %v3890 = vrot.slane %v3876, %v3889
        %v3891 = vcombine.low %v3867, %v3883
        %v3892 = vcombine.high %v3867, %v3883
        %v3894 = vunpack.c.l.s4 1934713408
        %v3895 = vunpack.c.0.s8 %v3894
        %v3896 = vlaneseq
        %v3897 = vshrl.u32 %v3896, 7
        %v3898 = vsub.s32 %v3895, %v3897
        %v3899 = vrot.slane %v3891, %v3898
        %v3901 = vunpack.c.l.s4 1934713408
        %v3902 = vunpack.c.0.s8 %v3901
        %v3903 = vlaneseq
        %v3904 = vshrl.u32 %v3903, 7
        %v3905 = vsub.s32 %v3902, %v3904
        %v3906 = vrot.slane %v3892, %v3905
        %v3907 = vcombine.low %v3874, %v3890
        %v3908 = vcombine.high %v3874, %v3890
        %v3910 = vunpack.c.l.s4 1934713408
        %v3911 = vunpack.c.0.s8 %v3910
        %v3912 = vlaneseq
        %v3913 = vshrl.u32 %v3912, 7
        %v3914 = vsub.s32 %v3911, %v3913
        %v3915 = vrot.slane %v3907, %v3914
        %v3917 = vunpack.c.l.s4 1934713408
        %v3918 = vunpack.c.0.s8 %v3917
        %v3919 = vlaneseq
        %v3920 = vshrl.u32 %v3919, 7
        %v3921 = vsub.s32 %v3918, %v3920
        %v3922 = vrot.slane %v3908, %v3921
        %v3923 = vcombine.high %v3899, 0
        %v3924 = vcombine.high %v3906, 0
        %v3925 = vcombine.high %v3915, 0
        %v3926 = vcombine.high %v3922, 0
        %v3927 = vcombine.low %v3737, %v3753
        %v3928 = vcombine.high %v3737, %v3753
        %v3930 = vunpack.c.l.s4 1983009808
        %v3931 = vunpack.c.0.s8 %v3930
        %v3932 = vlaneseq
        %v3933 = vshrl.u32 %v3932, 7
        %v3934 = vsub.s32 %v3931, %v3933
        %v3935 = vrot.slane %v3927, %v3934
        %v3937 = vunpack.c.l.s4 1983009808
        %v3938 = vunpack.c.0.s8 %v3937
        %v3939 = vlaneseq
        %v3940 = vshrl.u32 %v3939, 7
        %v3941 = vsub.s32 %v3938, %v3940
        %v3942 = vrot.slane %v3928, %v3941
        %v3943 = vcombine.low %v3745, %v3761
        %v3944 = vcombine.high %v3745, %v3761
        %v3946 = vunpack.c.l.s4 1983009808
        %v3947 = vunpack.c.0.s8 %v3946
        %v3948 = vlaneseq
        %v3949 = vshrl.u32 %v3948, 7
        %v3950 = vsub.s32 %v3947, %v3949
        %v3951 = vrot.slane %v3943, %v3950
        %v3953 = vunpack.c.l.s4 1983009808
        %v3954 = vunpack.c.0.s8 %v3953
        %v3955 = vlaneseq
        %v3956 = vshrl.u32 %v3955, 7
        %v3957 = vsub.s32 %v3954, %v3956
        %v3958 = vrot.slane %v3944, %v3957
        %v3959 = vcombine.low %v3935, %v3951
        %v3960 = vcombine.high %v3935, %v3951
        %v3962 = vunpack.c.l.s4 1934713408
        %v3963 = vunpack.c.0.s8 %v3962
        %v3964 = vlaneseq
        %v3965 = vshrl.u32 %v3964, 7
        %v3966 = vsub.s32 %v3963, %v3965
        %v3967 = vrot.slane %v3959, %v3966
        %v3969 = vunpack.c.l.s4 1934713408
        %v3970 = vunpack.c.0.s8 %v3969
        %v3971 = vlaneseq
        %v3972 = vshrl.u32 %v3971, 7
        %v3973 = vsub.s32 %v3970, %v3972
        %v3974 = vrot.slane %v3960, %v3973
        %v3975 = vcombine.low %v3942, %v3958
        %v3976 = vcombine.high %v3942, %v3958
        %v3978 = vunpack.c.l.s4 1934713408
        %v3979 = vunpack.c.0.s8 %v3978
        %v3980 = vlaneseq
        %v3981 = vshrl.u32 %v3980, 7
        %v3982 = vsub.s32 %v3979, %v3981
        %v3983 = vrot.slane %v3975, %v3982
        %v3985 = vunpack.c.l.s4 1934713408
        %v3986 = vunpack.c.0.s8 %v3985
        %v3987 = vlaneseq
        %v3988 = vshrl.u32 %v3987, 7
        %v3989 = vsub.s32 %v3986, %v3988
        %v3990 = vrot.slane %v3976, %v3989
        %v3991 = vcombine.high %v3967, 0
        %v3992 = vcombine.high %v3974, 0
        %v3993 = vcombine.high %v3983, 0
        %v3994 = vcombine.high %v3990, 0
        %v3995 = vcombine.low %v3765, %v3781
        %v3996 = vcombine.high %v3765, %v3781
        %v3998 = vunpack.c.l.s4 1983009808
        %v3999 = vunpack.c.0.s8 %v3998
        %v4000 = vlaneseq
        %v4001 = vshrl.u32 %v4000, 7
        %v4002 = vsub.s32 %v3999, %v4001
        %v4003 = vrot.slane %v3995, %v4002
        %v4005 = vunpack.c.l.s4 1983009808
        %v4006 = vunpack.c.0.s8 %v4005
        %v4007 = vlaneseq
        %v4008 = vshrl.u32 %v4007, 7
        %v4009 = vsub.s32 %v4006, %v4008
        %v4010 = vrot.slane %v3996, %v4009
        %v4011 = vcombine.low %v3773, %v3789
        %v4012 = vcombine.high %v3773, %v3789
        %v4014 = vunpack.c.l.s4 1983009808
        %v4015 = vunpack.c.0.s8 %v4014
        %v4016 = vlaneseq
        %v4017 = vshrl.u32 %v4016, 7
        %v4018 = vsub.s32 %v4015, %v4017
        %v4019 = vrot.slane %v4011, %v4018
        %v4021 = vunpack.c.l.s4 1983009808
        %v4022 = vunpack.c.0.s8 %v4021
        %v4023 = vlaneseq
        %v4024 = vshrl.u32 %v4023, 7
        %v4025 = vsub.s32 %v4022, %v4024
        %v4026 = vrot.slane %v4012, %v4025
        %v4027 = vcombine.low %v4003, %v4019
        %v4028 = vcombine.high %v4003, %v4019
        %v4030 = vunpack.c.l.s4 1934713408
        %v4031 = vunpack.c.0.s8 %v4030
        %v4032 = vlaneseq
        %v4033 = vshrl.u32 %v4032, 7
        %v4034 = vsub.s32 %v4031, %v4033
        %v4035 = vrot.slane %v4027, %v4034
        %v4037 = vunpack.c.l.s4 1934713408
        %v4038 = vunpack.c.0.s8 %v4037
        %v4039 = vlaneseq
        %v4040 = vshrl.u32 %v4039, 7
        %v4041 = vsub.s32 %v4038, %v4040
        %v4042 = vrot.slane %v4028, %v4041
        %v4043 = vcombine.low %v4010, %v4026
        %v4044 = vcombine.high %v4010, %v4026
        %v4046 = vunpack.c.l.s4 1934713408
        %v4047 = vunpack.c.0.s8 %v4046
        %v4048 = vlaneseq
        %v4049 = vshrl.u32 %v4048, 7
        %v4050 = vsub.s32 %v4047, %v4049
        %v4051 = vrot.slane %v4043, %v4050
        %v4053 = vunpack.c.l.s4 1934713408
        %v4054 = vunpack.c.0.s8 %v4053
        %v4055 = vlaneseq
        %v4056 = vshrl.u32 %v4055, 7
        %v4057 = vsub.s32 %v4054, %v4056
        %v4058 = vrot.slane %v4044, %v4057
        %v4059 = vcombine.high %v4035, 0
        %v4060 = vcombine.high %v4042, 0
        %v4061 = vcombine.high %v4051, 0
        %v4062 = vcombine.high %v4058, 0
        %v4063 = vcombine.low %v3769, %v3785
        %v4064 = vcombine.high %v3769, %v3785
        %v4066 = vunpack.c.l.s4 1983009808
        %v4067 = vunpack.c.0.s8 %v4066
        %v4068 = vlaneseq
        %v4069 = vshrl.u32 %v4068, 7
        %v4070 = vsub.s32 %v4067, %v4069
        %v4071 = vrot.slane %v4063, %v4070
        %v4073 = vunpack.c.l.s4 1983009808
        %v4074 = vunpack.c.0.s8 %v4073
        %v4075 = vlaneseq
        %v4076 = vshrl.u32 %v4075, 7
        %v4077 = vsub.s32 %v4074, %v4076
        %v4078 = vrot.slane %v4064, %v4077
        %v4079 = vcombine.low %v3777, %v3793
        %v4080 = vcombine.high %v3777, %v3793
        %v4082 = vunpack.c.l.s4 1983009808
        %v4083 = vunpack.c.0.s8 %v4082
        %v4084 = vlaneseq
        %v4085 = vshrl.u32 %v4084, 7
        %v4086 = vsub.s32 %v4083, %v4085
        %v4087 = vrot.slane %v4079, %v4086
        %v4089 = vunpack.c.l.s4 1983009808
        %v4090 = vunpack.c.0.s8 %v4089
        %v4091 = vlaneseq
        %v4092 = vshrl.u32 %v4091, 7
        %v4093 = vsub.s32 %v4090, %v4092
        %v4094 = vrot.slane %v4080, %v4093
        %v4095 = vcombine.low %v4071, %v4087
        %v4096 = vcombine.high %v4071, %v4087
        %v4098 = vunpack.c.l.s4 1934713408
        %v4099 = vunpack.c.0.s8 %v4098
        %v4100 = vlaneseq
        %v4101 = vshrl.u32 %v4100, 7
        %v4102 = vsub.s32 %v4099, %v4101
        %v4103 = vrot.slane %v4095, %v4102
        %v4105 = vunpack.c.l.s4 1934713408
        %v4106 = vunpack.c.0.s8 %v4105
        %v4107 = vlaneseq
        %v4108 = vshrl.u32 %v4107, 7
        %v4109 = vsub.s32 %v4106, %v4108
        %v4110 = vrot.slane %v4096, %v4109
        %v4111 = vcombine.low %v4078, %v4094
        %v4112 = vcombine.high %v4078, %v4094
        %v4114 = vunpack.c.l.s4 1934713408
        %v4115 = vunpack.c.0.s8 %v4114
        %v4116 = vlaneseq
        %v4117 = vshrl.u32 %v4116, 7
        %v4118 = vsub.s32 %v4115, %v4117
        %v4119 = vrot.slane %v4111, %v4118
        %v4121 = vunpack.c.l.s4 1934713408
        %v4122 = vunpack.c.0.s8 %v4121
        %v4123 = vlaneseq
        %v4124 = vshrl.u32 %v4123, 7
        %v4125 = vsub.s32 %v4122, %v4124
        %v4126 = vrot.slane %v4112, %v4125
        %v4127 = vcombine.high %v4103, 0
        %v4128 = vcombine.high %v4110, 0
        %v4129 = vcombine.high %v4119, 0
        %v4130 = vcombine.high %v4126, 0
        %v4131 = vcombine.low %v3797, %v3813
        %v4132 = vcombine.high %v3797, %v3813
        %v4134 = vunpack.c.l.s4 1983009808
        %v4135 = vunpack.c.0.s8 %v4134
        %v4136 = vlaneseq
        %v4137 = vshrl.u32 %v4136, 7
        %v4138 = vsub.s32 %v4135, %v4137
        %v4139 = vrot.slane %v4131, %v4138
        %v4141 = vunpack.c.l.s4 1983009808
        %v4142 = vunpack.c.0.s8 %v4141
        %v4143 = vlaneseq
        %v4144 = vshrl.u32 %v4143, 7
        %v4145 = vsub.s32 %v4142, %v4144
        %v4146 = vrot.slane %v4132, %v4145
        %v4147 = vcombine.low %v3805, %v3821
        %v4148 = vcombine.high %v3805, %v3821
        %v4150 = vunpack.c.l.s4 1983009808
        %v4151 = vunpack.c.0.s8 %v4150
        %v4152 = vlaneseq
        %v4153 = vshrl.u32 %v4152, 7
        %v4154 = vsub.s32 %v4151, %v4153
        %v4155 = vrot.slane %v4147, %v4154
        %v4157 = vunpack.c.l.s4 1983009808
        %v4158 = vunpack.c.0.s8 %v4157
        %v4159 = vlaneseq
        %v4160 = vshrl.u32 %v4159, 7
        %v4161 = vsub.s32 %v4158, %v4160
        %v4162 = vrot.slane %v4148, %v4161
        %v4163 = vcombine.low %v4139, %v4155
        %v4164 = vcombine.high %v4139, %v4155
        %v4166 = vunpack.c.l.s4 1934713408
        %v4167 = vunpack.c.0.s8 %v4166
        %v4168 = vlaneseq
        %v4169 = vshrl.u32 %v4168, 7
        %v4170 = vsub.s32 %v4167, %v4169
        %v4171 = vrot.slane %v4163, %v4170
        %v4173 = vunpack.c.l.s4 1934713408
        %v4174 = vunpack.c.0.s8 %v4173
        %v4175 = vlaneseq
        %v4176 = vshrl.u32 %v4175, 7
        %v4177 = vsub.s32 %v4174, %v4176
        %v4178 = vrot.slane %v4164, %v4177
        %v4179 = vcombine.low %v4146, %v4162
        %v4180 = vcombine.high %v4146, %v4162
        %v4182 = vunpack.c.l.s4 1934713408
        %v4183 = vunpack.c.0.s8 %v4182
        %v4184 = vlaneseq
        %v4185 = vshrl.u32 %v4184, 7
        %v4186 = vsub.s32 %v4183, %v4185
        %v4187 = vrot.slane %v4179, %v4186
        %v4189 = vunpack.c.l.s4 1934713408
        %v4190 = vunpack.c.0.s8 %v4189
        %v4191 = vlaneseq
        %v4192 = vshrl.u32 %v4191, 7
        %v4193 = vsub.s32 %v4190, %v4192
        %v4194 = vrot.slane %v4180, %v4193
        %v4195 = vcombine.high %v4171, 0
        %v4196 = vcombine.high %v4178, 0
        %v4197 = vcombine.high %v4187, 0
        %v4198 = vcombine.high %v4194, 0
        %v4199 = vcombine.low %v3801, %v3817
        %v4200 = vcombine.high %v3801, %v3817
        %v4202 = vunpack.c.l.s4 1983009808
        %v4203 = vunpack.c.0.s8 %v4202
        %v4204 = vlaneseq
        %v4205 = vshrl.u32 %v4204, 7
        %v4206 = vsub.s32 %v4203, %v4205
        %v4207 = vrot.slane %v4199, %v4206
        %v4209 = vunpack.c.l.s4 1983009808
        %v4210 = vunpack.c.0.s8 %v4209
        %v4211 = vlaneseq
        %v4212 = vshrl.u32 %v4211, 7
        %v4213 = vsub.s32 %v4210, %v4212
        %v4214 = vrot.slane %v4200, %v4213
        %v4215 = vcombine.low %v3809, %v3825
        %v4216 = vcombine.high %v3809, %v3825
        %v4218 = vunpack.c.l.s4 1983009808
        %v4219 = vunpack.c.0.s8 %v4218
        %v4220 = vlaneseq
        %v4221 = vshrl.u32 %v4220, 7
        %v4222 = vsub.s32 %v4219, %v4221
        %v4223 = vrot.slane %v4215, %v4222
        %v4225 = vunpack.c.l.s4 1983009808
        %v4226 = vunpack.c.0.s8 %v4225
        %v4227 = vlaneseq
        %v4228 = vshrl.u32 %v4227, 7
        %v4229 = vsub.s32 %v4226, %v4228
        %v4230 = vrot.slane %v4216, %v4229
        %v4231 = vcombine.low %v4207, %v4223
        %v4232 = vcombine.high %v4207, %v4223
        %v4234 = vunpack.c.l.s4 1934713408
        %v4235 = vunpack.c.0.s8 %v4234
        %v4236 = vlaneseq
        %v4237 = vshrl.u32 %v4236, 7
        %v4238 = vsub.s32 %v4235, %v4237
        %v4239 = vrot.slane %v4231, %v4238
        %v4241 = vunpack.c.l.s4 1934713408
        %v4242 = vunpack.c.0.s8 %v4241
        %v4243 = vlaneseq
        %v4244 = vshrl.u32 %v4243, 7
        %v4245 = vsub.s32 %v4242, %v4244
        %v4246 = vrot.slane %v4232, %v4245
        %v4247 = vcombine.low %v4214, %v4230
        %v4248 = vcombine.high %v4214, %v4230
        %v4250 = vunpack.c.l.s4 1934713408
        %v4251 = vunpack.c.0.s8 %v4250
        %v4252 = vlaneseq
        %v4253 = vshrl.u32 %v4252, 7
        %v4254 = vsub.s32 %v4251, %v4253
        %v4255 = vrot.slane %v4247, %v4254
        %v4257 = vunpack.c.l.s4 1934713408
        %v4258 = vunpack.c.0.s8 %v4257
        %v4259 = vlaneseq
        %v4260 = vshrl.u32 %v4259, 7
        %v4261 = vsub.s32 %v4258, %v4260
        %v4262 = vrot.slane %v4248, %v4261
        %v4263 = vcombine.high %v4239, 0
        %v4264 = vcombine.high %v4246, 0
        %v4265 = vcombine.high %v4255, 0
        %v4266 = vcombine.high %v4262, 0
        %v4267 = vcombine.low %v3829, %v3845
        %v4268 = vcombine.high %v3829, %v3845
        %v4270 = vunpack.c.l.s4 1983009808
        %v4271 = vunpack.c.0.s8 %v4270
        %v4272 = vlaneseq
        %v4273 = vshrl.u32 %v4272, 7
        %v4274 = vsub.s32 %v4271, %v4273
        %v4275 = vrot.slane %v4267, %v4274
        %v4277 = vunpack.c.l.s4 1983009808
        %v4278 = vunpack.c.0.s8 %v4277
        %v4279 = vlaneseq
        %v4280 = vshrl.u32 %v4279, 7
        %v4281 = vsub.s32 %v4278, %v4280
        %v4282 = vrot.slane %v4268, %v4281
        %v4283 = vcombine.low %v3837, %v3853
        %v4284 = vcombine.high %v3837, %v3853
        %v4286 = vunpack.c.l.s4 1983009808
        %v4287 = vunpack.c.0.s8 %v4286
        %v4288 = vlaneseq
        %v4289 = vshrl.u32 %v4288, 7
        %v4290 = vsub.s32 %v4287, %v4289
        %v4291 = vrot.slane %v4283, %v4290
        %v4293 = vunpack.c.l.s4 1983009808
        %v4294 = vunpack.c.0.s8 %v4293
        %v4295 = vlaneseq
        %v4296 = vshrl.u32 %v4295, 7
        %v4297 = vsub.s32 %v4294, %v4296
        %v4298 = vrot.slane %v4284, %v4297
        %v4299 = vcombine.low %v4275, %v4291
        %v4300 = vcombine.high %v4275, %v4291
        %v4302 = vunpack.c.l.s4 1934713408
        %v4303 = vunpack.c.0.s8 %v4302
        %v4304 = vlaneseq
        %v4305 = vshrl.u32 %v4304, 7
        %v4306 = vsub.s32 %v4303, %v4305
        %v4307 = vrot.slane %v4299, %v4306
        %v4309 = vunpack.c.l.s4 1934713408
        %v4310 = vunpack.c.0.s8 %v4309
        %v4311 = vlaneseq
        %v4312 = vshrl.u32 %v4311, 7
        %v4313 = vsub.s32 %v4310, %v4312
        %v4314 = vrot.slane %v4300, %v4313
        %v4315 = vcombine.low %v4282, %v4298
        %v4316 = vcombine.high %v4282, %v4298
        %v4318 = vunpack.c.l.s4 1934713408
        %v4319 = vunpack.c.0.s8 %v4318
        %v4320 = vlaneseq
        %v4321 = vshrl.u32 %v4320, 7
        %v4322 = vsub.s32 %v4319, %v4321
        %v4323 = vrot.slane %v4315, %v4322
        %v4325 = vunpack.c.l.s4 1934713408
        %v4326 = vunpack.c.0.s8 %v4325
        %v4327 = vlaneseq
        %v4328 = vshrl.u32 %v4327, 7
        %v4329 = vsub.s32 %v4326, %v4328
        %v4330 = vrot.slane %v4316, %v4329
        %v4331 = vcombine.high %v4307, 0
        %v4332 = vcombine.high %v4314, 0
        %v4333 = vcombine.high %v4323, 0
        %v4334 = vcombine.high %v4330, 0
        %v4335 = vcombine.low %v3833, %v3849
        %v4336 = vcombine.high %v3833, %v3849
        %v4338 = vunpack.c.l.s4 1983009808
        %v4339 = vunpack.c.0.s8 %v4338
        %v4340 = vlaneseq
        %v4341 = vshrl.u32 %v4340, 7
        %v4342 = vsub.s32 %v4339, %v4341
        %v4343 = vrot.slane %v4335, %v4342
        %v4345 = vunpack.c.l.s4 1983009808
        %v4346 = vunpack.c.0.s8 %v4345
        %v4347 = vlaneseq
        %v4348 = vshrl.u32 %v4347, 7
        %v4349 = vsub.s32 %v4346, %v4348
        %v4350 = vrot.slane %v4336, %v4349
        %v4351 = vcombine.low %v3841, %v3857
        %v4352 = vcombine.high %v3841, %v3857
        %v4354 = vunpack.c.l.s4 1983009808
        %v4355 = vunpack.c.0.s8 %v4354
        %v4356 = vlaneseq
        %v4357 = vshrl.u32 %v4356, 7
        %v4358 = vsub.s32 %v4355, %v4357
        %v4359 = vrot.slane %v4351, %v4358
        %v4361 = vunpack.c.l.s4 1983009808
        %v4362 = vunpack.c.0.s8 %v4361
        %v4363 = vlaneseq
        %v4364 = vshrl.u32 %v4363, 7
        %v4365 = vsub.s32 %v4362, %v4364
        %v4366 = vrot.slane %v4352, %v4365
        %v4367 = vcombine.low %v4343, %v4359
        %v4368 = vcombine.high %v4343, %v4359
        %v4370 = vunpack.c.l.s4 1934713408
        %v4371 = vunpack.c.0.s8 %v4370
        %v4372 = vlaneseq
        %v4373 = vshrl.u32 %v4372, 7
        %v4374 = vsub.s32 %v4371, %v4373
        %v4375 = vrot.slane %v4367, %v4374
        %v4377 = vunpack.c.l.s4 1934713408
        %v4378 = vunpack.c.0.s8 %v4377
        %v4379 = vlaneseq
        %v4380 = vshrl.u32 %v4379, 7
        %v4381 = vsub.s32 %v4378, %v4380
        %v4382 = vrot.slane %v4368, %v4381
        %v4383 = vcombine.low %v4350, %v4366
        %v4384 = vcombine.high %v4350, %v4366
        %v4386 = vunpack.c.l.s4 1934713408
        %v4387 = vunpack.c.0.s8 %v4386
        %v4388 = vlaneseq
        %v4389 = vshrl.u32 %v4388, 7
        %v4390 = vsub.s32 %v4387, %v4389
        %v4391 = vrot.slane %v4383, %v4390
        %v4393 = vunpack.c.l.s4 1934713408
        %v4394 = vunpack.c.0.s8 %v4393
        %v4395 = vlaneseq
        %v4396 = vshrl.u32 %v4395, 7
        %v4397 = vsub.s32 %v4394, %v4396
        %v4398 = vrot.slane %v4384, %v4397
        %v4399 = vcombine.high %v4375, 0
        %v4400 = vcombine.high %v4382, 0
        %v4401 = vcombine.high %v4391, 0
        %v4402 = vcombine.high %v4398, 0
        %4403 = vxpose.xlu0.c.b16.start [1/8] %v3899, 128
        %4404 = vxpose.xlu0.c.b16.cont [2/8] 0, 128
        %4405 = vxpose.xlu0.c.b16.cont [3/8] 0, 128
        %4406 = vxpose.xlu0.c.b16.cont [4/8] 0, 128
        %4407 = vxpose.xlu0.c.b16.cont [5/8] 0, 128
        %4408 = vxpose.xlu0.c.b16.cont [6/8] 0, 128
        %4409 = vxpose.xlu0.c.b16.cont [7/8] 0, 128
        %4410 = vxpose.xlu0.c.b16.end [8/8] 0, 128
        %v4411 = vpop.trf.xlu0
        %v4412 = vpop.trf.xlu0
        %v4413 = vpop.trf.xlu0
        %v4414 = vpop.trf.xlu0
        %v4415 = vpop.trf.xlu0
        %v4416 = vpop.trf.xlu0
        %v4417 = vpop.trf.xlu0
        %v4418 = vpop.trf.xlu0
        %4419 = vxpose.xlu0.c.b16.start [1/8] %v3967, 128
        %4420 = vxpose.xlu0.c.b16.cont [2/8] 0, 128
        %4421 = vxpose.xlu0.c.b16.cont [3/8] 0, 128
        %4422 = vxpose.xlu0.c.b16.cont [4/8] 0, 128
        %4423 = vxpose.xlu0.c.b16.cont [5/8] 0, 128
        %4424 = vxpose.xlu0.c.b16.cont [6/8] 0, 128
        %4425 = vxpose.xlu0.c.b16.cont [7/8] 0, 128
        %4426 = vxpose.xlu0.c.b16.end [8/8] 0, 128
        %v4427 = vpop.trf.xlu0
        %v4428 = vpop.trf.xlu0
        %v4429 = vpop.trf.xlu0
        %v4430 = vpop.trf.xlu0
        %v4431 = vpop.trf.xlu0
        %v4432 = vpop.trf.xlu0
        %v4433 = vpop.trf.xlu0
        %v4434 = vpop.trf.xlu0
        %4435 = vxpose.xlu0.c.b16.start [1/8] %v3923, 128
        %4436 = vxpose.xlu0.c.b16.cont [2/8] 0, 128
        %4437 = vxpose.xlu0.c.b16.cont [3/8] 0, 128
        %4438 = vxpose.xlu0.c.b16.cont [4/8] 0, 128
        %4439 = vxpose.xlu0.c.b16.cont [5/8] 0, 128
        %4440 = vxpose.xlu0.c.b16.cont [6/8] 0, 128
        %4441 = vxpose.xlu0.c.b16.cont [7/8] 0, 128
        %4442 = vxpose.xlu0.c.b16.end [8/8] 0, 128
        %v4443 = vpop.trf.xlu0
        %v4444 = vpop.trf.xlu0
        %v4445 = vpop.trf.xlu0
        %v4446 = vpop.trf.xlu0
        %v4447 = vpop.trf.xlu0
        %v4448 = vpop.trf.xlu0
        %v4449 = vpop.trf.xlu0
        %v4450 = vpop.trf.xlu0
        %4451 = vxpose.xlu0.c.b16.start [1/8] %v3991, 128
        %4452 = vxpose.xlu0.c.b16.cont [2/8] 0, 128
        %4453 = vxpose.xlu0.c.b16.cont [3/8] 0, 128
        %4454 = vxpose.xlu0.c.b16.cont [4/8] 0, 128
        %4455 = vxpose.xlu0.c.b16.cont [5/8] 0, 128
        %4456 = vxpose.xlu0.c.b16.cont [6/8] 0, 128
        %4457 = vxpose.xlu0.c.b16.cont [7/8] 0, 128
        %4458 = vxpose.xlu0.c.b16.end [8/8] 0, 128
        %v4459 = vpop.trf.xlu0
        %v4460 = vpop.trf.xlu0
        %v4461 = vpop.trf.xlu0
        %v4462 = vpop.trf.xlu0
        %v4463 = vpop.trf.xlu0
        %v4464 = vpop.trf.xlu0
        %v4465 = vpop.trf.xlu0
        %v4466 = vpop.trf.xlu0
        %4467 = vxpose.xlu0.c.b16.start [1/8] %v3906, 128
        %4468 = vxpose.xlu0.c.b16.cont [2/8] 0, 128
        %4469 = vxpose.xlu0.c.b16.cont [3/8] 0, 128
        %4470 = vxpose.xlu0.c.b16.cont [4/8] 0, 128
        %4471 = vxpose.xlu0.c.b16.cont [5/8] 0, 128
        %4472 = vxpose.xlu0.c.b16.cont [6/8] 0, 128
        %4473 = vxpose.xlu0.c.b16.cont [7/8] 0, 128
        %4474 = vxpose.xlu0.c.b16.end [8/8] 0, 128
        %v4475 = vpop.trf.xlu0
        %v4476 = vpop.trf.xlu0
        %v4477 = vpop.trf.xlu0
        %v4478 = vpop.trf.xlu0
        %v4479 = vpop.trf.xlu0
        %v4480 = vpop.trf.xlu0
        %v4481 = vpop.trf.xlu0
        %v4482 = vpop.trf.xlu0
        %4483 = vxpose.xlu0.c.b16.start [1/8] %v3974, 128
        %4484 = vxpose.xlu0.c.b16.cont [2/8] 0, 128
        %4485 = vxpose.xlu0.c.b16.cont [3/8] 0, 128
        %4486 = vxpose.xlu0.c.b16.cont [4/8] 0, 128
        %4487 = vxpose.xlu0.c.b16.cont [5/8] 0, 128
        %4488 = vxpose.xlu0.c.b16.cont [6/8] 0, 128
        %4489 = vxpose.xlu0.c.b16.cont [7/8] 0, 128
        %4490 = vxpose.xlu0.c.b16.end [8/8] 0, 128
        %v4491 = vpop.trf.xlu0
        %v4492 = vpop.trf.xlu0
        %v4493 = vpop.trf.xlu0
        %v4494 = vpop.trf.xlu0
        %v4495 = vpop.trf.xlu0
        %v4496 = vpop.trf.xlu0
        %v4497 = vpop.trf.xlu0
        %v4498 = vpop.trf.xlu0
        %4499 = vxpose.xlu0.c.b16.start [1/8] %v3924, 128
        %4500 = vxpose.xlu0.c.b16.cont [2/8] 0, 128
        %4501 = vxpose.xlu0.c.b16.cont [3/8] 0, 128
        %4502 = vxpose.xlu0.c.b16.cont [4/8] 0, 128
        %4503 = vxpose.xlu0.c.b16.cont [5/8] 0, 128
        %4504 = vxpose.xlu0.c.b16.cont [6/8] 0, 128
        %4505 = vxpose.xlu0.c.b16.cont [7/8] 0, 128
        %4506 = vxpose.xlu0.c.b16.end [8/8] 0, 128
        %v4507 = vpop.trf.xlu0
        %v4508 = vpop.trf.xlu0
        %v4509 = vpop.trf.xlu0
        %v4510 = vpop.trf.xlu0
        %v4511 = vpop.trf.xlu0
        %v4512 = vpop.trf.xlu0
        %v4513 = vpop.trf.xlu0
        %v4514 = vpop.trf.xlu0
        %4515 = vxpose.xlu0.c.b16.start [1/8] %v3992, 128
        %4516 = vxpose.xlu0.c.b16.cont [2/8] 0, 128
        %4517 = vxpose.xlu0.c.b16.cont [3/8] 0, 128
        %4518 = vxpose.xlu0.c.b16.cont [4/8] 0, 128
        %4519 = vxpose.xlu0.c.b16.cont [5/8] 0, 128
        %4520 = vxpose.xlu0.c.b16.cont [6/8] 0, 128
        %4521 = vxpose.xlu0.c.b16.cont [7/8] 0, 128
        %4522 = vxpose.xlu0.c.b16.end [8/8] 0, 128
        %v4523 = vpop.trf.xlu0
        %v4524 = vpop.trf.xlu0
        %v4525 = vpop.trf.xlu0
        %v4526 = vpop.trf.xlu0
        %v4527 = vpop.trf.xlu0
        %v4528 = vpop.trf.xlu0
        %v4529 = vpop.trf.xlu0
        %v4530 = vpop.trf.xlu0
        %4531 = vxpose.xlu0.c.b16.start [1/8] %v3915, 128
        %4532 = vxpose.xlu0.c.b16.cont [2/8] 0, 128
        %4533 = vxpose.xlu0.c.b16.cont [3/8] 0, 128
        %4534 = vxpose.xlu0.c.b16.cont [4/8] 0, 128
        %4535 = vxpose.xlu0.c.b16.cont [5/8] 0, 128
        %4536 = vxpose.xlu0.c.b16.cont [6/8] 0, 128
        %4537 = vxpose.xlu0.c.b16.cont [7/8] 0, 128
        %4538 = vxpose.xlu0.c.b16.end [8/8] 0, 128
        %v4539 = vpop.trf.xlu0
        %v4540 = vpop.trf.xlu0
        %v4541 = vpop.trf.xlu0
        %v4542 = vpop.trf.xlu0
        %v4543 = vpop.trf.xlu0
        %v4544 = vpop.trf.xlu0
        %v4545 = vpop.trf.xlu0
        %v4546 = vpop.trf.xlu0
        %4547 = vxpose.xlu0.c.b16.start [1/8] %v3983, 128
        %4548 = vxpose.xlu0.c.b16.cont [2/8] 0, 128
        %4549 = vxpose.xlu0.c.b16.cont [3/8] 0, 128
        %4550 = vxpose.xlu0.c.b16.cont [4/8] 0, 128
        %4551 = vxpose.xlu0.c.b16.cont [5/8] 0, 128
        %4552 = vxpose.xlu0.c.b16.cont [6/8] 0, 128
        %4553 = vxpose.xlu0.c.b16.cont [7/8] 0, 128
        %4554 = vxpose.xlu0.c.b16.end [8/8] 0, 128
        %v4555 = vpop.trf.xlu0
        %v4556 = vpop.trf.xlu0
        %v4557 = vpop.trf.xlu0
        %v4558 = vpop.trf.xlu0
        %v4559 = vpop.trf.xlu0
        %v4560 = vpop.trf.xlu0
        %v4561 = vpop.trf.xlu0
        %v4562 = vpop.trf.xlu0
        %4563 = vxpose.xlu0.c.b16.start [1/8] %v3925, 128
        %4564 = vxpose.xlu0.c.b16.cont [2/8] 0, 128
        %4565 = vxpose.xlu0.c.b16.cont [3/8] 0, 128
        %4566 = vxpose.xlu0.c.b16.cont [4/8] 0, 128
        %4567 = vxpose.xlu0.c.b16.cont [5/8] 0, 128
        %4568 = vxpose.xlu0.c.b16.cont [6/8] 0, 128
        %4569 = vxpose.xlu0.c.b16.cont [7/8] 0, 128
        %4570 = vxpose.xlu0.c.b16.end [8/8] 0, 128
        %v4571 = vpop.trf.xlu0
        %v4572 = vpop.trf.xlu0
        %v4573 = vpop.trf.xlu0
        %v4574 = vpop.trf.xlu0
        %v4575 = vpop.trf.xlu0
        %v4576 = vpop.trf.xlu0
        %v4577 = vpop.trf.xlu0
        %v4578 = vpop.trf.xlu0
        %4579 = vxpose.xlu0.c.b16.start [1/8] %v3993, 128
        %4580 = vxpose.xlu0.c.b16.cont [2/8] 0, 128
        %4581 = vxpose.xlu0.c.b16.cont [3/8] 0, 128
        %4582 = vxpose.xlu0.c.b16.cont [4/8] 0, 128
        %4583 = vxpose.xlu0.c.b16.cont [5/8] 0, 128
        %4584 = vxpose.xlu0.c.b16.cont [6/8] 0, 128
        %4585 = vxpose.xlu0.c.b16.cont [7/8] 0, 128
        %4586 = vxpose.xlu0.c.b16.end [8/8] 0, 128
        %v4587 = vpop.trf.xlu0
        %v4588 = vpop.trf.xlu0
        %v4589 = vpop.trf.xlu0
        %v4590 = vpop.trf.xlu0
        %v4591 = vpop.trf.xlu0
        %v4592 = vpop.trf.xlu0
        %v4593 = vpop.trf.xlu0
        %v4594 = vpop.trf.xlu0
        %4595 = vxpose.xlu0.c.b16.start [1/8] %v3922, 128
        %4596 = vxpose.xlu0.c.b16.cont [2/8] 0, 128
        %4597 = vxpose.xlu0.c.b16.cont [3/8] 0, 128
        %4598 = vxpose.xlu0.c.b16.cont [4/8] 0, 128
        %4599 = vxpose.xlu0.c.b16.cont [5/8] 0, 128
        %4600 = vxpose.xlu0.c.b16.cont [6/8] 0, 128
        %4601 = vxpose.xlu0.c.b16.cont [7/8] 0, 128
        %4602 = vxpose.xlu0.c.b16.end [8/8] 0, 128
        %v4603 = vpop.trf.xlu0
        %v4604 = vpop.trf.xlu0
        %v4605 = vpop.trf.xlu0
        %v4606 = vpop.trf.xlu0
        %v4607 = vpop.trf.xlu0
        %v4608 = vpop.trf.xlu0
        %v4609 = vpop.trf.xlu0
        %v4610 = vpop.trf.xlu0
        %4611 = vxpose.xlu0.c.b16.start [1/8] %v3990, 128
        %4612 = vxpose.xlu0.c.b16.cont [2/8] 0, 128
        %4613 = vxpose.xlu0.c.b16.cont [3/8] 0, 128
        %4614 = vxpose.xlu0.c.b16.cont [4/8] 0, 128
        %4615 = vxpose.xlu0.c.b16.cont [5/8] 0, 128
        %4616 = vxpose.xlu0.c.b16.cont [6/8] 0, 128
        %4617 = vxpose.xlu0.c.b16.cont [7/8] 0, 128
        %4618 = vxpose.xlu0.c.b16.end [8/8] 0, 128
        %v4619 = vpop.trf.xlu0
        %v4620 = vpop.trf.xlu0
        %v4621 = vpop.trf.xlu0
        %v4622 = vpop.trf.xlu0
        %v4623 = vpop.trf.xlu0
        %v4624 = vpop.trf.xlu0
        %v4625 = vpop.trf.xlu0
        %v4626 = vpop.trf.xlu0
        %4627 = vxpose.xlu0.c.b16.start [1/8] %v3926, 128
        %4628 = vxpose.xlu0.c.b16.cont [2/8] 0, 128
        %4629 = vxpose.xlu0.c.b16.cont [3/8] 0, 128
        %4630 = vxpose.xlu0.c.b16.cont [4/8] 0, 128
        %4631 = vxpose.xlu0.c.b16.cont [5/8] 0, 128
        %4632 = vxpose.xlu0.c.b16.cont [6/8] 0, 128
        %4633 = vxpose.xlu0.c.b16.cont [7/8] 0, 128
        %4634 = vxpose.xlu0.c.b16.end [8/8] 0, 128
        %v4635 = vpop.trf.xlu0
        %v4636 = vpop.trf.xlu0
        %v4637 = vpop.trf.xlu0
        %v4638 = vpop.trf.xlu0
        %v4639 = vpop.trf.xlu0
        %v4640 = vpop.trf.xlu0
        %v4641 = vpop.trf.xlu0
        %v4642 = vpop.trf.xlu0
        %4643 = vxpose.xlu0.c.b16.start [1/8] %v3994, 128
        %4644 = vxpose.xlu0.c.b16.cont [2/8] 0, 128
        %4645 = vxpose.xlu0.c.b16.cont [3/8] 0, 128
        %4646 = vxpose.xlu0.c.b16.cont [4/8] 0, 128
        %4647 = vxpose.xlu0.c.b16.cont [5/8] 0, 128
        %4648 = vxpose.xlu0.c.b16.cont [6/8] 0, 128
        %4649 = vxpose.xlu0.c.b16.cont [7/8] 0, 128
        %4650 = vxpose.xlu0.c.b16.end [8/8] 0, 128
        %v4651 = vpop.trf.xlu0
        %v4652 = vpop.trf.xlu0
        %v4653 = vpop.trf.xlu0
        %v4654 = vpop.trf.xlu0
        %v4655 = vpop.trf.xlu0
        %v4656 = vpop.trf.xlu0
        %v4657 = vpop.trf.xlu0
        %v4658 = vpop.trf.xlu0
        %4659 = vxpose.xlu0.c.b16.start [1/8] %v4035, 128
        %4660 = vxpose.xlu0.c.b16.cont [2/8] 0, 128
        %4661 = vxpose.xlu0.c.b16.cont [3/8] 0, 128
        %4662 = vxpose.xlu0.c.b16.cont [4/8] 0, 128
        %4663 = vxpose.xlu0.c.b16.cont [5/8] 0, 128
        %4664 = vxpose.xlu0.c.b16.cont [6/8] 0, 128
        %4665 = vxpose.xlu0.c.b16.cont [7/8] 0, 128
        %4666 = vxpose.xlu0.c.b16.end [8/8] 0, 128
        %v4667 = vpop.trf.xlu0
        %v4668 = vpop.trf.xlu0
        %v4669 = vpop.trf.xlu0
        %v4670 = vpop.trf.xlu0
        %v4671 = vpop.trf.xlu0
        %v4672 = vpop.trf.xlu0
        %v4673 = vpop.trf.xlu0
        %v4674 = vpop.trf.xlu0
        %4675 = vxpose.xlu0.c.b16.start [1/8] %v4103, 128
        %4676 = vxpose.xlu0.c.b16.cont [2/8] 0, 128
        %4677 = vxpose.xlu0.c.b16.cont [3/8] 0, 128
        %4678 = vxpose.xlu0.c.b16.cont [4/8] 0, 128
        %4679 = vxpose.xlu0.c.b16.cont [5/8] 0, 128
        %4680 = vxpose.xlu0.c.b16.cont [6/8] 0, 128
        %4681 = vxpose.xlu0.c.b16.cont [7/8] 0, 128
        %4682 = vxpose.xlu0.c.b16.end [8/8] 0, 128
        %v4683 = vpop.trf.xlu0
        %v4684 = vpop.trf.xlu0
        %v4685 = vpop.trf.xlu0
        %v4686 = vpop.trf.xlu0
        %v4687 = vpop.trf.xlu0
        %v4688 = vpop.trf.xlu0
        %v4689 = vpop.trf.xlu0
        %v4690 = vpop.trf.xlu0
        %4691 = vxpose.xlu0.c.b16.start [1/8] %v4059, 128
        %4692 = vxpose.xlu0.c.b16.cont [2/8] 0, 128
        %4693 = vxpose.xlu0.c.b16.cont [3/8] 0, 128
        %4694 = vxpose.xlu0.c.b16.cont [4/8] 0, 128
        %4695 = vxpose.xlu0.c.b16.cont [5/8] 0, 128
        %4696 = vxpose.xlu0.c.b16.cont [6/8] 0, 128
        %4697 = vxpose.xlu0.c.b16.cont [7/8] 0, 128
        %4698 = vxpose.xlu0.c.b16.end [8/8] 0, 128
        %v4699 = vpop.trf.xlu0
        %v4700 = vpop.trf.xlu0
        %v4701 = vpop.trf.xlu0
        %v4702 = vpop.trf.xlu0
        %v4703 = vpop.trf.xlu0
        %v4704 = vpop.trf.xlu0
        %v4705 = vpop.trf.xlu0
        %v4706 = vpop.trf.xlu0
        %4707 = vxpose.xlu0.c.b16.start [1/8] %v4127, 128
        %4708 = vxpose.xlu0.c.b16.cont [2/8] 0, 128
        %4709 = vxpose.xlu0.c.b16.cont [3/8] 0, 128
        %4710 = vxpose.xlu0.c.b16.cont [4/8] 0, 128
        %4711 = vxpose.xlu0.c.b16.cont [5/8] 0, 128
        %4712 = vxpose.xlu0.c.b16.cont [6/8] 0, 128
        %4713 = vxpose.xlu0.c.b16.cont [7/8] 0, 128
        %4714 = vxpose.xlu0.c.b16.end [8/8] 0, 128
        %v4715 = vpop.trf.xlu0
        %v4716 = vpop.trf.xlu0
        %v4717 = vpop.trf.xlu0
        %v4718 = vpop.trf.xlu0
        %v4719 = vpop.trf.xlu0
        %v4720 = vpop.trf.xlu0
        %v4721 = vpop.trf.xlu0
        %v4722 = vpop.trf.xlu0
        %4723 = vxpose.xlu0.c.b16.start [1/8] %v4042, 128
        %4724 = vxpose.xlu0.c.b16.cont [2/8] 0, 128
        %4725 = vxpose.xlu0.c.b16.cont [3/8] 0, 128
        %4726 = vxpose.xlu0.c.b16.cont [4/8] 0, 128
        %4727 = vxpose.xlu0.c.b16.cont [5/8] 0, 128
        %4728 = vxpose.xlu0.c.b16.cont [6/8] 0, 128
        %4729 = vxpose.xlu0.c.b16.cont [7/8] 0, 128
        %4730 = vxpose.xlu0.c.b16.end [8/8] 0, 128
        %v4731 = vpop.trf.xlu0
        %v4732 = vpop.trf.xlu0
        %v4733 = vpop.trf.xlu0
        %v4734 = vpop.trf.xlu0
        %v4735 = vpop.trf.xlu0
        %v4736 = vpop.trf.xlu0
        %v4737 = vpop.trf.xlu0
        %v4738 = vpop.trf.xlu0
        %4739 = vxpose.xlu0.c.b16.start [1/8] %v4110, 128
        %4740 = vxpose.xlu0.c.b16.cont [2/8] 0, 128
        %4741 = vxpose.xlu0.c.b16.cont [3/8] 0, 128
        %4742 = vxpose.xlu0.c.b16.cont [4/8] 0, 128
        %4743 = vxpose.xlu0.c.b16.cont [5/8] 0, 128
        %4744 = vxpose.xlu0.c.b16.cont [6/8] 0, 128
        %4745 = vxpose.xlu0.c.b16.cont [7/8] 0, 128
        %4746 = vxpose.xlu0.c.b16.end [8/8] 0, 128
        %v4747 = vpop.trf.xlu0
        %v4748 = vpop.trf.xlu0
        %v4749 = vpop.trf.xlu0
        %v4750 = vpop.trf.xlu0
        %v4751 = vpop.trf.xlu0
        %v4752 = vpop.trf.xlu0
        %v4753 = vpop.trf.xlu0
        %v4754 = vpop.trf.xlu0
        %4755 = vxpose.xlu0.c.b16.start [1/8] %v4060, 128
        %4756 = vxpose.xlu0.c.b16.cont [2/8] 0, 128
        %4757 = vxpose.xlu0.c.b16.cont [3/8] 0, 128
        %4758 = vxpose.xlu0.c.b16.cont [4/8] 0, 128
        %4759 = vxpose.xlu0.c.b16.cont [5/8] 0, 128
        %4760 = vxpose.xlu0.c.b16.cont [6/8] 0, 128
        %4761 = vxpose.xlu0.c.b16.cont [7/8] 0, 128
        %4762 = vxpose.xlu0.c.b16.end [8/8] 0, 128
        %v4763 = vpop.trf.xlu0
        %v4764 = vpop.trf.xlu0
        %v4765 = vpop.trf.xlu0
        %v4766 = vpop.trf.xlu0
        %v4767 = vpop.trf.xlu0
        %v4768 = vpop.trf.xlu0
        %v4769 = vpop.trf.xlu0
        %v4770 = vpop.trf.xlu0
        %4771 = vxpose.xlu0.c.b16.start [1/8] %v4128, 128
        %4772 = vxpose.xlu0.c.b16.cont [2/8] 0, 128
        %4773 = vxpose.xlu0.c.b16.cont [3/8] 0, 128
        %4774 = vxpose.xlu0.c.b16.cont [4/8] 0, 128
        %4775 = vxpose.xlu0.c.b16.cont [5/8] 0, 128
        %4776 = vxpose.xlu0.c.b16.cont [6/8] 0, 128
        %4777 = vxpose.xlu0.c.b16.cont [7/8] 0, 128
        %4778 = vxpose.xlu0.c.b16.end [8/8] 0, 128
        %v4779 = vpop.trf.xlu0
        %v4780 = vpop.trf.xlu0
        %v4781 = vpop.trf.xlu0
        %v4782 = vpop.trf.xlu0
        %v4783 = vpop.trf.xlu0
        %v4784 = vpop.trf.xlu0
        %v4785 = vpop.trf.xlu0
        %v4786 = vpop.trf.xlu0
        %4787 = vxpose.xlu0.c.b16.start [1/8] %v4051, 128
        %4788 = vxpose.xlu0.c.b16.cont [2/8] 0, 128
        %4789 = vxpose.xlu0.c.b16.cont [3/8] 0, 128
        %4790 = vxpose.xlu0.c.b16.cont [4/8] 0, 128
        %4791 = vxpose.xlu0.c.b16.cont [5/8] 0, 128
        %4792 = vxpose.xlu0.c.b16.cont [6/8] 0, 128
        %4793 = vxpose.xlu0.c.b16.cont [7/8] 0, 128
        %4794 = vxpose.xlu0.c.b16.end [8/8] 0, 128
        %v4795 = vpop.trf.xlu0
        %v4796 = vpop.trf.xlu0
        %v4797 = vpop.trf.xlu0
        %v4798 = vpop.trf.xlu0
        %v4799 = vpop.trf.xlu0
        %v4800 = vpop.trf.xlu0
        %v4801 = vpop.trf.xlu0
        %v4802 = vpop.trf.xlu0
        %4803 = vxpose.xlu0.c.b16.start [1/8] %v4119, 128
        %4804 = vxpose.xlu0.c.b16.cont [2/8] 0, 128
        %4805 = vxpose.xlu0.c.b16.cont [3/8] 0, 128
        %4806 = vxpose.xlu0.c.b16.cont [4/8] 0, 128
        %4807 = vxpose.xlu0.c.b16.cont [5/8] 0, 128
        %4808 = vxpose.xlu0.c.b16.cont [6/8] 0, 128
        %4809 = vxpose.xlu0.c.b16.cont [7/8] 0, 128
        %4810 = vxpose.xlu0.c.b16.end [8/8] 0, 128
        %v4811 = vpop.trf.xlu0
        %v4812 = vpop.trf.xlu0
        %v4813 = vpop.trf.xlu0
        %v4814 = vpop.trf.xlu0
        %v4815 = vpop.trf.xlu0
        %v4816 = vpop.trf.xlu0
        %v4817 = vpop.trf.xlu0
        %v4818 = vpop.trf.xlu0
        %4819 = vxpose.xlu0.c.b16.start [1/8] %v4061, 128
        %4820 = vxpose.xlu0.c.b16.cont [2/8] 0, 128
        %4821 = vxpose.xlu0.c.b16.cont [3/8] 0, 128
        %4822 = vxpose.xlu0.c.b16.cont [4/8] 0, 128
        %4823 = vxpose.xlu0.c.b16.cont [5/8] 0, 128
        %4824 = vxpose.xlu0.c.b16.cont [6/8] 0, 128
        %4825 = vxpose.xlu0.c.b16.cont [7/8] 0, 128
        %4826 = vxpose.xlu0.c.b16.end [8/8] 0, 128
        %v4827 = vpop.trf.xlu0
        %v4828 = vpop.trf.xlu0
        %v4829 = vpop.trf.xlu0
        %v4830 = vpop.trf.xlu0
        %v4831 = vpop.trf.xlu0
        %v4832 = vpop.trf.xlu0
        %v4833 = vpop.trf.xlu0
        %v4834 = vpop.trf.xlu0
        %4835 = vxpose.xlu0.c.b16.start [1/8] %v4129, 128
        %4836 = vxpose.xlu0.c.b16.cont [2/8] 0, 128
        %4837 = vxpose.xlu0.c.b16.cont [3/8] 0, 128
        %4838 = vxpose.xlu0.c.b16.cont [4/8] 0, 128
        %4839 = vxpose.xlu0.c.b16.cont [5/8] 0, 128
        %4840 = vxpose.xlu0.c.b16.cont [6/8] 0, 128
        %4841 = vxpose.xlu0.c.b16.cont [7/8] 0, 128
        %4842 = vxpose.xlu0.c.b16.end [8/8] 0, 128
        %v4843 = vpop.trf.xlu0
        %v4844 = vpop.trf.xlu0
        %v4845 = vpop.trf.xlu0
        %v4846 = vpop.trf.xlu0
        %v4847 = vpop.trf.xlu0
        %v4848 = vpop.trf.xlu0
        %v4849 = vpop.trf.xlu0
        %v4850 = vpop.trf.xlu0
        %4851 = vxpose.xlu0.c.b16.start [1/8] %v4058, 128
        %4852 = vxpose.xlu0.c.b16.cont [2/8] 0, 128
        %4853 = vxpose.xlu0.c.b16.cont [3/8] 0, 128
        %4854 = vxpose.xlu0.c.b16.cont [4/8] 0, 128
        %4855 = vxpose.xlu0.c.b16.cont [5/8] 0, 128
        %4856 = vxpose.xlu0.c.b16.cont [6/8] 0, 128
        %4857 = vxpose.xlu0.c.b16.cont [7/8] 0, 128
        %4858 = vxpose.xlu0.c.b16.end [8/8] 0, 128
        %v4859 = vpop.trf.xlu0
        %v4860 = vpop.trf.xlu0
        %v4861 = vpop.trf.xlu0
        %v4862 = vpop.trf.xlu0
        %v4863 = vpop.trf.xlu0
        %v4864 = vpop.trf.xlu0
        %v4865 = vpop.trf.xlu0
        %v4866 = vpop.trf.xlu0
        %4867 = vxpose.xlu0.c.b16.start [1/8] %v4126, 128
        %4868 = vxpose.xlu0.c.b16.cont [2/8] 0, 128
        %4869 = vxpose.xlu0.c.b16.cont [3/8] 0, 128
        %4870 = vxpose.xlu0.c.b16.cont [4/8] 0, 128
        %4871 = vxpose.xlu0.c.b16.cont [5/8] 0, 128
        %4872 = vxpose.xlu0.c.b16.cont [6/8] 0, 128
        %4873 = vxpose.xlu0.c.b16.cont [7/8] 0, 128
        %4874 = vxpose.xlu0.c.b16.end [8/8] 0, 128
        %v4875 = vpop.trf.xlu0
        %v4876 = vpop.trf.xlu0
        %v4877 = vpop.trf.xlu0
        %v4878 = vpop.trf.xlu0
        %v4879 = vpop.trf.xlu0
        %v4880 = vpop.trf.xlu0
        %v4881 = vpop.trf.xlu0
        %v4882 = vpop.trf.xlu0
        %4883 = vxpose.xlu0.c.b16.start [1/8] %v4062, 128
        %4884 = vxpose.xlu0.c.b16.cont [2/8] 0, 128
        %4885 = vxpose.xlu0.c.b16.cont [3/8] 0, 128
        %4886 = vxpose.xlu0.c.b16.cont [4/8] 0, 128
        %4887 = vxpose.xlu0.c.b16.cont [5/8] 0, 128
        %4888 = vxpose.xlu0.c.b16.cont [6/8] 0, 128
        %4889 = vxpose.xlu0.c.b16.cont [7/8] 0, 128
        %4890 = vxpose.xlu0.c.b16.end [8/8] 0, 128
        %v4891 = vpop.trf.xlu0
        %v4892 = vpop.trf.xlu0
        %v4893 = vpop.trf.xlu0
        %v4894 = vpop.trf.xlu0
        %v4895 = vpop.trf.xlu0
        %v4896 = vpop.trf.xlu0
        %v4897 = vpop.trf.xlu0
        %v4898 = vpop.trf.xlu0
        %4899 = vxpose.xlu0.c.b16.start [1/8] %v4130, 128
        %4900 = vxpose.xlu0.c.b16.cont [2/8] 0, 128
        %4901 = vxpose.xlu0.c.b16.cont [3/8] 0, 128
        %4902 = vxpose.xlu0.c.b16.cont [4/8] 0, 128
        %4903 = vxpose.xlu0.c.b16.cont [5/8] 0, 128
        %4904 = vxpose.xlu0.c.b16.cont [6/8] 0, 128
        %4905 = vxpose.xlu0.c.b16.cont [7/8] 0, 128
        %4906 = vxpose.xlu0.c.b16.end [8/8] 0, 128
        %v4907 = vpop.trf.xlu0
        %v4908 = vpop.trf.xlu0
        %v4909 = vpop.trf.xlu0
        %v4910 = vpop.trf.xlu0
        %v4911 = vpop.trf.xlu0
        %v4912 = vpop.trf.xlu0
        %v4913 = vpop.trf.xlu0
        %v4914 = vpop.trf.xlu0
        %4915 = vxpose.xlu0.c.b16.start [1/8] %v4171, 128
        %4916 = vxpose.xlu0.c.b16.cont [2/8] 0, 128
        %4917 = vxpose.xlu0.c.b16.cont [3/8] 0, 128
        %4918 = vxpose.xlu0.c.b16.cont [4/8] 0, 128
        %4919 = vxpose.xlu0.c.b16.cont [5/8] 0, 128
        %4920 = vxpose.xlu0.c.b16.cont [6/8] 0, 128
        %4921 = vxpose.xlu0.c.b16.cont [7/8] 0, 128
        %4922 = vxpose.xlu0.c.b16.end [8/8] 0, 128
        %v4923 = vpop.trf.xlu0
        %v4924 = vpop.trf.xlu0
        %v4925 = vpop.trf.xlu0
        %v4926 = vpop.trf.xlu0
        %v4927 = vpop.trf.xlu0
        %v4928 = vpop.trf.xlu0
        %v4929 = vpop.trf.xlu0
        %v4930 = vpop.trf.xlu0
        %4931 = vxpose.xlu0.c.b16.start [1/8] %v4239, 128
        %4932 = vxpose.xlu0.c.b16.cont [2/8] 0, 128
        %4933 = vxpose.xlu0.c.b16.cont [3/8] 0, 128
        %4934 = vxpose.xlu0.c.b16.cont [4/8] 0, 128
        %4935 = vxpose.xlu0.c.b16.cont [5/8] 0, 128
        %4936 = vxpose.xlu0.c.b16.cont [6/8] 0, 128
        %4937 = vxpose.xlu0.c.b16.cont [7/8] 0, 128
        %4938 = vxpose.xlu0.c.b16.end [8/8] 0, 128
        %v4939 = vpop.trf.xlu0
        %v4940 = vpop.trf.xlu0
        %v4941 = vpop.trf.xlu0
        %v4942 = vpop.trf.xlu0
        %v4943 = vpop.trf.xlu0
        %v4944 = vpop.trf.xlu0
        %v4945 = vpop.trf.xlu0
        %v4946 = vpop.trf.xlu0
        %4947 = vxpose.xlu0.c.b16.start [1/8] %v4195, 128
        %4948 = vxpose.xlu0.c.b16.cont [2/8] 0, 128
        %4949 = vxpose.xlu0.c.b16.cont [3/8] 0, 128
        %4950 = vxpose.xlu0.c.b16.cont [4/8] 0, 128
        %4951 = vxpose.xlu0.c.b16.cont [5/8] 0, 128
        %4952 = vxpose.xlu0.c.b16.cont [6/8] 0, 128
        %4953 = vxpose.xlu0.c.b16.cont [7/8] 0, 128
        %4954 = vxpose.xlu0.c.b16.end [8/8] 0, 128
        %v4955 = vpop.trf.xlu0
        %v4956 = vpop.trf.xlu0
        %v4957 = vpop.trf.xlu0
        %v4958 = vpop.trf.xlu0
        %v4959 = vpop.trf.xlu0
        %v4960 = vpop.trf.xlu0
        %v4961 = vpop.trf.xlu0
        %v4962 = vpop.trf.xlu0
        %4963 = vxpose.xlu0.c.b16.start [1/8] %v4263, 128
        %4964 = vxpose.xlu0.c.b16.cont [2/8] 0, 128
        %4965 = vxpose.xlu0.c.b16.cont [3/8] 0, 128
        %4966 = vxpose.xlu0.c.b16.cont [4/8] 0, 128
        %4967 = vxpose.xlu0.c.b16.cont [5/8] 0, 128
        %4968 = vxpose.xlu0.c.b16.cont [6/8] 0, 128
        %4969 = vxpose.xlu0.c.b16.cont [7/8] 0, 128
        %4970 = vxpose.xlu0.c.b16.end [8/8] 0, 128
        %v4971 = vpop.trf.xlu0
        %v4972 = vpop.trf.xlu0
        %v4973 = vpop.trf.xlu0
        %v4974 = vpop.trf.xlu0
        %v4975 = vpop.trf.xlu0
        %v4976 = vpop.trf.xlu0
        %v4977 = vpop.trf.xlu0
        %v4978 = vpop.trf.xlu0
        %4979 = vxpose.xlu0.c.b16.start [1/8] %v4178, 128
        %4980 = vxpose.xlu0.c.b16.cont [2/8] 0, 128
        %4981 = vxpose.xlu0.c.b16.cont [3/8] 0, 128
        %4982 = vxpose.xlu0.c.b16.cont [4/8] 0, 128
        %4983 = vxpose.xlu0.c.b16.cont [5/8] 0, 128
        %4984 = vxpose.xlu0.c.b16.cont [6/8] 0, 128
        %4985 = vxpose.xlu0.c.b16.cont [7/8] 0, 128
        %4986 = vxpose.xlu0.c.b16.end [8/8] 0, 128
        %v4987 = vpop.trf.xlu0
        %v4988 = vpop.trf.xlu0
        %v4989 = vpop.trf.xlu0
        %v4990 = vpop.trf.xlu0
        %v4991 = vpop.trf.xlu0
        %v4992 = vpop.trf.xlu0
        %v4993 = vpop.trf.xlu0
        %v4994 = vpop.trf.xlu0
        %4995 = vxpose.xlu0.c.b16.start [1/8] %v4246, 128
        %4996 = vxpose.xlu0.c.b16.cont [2/8] 0, 128
        %4997 = vxpose.xlu0.c.b16.cont [3/8] 0, 128
        %4998 = vxpose.xlu0.c.b16.cont [4/8] 0, 128
        %4999 = vxpose.xlu0.c.b16.cont [5/8] 0, 128
        %5000 = vxpose.xlu0.c.b16.cont [6/8] 0, 128
        %5001 = vxpose.xlu0.c.b16.cont [7/8] 0, 128
        %5002 = vxpose.xlu0.c.b16.end [8/8] 0, 128
        %v5003 = vpop.trf.xlu0
        %v5004 = vpop.trf.xlu0
        %v5005 = vpop.trf.xlu0
        %v5006 = vpop.trf.xlu0
        %v5007 = vpop.trf.xlu0
        %v5008 = vpop.trf.xlu0
        %v5009 = vpop.trf.xlu0
        %v5010 = vpop.trf.xlu0
        %5011 = vxpose.xlu0.c.b16.start [1/8] %v4196, 128
        %5012 = vxpose.xlu0.c.b16.cont [2/8] 0, 128
        %5013 = vxpose.xlu0.c.b16.cont [3/8] 0, 128
        %5014 = vxpose.xlu0.c.b16.cont [4/8] 0, 128
        %5015 = vxpose.xlu0.c.b16.cont [5/8] 0, 128
        %5016 = vxpose.xlu0.c.b16.cont [6/8] 0, 128
        %5017 = vxpose.xlu0.c.b16.cont [7/8] 0, 128
        %5018 = vxpose.xlu0.c.b16.end [8/8] 0, 128
        %v5019 = vpop.trf.xlu0
        %v5020 = vpop.trf.xlu0
        %v5021 = vpop.trf.xlu0
        %v5022 = vpop.trf.xlu0
        %v5023 = vpop.trf.xlu0
        %v5024 = vpop.trf.xlu0
        %v5025 = vpop.trf.xlu0
        %v5026 = vpop.trf.xlu0
        %5027 = vxpose.xlu0.c.b16.start [1/8] %v4264, 128
        %5028 = vxpose.xlu0.c.b16.cont [2/8] 0, 128
        %5029 = vxpose.xlu0.c.b16.cont [3/8] 0, 128
        %5030 = vxpose.xlu0.c.b16.cont [4/8] 0, 128
        %5031 = vxpose.xlu0.c.b16.cont [5/8] 0, 128
        %5032 = vxpose.xlu0.c.b16.cont [6/8] 0, 128
        %5033 = vxpose.xlu0.c.b16.cont [7/8] 0, 128
        %5034 = vxpose.xlu0.c.b16.end [8/8] 0, 128
        %v5035 = vpop.trf.xlu0
        %v5036 = vpop.trf.xlu0
        %v5037 = vpop.trf.xlu0
        %v5038 = vpop.trf.xlu0
        %v5039 = vpop.trf.xlu0
        %v5040 = vpop.trf.xlu0
        %v5041 = vpop.trf.xlu0
        %v5042 = vpop.trf.xlu0
        %5043 = vxpose.xlu0.c.b16.start [1/8] %v4187, 128
        %5044 = vxpose.xlu0.c.b16.cont [2/8] 0, 128
        %5045 = vxpose.xlu0.c.b16.cont [3/8] 0, 128
        %5046 = vxpose.xlu0.c.b16.cont [4/8] 0, 128
        %5047 = vxpose.xlu0.c.b16.cont [5/8] 0, 128
        %5048 = vxpose.xlu0.c.b16.cont [6/8] 0, 128
        %5049 = vxpose.xlu0.c.b16.cont [7/8] 0, 128
        %5050 = vxpose.xlu0.c.b16.end [8/8] 0, 128
        %v5051 = vpop.trf.xlu0
        %v5052 = vpop.trf.xlu0
        %v5053 = vpop.trf.xlu0
        %v5054 = vpop.trf.xlu0
        %v5055 = vpop.trf.xlu0
        %v5056 = vpop.trf.xlu0
        %v5057 = vpop.trf.xlu0
        %v5058 = vpop.trf.xlu0
        %5059 = vxpose.xlu0.c.b16.start [1/8] %v4255, 128
        %5060 = vxpose.xlu0.c.b16.cont [2/8] 0, 128
        %5061 = vxpose.xlu0.c.b16.cont [3/8] 0, 128
        %5062 = vxpose.xlu0.c.b16.cont [4/8] 0, 128
        %5063 = vxpose.xlu0.c.b16.cont [5/8] 0, 128
        %5064 = vxpose.xlu0.c.b16.cont [6/8] 0, 128
        %5065 = vxpose.xlu0.c.b16.cont [7/8] 0, 128
        %5066 = vxpose.xlu0.c.b16.end [8/8] 0, 128
        %v5067 = vpop.trf.xlu0
        %v5068 = vpop.trf.xlu0
        %v5069 = vpop.trf.xlu0
        %v5070 = vpop.trf.xlu0
        %v5071 = vpop.trf.xlu0
        %v5072 = vpop.trf.xlu0
        %v5073 = vpop.trf.xlu0
        %v5074 = vpop.trf.xlu0
        %5075 = vxpose.xlu0.c.b16.start [1/8] %v4197, 128
        %5076 = vxpose.xlu0.c.b16.cont [2/8] 0, 128
        %5077 = vxpose.xlu0.c.b16.cont [3/8] 0, 128
        %5078 = vxpose.xlu0.c.b16.cont [4/8] 0, 128
        %5079 = vxpose.xlu0.c.b16.cont [5/8] 0, 128
        %5080 = vxpose.xlu0.c.b16.cont [6/8] 0, 128
        %5081 = vxpose.xlu0.c.b16.cont [7/8] 0, 128
        %5082 = vxpose.xlu0.c.b16.end [8/8] 0, 128
        %v5083 = vpop.trf.xlu0
        %v5084 = vpop.trf.xlu0
        %v5085 = vpop.trf.xlu0
        %v5086 = vpop.trf.xlu0
        %v5087 = vpop.trf.xlu0
        %v5088 = vpop.trf.xlu0
        %v5089 = vpop.trf.xlu0
        %v5090 = vpop.trf.xlu0
        %5091 = vxpose.xlu0.c.b16.start [1/8] %v4265, 128
        %5092 = vxpose.xlu0.c.b16.cont [2/8] 0, 128
        %5093 = vxpose.xlu0.c.b16.cont [3/8] 0, 128
        %5094 = vxpose.xlu0.c.b16.cont [4/8] 0, 128
        %5095 = vxpose.xlu0.c.b16.cont [5/8] 0, 128
        %5096 = vxpose.xlu0.c.b16.cont [6/8] 0, 128
        %5097 = vxpose.xlu0.c.b16.cont [7/8] 0, 128
        %5098 = vxpose.xlu0.c.b16.end [8/8] 0, 128
        %v5099 = vpop.trf.xlu0
        %v5100 = vpop.trf.xlu0
        %v5101 = vpop.trf.xlu0
        %v5102 = vpop.trf.xlu0
        %v5103 = vpop.trf.xlu0
        %v5104 = vpop.trf.xlu0
        %v5105 = vpop.trf.xlu0
        %v5106 = vpop.trf.xlu0
        %5107 = vxpose.xlu0.c.b16.start [1/8] %v4194, 128
        %5108 = vxpose.xlu0.c.b16.cont [2/8] 0, 128
        %5109 = vxpose.xlu0.c.b16.cont [3/8] 0, 128
        %5110 = vxpose.xlu0.c.b16.cont [4/8] 0, 128
        %5111 = vxpose.xlu0.c.b16.cont [5/8] 0, 128
        %5112 = vxpose.xlu0.c.b16.cont [6/8] 0, 128
        %5113 = vxpose.xlu0.c.b16.cont [7/8] 0, 128
        %5114 = vxpose.xlu0.c.b16.end [8/8] 0, 128
        %v5115 = vpop.trf.xlu0
        %v5116 = vpop.trf.xlu0
        %v5117 = vpop.trf.xlu0
        %v5118 = vpop.trf.xlu0
        %v5119 = vpop.trf.xlu0
        %v5120 = vpop.trf.xlu0
        %v5121 = vpop.trf.xlu0
        %v5122 = vpop.trf.xlu0
        %5123 = vxpose.xlu0.c.b16.start [1/8] %v4262, 128
        %5124 = vxpose.xlu0.c.b16.cont [2/8] 0, 128
        %5125 = vxpose.xlu0.c.b16.cont [3/8] 0, 128
        %5126 = vxpose.xlu0.c.b16.cont [4/8] 0, 128
        %5127 = vxpose.xlu0.c.b16.cont [5/8] 0, 128
        %5128 = vxpose.xlu0.c.b16.cont [6/8] 0, 128
        %5129 = vxpose.xlu0.c.b16.cont [7/8] 0, 128
        %5130 = vxpose.xlu0.c.b16.end [8/8] 0, 128
        %v5131 = vpop.trf.xlu0
        %v5132 = vpop.trf.xlu0
        %v5133 = vpop.trf.xlu0
        %v5134 = vpop.trf.xlu0
        %v5135 = vpop.trf.xlu0
        %v5136 = vpop.trf.xlu0
        %v5137 = vpop.trf.xlu0
        %v5138 = vpop.trf.xlu0
        %5139 = vxpose.xlu0.c.b16.start [1/8] %v4198, 128
        %5140 = vxpose.xlu0.c.b16.cont [2/8] 0, 128
        %5141 = vxpose.xlu0.c.b16.cont [3/8] 0, 128
        %5142 = vxpose.xlu0.c.b16.cont [4/8] 0, 128
        %5143 = vxpose.xlu0.c.b16.cont [5/8] 0, 128
        %5144 = vxpose.xlu0.c.b16.cont [6/8] 0, 128
        %5145 = vxpose.xlu0.c.b16.cont [7/8] 0, 128
        %5146 = vxpose.xlu0.c.b16.end [8/8] 0, 128
        %v5147 = vpop.trf.xlu0
        %v5148 = vpop.trf.xlu0
        %v5149 = vpop.trf.xlu0
        %v5150 = vpop.trf.xlu0
        %v5151 = vpop.trf.xlu0
        %v5152 = vpop.trf.xlu0
        %v5153 = vpop.trf.xlu0
        %v5154 = vpop.trf.xlu0
        %5155 = vxpose.xlu0.c.b16.start [1/8] %v4266, 128
        %5156 = vxpose.xlu0.c.b16.cont [2/8] 0, 128
        %5157 = vxpose.xlu0.c.b16.cont [3/8] 0, 128
        %5158 = vxpose.xlu0.c.b16.cont [4/8] 0, 128
        %5159 = vxpose.xlu0.c.b16.cont [5/8] 0, 128
        %5160 = vxpose.xlu0.c.b16.cont [6/8] 0, 128
        %5161 = vxpose.xlu0.c.b16.cont [7/8] 0, 128
        %5162 = vxpose.xlu0.c.b16.end [8/8] 0, 128
        %v5163 = vpop.trf.xlu0
        %v5164 = vpop.trf.xlu0
        %v5165 = vpop.trf.xlu0
        %v5166 = vpop.trf.xlu0
        %v5167 = vpop.trf.xlu0
        %v5168 = vpop.trf.xlu0
        %v5169 = vpop.trf.xlu0
        %v5170 = vpop.trf.xlu0
        %5171 = vxpose.xlu0.c.b16.start [1/8] %v4307, 128
        %5172 = vxpose.xlu0.c.b16.cont [2/8] 0, 128
        %5173 = vxpose.xlu0.c.b16.cont [3/8] 0, 128
        %5174 = vxpose.xlu0.c.b16.cont [4/8] 0, 128
        %5175 = vxpose.xlu0.c.b16.cont [5/8] 0, 128
        %5176 = vxpose.xlu0.c.b16.cont [6/8] 0, 128
        %5177 = vxpose.xlu0.c.b16.cont [7/8] 0, 128
        %5178 = vxpose.xlu0.c.b16.end [8/8] 0, 128
        %v5179 = vpop.trf.xlu0
        %v5180 = vpop.trf.xlu0
        %v5181 = vpop.trf.xlu0
        %v5182 = vpop.trf.xlu0
        %v5183 = vpop.trf.xlu0
        %v5184 = vpop.trf.xlu0
        %v5185 = vpop.trf.xlu0
        %v5186 = vpop.trf.xlu0
        %5187 = vxpose.xlu0.c.b16.start [1/8] %v4375, 128
        %5188 = vxpose.xlu0.c.b16.cont [2/8] 0, 128
        %5189 = vxpose.xlu0.c.b16.cont [3/8] 0, 128
        %5190 = vxpose.xlu0.c.b16.cont [4/8] 0, 128
        %5191 = vxpose.xlu0.c.b16.cont [5/8] 0, 128
        %5192 = vxpose.xlu0.c.b16.cont [6/8] 0, 128
        %5193 = vxpose.xlu0.c.b16.cont [7/8] 0, 128
        %5194 = vxpose.xlu0.c.b16.end [8/8] 0, 128
        %v5195 = vpop.trf.xlu0
        %v5196 = vpop.trf.xlu0
        %v5197 = vpop.trf.xlu0
        %v5198 = vpop.trf.xlu0
        %v5199 = vpop.trf.xlu0
        %v5200 = vpop.trf.xlu0
        %v5201 = vpop.trf.xlu0
        %v5202 = vpop.trf.xlu0
        %5203 = vxpose.xlu0.c.b16.start [1/8] %v4331, 128
        %5204 = vxpose.xlu0.c.b16.cont [2/8] 0, 128
        %5205 = vxpose.xlu0.c.b16.cont [3/8] 0, 128
        %5206 = vxpose.xlu0.c.b16.cont [4/8] 0, 128
        %5207 = vxpose.xlu0.c.b16.cont [5/8] 0, 128
        %5208 = vxpose.xlu0.c.b16.cont [6/8] 0, 128
        %5209 = vxpose.xlu0.c.b16.cont [7/8] 0, 128
        %5210 = vxpose.xlu0.c.b16.end [8/8] 0, 128
        %v5211 = vpop.trf.xlu0
        %v5212 = vpop.trf.xlu0
        %v5213 = vpop.trf.xlu0
        %v5214 = vpop.trf.xlu0
        %v5215 = vpop.trf.xlu0
        %v5216 = vpop.trf.xlu0
        %v5217 = vpop.trf.xlu0
        %v5218 = vpop.trf.xlu0
        %5219 = vxpose.xlu0.c.b16.start [1/8] %v4399, 128
        %5220 = vxpose.xlu0.c.b16.cont [2/8] 0, 128
        %5221 = vxpose.xlu0.c.b16.cont [3/8] 0, 128
        %5222 = vxpose.xlu0.c.b16.cont [4/8] 0, 128
        %5223 = vxpose.xlu0.c.b16.cont [5/8] 0, 128
        %5224 = vxpose.xlu0.c.b16.cont [6/8] 0, 128
        %5225 = vxpose.xlu0.c.b16.cont [7/8] 0, 128
        %5226 = vxpose.xlu0.c.b16.end [8/8] 0, 128
        %v5227 = vpop.trf.xlu0
        %v5228 = vpop.trf.xlu0
        %v5229 = vpop.trf.xlu0
        %v5230 = vpop.trf.xlu0
        %v5231 = vpop.trf.xlu0
        %v5232 = vpop.trf.xlu0
        %v5233 = vpop.trf.xlu0
        %v5234 = vpop.trf.xlu0
        %5235 = vxpose.xlu0.c.b16.start [1/8] %v4314, 128
        %5236 = vxpose.xlu0.c.b16.cont [2/8] 0, 128
        %5237 = vxpose.xlu0.c.b16.cont [3/8] 0, 128
        %5238 = vxpose.xlu0.c.b16.cont [4/8] 0, 128
        %5239 = vxpose.xlu0.c.b16.cont [5/8] 0, 128
        %5240 = vxpose.xlu0.c.b16.cont [6/8] 0, 128
        %5241 = vxpose.xlu0.c.b16.cont [7/8] 0, 128
        %5242 = vxpose.xlu0.c.b16.end [8/8] 0, 128
        %v5243 = vpop.trf.xlu0
        %v5244 = vpop.trf.xlu0
        %v5245 = vpop.trf.xlu0
        %v5246 = vpop.trf.xlu0
        %v5247 = vpop.trf.xlu0
        %v5248 = vpop.trf.xlu0
        %v5249 = vpop.trf.xlu0
        %v5250 = vpop.trf.xlu0
        %5251 = vxpose.xlu0.c.b16.start [1/8] %v4382, 128
        %5252 = vxpose.xlu0.c.b16.cont [2/8] 0, 128
        %5253 = vxpose.xlu0.c.b16.cont [3/8] 0, 128
        %5254 = vxpose.xlu0.c.b16.cont [4/8] 0, 128
        %5255 = vxpose.xlu0.c.b16.cont [5/8] 0, 128
        %5256 = vxpose.xlu0.c.b16.cont [6/8] 0, 128
        %5257 = vxpose.xlu0.c.b16.cont [7/8] 0, 128
        %5258 = vxpose.xlu0.c.b16.end [8/8] 0, 128
        %v5259 = vpop.trf.xlu0
        %v5260 = vpop.trf.xlu0
        %v5261 = vpop.trf.xlu0
        %v5262 = vpop.trf.xlu0
        %v5263 = vpop.trf.xlu0
        %v5264 = vpop.trf.xlu0
        %v5265 = vpop.trf.xlu0
        %v5266 = vpop.trf.xlu0
        %5267 = vxpose.xlu0.c.b16.start [1/8] %v4332, 128
        %5268 = vxpose.xlu0.c.b16.cont [2/8] 0, 128
        %5269 = vxpose.xlu0.c.b16.cont [3/8] 0, 128
        %5270 = vxpose.xlu0.c.b16.cont [4/8] 0, 128
        %5271 = vxpose.xlu0.c.b16.cont [5/8] 0, 128
        %5272 = vxpose.xlu0.c.b16.cont [6/8] 0, 128
        %5273 = vxpose.xlu0.c.b16.cont [7/8] 0, 128
        %5274 = vxpose.xlu0.c.b16.end [8/8] 0, 128
        %v5275 = vpop.trf.xlu0
        %v5276 = vpop.trf.xlu0
        %v5277 = vpop.trf.xlu0
        %v5278 = vpop.trf.xlu0
        %v5279 = vpop.trf.xlu0
        %v5280 = vpop.trf.xlu0
        %v5281 = vpop.trf.xlu0
        %v5282 = vpop.trf.xlu0
        %5283 = vxpose.xlu0.c.b16.start [1/8] %v4400, 128
        %5284 = vxpose.xlu0.c.b16.cont [2/8] 0, 128
        %5285 = vxpose.xlu0.c.b16.cont [3/8] 0, 128
        %5286 = vxpose.xlu0.c.b16.cont [4/8] 0, 128
        %5287 = vxpose.xlu0.c.b16.cont [5/8] 0, 128
        %5288 = vxpose.xlu0.c.b16.cont [6/8] 0, 128
        %5289 = vxpose.xlu0.c.b16.cont [7/8] 0, 128
        %5290 = vxpose.xlu0.c.b16.end [8/8] 0, 128
        %v5291 = vpop.trf.xlu0
        %v5292 = vpop.trf.xlu0
        %v5293 = vpop.trf.xlu0
        %v5294 = vpop.trf.xlu0
        %v5295 = vpop.trf.xlu0
        %v5296 = vpop.trf.xlu0
        %v5297 = vpop.trf.xlu0
        %v5298 = vpop.trf.xlu0
        %5299 = vxpose.xlu0.c.b16.start [1/8] %v4323, 128
        %5300 = vxpose.xlu0.c.b16.cont [2/8] 0, 128
        %5301 = vxpose.xlu0.c.b16.cont [3/8] 0, 128
        %5302 = vxpose.xlu0.c.b16.cont [4/8] 0, 128
        %5303 = vxpose.xlu0.c.b16.cont [5/8] 0, 128
        %5304 = vxpose.xlu0.c.b16.cont [6/8] 0, 128
        %5305 = vxpose.xlu0.c.b16.cont [7/8] 0, 128
        %5306 = vxpose.xlu0.c.b16.end [8/8] 0, 128
        %v5307 = vpop.trf.xlu0
        %v5308 = vpop.trf.xlu0
        %v5309 = vpop.trf.xlu0
        %v5310 = vpop.trf.xlu0
        %v5311 = vpop.trf.xlu0
        %v5312 = vpop.trf.xlu0
        %v5313 = vpop.trf.xlu0
        %v5314 = vpop.trf.xlu0
        %5315 = vxpose.xlu0.c.b16.start [1/8] %v4391, 128
        %5316 = vxpose.xlu0.c.b16.cont [2/8] 0, 128
        %5317 = vxpose.xlu0.c.b16.cont [3/8] 0, 128
        %5318 = vxpose.xlu0.c.b16.cont [4/8] 0, 128
        %5319 = vxpose.xlu0.c.b16.cont [5/8] 0, 128
        %5320 = vxpose.xlu0.c.b16.cont [6/8] 0, 128
        %5321 = vxpose.xlu0.c.b16.cont [7/8] 0, 128
        %5322 = vxpose.xlu0.c.b16.end [8/8] 0, 128
        %v5323 = vpop.trf.xlu0
        %v5324 = vpop.trf.xlu0
        %v5325 = vpop.trf.xlu0
        %v5326 = vpop.trf.xlu0
        %v5327 = vpop.trf.xlu0
        %v5328 = vpop.trf.xlu0
        %v5329 = vpop.trf.xlu0
        %v5330 = vpop.trf.xlu0
        %5331 = vxpose.xlu0.c.b16.start [1/8] %v4333, 128
        %5332 = vxpose.xlu0.c.b16.cont [2/8] 0, 128
        %5333 = vxpose.xlu0.c.b16.cont [3/8] 0, 128
        %5334 = vxpose.xlu0.c.b16.cont [4/8] 0, 128
        %5335 = vxpose.xlu0.c.b16.cont [5/8] 0, 128
        %5336 = vxpose.xlu0.c.b16.cont [6/8] 0, 128
        %5337 = vxpose.xlu0.c.b16.cont [7/8] 0, 128
        %5338 = vxpose.xlu0.c.b16.end [8/8] 0, 128
        %v5339 = vpop.trf.xlu0
        %v5340 = vpop.trf.xlu0
        %v5341 = vpop.trf.xlu0
        %v5342 = vpop.trf.xlu0
        %v5343 = vpop.trf.xlu0
        %v5344 = vpop.trf.xlu0
        %v5345 = vpop.trf.xlu0
        %v5346 = vpop.trf.xlu0
        %5347 = vxpose.xlu0.c.b16.start [1/8] %v4401, 128
        %5348 = vxpose.xlu0.c.b16.cont [2/8] 0, 128
        %5349 = vxpose.xlu0.c.b16.cont [3/8] 0, 128
        %5350 = vxpose.xlu0.c.b16.cont [4/8] 0, 128
        %5351 = vxpose.xlu0.c.b16.cont [5/8] 0, 128
        %5352 = vxpose.xlu0.c.b16.cont [6/8] 0, 128
        %5353 = vxpose.xlu0.c.b16.cont [7/8] 0, 128
        %5354 = vxpose.xlu0.c.b16.end [8/8] 0, 128
        %v5355 = vpop.trf.xlu0
        %v5356 = vpop.trf.xlu0
        %v5357 = vpop.trf.xlu0
        %v5358 = vpop.trf.xlu0
        %v5359 = vpop.trf.xlu0
        %v5360 = vpop.trf.xlu0
        %v5361 = vpop.trf.xlu0
        %v5362 = vpop.trf.xlu0
        %5363 = vxpose.xlu0.c.b16.start [1/8] %v4330, 128
        %5364 = vxpose.xlu0.c.b16.cont [2/8] 0, 128
        %5365 = vxpose.xlu0.c.b16.cont [3/8] 0, 128
        %5366 = vxpose.xlu0.c.b16.cont [4/8] 0, 128
        %5367 = vxpose.xlu0.c.b16.cont [5/8] 0, 128
        %5368 = vxpose.xlu0.c.b16.cont [6/8] 0, 128
        %5369 = vxpose.xlu0.c.b16.cont [7/8] 0, 128
        %5370 = vxpose.xlu0.c.b16.end [8/8] 0, 128
        %v5371 = vpop.trf.xlu0
        %v5372 = vpop.trf.xlu0
        %v5373 = vpop.trf.xlu0
        %v5374 = vpop.trf.xlu0
        %v5375 = vpop.trf.xlu0
        %v5376 = vpop.trf.xlu0
        %v5377 = vpop.trf.xlu0
        %v5378 = vpop.trf.xlu0
        %5379 = vxpose.xlu0.c.b16.start [1/8] %v4398, 128
        %5380 = vxpose.xlu0.c.b16.cont [2/8] 0, 128
        %5381 = vxpose.xlu0.c.b16.cont [3/8] 0, 128
        %5382 = vxpose.xlu0.c.b16.cont [4/8] 0, 128
        %5383 = vxpose.xlu0.c.b16.cont [5/8] 0, 128
        %5384 = vxpose.xlu0.c.b16.cont [6/8] 0, 128
        %5385 = vxpose.xlu0.c.b16.cont [7/8] 0, 128
        %5386 = vxpose.xlu0.c.b16.end [8/8] 0, 128
        %v5387 = vpop.trf.xlu0
        %v5388 = vpop.trf.xlu0
        %v5389 = vpop.trf.xlu0
        %v5390 = vpop.trf.xlu0
        %v5391 = vpop.trf.xlu0
        %v5392 = vpop.trf.xlu0
        %v5393 = vpop.trf.xlu0
        %v5394 = vpop.trf.xlu0
        %5395 = vxpose.xlu0.c.b16.start [1/8] %v4334, 128
        %5396 = vxpose.xlu0.c.b16.cont [2/8] 0, 128
        %5397 = vxpose.xlu0.c.b16.cont [3/8] 0, 128
        %5398 = vxpose.xlu0.c.b16.cont [4/8] 0, 128
        %5399 = vxpose.xlu0.c.b16.cont [5/8] 0, 128
        %5400 = vxpose.xlu0.c.b16.cont [6/8] 0, 128
        %5401 = vxpose.xlu0.c.b16.cont [7/8] 0, 128
        %5402 = vxpose.xlu0.c.b16.end [8/8] 0, 128
        %v5403 = vpop.trf.xlu0
        %v5404 = vpop.trf.xlu0
        %v5405 = vpop.trf.xlu0
        %v5406 = vpop.trf.xlu0
        %v5407 = vpop.trf.xlu0
        %v5408 = vpop.trf.xlu0
        %v5409 = vpop.trf.xlu0
        %v5410 = vpop.trf.xlu0
        %5411 = vxpose.xlu0.c.b16.start [1/8] %v4402, 128
        %5412 = vxpose.xlu0.c.b16.cont [2/8] 0, 128
        %5413 = vxpose.xlu0.c.b16.cont [3/8] 0, 128
        %5414 = vxpose.xlu0.c.b16.cont [4/8] 0, 128
        %5415 = vxpose.xlu0.c.b16.cont [5/8] 0, 128
        %5416 = vxpose.xlu0.c.b16.cont [6/8] 0, 128
        %5417 = vxpose.xlu0.c.b16.cont [7/8] 0, 128
        %5418 = vxpose.xlu0.c.b16.end [8/8] 0, 128
        %v5419 = vpop.trf.xlu0
        %v5420 = vpop.trf.xlu0
        %v5421 = vpop.trf.xlu0
        %v5422 = vpop.trf.xlu0
        %v5423 = vpop.trf.xlu0
        %v5424 = vpop.trf.xlu0
        %v5425 = vpop.trf.xlu0
        %v5426 = vpop.trf.xlu0
        %v5427 = vcombine.low %v4411, %v4475
        %v5429 = vunpack.c.l.s4 1983009808
        %v5430 = vunpack.c.0.s8 %v5429
        %v5431 = vlaneseq
        %v5432 = vshrl.u32 %v5431, 7
        %v5433 = vsub.s32 %v5430, %v5432
        %v5434 = vrot.slane %v5427, %v5433
        %v5435 = vcombine.low %v4443, %v4507
        %v5437 = vunpack.c.l.s4 1983009808
        %v5438 = vunpack.c.0.s8 %v5437
        %v5439 = vlaneseq
        %v5440 = vshrl.u32 %v5439, 7
        %v5441 = vsub.s32 %v5438, %v5440
        %v5442 = vrot.slane %v5435, %v5441
        %v5443 = vcombine.low %v4539, %v4603
        %v5445 = vunpack.c.l.s4 1983009808
        %v5446 = vunpack.c.0.s8 %v5445
        %v5447 = vlaneseq
        %v5448 = vshrl.u32 %v5447, 7
        %v5449 = vsub.s32 %v5446, %v5448
        %v5450 = vrot.slane %v5443, %v5449
        %v5451 = vcombine.low %v4571, %v4635
        %v5453 = vunpack.c.l.s4 1983009808
        %v5454 = vunpack.c.0.s8 %v5453
        %v5455 = vlaneseq
        %v5456 = vshrl.u32 %v5455, 7
        %v5457 = vsub.s32 %v5454, %v5456
        %v5458 = vrot.slane %v5451, %v5457
        %v5459 = vcombine.low %v5434, %v5442
        %v5461 = vunpack.c.l.s4 1934713408
        %v5462 = vunpack.c.0.s8 %v5461
        %v5463 = vlaneseq
        %v5464 = vshrl.u32 %v5463, 7
        %v5465 = vsub.s32 %v5462, %v5464
        %v5466 = vrot.slane %v5459, %v5465
        %v5467 = vcombine.low %v5450, %v5458
        %v5469 = vunpack.c.l.s4 1934713408
        %v5470 = vunpack.c.0.s8 %v5469
        %v5471 = vlaneseq
        %v5472 = vshrl.u32 %v5471, 7
        %v5473 = vsub.s32 %v5470, %v5472
        %v5474 = vrot.slane %v5467, %v5473
        %v5475 = vcombine.low %v5466, %v5474
        %v5476 = vcombine.low %v4427, %v4491
        %v5478 = vunpack.c.l.s4 1983009808
        %v5479 = vunpack.c.0.s8 %v5478
        %v5480 = vlaneseq
        %v5481 = vshrl.u32 %v5480, 7
        %v5482 = vsub.s32 %v5479, %v5481
        %v5483 = vrot.slane %v5476, %v5482
        %v5484 = vcombine.low %v4459, %v4523
        %v5486 = vunpack.c.l.s4 1983009808
        %v5487 = vunpack.c.0.s8 %v5486
        %v5488 = vlaneseq
        %v5489 = vshrl.u32 %v5488, 7
        %v5490 = vsub.s32 %v5487, %v5489
        %v5491 = vrot.slane %v5484, %v5490
        %v5492 = vcombine.low %v4555, %v4619
        %v5494 = vunpack.c.l.s4 1983009808
        %v5495 = vunpack.c.0.s8 %v5494
        %v5496 = vlaneseq
        %v5497 = vshrl.u32 %v5496, 7
        %v5498 = vsub.s32 %v5495, %v5497
        %v5499 = vrot.slane %v5492, %v5498
        %v5500 = vcombine.low %v4587, %v4651
        %v5502 = vunpack.c.l.s4 1983009808
        %v5503 = vunpack.c.0.s8 %v5502
        %v5504 = vlaneseq
        %v5505 = vshrl.u32 %v5504, 7
        %v5506 = vsub.s32 %v5503, %v5505
        %v5507 = vrot.slane %v5500, %v5506
        %v5508 = vcombine.low %v5483, %v5491
        %v5510 = vunpack.c.l.s4 1934713408
        %v5511 = vunpack.c.0.s8 %v5510
        %v5512 = vlaneseq
        %v5513 = vshrl.u32 %v5512, 7
        %v5514 = vsub.s32 %v5511, %v5513
        %v5515 = vrot.slane %v5508, %v5514
        %v5516 = vcombine.low %v5499, %v5507
        %v5518 = vunpack.c.l.s4 1934713408
        %v5519 = vunpack.c.0.s8 %v5518
        %v5520 = vlaneseq
        %v5521 = vshrl.u32 %v5520, 7
        %v5522 = vsub.s32 %v5519, %v5521
        %v5523 = vrot.slane %v5516, %v5522
        %v5524 = vcombine.low %v5515, %v5523
        %v5525 = vcombine.low %v4667, %v4731
        %v5527 = vunpack.c.l.s4 1983009808
        %v5528 = vunpack.c.0.s8 %v5527
        %v5529 = vlaneseq
        %v5530 = vshrl.u32 %v5529, 7
        %v5531 = vsub.s32 %v5528, %v5530
        %v5532 = vrot.slane %v5525, %v5531
        %v5533 = vcombine.low %v4699, %v4763
        %v5535 = vunpack.c.l.s4 1983009808
        %v5536 = vunpack.c.0.s8 %v5535
        %v5537 = vlaneseq
        %v5538 = vshrl.u32 %v5537, 7
        %v5539 = vsub.s32 %v5536, %v5538
        %v5540 = vrot.slane %v5533, %v5539
        %v5541 = vcombine.low %v4795, %v4859
        %v5543 = vunpack.c.l.s4 1983009808
        %v5544 = vunpack.c.0.s8 %v5543
        %v5545 = vlaneseq
        %v5546 = vshrl.u32 %v5545, 7
        %v5547 = vsub.s32 %v5544, %v5546
        %v5548 = vrot.slane %v5541, %v5547
        %v5549 = vcombine.low %v4827, %v4891
        %v5551 = vunpack.c.l.s4 1983009808
        %v5552 = vunpack.c.0.s8 %v5551
        %v5553 = vlaneseq
        %v5554 = vshrl.u32 %v5553, 7
        %v5555 = vsub.s32 %v5552, %v5554
        %v5556 = vrot.slane %v5549, %v5555
        %v5557 = vcombine.low %v5532, %v5540
        %v5559 = vunpack.c.l.s4 1934713408
        %v5560 = vunpack.c.0.s8 %v5559
        %v5561 = vlaneseq
        %v5562 = vshrl.u32 %v5561, 7
        %v5563 = vsub.s32 %v5560, %v5562
        %v5564 = vrot.slane %v5557, %v5563
        %v5565 = vcombine.low %v5548, %v5556
        %v5567 = vunpack.c.l.s4 1934713408
        %v5568 = vunpack.c.0.s8 %v5567
        %v5569 = vlaneseq
        %v5570 = vshrl.u32 %v5569, 7
        %v5571 = vsub.s32 %v5568, %v5570
        %v5572 = vrot.slane %v5565, %v5571
        %v5573 = vcombine.low %v5564, %v5572
        %v5574 = vcombine.low %v4683, %v4747
        %v5576 = vunpack.c.l.s4 1983009808
        %v5577 = vunpack.c.0.s8 %v5576
        %v5578 = vlaneseq
        %v5579 = vshrl.u32 %v5578, 7
        %v5580 = vsub.s32 %v5577, %v5579
        %v5581 = vrot.slane %v5574, %v5580
        %v5582 = vcombine.low %v4715, %v4779
        %v5584 = vunpack.c.l.s4 1983009808
        %v5585 = vunpack.c.0.s8 %v5584
        %v5586 = vlaneseq
        %v5587 = vshrl.u32 %v5586, 7
        %v5588 = vsub.s32 %v5585, %v5587
        %v5589 = vrot.slane %v5582, %v5588
        %v5590 = vcombine.low %v4811, %v4875
        %v5592 = vunpack.c.l.s4 1983009808
        %v5593 = vunpack.c.0.s8 %v5592
        %v5594 = vlaneseq
        %v5595 = vshrl.u32 %v5594, 7
        %v5596 = vsub.s32 %v5593, %v5595
        %v5597 = vrot.slane %v5590, %v5596
        %v5598 = vcombine.low %v4843, %v4907
        %v5600 = vunpack.c.l.s4 1983009808
        %v5601 = vunpack.c.0.s8 %v5600
        %v5602 = vlaneseq
        %v5603 = vshrl.u32 %v5602, 7
        %v5604 = vsub.s32 %v5601, %v5603
        %v5605 = vrot.slane %v5598, %v5604
        %v5606 = vcombine.low %v5581, %v5589
        %v5608 = vunpack.c.l.s4 1934713408
        %v5609 = vunpack.c.0.s8 %v5608
        %v5610 = vlaneseq
        %v5611 = vshrl.u32 %v5610, 7
        %v5612 = vsub.s32 %v5609, %v5611
        %v5613 = vrot.slane %v5606, %v5612
        %v5614 = vcombine.low %v5597, %v5605
        %v5616 = vunpack.c.l.s4 1934713408
        %v5617 = vunpack.c.0.s8 %v5616
        %v5618 = vlaneseq
        %v5619 = vshrl.u32 %v5618, 7
        %v5620 = vsub.s32 %v5617, %v5619
        %v5621 = vrot.slane %v5614, %v5620
        %v5622 = vcombine.low %v5613, %v5621
        %v5623 = vcombine.low %v4923, %v4987
        %v5625 = vunpack.c.l.s4 1983009808
        %v5626 = vunpack.c.0.s8 %v5625
        %v5627 = vlaneseq
        %v5628 = vshrl.u32 %v5627, 7
        %v5629 = vsub.s32 %v5626, %v5628
        %v5630 = vrot.slane %v5623, %v5629
        %v5631 = vcombine.low %v4955, %v5019
        %v5633 = vunpack.c.l.s4 1983009808
        %v5634 = vunpack.c.0.s8 %v5633
        %v5635 = vlaneseq
        %v5636 = vshrl.u32 %v5635, 7
        %v5637 = vsub.s32 %v5634, %v5636
        %v5638 = vrot.slane %v5631, %v5637
        %v5639 = vcombine.low %v5051, %v5115
        %v5641 = vunpack.c.l.s4 1983009808
        %v5642 = vunpack.c.0.s8 %v5641
        %v5643 = vlaneseq
        %v5644 = vshrl.u32 %v5643, 7
        %v5645 = vsub.s32 %v5642, %v5644
        %v5646 = vrot.slane %v5639, %v5645
        %v5647 = vcombine.low %v5083, %v5147
        %v5649 = vunpack.c.l.s4 1983009808
        %v5650 = vunpack.c.0.s8 %v5649
        %v5651 = vlaneseq
        %v5652 = vshrl.u32 %v5651, 7
        %v5653 = vsub.s32 %v5650, %v5652
        %v5654 = vrot.slane %v5647, %v5653
        %v5655 = vcombine.low %v5630, %v5638
        %v5657 = vunpack.c.l.s4 1934713408
        %v5658 = vunpack.c.0.s8 %v5657
        %v5659 = vlaneseq
        %v5660 = vshrl.u32 %v5659, 7
        %v5661 = vsub.s32 %v5658, %v5660
        %v5662 = vrot.slane %v5655, %v5661
        %v5663 = vcombine.low %v5646, %v5654
        %v5665 = vunpack.c.l.s4 1934713408
        %v5666 = vunpack.c.0.s8 %v5665
        %v5667 = vlaneseq
        %v5668 = vshrl.u32 %v5667, 7
        %v5669 = vsub.s32 %v5666, %v5668
        %v5670 = vrot.slane %v5663, %v5669
        %v5671 = vcombine.low %v5662, %v5670
        %v5672 = vcombine.low %v4939, %v5003
        %v5674 = vunpack.c.l.s4 1983009808
        %v5675 = vunpack.c.0.s8 %v5674
        %v5676 = vlaneseq
        %v5677 = vshrl.u32 %v5676, 7
        %v5678 = vsub.s32 %v5675, %v5677
        %v5679 = vrot.slane %v5672, %v5678
        %v5680 = vcombine.low %v4971, %v5035
        %v5682 = vunpack.c.l.s4 1983009808
        %v5683 = vunpack.c.0.s8 %v5682
        %v5684 = vlaneseq
        %v5685 = vshrl.u32 %v5684, 7
        %v5686 = vsub.s32 %v5683, %v5685
        %v5687 = vrot.slane %v5680, %v5686
        %v5688 = vcombine.low %v5067, %v5131
        %v5690 = vunpack.c.l.s4 1983009808
        %v5691 = vunpack.c.0.s8 %v5690
        %v5692 = vlaneseq
        %v5693 = vshrl.u32 %v5692, 7
        %v5694 = vsub.s32 %v5691, %v5693
        %v5695 = vrot.slane %v5688, %v5694
        %v5696 = vcombine.low %v5099, %v5163
        %v5698 = vunpack.c.l.s4 1983009808
        %v5699 = vunpack.c.0.s8 %v5698
        %v5700 = vlaneseq
        %v5701 = vshrl.u32 %v5700, 7
        %v5702 = vsub.s32 %v5699, %v5701
        %v5703 = vrot.slane %v5696, %v5702
        %v5704 = vcombine.low %v5679, %v5687
        %v5706 = vunpack.c.l.s4 1934713408
        %v5707 = vunpack.c.0.s8 %v5706
        %v5708 = vlaneseq
        %v5709 = vshrl.u32 %v5708, 7
        %v5710 = vsub.s32 %v5707, %v5709
        %v5711 = vrot.slane %v5704, %v5710
        %v5712 = vcombine.low %v5695, %v5703
        %v5714 = vunpack.c.l.s4 1934713408
        %v5715 = vunpack.c.0.s8 %v5714
        %v5716 = vlaneseq
        %v5717 = vshrl.u32 %v5716, 7
        %v5718 = vsub.s32 %v5715, %v5717
        %v5719 = vrot.slane %v5712, %v5718
        %v5720 = vcombine.low %v5711, %v5719
        %v5721 = vcombine.low %v5179, %v5243
        %v5723 = vunpack.c.l.s4 1983009808
        %v5724 = vunpack.c.0.s8 %v5723
        %v5725 = vlaneseq
        %v5726 = vshrl.u32 %v5725, 7
        %v5727 = vsub.s32 %v5724, %v5726
        %v5728 = vrot.slane %v5721, %v5727
        %v5729 = vcombine.low %v5211, %v5275
        %v5731 = vunpack.c.l.s4 1983009808
        %v5732 = vunpack.c.0.s8 %v5731
        %v5733 = vlaneseq
        %v5734 = vshrl.u32 %v5733, 7
        %v5735 = vsub.s32 %v5732, %v5734
        %v5736 = vrot.slane %v5729, %v5735
        %v5737 = vcombine.low %v5307, %v5371
        %v5739 = vunpack.c.l.s4 1983009808
        %v5740 = vunpack.c.0.s8 %v5739
        %v5741 = vlaneseq
        %v5742 = vshrl.u32 %v5741, 7
        %v5743 = vsub.s32 %v5740, %v5742
        %v5744 = vrot.slane %v5737, %v5743
        %v5745 = vcombine.low %v5339, %v5403
        %v5747 = vunpack.c.l.s4 1983009808
        %v5748 = vunpack.c.0.s8 %v5747
        %v5749 = vlaneseq
        %v5750 = vshrl.u32 %v5749, 7
        %v5751 = vsub.s32 %v5748, %v5750
        %v5752 = vrot.slane %v5745, %v5751
        %v5753 = vcombine.low %v5728, %v5736
        %v5755 = vunpack.c.l.s4 1934713408
        %v5756 = vunpack.c.0.s8 %v5755
        %v5757 = vlaneseq
        %v5758 = vshrl.u32 %v5757, 7
        %v5759 = vsub.s32 %v5756, %v5758
        %v5760 = vrot.slane %v5753, %v5759
        %v5761 = vcombine.low %v5744, %v5752
        %v5763 = vunpack.c.l.s4 1934713408
        %v5764 = vunpack.c.0.s8 %v5763
        %v5765 = vlaneseq
        %v5766 = vshrl.u32 %v5765, 7
        %v5767 = vsub.s32 %v5764, %v5766
        %v5768 = vrot.slane %v5761, %v5767
        %v5769 = vcombine.low %v5760, %v5768
        %v5770 = vcombine.low %v5195, %v5259
        %v5772 = vunpack.c.l.s4 1983009808
        %v5773 = vunpack.c.0.s8 %v5772
        %v5774 = vlaneseq
        %v5775 = vshrl.u32 %v5774, 7
        %v5776 = vsub.s32 %v5773, %v5775
        %v5777 = vrot.slane %v5770, %v5776
        %v5778 = vcombine.low %v5227, %v5291
        %v5780 = vunpack.c.l.s4 1983009808
        %v5781 = vunpack.c.0.s8 %v5780
        %v5782 = vlaneseq
        %v5783 = vshrl.u32 %v5782, 7
        %v5784 = vsub.s32 %v5781, %v5783
        %v5785 = vrot.slane %v5778, %v5784
        %v5786 = vcombine.low %v5323, %v5387
        %v5788 = vunpack.c.l.s4 1983009808
        %v5789 = vunpack.c.0.s8 %v5788
        %v5790 = vlaneseq
        %v5791 = vshrl.u32 %v5790, 7
        %v5792 = vsub.s32 %v5789, %v5791
        %v5793 = vrot.slane %v5786, %v5792
        %v5794 = vcombine.low %v5355, %v5419
        %v5796 = vunpack.c.l.s4 1983009808
        %v5797 = vunpack.c.0.s8 %v5796
        %v5798 = vlaneseq
        %v5799 = vshrl.u32 %v5798, 7
        %v5800 = vsub.s32 %v5797, %v5799
        %v5801 = vrot.slane %v5794, %v5800
        %v5802 = vcombine.low %v5777, %v5785
        %v5804 = vunpack.c.l.s4 1934713408
        %v5805 = vunpack.c.0.s8 %v5804
        %v5806 = vlaneseq
        %v5807 = vshrl.u32 %v5806, 7
        %v5808 = vsub.s32 %v5805, %v5807
        %v5809 = vrot.slane %v5802, %v5808
        %v5810 = vcombine.low %v5793, %v5801
        %v5812 = vunpack.c.l.s4 1934713408
        %v5813 = vunpack.c.0.s8 %v5812
        %v5814 = vlaneseq
        %v5815 = vshrl.u32 %v5814, 7
        %v5816 = vsub.s32 %v5813, %v5815
        %v5817 = vrot.slane %v5810, %v5816
        %v5818 = vcombine.low %v5809, %v5817
        %v5821 = vpack.i.b16 %v5524, %v5475
        %v5822 = vshrl.u32 %v5475, 16
        %v5823 = vshrl.u32 %v5524, 16
        %v5824 = vpack.i.b16 %v5823, %v5822
        %v5827 = vpack.i.b16 %v5622, %v5573
        %v5828 = vshrl.u32 %v5573, 16
        %v5829 = vshrl.u32 %v5622, 16
        %v5830 = vpack.i.b16 %v5829, %v5828
        %v5833 = vpack.i.b16 %v5720, %v5671
        %v5834 = vshrl.u32 %v5671, 16
        %v5835 = vshrl.u32 %v5720, 16
        %v5836 = vpack.i.b16 %v5835, %v5834
        %v5839 = vpack.i.b16 %v5818, %v5769
        %v5840 = vshrl.u32 %v5769, 16
        %v5841 = vshrl.u32 %v5818, 16
        %v5842 = vpack.i.b16 %v5841, %v5840
        %v5844 = vsel %vm3578, %v5821, 0
        %v5847 = vsel %vm3578, %v5827, 0
        %v5850 = vsel %vm3578, %v5833, 0
        %v5853 = vsel %vm3578, %v5839, 0
        %v5856 = vsel %vm3578, %v3601, 0
        %5858 = vmatprep.subr.bf16.mxu0 0
        %5859 = vmatpush1.bf16.xpose.msra.mxu0 0
        %5860 = vmatprep.subr.bf16.mxu0 0
        %5861 = vmatpush1.bf16.xpose.msra.mxu0 0
        %5862 = vmatprep.subr.bf16.mxu0 0
        %5863 = vmatpush1.bf16.xpose.msra.mxu0 0
        %5864 = vmatprep.subr.bf16.mxu0 0
        %5865 = vmatpush1.bf16.xpose.msra.mxu0 0
        %5866 = vmatprep.subr.bf16.mxu0 0
        %5867 = vmatpush1.bf16.xpose.msra.mxu0 0
        %5868 = vmatprep.subr.bf16.mxu0 0
        %5869 = vmatpush1.bf16.xpose.msra.mxu0 0
        %5870 = vmatprep.subr.bf16.mxu0 0
        %5871 = vmatpush1.bf16.xpose.msra.mxu0 0
        %5872 = vmatprep.subr.bf16.mxu0 0
        %5873 = vmatpush1.bf16.xpose.msra.mxu0 %v5856
        %5874 = vmatprep.subr.bf16.mxu0 0
        %5875 = vmatpush2.bf16.xpose.msra.mxu0 0
        %5876 = vmatprep.subr.bf16.mxu0 0
        %5877 = vmatpush2.bf16.xpose.msra.mxu0 0
        %5878 = vmatprep.subr.bf16.mxu0 0
        %5879 = vmatpush2.bf16.xpose.msra.mxu0 0
        %5880 = vmatprep.subr.bf16.mxu0 0
        %5881 = vmatpush2.bf16.xpose.msra.mxu0 0
        %5882 = vmatprep.subr.bf16.mxu0 0
        %5883 = vmatpush2.bf16.xpose.msra.mxu0 0
        %5884 = vmatprep.subr.bf16.mxu0 0
        %5885 = vmatpush2.bf16.xpose.msra.mxu0 0
        %5886 = vmatprep.subr.bf16.mxu0 0
        %5887 = vmatpush2.bf16.xpose.msra.mxu0 0
        %5888 = vmatprep.subr.bf16.mxu0 0
        %5889 = vmatpush2.bf16.xpose.msra.mxu0 0
        %5890 = vmatprep.mubr.bf16.mxu0 0
        %5891 = vmatmul.mubr.bf16.gmra.mxu0 %v5844
        %v5892 = vpop.f32.mrf.mxu0
        %v5893 = vadd.f32 0.0, %v5892
        %v5894 = vpop.f32.mrf.mxu0
        %v5895 = vpop.f32.mrf.mxu0
        %v5896 = vadd.f32 0.0, %v5895
        %v5897 = vpop.f32.mrf.mxu0
        %5898 = vmatprep.mubr.bf16.mxu0 0
        %5899 = vmatmul.mubr.bf16.gmra.mxu0 %v5847
        %v5900 = vpop.f32.mrf.mxu0
        %v5901 = vadd.f32 0.0, %v5900
        %v5902 = vpop.f32.mrf.mxu0
        %v5903 = vpop.f32.mrf.mxu0
        %v5904 = vadd.f32 0.0, %v5903
        %v5905 = vpop.f32.mrf.mxu0
        %5906 = vmatprep.mubr.bf16.mxu0 0
        %5907 = vmatmul.mubr.bf16.gmra.mxu0 %v5850
        %v5908 = vpop.f32.mrf.mxu0
        %v5909 = vadd.f32 0.0, %v5908
        %v5910 = vpop.f32.mrf.mxu0
        %v5911 = vpop.f32.mrf.mxu0
        %v5912 = vadd.f32 0.0, %v5911
        %v5913 = vpop.f32.mrf.mxu0
        %5914 = vmatprep.mubr.bf16.mxu0 0
        %5915 = vmatmul.mubr.bf16.gmra.mxu0 %v5853
        %v5916 = vpop.f32.mrf.mxu0
        %v5917 = vadd.f32 0.0, %v5916
        %v5918 = vpop.f32.mrf.mxu0
        %v5919 = vpop.f32.mrf.mxu0
        %v5920 = vadd.f32 0.0, %v5919
        %v5921 = vpop.f32.mrf.mxu0
        %5922 = vdwg.mxu0
        %v5924 = vsel %vm3578, %v5824, 0
        %v5927 = vsel %vm3578, %v5830, 0
        %v5930 = vsel %vm3578, %v5836, 0
        %v5933 = vsel %vm3578, %v5842, 0
        %v5936 = vsel %vm3578, %v3602, 0
        %5938 = vmatprep.subr.bf16.mxu0 0
        %5939 = vmatpush1.bf16.xpose.msra.mxu0 0
        %5940 = vmatprep.subr.bf16.mxu0 0
        %5941 = vmatpush1.bf16.xpose.msra.mxu0 0
        %5942 = vmatprep.subr.bf16.mxu0 0
        %5943 = vmatpush1.bf16.xpose.msra.mxu0 0
        %5944 = vmatprep.subr.bf16.mxu0 0
        %5945 = vmatpush1.bf16.xpose.msra.mxu0 0
        %5946 = vmatprep.subr.bf16.mxu0 0
        %5947 = vmatpush1.bf16.xpose.msra.mxu0 0
        %5948 = vmatprep.subr.bf16.mxu0 0
        %5949 = vmatpush1.bf16.xpose.msra.mxu0 0
        %5950 = vmatprep.subr.bf16.mxu0 0
        %5951 = vmatpush1.bf16.xpose.msra.mxu0 0
        %5952 = vmatprep.subr.bf16.mxu0 0
        %5953 = vmatpush1.bf16.xpose.msra.mxu0 %v5936
        %5954 = vmatprep.subr.bf16.mxu0 0
        %5955 = vmatpush2.bf16.xpose.msra.mxu0 0
        %5956 = vmatprep.subr.bf16.mxu0 0
        %5957 = vmatpush2.bf16.xpose.msra.mxu0 0
        %5958 = vmatprep.subr.bf16.mxu0 0
        %5959 = vmatpush2.bf16.xpose.msra.mxu0 0
        %5960 = vmatprep.subr.bf16.mxu0 0
        %5961 = vmatpush2.bf16.xpose.msra.mxu0 0
        %5962 = vmatprep.subr.bf16.mxu0 0
        %5963 = vmatpush2.bf16.xpose.msra.mxu0 0
        %5964 = vmatprep.subr.bf16.mxu0 0
        %5965 = vmatpush2.bf16.xpose.msra.mxu0 0
        %5966 = vmatprep.subr.bf16.mxu0 0
        %5967 = vmatpush2.bf16.xpose.msra.mxu0 0
        %5968 = vmatprep.subr.bf16.mxu0 0
        %5969 = vmatpush2.bf16.xpose.msra.mxu0 0
        %5970 = vmatprep.mubr.bf16.mxu0 0
        %5971 = vmatmul.mubr.bf16.gmra.mxu0 %v5924
        %v5972 = vpop.f32.mrf.mxu0
        %v5973 = vadd.f32 0.0, %v5972
        %v5974 = vpop.f32.mrf.mxu0
        %v5975 = vpop.f32.mrf.mxu0
        %v5976 = vadd.f32 0.0, %v5975
        %v5977 = vpop.f32.mrf.mxu0
        %5978 = vmatprep.mubr.bf16.mxu0 0
        %5979 = vmatmul.mubr.bf16.gmra.mxu0 %v5927
        %v5980 = vpop.f32.mrf.mxu0
        %v5981 = vadd.f32 0.0, %v5980
        %v5982 = vpop.f32.mrf.mxu0
        %v5983 = vpop.f32.mrf.mxu0
        %v5984 = vadd.f32 0.0, %v5983
        %v5985 = vpop.f32.mrf.mxu0
        %5986 = vmatprep.mubr.bf16.mxu0 0
        %5987 = vmatmul.mubr.bf16.gmra.mxu0 %v5930
        %v5988 = vpop.f32.mrf.mxu0
        %v5989 = vadd.f32 0.0, %v5988
        %v5990 = vpop.f32.mrf.mxu0
        %v5991 = vpop.f32.mrf.mxu0
        %v5992 = vadd.f32 0.0, %v5991
        %v5993 = vpop.f32.mrf.mxu0
        %5994 = vmatprep.mubr.bf16.mxu0 0
        %5995 = vmatmul.mubr.bf16.gmra.mxu0 %v5933
        %v5996 = vpop.f32.mrf.mxu0
        %v5997 = vadd.f32 0.0, %v5996
        %v5998 = vpop.f32.mrf.mxu0
        %v5999 = vpop.f32.mrf.mxu0
        %v6000 = vadd.f32 0.0, %v5999
        %v6001 = vpop.f32.mrf.mxu0
        %6002 = vdwg.mxu0
        %6003 = vxpose.xlu0.b32.start [1/16] %v5893, 128
        %6004 = vxpose.xlu0.b32.cont [2/16] %v5896, 128
        %6005 = vxpose.xlu0.b32.cont [3/16] %v5901, 128
        %6006 = vxpose.xlu0.b32.cont [4/16] %v5904, 128
        %6007 = vxpose.xlu0.b32.cont [5/16] %v5909, 128
        %6008 = vxpose.xlu0.b32.cont [6/16] %v5912, 128
        %6009 = vxpose.xlu0.b32.cont [7/16] %v5917, 128
        %6010 = vxpose.xlu0.b32.cont [8/16] %v5920, 128
        %6011 = vxpose.xlu0.b32.cont [9/16] 0.0, 128
        %6012 = vxpose.xlu0.b32.cont [10/16] 0.0, 128
        %6013 = vxpose.xlu0.b32.cont [11/16] 0.0, 128
        %6014 = vxpose.xlu0.b32.cont [12/16] 0.0, 128
        %6015 = vxpose.xlu0.b32.cont [13/16] 0.0, 128
        %6016 = vxpose.xlu0.b32.cont [14/16] 0.0, 128
        %6017 = vxpose.xlu0.b32.cont [15/16] 0.0, 128
        %6018 = vxpose.xlu0.b32.end [16/16] 0.0, 128
        %v6019 = vpop.trf.xlu0
        %v6020 = vpop.trf.xlu0
        %v6021 = vpop.trf.xlu0
        %v6022 = vpop.trf.xlu0
        %v6023 = vpop.trf.xlu0
        %v6024 = vpop.trf.xlu0
        %v6025 = vpop.trf.xlu0
        %v6026 = vpop.trf.xlu0
        %v6027 = vpop.trf.xlu0
        %v6028 = vpop.trf.xlu0
        %v6029 = vpop.trf.xlu0
        %v6030 = vpop.trf.xlu0
        %v6031 = vpop.trf.xlu0
        %v6032 = vpop.trf.xlu0
        %v6033 = vpop.trf.xlu0
        %v6034 = vpop.trf.xlu0
        %6035 = vxpose.xlu0.b32.start [1/16] %v5973, 128
        %6036 = vxpose.xlu0.b32.cont [2/16] %v5976, 128
        %6037 = vxpose.xlu0.b32.cont [3/16] %v5981, 128
        %6038 = vxpose.xlu0.b32.cont [4/16] %v5984, 128
        %6039 = vxpose.xlu0.b32.cont [5/16] %v5989, 128
        %6040 = vxpose.xlu0.b32.cont [6/16] %v5992, 128
        %6041 = vxpose.xlu0.b32.cont [7/16] %v5997, 128
        %6042 = vxpose.xlu0.b32.cont [8/16] %v6000, 128
        %6043 = vxpose.xlu0.b32.cont [9/16] 0.0, 128
        %6044 = vxpose.xlu0.b32.cont [10/16] 0.0, 128
        %6045 = vxpose.xlu0.b32.cont [11/16] 0.0, 128
        %6046 = vxpose.xlu0.b32.cont [12/16] 0.0, 128
        %6047 = vxpose.xlu0.b32.cont [13/16] 0.0, 128
        %6048 = vxpose.xlu0.b32.cont [14/16] 0.0, 128
        %6049 = vxpose.xlu0.b32.cont [15/16] 0.0, 128
        %6050 = vxpose.xlu0.b32.end [16/16] 0.0, 128
        %v6051 = vpop.trf.xlu0
        %v6052 = vpop.trf.xlu0
        %v6053 = vpop.trf.xlu0
        %v6054 = vpop.trf.xlu0
        %v6055 = vpop.trf.xlu0
        %v6056 = vpop.trf.xlu0
        %v6057 = vpop.trf.xlu0
        %v6058 = vpop.trf.xlu0
        %v6059 = vpop.trf.xlu0
        %v6060 = vpop.trf.xlu0
        %v6061 = vpop.trf.xlu0
        %v6062 = vpop.trf.xlu0
        %v6063 = vpop.trf.xlu0
        %v6064 = vpop.trf.xlu0
        %v6065 = vpop.trf.xlu0
        %v6066 = vpop.trf.xlu0
        %v6067 = vcombine.high %v6019, 0.0
        %v6069 = vunpack.c.l.s4 1983009808
        %v6070 = vunpack.c.0.s8 %v6069
        %v6071 = vlaneseq
        %v6072 = vshrl.u32 %v6071, 7
        %v6073 = vsub.s32 %v6070, %v6072
        %v6074 = vrot.slane %v6019, %v6073
        %v6076 = vunpack.c.l.s4 1983009808
        %v6077 = vunpack.c.0.s8 %v6076
        %v6078 = vlaneseq
        %v6079 = vshrl.u32 %v6078, 7
        %v6080 = vsub.s32 %v6077, %v6079
        %v6081 = vrot.slane %v6067, %v6080
        %v6082 = vcombine.high %v6051, 0.0
        %v6084 = vunpack.c.l.s4 1983009808
        %v6085 = vunpack.c.0.s8 %v6084
        %v6086 = vlaneseq
        %v6087 = vshrl.u32 %v6086, 7
        %v6088 = vsub.s32 %v6085, %v6087
        %v6089 = vrot.slane %v6051, %v6088
        %v6091 = vunpack.c.l.s4 1983009808
        %v6092 = vunpack.c.0.s8 %v6091
        %v6093 = vlaneseq
        %v6094 = vshrl.u32 %v6093, 7
        %v6095 = vsub.s32 %v6092, %v6094
        %v6096 = vrot.slane %v6082, %v6095
        %v6097 = vcombine.low %v6074, %v6089
        %v6098 = vcombine.high %v6074, %v6089
        %v6100 = vunpack.c.l.s4 1934713408
        %v6101 = vunpack.c.0.s8 %v6100
        %v6102 = vlaneseq
        %v6103 = vshrl.u32 %v6102, 7
        %v6104 = vsub.s32 %v6101, %v6103
        %v6105 = vrot.slane %v6097, %v6104
        %v6107 = vunpack.c.l.s4 1934713408
        %v6108 = vunpack.c.0.s8 %v6107
        %v6109 = vlaneseq
        %v6110 = vshrl.u32 %v6109, 7
        %v6111 = vsub.s32 %v6108, %v6110
        %v6112 = vrot.slane %v6098, %v6111
        %v6113 = vcombine.low %v6081, %v6096
        %v6114 = vcombine.high %v6081, %v6096
        %v6116 = vunpack.c.l.s4 1934713408
        %v6117 = vunpack.c.0.s8 %v6116
        %v6118 = vlaneseq
        %v6119 = vshrl.u32 %v6118, 7
        %v6120 = vsub.s32 %v6117, %v6119
        %v6121 = vrot.slane %v6113, %v6120
        %v6123 = vunpack.c.l.s4 1934713408
        %v6124 = vunpack.c.0.s8 %v6123
        %v6125 = vlaneseq
        %v6126 = vshrl.u32 %v6125, 7
        %v6127 = vsub.s32 %v6124, %v6126
        %v6128 = vrot.slane %v6114, %v6127
        %v6129 = vcombine.high %v6105, 0.0
        %v6130 = vcombine.high %v6112, 0.0
        %v6131 = vcombine.high %v6121, 0.0
        %v6132 = vcombine.high %v6128, 0.0
        %v6133 = vcombine.low %v6105, %v6112
        %v6135 = vunpack.c.l.s4 1983009808
        %v6136 = vunpack.c.0.s8 %v6135
        %v6137 = vlaneseq
        %v6138 = vshrl.u32 %v6137, 7
        %v6139 = vsub.s32 %v6136, %v6138
        %v6140 = vrot.slane %v6133, %v6139
        %v6141 = vcombine.low %v6129, %v6130
        %v6143 = vunpack.c.l.s4 1983009808
        %v6144 = vunpack.c.0.s8 %v6143
        %v6145 = vlaneseq
        %v6146 = vshrl.u32 %v6145, 7
        %v6147 = vsub.s32 %v6144, %v6146
        %v6148 = vrot.slane %v6141, %v6147
        %v6149 = vcombine.low %v6121, %v6128
        %v6151 = vunpack.c.l.s4 1983009808
        %v6152 = vunpack.c.0.s8 %v6151
        %v6153 = vlaneseq
        %v6154 = vshrl.u32 %v6153, 7
        %v6155 = vsub.s32 %v6152, %v6154
        %v6156 = vrot.slane %v6149, %v6155
        %v6157 = vcombine.low %v6131, %v6132
        %v6159 = vunpack.c.l.s4 1983009808
        %v6160 = vunpack.c.0.s8 %v6159
        %v6161 = vlaneseq
        %v6162 = vshrl.u32 %v6161, 7
        %v6163 = vsub.s32 %v6160, %v6162
        %v6164 = vrot.slane %v6157, %v6163
        %v6165 = vcombine.low %v6140, %v6148
        %v6167 = vunpack.c.l.s4 1934713408
        %v6168 = vunpack.c.0.s8 %v6167
        %v6169 = vlaneseq
        %v6170 = vshrl.u32 %v6169, 7
        %v6171 = vsub.s32 %v6168, %v6170
        %v6172 = vrot.slane %v6165, %v6171
        %v6173 = vcombine.low %v6156, %v6164
        %v6175 = vunpack.c.l.s4 1934713408
        %v6176 = vunpack.c.0.s8 %v6175
        %v6177 = vlaneseq
        %v6178 = vshrl.u32 %v6177, 7
        %v6179 = vsub.s32 %v6176, %v6178
        %v6180 = vrot.slane %v6173, %v6179
        %v6181 = vcombine.low %v6172, %v6180
        %v6182 = vcombine.high %v6172, %v6180
        %6184 = vrot.lane.b32.xlu0 %v6182, 64
        %v6185 = vpop.permute.xlu0 %6184
        %v6187 = vsel %vm3491, %v6181, %v6185
        %v6188 = vld [vmem:[%s558] sm:$0xf]
        %v6189 = vld [vmem:[%s558 + $0x4] sm:$0xf]
        %v6190 = vld [vmem:[%s558 + $0x8] sm:$0xf]
        %v6191 = vld [vmem:[%s558 + $0xc] sm:$0xf]
        %v6192 = vld [vmem:[%s558 + $0x10] sm:$0xf]
        %v6193 = vld [vmem:[%s558 + $0x14] sm:$0xf]
        %v6194 = vld [vmem:[%s558 + $0x18] sm:$0xf]
        %v6195 = vld [vmem:[%s558 + $0x1c] sm:$0xf]
        %v6196 = vld [vmem:[%s558 + $0x20] sm:$0xf]
        %v6197 = vld [vmem:[%s558 + $0x24] sm:$0xf]
        %v6198 = vld [vmem:[%s558 + $0x28] sm:$0xf]
        %v6199 = vld [vmem:[%s558 + $0x2c] sm:$0xf]
        %v6200 = vld [vmem:[%s558 + $0x30] sm:$0xf]
        %v6201 = vld [vmem:[%s558 + $0x34] sm:$0xf]
        %v6202 = vld [vmem:[%s558 + $0x38] sm:$0xf]
        %v6203 = vld [vmem:[%s558 + $0x3c] sm:$0xf]
        %v6204 = vpack.c.bf16 %v6187, %v6187
        %v6221 = vunpack.c.l.b16 %v6188
        %v6222 = vunpack.c.l.b16 %v6189
        %v6223 = vunpack.c.l.b16 %v6190
        %v6224 = vunpack.c.l.b16 %v6191
        %v6225 = vunpack.c.l.b16 %v6192
        %v6226 = vunpack.c.l.b16 %v6193
        %v6227 = vunpack.c.l.b16 %v6194
        %v6228 = vunpack.c.l.b16 %v6195
        %v6229 = vunpack.c.l.b16 %v6196
        %v6230 = vunpack.c.l.b16 %v6197
        %v6231 = vunpack.c.l.b16 %v6198
        %v6232 = vunpack.c.l.b16 %v6199
        %v6233 = vunpack.c.l.b16 %v6200
        %v6234 = vunpack.c.l.b16 %v6201
        %v6235 = vunpack.c.l.b16 %v6202
        %v6236 = vunpack.c.l.b16 %v6203
        %v6237 = vpack.c.b16 %v6222, %v6221
        %v6238 = vpack.c.b16 %v6224, %v6223
        %v6239 = vpack.c.b16 %v6226, %v6225
        %v6240 = vpack.c.b16 %v6228, %v6227
        %v6241 = vpack.c.b16 %v6230, %v6229
        %v6242 = vpack.c.b16 %v6232, %v6231
        %v6243 = vpack.c.b16 %v6234, %v6233
        %v6244 = vpack.c.b16 %v6236, %v6235
        %6253 = vmatprep.subr.bf16.mxu0 0
        %6254 = vmatpush1.bf16.msra.mxu0 %v6244
        %6255 = vmatprep.subr.bf16.mxu0 0
        %6256 = vmatpush1.bf16.msra.mxu0 %v6243
        %6257 = vmatprep.subr.bf16.mxu0 0
        %6258 = vmatpush1.bf16.msra.mxu0 %v6242
        %6259 = vmatprep.subr.bf16.mxu0 0
        %6260 = vmatpush1.bf16.msra.mxu0 %v6241
        %6261 = vmatprep.subr.bf16.mxu0 0
        %6262 = vmatpush1.bf16.msra.mxu0 %v6240
        %6263 = vmatprep.subr.bf16.mxu0 0
        %6264 = vmatpush1.bf16.msra.mxu0 %v6239
        %6265 = vmatprep.subr.bf16.mxu0 0
        %6266 = vmatpush1.bf16.msra.mxu0 %v6238
        %6267 = vmatprep.subr.bf16.mxu0 0
        %6268 = vmatpush1.bf16.msra.mxu0 %v6237
        %6269 = vmatprep.subr.bf16.mxu0 0
        %6270 = vmatpush2.bf16.msra.mxu0 0
        %6271 = vmatprep.subr.bf16.mxu0 0
        %6272 = vmatpush2.bf16.msra.mxu0 0
        %6273 = vmatprep.subr.bf16.mxu0 0
        %6274 = vmatpush2.bf16.msra.mxu0 0
        %6275 = vmatprep.subr.bf16.mxu0 0
        %6276 = vmatpush2.bf16.msra.mxu0 0
        %6277 = vmatprep.subr.bf16.mxu0 0
        %6278 = vmatpush2.bf16.msra.mxu0 0
        %6279 = vmatprep.subr.bf16.mxu0 0
        %6280 = vmatpush2.bf16.msra.mxu0 0
        %6281 = vmatprep.subr.bf16.mxu0 0
        %6282 = vmatpush2.bf16.msra.mxu0 0
        %6283 = vmatprep.subr.bf16.mxu0 0
        %6284 = vmatpush2.bf16.msra.mxu0 0
        %6285 = vmatprep.mubr.bf16.mxu0 0
        %6286 = vmatmul.mubr.bf16.gmra.mxu0 %v6204
        %v6287 = vpop.f32.mrf.mxu0
        %v6288 = vadd.f32 %v682, %v6287
        %v6289 = vpop.f32.mrf.mxu0
        %v6290 = vpop.f32.mrf.mxu0
        %v6291 = vpop.f32.mrf.mxu0
        %6292 = vdwg.mxu0
        %v6293 = vadd.f32 %v680, %v6288
        %6294 = vadd.xlane.f32.xlu0 %v6293
        %v6295 = vpop.xlane.xlu0 %6294
        %v6296 = vrcp.pop 128.0
        %v6297 = vmul.f32 %v6295, %v6296
        %v6298 = vsub.f32 %v6293, %v6297
        %v6299 = vmul.f32 %v6298, %v6298
        %6300 = vadd.xlane.f32.xlu0 %v6299
        %v6301 = vpop.xlane.xlu0 %6300
        %v6302 = vmul.f32 %v6301, %v6296
        %v6303 = vadd.f32 %v6302, 1e-12
        %v6304 = vrsqrt.pop %v6303
        %v6305 = vmul.f32 %v6298, %v6304
        %v6306 = vmul.f32 %v6305, %v686
        %v6307 = vadd.f32 %v6306, %v687
        %v6308 = vld [vmem:[%s669] sm:$0xff]
        %v6309 = vld [vmem:[%s669 + $0x8] sm:$0xff]
        %v6310 = vld [vmem:[%s669 + $0x10] sm:$0xff]
        %v6311 = vld [vmem:[%s669 + $0x18] sm:$0xff]
        %v6312 = vld [vmem:[%s669 + $0x20] sm:$0xff]
        %v6313 = vld [vmem:[%s669 + $0x28] sm:$0xff]
        %v6314 = vld [vmem:[%s669 + $0x30] sm:$0xff]
        %v6315 = vld [vmem:[%s669 + $0x38] sm:$0xff]
        %v6316 = vld [vmem:[%s669 + $0x40] sm:$0xff]
        %v6317 = vld [vmem:[%s669 + $0x48] sm:$0xff]
        %v6318 = vld [vmem:[%s669 + $0x50] sm:$0xff]
        %v6319 = vld [vmem:[%s669 + $0x58] sm:$0xff]
        %v6320 = vld [vmem:[%s669 + $0x60] sm:$0xff]
        %v6321 = vld [vmem:[%s669 + $0x68] sm:$0xff]
        %v6322 = vld [vmem:[%s669 + $0x70] sm:$0xff]
        %v6323 = vld [vmem:[%s669 + $0x78] sm:$0xff]
        %v6324 = vpack.c.bf16 %v6307, %v6307
        %v6326 = vlaneseq
        %v6327 = vshrl.u32 %v6326, 7
        %v6328 = vsub.s32 0, %v6327
        %v6329 = vrot.slane %v684, %v6328
        %v6330 = vlaneseq
        %v6331 = vshrl.u32 %v6330, 7
        %v6332 = vsub.s32 1, %v6331
        %v6333 = vrot.slane %v684, %v6332
        %v6352 = vunpack.c.l.b16 %v6308
        %v6353 = vunpack.c.h.b16 %v6308
        %v6354 = vunpack.c.l.b16 %v6309
        %v6355 = vunpack.c.h.b16 %v6309
        %v6356 = vunpack.c.l.b16 %v6310
        %v6357 = vunpack.c.h.b16 %v6310
        %v6358 = vunpack.c.l.b16 %v6311
        %v6359 = vunpack.c.h.b16 %v6311
        %v6360 = vunpack.c.l.b16 %v6312
        %v6361 = vunpack.c.h.b16 %v6312
        %v6362 = vunpack.c.l.b16 %v6313
        %v6363 = vunpack.c.h.b16 %v6313
        %v6364 = vunpack.c.l.b16 %v6314
        %v6365 = vunpack.c.h.b16 %v6314
        %v6366 = vunpack.c.l.b16 %v6315
        %v6367 = vunpack.c.h.b16 %v6315
        %v6368 = vunpack.c.l.b16 %v6316
        %v6369 = vunpack.c.h.b16 %v6316
        %v6370 = vunpack.c.l.b16 %v6317
        %v6371 = vunpack.c.h.b16 %v6317
        %v6372 = vunpack.c.l.b16 %v6318
        %v6373 = vunpack.c.h.b16 %v6318
        %v6374 = vunpack.c.l.b16 %v6319
        %v6375 = vunpack.c.h.b16 %v6319
        %v6376 = vunpack.c.l.b16 %v6320
        %v6377 = vunpack.c.h.b16 %v6320
        %v6378 = vunpack.c.l.b16 %v6321
        %v6379 = vunpack.c.h.b16 %v6321
        %v6380 = vunpack.c.l.b16 %v6322
        %v6381 = vunpack.c.h.b16 %v6322
        %v6382 = vunpack.c.l.b16 %v6323
        %v6383 = vunpack.c.h.b16 %v6323
        %v6384 = vpack.c.b16 %v6354, %v6352
        %v6385 = vpack.c.b16 %v6355, %v6353
        %v6386 = vpack.c.b16 %v6358, %v6356
        %v6387 = vpack.c.b16 %v6359, %v6357
        %v6388 = vpack.c.b16 %v6362, %v6360
        %v6389 = vpack.c.b16 %v6363, %v6361
        %v6390 = vpack.c.b16 %v6366, %v6364
        %v6391 = vpack.c.b16 %v6367, %v6365
        %v6392 = vpack.c.b16 %v6370, %v6368
        %v6393 = vpack.c.b16 %v6371, %v6369
        %v6394 = vpack.c.b16 %v6374, %v6372
        %v6395 = vpack.c.b16 %v6375, %v6373
        %v6396 = vpack.c.b16 %v6378, %v6376
        %v6397 = vpack.c.b16 %v6379, %v6377
        %v6398 = vpack.c.b16 %v6382, %v6380
        %v6399 = vpack.c.b16 %v6383, %v6381
        %6416 = vmatprep.subr.bf16.mxu0 %v6399
        %6417 = vmatpush1.bf16.msra.mxu0 %v6398
        %6418 = vmatprep.subr.bf16.mxu0 %v6397
        %6419 = vmatpush1.bf16.msra.mxu0 %v6396
        %6420 = vmatprep.subr.bf16.mxu0 %v6395
        %6421 = vmatpush1.bf16.msra.mxu0 %v6394
        %6422 = vmatprep.subr.bf16.mxu0 %v6393
        %6423 = vmatpush1.bf16.msra.mxu0 %v6392
        %6424 = vmatprep.subr.bf16.mxu0 %v6391
        %6425 = vmatpush1.bf16.msra.mxu0 %v6390
        %6426 = vmatprep.subr.bf16.mxu0 %v6389
        %6427 = vmatpush1.bf16.msra.mxu0 %v6388
        %6428 = vmatprep.subr.bf16.mxu0 %v6387
        %6429 = vmatpush1.bf16.msra.mxu0 %v6386
        %6430 = vmatprep.subr.bf16.mxu0 %v6385
        %6431 = vmatpush1.bf16.msra.mxu0 %v6384
        %6432 = vmatprep.subr.bf16.mxu0 0
        %6433 = vmatpush2.bf16.msra.mxu0 0
        %6434 = vmatprep.subr.bf16.mxu0 0
        %6435 = vmatpush2.bf16.msra.mxu0 0
        %6436 = vmatprep.subr.bf16.mxu0 0
        %6437 = vmatpush2.bf16.msra.mxu0 0
        %6438 = vmatprep.subr.bf16.mxu0 0
        %6439 = vmatpush2.bf16.msra.mxu0 0
        %6440 = vmatprep.subr.bf16.mxu0 0
        %6441 = vmatpush2.bf16.msra.mxu0 0
        %6442 = vmatprep.subr.bf16.mxu0 0
        %6443 = vmatpush2.bf16.msra.mxu0 0
        %6444 = vmatprep.subr.bf16.mxu0 0
        %6445 = vmatpush2.bf16.msra.mxu0 0
        %6446 = vmatprep.subr.bf16.mxu0 0
        %6447 = vmatpush2.bf16.msra.mxu0 0
        %6448 = vmatprep.mubr.bf16.mxu0 0
        %6449 = vmatmul.mubr.bf16.gmra.mxu0 %v6324
        %v6450 = vpop.f32.mrf.mxu0
        %v6451 = vadd.f32 %v6329, %v6450
        %v6452 = vpop.f32.mrf.mxu0
        %v6453 = vadd.f32 %v6333, %v6452
        %v6454 = vpop.f32.mrf.mxu0
        %v6455 = vpop.f32.mrf.mxu0
        %6456 = vdwg.mxu0
        %v6457 = vmul.f32 %v6451, %v6451
        %v6458 = vmul.f32 %v6453, %v6453
        %v6459 = vmul.f32 %v6451, %v6457
        %v6460 = vmul.f32 %v6453, %v6458
        %v6461 = vmul.f32 %v6459, 0.044715
        %v6462 = vmul.f32 %v6460, 0.044715
        %v6463 = vadd.f32 %v6451, %v6461
        %v6464 = vadd.f32 %v6453, %v6462
        %v6465 = vmul.f32 %v6463, 0.7978846
        %v6466 = vmul.f32 %v6464, 0.7978846
        %v6467 = vtanh.pop %v6465
        %v6468 = vtanh.pop %v6466
        %v6469 = vadd.f32 %v6467, 1.0
        %v6470 = vadd.f32 %v6468, 1.0
        %v6471 = vmul.f32 %v6469, 0.5
        %v6472 = vmul.f32 %v6470, 0.5
        %v6473 = vmul.f32 %v6451, %v6471
        %v6474 = vmul.f32 %v6453, %v6472
        %v6475 = vld [vmem:[%s567] sm:$0xf]
        %v6476 = vld [vmem:[%s567 + $0x4] sm:$0xf]
        %v6477 = vld [vmem:[%s567 + $0x8] sm:$0xf]
        %v6478 = vld [vmem:[%s567 + $0xc] sm:$0xf]
        %v6479 = vld [vmem:[%s567 + $0x10] sm:$0xf]
        %v6480 = vld [vmem:[%s567 + $0x14] sm:$0xf]
        %v6481 = vld [vmem:[%s567 + $0x18] sm:$0xf]
        %v6482 = vld [vmem:[%s567 + $0x1c] sm:$0xf]
        %v6483 = vld [vmem:[%s567 + $0x20] sm:$0xf]
        %v6484 = vld [vmem:[%s567 + $0x24] sm:$0xf]
        %v6485 = vld [vmem:[%s567 + $0x28] sm:$0xf]
        %v6486 = vld [vmem:[%s567 + $0x2c] sm:$0xf]
        %v6487 = vld [vmem:[%s567 + $0x30] sm:$0xf]
        %v6488 = vld [vmem:[%s567 + $0x34] sm:$0xf]
        %v6489 = vld [vmem:[%s567 + $0x38] sm:$0xf]
        %v6490 = vld [vmem:[%s567 + $0x3c] sm:$0xf]
        %v6491 = vld [vmem:[%s567 + $0x40] sm:$0xf]
        %v6492 = vld [vmem:[%s567 + $0x44] sm:$0xf]
        %v6493 = vld [vmem:[%s567 + $0x48] sm:$0xf]
        %v6494 = vld [vmem:[%s567 + $0x4c] sm:$0xf]
        %v6495 = vld [vmem:[%s567 + $0x50] sm:$0xf]
        %v6496 = vld [vmem:[%s567 + $0x54] sm:$0xf]
        %v6497 = vld [vmem:[%s567 + $0x58] sm:$0xf]
        %v6498 = vld [vmem:[%s567 + $0x5c] sm:$0xf]
        %v6499 = vld [vmem:[%s567 + $0x60] sm:$0xf]
        %v6500 = vld [vmem:[%s567 + $0x64] sm:$0xf]
        %v6501 = vld [vmem:[%s567 + $0x68] sm:$0xf]
        %v6502 = vld [vmem:[%s567 + $0x6c] sm:$0xf]
        %v6503 = vld [vmem:[%s567 + $0x70] sm:$0xf]
        %v6504 = vld [vmem:[%s567 + $0x74] sm:$0xf]
        %v6505 = vld [vmem:[%s567 + $0x78] sm:$0xf]
        %v6506 = vld [vmem:[%s567 + $0x7c] sm:$0xf]
        %v6507 = vpack.c.bf16 %v6473, %v6473
        %v6508 = vpack.c.bf16 %v6474, %v6474
        %v6541 = vunpack.c.l.b16 %v6475
        %v6542 = vunpack.c.l.b16 %v6476
        %v6543 = vunpack.c.l.b16 %v6477
        %v6544 = vunpack.c.l.b16 %v6478
        %v6545 = vunpack.c.l.b16 %v6479
        %v6546 = vunpack.c.l.b16 %v6480
        %v6547 = vunpack.c.l.b16 %v6481
        %v6548 = vunpack.c.l.b16 %v6482
        %v6549 = vunpack.c.l.b16 %v6483
        %v6550 = vunpack.c.l.b16 %v6484
        %v6551 = vunpack.c.l.b16 %v6485
        %v6552 = vunpack.c.l.b16 %v6486
        %v6553 = vunpack.c.l.b16 %v6487
        %v6554 = vunpack.c.l.b16 %v6488
        %v6555 = vunpack.c.l.b16 %v6489
        %v6556 = vunpack.c.l.b16 %v6490
        %v6557 = vunpack.c.l.b16 %v6491
        %v6558 = vunpack.c.l.b16 %v6492
        %v6559 = vunpack.c.l.b16 %v6493
        %v6560 = vunpack.c.l.b16 %v6494
        %v6561 = vunpack.c.l.b16 %v6495
        %v6562 = vunpack.c.l.b16 %v6496
        %v6563 = vunpack.c.l.b16 %v6497
        %v6564 = vunpack.c.l.b16 %v6498
        %v6565 = vunpack.c.l.b16 %v6499
        %v6566 = vunpack.c.l.b16 %v6500
        %v6567 = vunpack.c.l.b16 %v6501
        %v6568 = vunpack.c.l.b16 %v6502
        %v6569 = vunpack.c.l.b16 %v6503
        %v6570 = vunpack.c.l.b16 %v6504
        %v6571 = vunpack.c.l.b16 %v6505
        %v6572 = vunpack.c.l.b16 %v6506
        %v6573 = vpack.c.b16 %v6542, %v6541
        %v6574 = vpack.c.b16 %v6544, %v6543
        %v6575 = vpack.c.b16 %v6546, %v6545
        %v6576 = vpack.c.b16 %v6548, %v6547
        %v6577 = vpack.c.b16 %v6550, %v6549
        %v6578 = vpack.c.b16 %v6552, %v6551
        %v6579 = vpack.c.b16 %v6554, %v6553
        %v6580 = vpack.c.b16 %v6556, %v6555
        %v6581 = vpack.c.b16 %v6558, %v6557
        %v6582 = vpack.c.b16 %v6560, %v6559
        %v6583 = vpack.c.b16 %v6562, %v6561
        %v6584 = vpack.c.b16 %v6564, %v6563
        %v6585 = vpack.c.b16 %v6566, %v6565
        %v6586 = vpack.c.b16 %v6568, %v6567
        %v6587 = vpack.c.b16 %v6570, %v6569
        %v6588 = vpack.c.b16 %v6572, %v6571
        %6605 = vmatprep.subr.bf16.mxu0 0
        %6606 = vmatpush1.bf16.msra.mxu0 %v6580
        %6607 = vmatprep.subr.bf16.mxu0 0
        %6608 = vmatpush1.bf16.msra.mxu0 %v6579
        %6609 = vmatprep.subr.bf16.mxu0 0
        %6610 = vmatpush1.bf16.msra.mxu0 %v6578
        %6611 = vmatprep.subr.bf16.mxu0 0
        %6612 = vmatpush1.bf16.msra.mxu0 %v6577
        %6613 = vmatprep.subr.bf16.mxu0 0
        %6614 = vmatpush1.bf16.msra.mxu0 %v6576
        %6615 = vmatprep.subr.bf16.mxu0 0
        %6616 = vmatpush1.bf16.msra.mxu0 %v6575
        %6617 = vmatprep.subr.bf16.mxu0 0
        %6618 = vmatpush1.bf16.msra.mxu0 %v6574
        %6619 = vmatprep.subr.bf16.mxu0 0
        %6620 = vmatpush1.bf16.msra.mxu0 %v6573
        %6621 = vmatprep.subr.bf16.mxu0 0
        %6622 = vmatpush2.bf16.msra.mxu0 %v6588
        %6623 = vmatprep.subr.bf16.mxu0 0
        %6624 = vmatpush2.bf16.msra.mxu0 %v6587
        %6625 = vmatprep.subr.bf16.mxu0 0
        %6626 = vmatpush2.bf16.msra.mxu0 %v6586
        %6627 = vmatprep.subr.bf16.mxu0 0
        %6628 = vmatpush2.bf16.msra.mxu0 %v6585
        %6629 = vmatprep.subr.bf16.mxu0 0
        %6630 = vmatpush2.bf16.msra.mxu0 %v6584
        %6631 = vmatprep.subr.bf16.mxu0 0
        %6632 = vmatpush2.bf16.msra.mxu0 %v6583
        %6633 = vmatprep.subr.bf16.mxu0 0
        %6634 = vmatpush2.bf16.msra.mxu0 %v6582
        %6635 = vmatprep.subr.bf16.mxu0 0
        %6636 = vmatpush2.bf16.msra.mxu0 %v6581
        %6637 = vmatprep.mubr.bf16.mxu0 %v6508
        %6638 = vmatmul.mubr.bf16.gmra.mxu0 %v6507
        %v6639 = vpop.f32.mrf.mxu0
        %v6640 = vadd.f32 %v685, %v6639
        %v6641 = vpop.f32.mrf.mxu0
        %v6642 = vpop.f32.mrf.mxu0
        %v6643 = vpop.f32.mrf.mxu0
        %6644 = vdwg.mxu0
        %v6645 = vadd.f32 %v6307, %v6640
        %6646 = vadd.xlane.f32.xlu0 %v6645
        %v6647 = vpop.xlane.xlu0 %6646
        %v6648 = vmul.f32 %v6647, %v6296
        %v6649 = vsub.f32 %v6645, %v6648
        %v6650 = vmul.f32 %v6649, %v6649
        %6651 = vadd.xlane.f32.xlu0 %v6650
        %v6652 = vpop.xlane.xlu0 %6651
        %v6653 = vmul.f32 %v6652, %v6296
        %v6654 = vadd.f32 %v6653, 1e-12
        %v6655 = vrsqrt.pop %v6654
        %v6656 = vmul.f32 %v6649, %v6655
        %v6657 = vmul.f32 %v6656, %v688
        %v6658 = vadd.f32 %v6657, %v689
        %6659 = vst [vmem:[#allocation2] sm:$0xff] %v6658
        %p6660 = scmp.eq.s32.totalorder %s42, 1
        // Predicated region
        $region93: #{corona_classifier_forward.1} parent=67 // pred_check
          %p6661 = pneg %p6660
        $region94: #{corona_classifier_forward.1} parent=67 // pred_check_branch
          %6663 = sbr.rel (%p6661) target = $region96
        $region95: #{corona_classifier_forward.1} parent=67 // pred_region
          %v6664 = vld [vmem:[#allocation11] sm:$0xf]
          %v6665 = vld [vmem:[#allocation11 + $0x4] sm:$0xf]
          %v6666 = vld [vmem:[#allocation11 + $0x8] sm:$0xf]
          %v6667 = vld [vmem:[#allocation11 + $0xc] sm:$0xf]
          %v6668 = vld [vmem:[#allocation11 + $0x10] sm:$0xf]
          %v6669 = vld [vmem:[#allocation11 + $0x14] sm:$0xf]
          %v6670 = vld [vmem:[#allocation11 + $0x18] sm:$0xf]
          %v6671 = vld [vmem:[#allocation11 + $0x1c] sm:$0xf]
          %v6672 = vld [vmem:[#allocation11 + $0x20] sm:$0xf]
          %v6673 = vld [vmem:[#allocation11 + $0x24] sm:$0xf]
          %v6674 = vld [vmem:[#allocation11 + $0x28] sm:$0xf]
          %v6675 = vld [vmem:[#allocation11 + $0x2c] sm:$0xf]
          %v6676 = vld [vmem:[#allocation11 + $0x30] sm:$0xf]
          %v6677 = vld [vmem:[#allocation11 + $0x34] sm:$0xf]
          %v6678 = vld [vmem:[#allocation11 + $0x38] sm:$0xf]
          %v6679 = vld [vmem:[#allocation11 + $0x3c] sm:$0xf]
          %v6680 = vpack.c.bf16 %v6658, %v6658
          %v6681 = vld [vmem:[%s9] sm:$0x1]
          %v6683 = vshrl.u32 %v6680, 16
          %v6685 = vrot.slane %v6683, 3
          %v6703 = vunpack.c.l.b16 %v6664
          %v6704 = vunpack.c.l.b16 %v6665
          %v6705 = vunpack.c.l.b16 %v6666
          %v6706 = vunpack.c.l.b16 %v6667
          %v6707 = vunpack.c.l.b16 %v6668
          %v6708 = vunpack.c.l.b16 %v6669
          %v6709 = vunpack.c.l.b16 %v6670
          %v6710 = vunpack.c.l.b16 %v6671
          %v6711 = vunpack.c.l.b16 %v6672
          %v6712 = vunpack.c.l.b16 %v6673
          %v6713 = vunpack.c.l.b16 %v6674
          %v6714 = vunpack.c.l.b16 %v6675
          %v6715 = vunpack.c.l.b16 %v6676
          %v6716 = vunpack.c.l.b16 %v6677
          %v6717 = vunpack.c.l.b16 %v6678
          %v6718 = vunpack.c.l.b16 %v6679
          %v6719 = vpack.c.b16 %v6704, %v6703
          %v6720 = vpack.c.b16 %v6706, %v6705
          %v6721 = vpack.c.b16 %v6708, %v6707
          %v6722 = vpack.c.b16 %v6710, %v6709
          %v6723 = vpack.c.b16 %v6712, %v6711
          %v6724 = vpack.c.b16 %v6714, %v6713
          %v6725 = vpack.c.b16 %v6716, %v6715
          %v6726 = vpack.c.b16 %v6718, %v6717
          %6735 = vmatprep.subr.bf16.mxu0 0
          %6736 = vmatpush1.bf16.msra.mxu0 %v6726
          %6737 = vmatprep.subr.bf16.mxu0 0
          %6738 = vmatpush1.bf16.msra.mxu0 %v6725
          %6739 = vmatprep.subr.bf16.mxu0 0
          %6740 = vmatpush1.bf16.msra.mxu0 %v6724
          %6741 = vmatprep.subr.bf16.mxu0 0
          %6742 = vmatpush1.bf16.msra.mxu0 %v6723
          %6743 = vmatprep.subr.bf16.mxu0 0
          %6744 = vmatpush1.bf16.msra.mxu0 %v6722
          %6745 = vmatprep.subr.bf16.mxu0 0
          %6746 = vmatpush1.bf16.msra.mxu0 %v6721
          %6747 = vmatprep.subr.bf16.mxu0 0
          %6748 = vmatpush1.bf16.msra.mxu0 %v6720
          %6749 = vmatprep.subr.bf16.mxu0 0
          %6750 = vmatpush1.bf16.msra.mxu0 %v6719
          %6751 = vmatprep.subr.bf16.mxu0 0
          %6752 = vmatpush2.bf16.msra.mxu0 0
          %6753 = vmatprep.subr.bf16.mxu0 0
          %6754 = vmatpush2.bf16.msra.mxu0 0
          %6755 = vmatprep.subr.bf16.mxu0 0
          %6756 = vmatpush2.bf16.msra.mxu0 0
          %6757 = vmatprep.subr.bf16.mxu0 0
          %6758 = vmatpush2.bf16.msra.mxu0 0
          %6759 = vmatprep.subr.bf16.mxu0 0
          %6760 = vmatpush2.bf16.msra.mxu0 0
          %6761 = vmatprep.subr.bf16.mxu0 0
          %6762 = vmatpush2.bf16.msra.mxu0 0
          %6763 = vmatprep.subr.bf16.mxu0 0
          %6764 = vmatpush2.bf16.msra.mxu0 0
          %6765 = vmatprep.subr.bf16.mxu0 0
          %6766 = vmatpush2.bf16.msra.mxu0 0
          %6767 = vmatprep.mubr.bf16.mxu0 0
          %6768 = vmatmul.mubr.bf16.gmra.mxu0 %v6685
          %v6769 = vpop.f32.mrf.mxu0
          %v6770 = vadd.f32 %v6681, %v6769
          %v6771 = vpop.f32.mrf.mxu0
          %v6772 = vpop.f32.mrf.mxu0
          %v6773 = vpop.f32.mrf.mxu0
          %6774 = vdwg.mxu0
          %v6775 = vtanh.pop %v6770
          %v6776 = vld [vmem:[%s10] sm:$0xf]
          %v6777 = vld [vmem:[%s10 + $0x4] sm:$0xf]
          %v6778 = vld [vmem:[%s10 + $0x8] sm:$0xf]
          %v6779 = vld [vmem:[%s10 + $0xc] sm:$0xf]
          %v6780 = vld [vmem:[%s10 + $0x10] sm:$0xf]
          %v6781 = vld [vmem:[%s10 + $0x14] sm:$0xf]
          %v6782 = vld [vmem:[%s10 + $0x18] sm:$0xf]
          %v6783 = vld [vmem:[%s10 + $0x1c] sm:$0xf]
          %v6784 = vld [vmem:[%s10 + $0x20] sm:$0xf]
          %v6785 = vld [vmem:[%s10 + $0x24] sm:$0xf]
          %v6786 = vld [vmem:[%s10 + $0x28] sm:$0xf]
          %v6787 = vld [vmem:[%s10 + $0x2c] sm:$0xf]
          %v6788 = vld [vmem:[%s10 + $0x30] sm:$0xf]
          %v6789 = vld [vmem:[%s10 + $0x34] sm:$0xf]
          %v6790 = vld [vmem:[%s10 + $0x38] sm:$0xf]
          %v6791 = vld [vmem:[%s10 + $0x3c] sm:$0xf]
          %v6792 = vpack.c.bf16 %v6775, %v6775
          %v6793 = vld [vmem:[%s11] sm:$0x1]
          %v6810 = vunpack.c.l.b16 %v6776
          %v6811 = vunpack.c.l.b16 %v6777
          %v6812 = vunpack.c.l.b16 %v6778
          %v6813 = vunpack.c.l.b16 %v6779
          %v6814 = vunpack.c.l.b16 %v6780
          %v6815 = vunpack.c.l.b16 %v6781
          %v6816 = vunpack.c.l.b16 %v6782
          %v6817 = vunpack.c.l.b16 %v6783
          %v6818 = vunpack.c.l.b16 %v6784
          %v6819 = vunpack.c.l.b16 %v6785
          %v6820 = vunpack.c.l.b16 %v6786
          %v6821 = vunpack.c.l.b16 %v6787
          %v6822 = vunpack.c.l.b16 %v6788
          %v6823 = vunpack.c.l.b16 %v6789
          %v6824 = vunpack.c.l.b16 %v6790
          %v6825 = vunpack.c.l.b16 %v6791
          %v6826 = vpack.c.b16 %v6811, %v6810
          %v6827 = vpack.c.b16 %v6813, %v6812
          %v6828 = vpack.c.b16 %v6815, %v6814
          %v6829 = vpack.c.b16 %v6817, %v6816
          %v6830 = vpack.c.b16 %v6819, %v6818
          %v6831 = vpack.c.b16 %v6821, %v6820
          %v6832 = vpack.c.b16 %v6823, %v6822
          %v6833 = vpack.c.b16 %v6825, %v6824
          %6842 = vmatprep.subr.bf16.mxu0 0
          %6843 = vmatpush1.bf16.msra.mxu0 %v6833
          %6844 = vmatprep.subr.bf16.mxu0 0
          %6845 = vmatpush1.bf16.msra.mxu0 %v6832
          %6846 = vmatprep.subr.bf16.mxu0 0
          %6847 = vmatpush1.bf16.msra.mxu0 %v6831
          %6848 = vmatprep.subr.bf16.mxu0 0
          %6849 = vmatpush1.bf16.msra.mxu0 %v6830
          %6850 = vmatprep.subr.bf16.mxu0 0
          %6851 = vmatpush1.bf16.msra.mxu0 %v6829
          %6852 = vmatprep.subr.bf16.mxu0 0
          %6853 = vmatpush1.bf16.msra.mxu0 %v6828
          %6854 = vmatprep.subr.bf16.mxu0 0
          %6855 = vmatpush1.bf16.msra.mxu0 %v6827
          %6856 = vmatprep.subr.bf16.mxu0 0
          %6857 = vmatpush1.bf16.msra.mxu0 %v6826
          %6858 = vmatprep.subr.bf16.mxu0 0
          %6859 = vmatpush2.bf16.msra.mxu0 0
          %6860 = vmatprep.subr.bf16.mxu0 0
          %6861 = vmatpush2.bf16.msra.mxu0 0
          %6862 = vmatprep.subr.bf16.mxu0 0
          %6863 = vmatpush2.bf16.msra.mxu0 0
          %6864 = vmatprep.subr.bf16.mxu0 0
          %6865 = vmatpush2.bf16.msra.mxu0 0
          %6866 = vmatprep.subr.bf16.mxu0 0
          %6867 = vmatpush2.bf16.msra.mxu0 0
          %6868 = vmatprep.subr.bf16.mxu0 0
          %6869 = vmatpush2.bf16.msra.mxu0 0
          %6870 = vmatprep.subr.bf16.mxu0 0
          %6871 = vmatpush2.bf16.msra.mxu0 0
          %6872 = vmatprep.subr.bf16.mxu0 0
          %6873 = vmatpush2.bf16.msra.mxu0 0
          %6874 = vmatprep.mubr.bf16.mxu0 0
          %6875 = vmatmul.mubr.bf16.gmra.mxu0 %v6792
          %v6876 = vpop.f32.mrf.mxu0
          %v6877 = vadd.f32 %v6793, %v6876
          %v6878 = vpop.f32.mrf.mxu0
          %v6879 = vpop.f32.mrf.mxu0
          %v6880 = vpop.f32.mrf.mxu0
          %6881 = vdwg.mxu0
          %vm6882 = vcmask 8192
          %6883 = vst.msk [vmem:[%s649] sm:$0x1] %vm6882, %v6877
          %v6884 = vsel %vm6882, %v6877, -inf
          %6885 = vmax.xlane.f32.xlu0 %v6884
          %v6886 = vpop.xlane.xlu0 %6885
          %v6887 = vsub.f32 %v6877, %v6886
          %v6888 = vmul.f32 %v6887, 1.442695
          %v6889 = vpow.pop %v6888
          %v6890 = vsel %vm6882, %v6889, 0.0
          %6891 = vadd.xlane.f32.xlu0 %v6890
          %v6892 = vpop.xlane.xlu0 %6891
          %v6893 = vlog2.pop %v6892
          %v6894 = vmul.f32 %v6893, 0.6931472
          %v6895 = vadd.f32 %v6894, %v6886
          %v6896 = vsub.f32 %v6877, %v6895
          %v6897 = vld [vmem:[%s664] sm:$0x1]
          %v6898 = vmul.f32 %v6896, %v6897
          %v6899 = vsel %vm6882, %v6898, 0.0
          %6900 = vadd.xlane.f32.xlu0 %v6899
          %v6901 = vpop.xlane.xlu0 %6900
          %v6902 = vsub.f32 0.0, %v6901
          %vm6903 = vcmask 0
          %6904 = vst.msk [vmem:[%s672] sm:$0x1] %vm6903, %v6902
        $region96: #{corona_classifier_forward.1} parent=67 // pred_fallthru
          _
        %s6905 = sand.u32 %s349, 1
        %s6906 = scalar_lea.sflag [#allocation5], %s6905
        %s6907 = sand.u32 %s349, 1
        %s6908 = scalar_lea.vmem [#allocation12], %s6907
        %p6909 = scmp.lt.s32.totalorder %s41, 1
        %s6910 = scalar_select %p6909, %s41, 1
        %s6911 = scalar_lea.vmem %s13, %s6910
        // Predicated region
        $region97: #{corona_classifier_forward.1} parent=67 // pred_check
          %p6912 = pneg %p359
        $region98: #{corona_classifier_forward.1} parent=67 // pred_check_branch
          %6914 = sbr.rel (%p6912) target = $region100
        $region99: #{corona_classifier_forward.1} parent=67 // pred_region
          %s6916 = ssub.s32 16, 16
          %6917 = vsyncadd %s6906, %s6916
          %s6918 = smul.addr %s41, 16
          %s6919 = scalar_lea.hbm %s12, %s6918
          %s6921 = sshll.u32 %s6908, 4
          %s6922 = int_to_ptr.vmem [resolvable:$true] %s6921
          %6924 = dma.vmem_to_hbm [thread:$0]  %s6922, 16, %s6919, %s6906
        $region100: #{corona_classifier_forward.1} parent=67 // pred_fallthru
          _
        // Predicated region
        $region101: #{corona_classifier_forward.1} parent=67 // pred_check
          %p6925 = pneg %p385
        $region102: #{corona_classifier_forward.1} parent=67 // pred_check_branch
          %6927 = sbr.rel (%p6925) target = $region104
        $region103: #{corona_classifier_forward.1} parent=67 // pred_region
          _
        $region104: #{corona_classifier_forward.1} parent=67 // pred_fallthru
          _
      $region68: #{corona_classifier_forward.1} parent=5 // pred_fallthru
        _
      %p6928 = scmp.le.s32.totalorder 2, %s32
      // Predicated region
      $region105: #{corona_classifier_forward.1} parent=5 // pred_check
        %p6929 = pneg %p6928
      $region106: #{corona_classifier_forward.1} parent=5 // pred_check_branch
        %6931 = sbr.rel (%p6929) target = $region108
      $region107: #{corona_classifier_forward.1} parent=5 // pred_region
        %s6932 = ssub.s32 %s32, 2
        // Predicated region
        $region109: #{corona_classifier_forward.1} parent=107 // pred_check
          %p6933 = pneg %p365
        $region110: #{corona_classifier_forward.1} parent=107 // pred_check_branch
          %6935 = sbr.rel (%p6933) target = $region112
        $region111: #{corona_classifier_forward.1} parent=107 // pred_region
          %s6936 = sand.u32 %s350, 1
          %s6937 = scalar_lea.sflag [#allocation5], %s6936
          %s6938 = sand.u32 %s350, 1
          %s6939 = scalar_lea.vmem [#allocation12], %s6938
          %6940 = dma.done %s6937, 16
        $region112: #{corona_classifier_forward.1} parent=107 // pred_fallthru
          _
        // Predicated region
        $region113: #{corona_classifier_forward.1} parent=107 // pred_check
          %p6941 = pneg %p391
        $region114: #{corona_classifier_forward.1} parent=107 // pred_check_branch
          %6943 = sbr.rel (%p6941) target = $region116
        $region115: #{corona_classifier_forward.1} parent=107 // pred_region
          %p6944 = scmp.lt.s32.totalorder %s43, 1
          %s6945 = scalar_select %p6944, %s43, 1
          %s6946 = scalar_lea.vmem %s13, %s6945
        $region116: #{corona_classifier_forward.1} parent=107 // pred_fallthru
          _
      $region108: #{corona_classifier_forward.1} parent=5 // pred_fallthru
        _
    $region6: #{corona_classifier_forward.1} parent=1 // loop_footer
      %s36 = sadd.s32 1, %s32
    $region7: #{corona_classifier_forward.1} parent=1 // loop_footer_branch
      %31 = sbr.rel target = $region3
    $region8: #{corona_classifier_forward.1} parent=1 // loop_exit
      _
    %6947 = vsyncpa [#allocation4], 1
    %s6948 = scalar_lea.sflag [#allocation4], 1
    %6949 = vsyncpa %s6948, 1
    %6950 = vsyncpa [#allocation7], 1
    %s6951 = scalar_lea.sflag [#allocation7], 1
    %6952 = vsyncpa %s6951, 1
    %6953 = vsyncpa [#allocation10], 1
    %s6954 = scalar_lea.sflag [#allocation10], 1
    %6955 = vsyncpa %s6954, 1
    %6956 = vsyncpa [#allocation5], 1
    %s6957 = scalar_lea.sflag [#allocation5], 1
    %6958 = vsyncpa %s6957, 1

</llo_original>
